<compile_context>
chip_gen: v7x
topology: tpu7x:2x2x1
jax: 0.10.0
libtpu: 0.0.40
codegen_flags: <defaults>
</compile_context>

<pallas_src>
import functools

import jax
import jax.numpy as jnp
from jax.experimental import pallas as pl
from jax.experimental.pallas import tpu as pltpu

MATMUL_DTYPE = jnp.bfloat16   # MXU operand dtype (accumulation is always f32)


# --------------------------- in-kernel helpers ------------------------------

def _mm(a, b):
    """bf16 x bf16 -> f32 MXU matmul."""
    return jnp.dot(a.astype(MATMUL_DTYPE), b.astype(MATMUL_DTYPE),
                   preferred_element_type=jnp.float32)


def _group_norm(x, gamma, beta, sel, selT, eps, silu):
    """GroupNorm over (L, C) for one batch element.

    sel:(C,G) one-hot group membership, selT:(G,C).  Group statistics are
    computed with tiny f32 matmuls (lane-dense, MXU) rather than reshapes.
    """
    x = x.astype(jnp.float32)
    L = x.shape[0]
    C, G = sel.shape
    n = (C // G) * L
    s1 = jnp.sum(x, axis=0, keepdims=True)            # (1, C)
    s2 = jnp.sum(x * x, axis=0, keepdims=True)        # (1, C)
    gmean = jnp.dot(s1, sel, preferred_element_type=jnp.float32) / n      # (1, G)
    gmsq = jnp.dot(s2, sel, preferred_element_type=jnp.float32) / n       # (1, G)
    ginv = jax.lax.rsqrt(gmsq - gmean * gmean + eps)                      # (1, G)
    mean_c = jnp.dot(gmean, selT, preferred_element_type=jnp.float32)     # (1, C)
    inv_c = jnp.dot(ginv, selT, preferred_element_type=jnp.float32)       # (1, C)
    y = (x - mean_c) * inv_c * gamma + beta
    if silu:
        y = y * jax.nn.sigmoid(y)
    return y


def _layer_norm(x, gamma, beta, eps=1e-5):
    mu = jnp.mean(x, axis=-1, keepdims=True)
    var = jnp.mean((x - mu) ** 2, axis=-1, keepdims=True)
    return (x - mu) * jax.lax.rsqrt(var + eps) * gamma + beta


def _conv3(h, w_ref, b, seq_len):
    """K=3 / stride=1 / pad=1 Conv1d as 3 shifted matmuls.

    h:(L, Cin) f32, w_ref:(3, Cin, Cout) bf16 ref, b:(1, Cout) f32."""
    cin = h.shape[1]
    zero = jnp.zeros((1, cin), jnp.float32)
    hp = jnp.concatenate([zero, h, zero], axis=0).astype(MATMUL_DTYPE)   # (L+2, Cin)
    acc = jnp.dot(hp[0:seq_len], w_ref[0], preferred_element_type=jnp.float32)
    acc = acc + jnp.dot(hp[1:seq_len + 1], w_ref[1], preferred_element_type=jnp.float32)
    acc = acc + jnp.dot(hp[2:seq_len + 2], w_ref[2], preferred_element_type=jnp.float32)
    return acc + b


def _mha(q, k, v, heads, head_dim, scale):
    """Multi-head attention on one batch element. q:(Lq,H*Dh), k/v:(Lk,H*Dh)."""
    outs = []
    for hh in range(heads):
        lo, hi = hh * head_dim, (hh + 1) * head_dim
        qh = (q[:, lo:hi] * scale).astype(MATMUL_DTYPE)
        kh = k[:, lo:hi].astype(MATMUL_DTYPE)
        vh = v[:, lo:hi].astype(MATMUL_DTYPE)
        s = jax.lax.dot_general(qh, kh, (((1,), (1,)), ((), ())),
                                preferred_element_type=jnp.float32)       # (Lq, Lk)
        s = s - jnp.max(s, axis=-1, keepdims=True)                        # f32 stats
        p = jnp.exp(s)
        p = p * pl.reciprocal(jnp.sum(p, axis=-1, keepdims=True), approx=True)
        outs.append(jnp.dot(p.astype(MATMUL_DTYPE), vh,
                            preferred_element_type=jnp.float32))          # (Lq, Dh)
    return jnp.concatenate(outs, axis=-1)                                 # (Lq, H*Dh)


# ------------------------------ fused kernels --------------------------------

def _resnet_kernel(*refs, eps, has_shortcut, seq_len):
    if has_shortcut:
        (x_ref, temb_ref, gn1_g, gn1_b, sel1, selT1, w1, b1, tw, tb,
         gn2_g, gn2_b, sel2, selT2, w2, b2, sw, sb, o_ref) = refs
    else:
        (x_ref, temb_ref, gn1_g, gn1_b, sel1, selT1, w1, b1, tw, tb,
         gn2_g, gn2_b, sel2, selT2, w2, b2, o_ref) = refs
        sw = sb = None

    x = x_ref[0].astype(jnp.float32)                                    # (L, Cin)
    h = _group_norm(x, gn1_g[...], gn1_b[...], sel1[...], selT1[...], eps, True)
    h = _conv3(h, w1, b1[...], seq_len)                                 # (L, Cout)

    t = temb_ref[0].astype(jnp.float32)                                 # (1, Tch)
    t = t * jax.nn.sigmoid(t)                                           # SiLU(temb)
    h = h + (_mm(t, tw[...]) + tb[...])                                 # fused temb add

    h = _group_norm(h, gn2_g[...], gn2_b[...], sel2[...], selT2[...], eps, True)
    # dropout(p=0.0) -> no-op
    h = _conv3(h, w2, b2[...], seq_len)

    if has_shortcut:
        x = _mm(x, sw[...]) + sb[...]                                   # 1x1 conv shortcut
    o_ref[0] = (x + h).astype(o_ref.dtype)                              # output_scale_factor=1


def _transformer_kernel(x_ref, ctx_ref,
                        gn_g, gn_b, sel, selT, pin_w, pin_b,
                        ln1_g, ln1_b, wqkv1, wo1, bo1,
                        ln2_g, ln2_b, wq2, wkv2, wo2, bo2,
                        ln3_g, ln3_b, ffwa, ffba, ffwg, ffbg, ffw2, ffb2,
                        pout_w, pout_b,
                        o_ref, *, heads, head_dim, gn_eps):
    x = x_ref[0].astype(jnp.float32)                                    # (L, C)  residual
    ctx = ctx_ref[0].astype(jnp.float32)                                # (S, Dc)
    inner = heads * head_dim
    scale = float(head_dim) ** -0.5

    h = _group_norm(x, gn_g[...], gn_b[...], sel[...], selT[...], gn_eps, False)
    h = _mm(h, pin_w[...]) + pin_b[...]                                 # proj_in (1x1 conv)

    # --- self-attention (fused QKV: lane-dense N = 3*inner) ---
    n = _layer_norm(h, ln1_g[...], ln1_b[...])
    qkv = _mm(n, wqkv1[...])                                            # (L, 3*inner)
    q, k, v = qkv[:, :inner], qkv[:, inner:2 * inner], qkv[:, 2 * inner:]
    a = _mha(q, k, v, heads, head_dim, scale)
    h = h + _mm(a, wo1[...]) + bo1[...]                                 # fused residual

    # --- cross-attention (fused KV projection from context) ---
    n = _layer_norm(h, ln2_g[...], ln2_b[...])
    q = _mm(n, wq2[...])
    kv = _mm(ctx, wkv2[...])                                            # (S, 2*inner)
    k, v = kv[:, :inner], kv[:, inner:]
    a = _mha(q, k, v, heads, head_dim, scale)
    h = h + _mm(a, wo2[...]) + bo2[...]                                 # fused residual

    # --- feed-forward: GEGLU (exact-erf GELU, matches PyTorch) ---
    n = _layer_norm(h, ln3_g[...], ln3_b[...])
    nb = n.astype(MATMUL_DTYPE)
    ga = jnp.dot(nb, ffwa[...], preferred_element_type=jnp.float32) + ffba[...]
    gg = jnp.dot(nb, ffwg[...], preferred_element_type=jnp.float32) + ffbg[...]
    gelu = 0.5 * gg * (1.0 + jax.lax.erf(gg * jnp.float32(0.7071067811865476)))
    h = h + _mm(ga * gelu, ffw2[...]) + ffb2[...]                       # fused residual

    # --- proj_out + outer residual ---
    y = _mm(h, pout_w[...]) + pout_b[...]
    o_ref[0] = (y + x).astype(o_ref.dtype)


def _downsample_kernel(xe_ref, xo_ref, w_ref, b_ref, o_ref):
    """K=3, stride=2, pad=1 Conv1d on even/odd row splits."""
    xe = xe_ref[0].astype(jnp.float32)                                  # x[2l]
    xo = xo_ref[0].astype(jnp.float32)                                  # x[2l+1]
    c = xe.shape[1]
    prev = jnp.concatenate([jnp.zeros((1, c), jnp.float32), xo[:-1]], axis=0)  # x[2l-1]
    y = (jnp.dot(prev.astype(MATMUL_DTYPE), w_ref[0], preferred_element_type=jnp.float32)
         + jnp.dot(xe.astype(MATMUL_DTYPE), w_ref[1], preferred_element_type=jnp.float32)
         + jnp.dot(xo.astype(MATMUL_DTYPE), w_ref[2], preferred_element_type=jnp.float32)
         + b_ref[...])
    o_ref[0] = y.astype(o_ref.dtype)


# ------------------------------- wrappers ------------------------------------

_PAR = pltpu.CompilerParams(dimension_semantics=("parallel",))


def _const_spec(shape):
    n = len(shape)
    return pl.BlockSpec(shape, lambda b: (0,) * n)


def resnet_block(p, x_blc, temb, *, eps):
    """x_blc:(B, L, Cin) f32, temb:(B, Tch) f32 -> (B, L, Cout) f32."""
    B, L, Cin = x_blc.shape
    Cout = p['conv1_w'].shape[2]
    has_shortcut = 'short_w' in p
    temb3 = temb.reshape(B, 1, temb.shape[1])

    inputs = [x_blc, temb3,
              p['gn1_g'], p['gn1_b'], p['sel1'], p['selT1'], p['conv1_w'], p['conv1_b'],
              p['temb_w'], p['temb_b'],
              p['gn2_g'], p['gn2_b'], p['sel2'], p['selT2'], p['conv2_w'], p['conv2_b']]
    if has_shortcut:
        inputs += [p['short_w'], p['short_b']]

    in_specs = [pl.BlockSpec((1, L, Cin), lambda b: (b, 0, 0)),
                pl.BlockSpec((1, 1, temb3.shape[2]), lambda b: (b, 0, 0))]
    in_specs += [_const_spec(a.shape) for a in inputs[2:]]

    return pl.pallas_call(
        functools.partial(_resnet_kernel, eps=eps,
                          has_shortcut=has_shortcut, seq_len=L),
        grid=(B,),
        in_specs=in_specs,
        out_specs=pl.BlockSpec((1, L, Cout), lambda b: (b, 0, 0)),
        out_shape=jax.ShapeDtypeStruct((B, L, Cout), jnp.float32),
        compiler_params=_PAR,
    )(*inputs)


def transformer_1d(p, x_blc, context, *, heads, head_dim):
    """x_blc:(B, L, C), context:(B, S, Dc) -> (B, L, C)."""
    B, L, C = x_blc.shape
    S, Dc = context.shape[1], context.shape[2]
    inputs = [x_blc, context,
              p['gn_g'], p['gn_b'], p['sel'], p['selT'], p['pin_w'], p['pin_b'],
              p['ln1_g'], p['ln1_b'], p['wqkv1'], p['wo1'], p['bo1'],
              p['ln2_g'], p['ln2_b'], p['wq2'], p['wkv2'], p['wo2'], p['bo2'],
              p['ln3_g'], p['ln3_b'], p['ffwa'], p['ffba'], p['ffwg'], p['ffbg'],
              p['ffw2'], p['ffb2'],
              p['pout_w'], p['pout_b']]
    in_specs = [pl.BlockSpec((1, L, C), lambda b: (b, 0, 0)),
                pl.BlockSpec((1, S, Dc), lambda b: (b, 0, 0))]
    in_specs += [_const_spec(a.shape) for a in inputs[2:]]
    return pl.pallas_call(
        functools.partial(_transformer_kernel, heads=heads, head_dim=head_dim,
                          gn_eps=1e-6),
        grid=(B,),
        in_specs=in_specs,
        out_specs=pl.BlockSpec((1, L, C), lambda b: (b, 0, 0)),
        out_shape=jax.ShapeDtypeStruct((B, L, C), jnp.float32),
        compiler_params=_PAR,
    )(*inputs)


def downsample(p, x_blc):
    """Conv1d(k=3, stride=2, pad=1). x_blc:(B, L, C) -> (B, L//2, C)."""
    B, L, C = x_blc.shape
    Lout = L // 2
    xe = x_blc[:, 0::2, :]      # thin layout glue: even/odd row split
    xo = x_blc[:, 1::2, :]
    inputs = [xe, xo, p['w'], p['b']]
    in_specs = [pl.BlockSpec((1, Lout, C), lambda b: (b, 0, 0)),
                pl.BlockSpec((1, Lout, C), lambda b: (b, 0, 0)),
                _const_spec(p['w'].shape), _const_spec(p['b'].shape)]
    return pl.pallas_call(
        _downsample_kernel,
        grid=(B,),
        in_specs=in_specs,
        out_specs=pl.BlockSpec((1, Lout, C), lambda b: (b, 0, 0)),
        out_shape=jax.ShapeDtypeStruct((B, Lout, C), jnp.float32),
        compiler_params=_PAR,
    )(*inputs)


def cross_attn_down_block_1d(params, hidden_states, temb, encoder_hidden_states, cfg):
    """hidden_states:(B, C, L) NCL like PyTorch; returns ((B,Cout,L'), output_states)."""
    # TODO(synk): downsampler kernel assumes downsample_padding == 1 (as configured).
    output_states = ()
    h_blc = jnp.transpose(hidden_states, (0, 2, 1))      # NCL -> NLC (layout glue, once)
    for p_res, p_attn in zip(params['resnets'], params['attentions']):
        h_blc = resnet_block(p_res, h_blc, temb, eps=cfg['resnet_eps'])
        h_blc = transformer_1d(p_attn, h_blc, encoder_hidden_states,
                               heads=cfg['heads'], head_dim=cfg['head_dim'])
        output_states += (jnp.transpose(h_blc, (0, 2, 1)),)
    for p_down in params['downsamplers']:
        h_blc = downsample(p_down, h_blc)
    hidden_states = jnp.transpose(h_blc, (0, 2, 1))
    if params['downsamplers']:
        output_states += (hidden_states,)
    return hidden_states, output_states


# -------------------------- params (init + prep) -----------------------------

def init_params(key, cfg):
    cin, cout = cfg['in_channels'], cfg['out_channels']
    tch, cad = cfg['temb_channels'], cfg['cross_attention_dim']
    keys = iter(jax.random.split(key, 64))

    def w(*shape):
        return 0.02 * jax.random.normal(next(keys), shape, jnp.float32)

    def zeros(*shape):
        return jnp.zeros(shape, jnp.float32)

    def ones(*shape):
        return jnp.ones(shape, jnp.float32)

    resnet = dict(
        gn1_g=ones(cin), gn1_b=zeros(cin),
        conv1_w=w(cout, cin, 3), conv1_b=zeros(cout),
        temb_w=w(tch, cout), temb_b=zeros(cout),
        gn2_g=ones(cout), gn2_b=zeros(cout),
        conv2_w=w(cout, cout, 3), conv2_b=zeros(cout),
    )
    if cin != cout:
        resnet['short_w'] = w(cout, cin, 1)
        resnet['short_b'] = zeros(cout)

    inner = cout  # heads * head_dim
    attn1 = dict(wq=w(inner, inner), wk=w(inner, inner), wv=w(inner, inner),
                 wo=w(inner, inner), bo=zeros(inner))
    attn2 = dict(wq=w(inner, inner), wk=w(cad, inner), wv=w(cad, inner),
                 wo=w(inner, inner), bo=zeros(inner))
    ff = dict(w1=w(inner, inner * 8), b1=zeros(inner * 8),
              w2=w(inner * 4, inner), b2=zeros(inner))
    block = dict(ln1_g=ones(inner), ln1_b=zeros(inner),
                 ln2_g=ones(inner), ln2_b=zeros(inner),
                 ln3_g=ones(inner), ln3_b=zeros(inner),
                 attn1=attn1, attn2=attn2, ff=ff)
    transformer = dict(gn_g=ones(cout), gn_b=zeros(cout),
                       proj_in_w=w(inner, cout, 1), proj_in_b=zeros(inner),
                       proj_out_w=w(cout, inner, 1), proj_out_b=zeros(cout),
                       block=block)
    down = dict(w=w(cout, cout, 3), b=zeros(cout))
    return dict(resnets=[resnet], attentions=[transformer], downsamplers=[down])


def _group_selectors(channels, groups):
    g = jnp.repeat(jnp.arange(groups), channels // groups)                  # (C,)
    sel = (g[:, None] == jnp.arange(groups)[None, :]).astype(jnp.float32)   # (C, G)
    return sel, sel.T


def _conv_w(w):   # PyTorch (Cout, Cin, K) -> (K, Cin, Cout) bf16, done ONCE
    return jnp.transpose(w, (2, 1, 0)).astype(MATMUL_DTYPE)


def _row(b):      # (N,) -> (1, N) f32
    return b.reshape(1, -1).astype(jnp.float32)


def prepare_params(params, cfg):
    """One-time layout prep: conv transposes, fused QKV/KV, GEGLU split, bf16 cast."""
    cin, cout, groups = cfg['in_channels'], cfg['out_channels'], cfg['resnet_groups']
    out = {'resnets': [], 'attentions': [], 'downsamplers': []}

    for i, p in enumerate(params['resnets']):
        rin = cin if i == 0 else cout
        sel1, selT1 = _group_selectors(rin, groups)
        sel2, selT2 = _group_selectors(cout, groups)
        q = dict(gn1_g=_row(p['gn1_g']), gn1_b=_row(p['gn1_b']), sel1=sel1, selT1=selT1,
                 conv1_w=_conv_w(p['conv1_w']), conv1_b=_row(p['conv1_b']),
                 temb_w=p['temb_w'].astype(MATMUL_DTYPE), temb_b=_row(p['temb_b']),
                 gn2_g=_row(p['gn2_g']), gn2_b=_row(p['gn2_b']), sel2=sel2, selT2=selT2,
                 conv2_w=_conv_w(p['conv2_w']), conv2_b=_row(p['conv2_b']))
        if 'short_w' in p:
            q['short_w'] = p['short_w'][:, :, 0].T.astype(MATMUL_DTYPE)   # (Cin, Cout)
            q['short_b'] = _row(p['short_b'])
        out['resnets'].append(q)

    for p in params['attentions']:
        sel, selT = _group_selectors(cout, groups)
        blk = p['block']
        a1, a2, ff = blk['attn1'], blk['attn2'], blk['ff']
        dff = ff['w2'].shape[0]                      # 4 * inner
        q = dict(
            gn_g=_row(p['gn_g']), gn_b=_row(p['gn_b']), sel=sel, selT=selT,
            pin_w=p['proj_in_w'][:, :, 0].T.astype(MATMUL_DTYPE),
            pin_b=_row(p['proj_in_b']),
            ln1_g=_row(blk['ln1_g']), ln1_b=_row(blk['ln1_b']),
            wqkv1=jnp.concatenate([a1['wq'], a1['wk'], a1['wv']],
                                  axis=1).astype(MATMUL_DTYPE),
            wo1=a1['wo'].astype(MATMUL_DTYPE), bo1=_row(a1['bo']),
            ln2_g=_row(blk['ln2_g']), ln2_b=_row(blk['ln2_b']),
            wq2=a2['wq'].astype(MATMUL_DTYPE),
            wkv2=jnp.concatenate([a2['wk'], a2['wv']], axis=1).astype(MATMUL_DTYPE),
            wo2=a2['wo'].astype(MATMUL_DTYPE), bo2=_row(a2['bo']),
            ln3_g=_row(blk['ln3_g']), ln3_b=_row(blk['ln3_b']),
            ffwa=ff['w1'][:, :dff].astype(MATMUL_DTYPE), ffba=_row(ff['b1'][:dff]),
            ffwg=ff['w1'][:, dff:].astype(MATMUL_DTYPE), ffbg=_row(ff['b1'][dff:]),
            ffw2=ff['w2'].astype(MATMUL_DTYPE), ffb2=_row(ff['b2']),
            pout_w=p['proj_out_w'][:, :, 0].T.astype(MATMUL_DTYPE),
            pout_b=_row(p['proj_out_b']),
        )
        out['attentions'].append(q)

    for p in params['downsamplers']:
        out['downsamplers'].append(dict(w=_conv_w(p['w']), b=_row(p['b'])))
    return out


# ---------------------------------- main -------------------------------------

if __name__ == "__main__":
    cfg = dict(in_channels=32, out_channels=64, temb_channels=32,
               cross_attention_dim=48, heads=2, head_dim=32,  # attn_num_head_channels=2
               resnet_groups=8, resnet_eps=1e-6, downsample_padding=1)

    key = jax.random.PRNGKey(0)
    kp, kx, kt, ke = jax.random.split(key, 4)
    params = prepare_params(init_params(kp, cfg), cfg)

    B, L, S = 2, 16, 8
    hidden_states = jax.random.normal(kx, (B, cfg['in_channels'], L), jnp.float32)
    temb = jax.random.normal(kt, (B, cfg['temb_channels']), jnp.float32)
    encoder_hidden_states = jax.random.normal(
        ke, (B, S, cfg['cross_attention_dim']), jnp.float32)

    fwd = jax.jit(functools.partial(cross_attn_down_block_1d, cfg=cfg))
    out, output_states = fwd(params, hidden_states, temb, encoder_hidden_states)

    jax.block_until_ready(out)
    for s in output_states:
        jax.block_until_ready(s)

    assert out.shape == (B, cfg['out_channels'], L // 2)
    assert output_states[0].shape == (B, cfg['out_channels'], L)
    assert output_states[-1].shape == (B, cfg['out_channels'], L // 2)
    print("KERNEL_OK")
</pallas_src>

<mosaic_0001>
module attributes {stable_mosaic.version = 11 : i64} {
  func.func @_resnet_kernel(%arg0: i32, %arg1: memref<1x16x32xf32, #tpu.memory_space<vmem>>, %arg2: memref<1x1x32xf32, #tpu.memory_space<vmem>>, %arg3: memref<1x32xf32, #tpu.memory_space<vmem>>, %arg4: memref<1x32xf32, #tpu.memory_space<vmem>>, %arg5: memref<32x8xf32, #tpu.memory_space<vmem>>, %arg6: memref<8x32xf32, #tpu.memory_space<vmem>>, %arg7: memref<3x32x64xbf16, #tpu.memory_space<vmem>>, %arg8: memref<1x64xf32, #tpu.memory_space<vmem>>, %arg9: memref<32x64xbf16, #tpu.memory_space<vmem>>, %arg10: memref<1x64xf32, #tpu.memory_space<vmem>>, %arg11: memref<1x64xf32, #tpu.memory_space<vmem>>, %arg12: memref<1x64xf32, #tpu.memory_space<vmem>>, %arg13: memref<64x8xf32, #tpu.memory_space<vmem>>, %arg14: memref<8x64xf32, #tpu.memory_space<vmem>>, %arg15: memref<3x64x64xbf16, #tpu.memory_space<vmem>>, %arg16: memref<1x64xf32, #tpu.memory_space<vmem>>, %arg17: memref<32x64xbf16, #tpu.memory_space<vmem>>, %arg18: memref<1x64xf32, #tpu.memory_space<vmem>>, %arg19: memref<1x16x64xf32, #tpu.memory_space<vmem>>) attributes {dimension_semantics = [#tpu.dimension_semantics<parallel>], iteration_bounds = array<i64: 2>, scalar_prefetch = 0 : i64, scratch_operands = 0 : i64, tpu.core_type = #tpu.core_type<tc>, window_params = [{transform_indices = @transform_0, window_bounds = array<i64: 1, 16, 32>}, {transform_indices = @transform_1, window_bounds = array<i64: 1, 1, 32>}, {pipeline_mode = #tpu.pipeline_mode<synchronous>, transform_indices = @transform_2, window_bounds = array<i64: 1, 32>}, {pipeline_mode = #tpu.pipeline_mode<synchronous>, transform_indices = @transform_3, window_bounds = array<i64: 1, 32>}, {pipeline_mode = #tpu.pipeline_mode<synchronous>, transform_indices = @transform_4, window_bounds = array<i64: 32, 8>}, {pipeline_mode = #tpu.pipeline_mode<synchronous>, transform_indices = @transform_5, window_bounds = array<i64: 8, 32>}, {pipeline_mode = #tpu.pipeline_mode<synchronous>, transform_indices = @transform_6, window_bounds = array<i64: 3, 32, 64>}, {pipeline_mode = #tpu.pipeline_mode<synchronous>, transform_indices = @transform_7, window_bounds = array<i64: 1, 64>}, {pipeline_mode = #tpu.pipeline_mode<synchronous>, transform_indices = @transform_8, window_bounds = array<i64: 32, 64>}, {pipeline_mode = #tpu.pipeline_mode<synchronous>, transform_indices = @transform_9, window_bounds = array<i64: 1, 64>}, {pipeline_mode = #tpu.pipeline_mode<synchronous>, transform_indices = @transform_10, window_bounds = array<i64: 1, 64>}, {pipeline_mode = #tpu.pipeline_mode<synchronous>, transform_indices = @transform_11, window_bounds = array<i64: 1, 64>}, {pipeline_mode = #tpu.pipeline_mode<synchronous>, transform_indices = @transform_12, window_bounds = array<i64: 64, 8>}, {pipeline_mode = #tpu.pipeline_mode<synchronous>, transform_indices = @transform_13, window_bounds = array<i64: 8, 64>}, {pipeline_mode = #tpu.pipeline_mode<synchronous>, transform_indices = @transform_14, window_bounds = array<i64: 3, 64, 64>}, {pipeline_mode = #tpu.pipeline_mode<synchronous>, transform_indices = @transform_15, window_bounds = array<i64: 1, 64>}, {pipeline_mode = #tpu.pipeline_mode<synchronous>, transform_indices = @transform_16, window_bounds = array<i64: 32, 64>}, {pipeline_mode = #tpu.pipeline_mode<synchronous>, transform_indices = @transform_17, window_bounds = array<i64: 1, 64>}, {transform_indices = @transform_18, window_bounds = array<i64: 1, 16, 64>}]} {
    %c0 = arith.constant 0 : index
    %c0_0 = arith.constant 0 : index
    %c0_1 = arith.constant 0 : index
    %0 = vector.load %arg1[%c0, %c0_0, %c0_1] : memref<1x16x32xf32, #tpu.memory_space<vmem>>, vector<1x16x32xf32>
    %1 = vector.shape_cast %0 : vector<1x16x32xf32> to vector<16x32xf32>
    %c0_2 = arith.constant 0 : index
    %c0_3 = arith.constant 0 : index
    %2 = vector.load %arg3[%c0_2, %c0_3] : memref<1x32xf32, #tpu.memory_space<vmem>>, vector<1x32xf32>
    %c0_4 = arith.constant 0 : index
    %c0_5 = arith.constant 0 : index
    %3 = vector.load %arg4[%c0_4, %c0_5] : memref<1x32xf32, #tpu.memory_space<vmem>>, vector<1x32xf32>
    %c0_6 = arith.constant 0 : index
    %c0_7 = arith.constant 0 : index
    %4 = vector.load %arg5[%c0_6, %c0_7] : memref<32x8xf32, #tpu.memory_space<vmem>>, vector<32x8xf32>
    %c0_8 = arith.constant 0 : index
    %c0_9 = arith.constant 0 : index
    %5 = vector.load %arg6[%c0_8, %c0_9] : memref<8x32xf32, #tpu.memory_space<vmem>>, vector<8x32xf32>
    %cst = arith.constant dense<0.000000e+00> : vector<32xf32>
    %6 = vector.multi_reduction <add>, %1, %cst [0] : vector<16x32xf32> to vector<32xf32>
    %7 = vector.shape_cast %6 : vector<32xf32> to vector<1x32xf32>
    %8 = arith.mulf %1, %1 : vector<16x32xf32>
    %cst_10 = arith.constant dense<0.000000e+00> : vector<32xf32>
    %9 = vector.multi_reduction <add>, %8, %cst_10 [0] : vector<16x32xf32> to vector<32xf32>
    %10 = vector.shape_cast %9 : vector<32xf32> to vector<1x32xf32>
    %cst_11 = arith.constant dense<0.000000e+00> : vector<1x8xf32>
    %11 = tpu.matmul %7, %4, %cst_11 {dimension_numbers = #tpu.dot_dimension_numbers<[1], [0], [0], [1], [0, 0, 1, 1], [], []>} : vector<1x32xf32>, vector<32x8xf32>, vector<1x8xf32> -> vector<1x8xf32>
    %cst_12 = arith.constant 6.400000e+01 : f32
    %12 = vector.broadcast %cst_12 : f32 to vector<1x8xf32>
    %13 = arith.divf %11, %12 : vector<1x8xf32>
    %cst_13 = arith.constant dense<0.000000e+00> : vector<1x8xf32>
    %14 = tpu.matmul %10, %4, %cst_13 {dimension_numbers = #tpu.dot_dimension_numbers<[1], [0], [0], [1], [0, 0, 1, 1], [], []>} : vector<1x32xf32>, vector<32x8xf32>, vector<1x8xf32> -> vector<1x8xf32>
    %cst_14 = arith.constant 6.400000e+01 : f32
    %15 = vector.broadcast %cst_14 : f32 to vector<1x8xf32>
    %16 = arith.divf %14, %15 : vector<1x8xf32>
    %17 = arith.mulf %13, %13 : vector<1x8xf32>
    %18 = arith.subf %16, %17 : vector<1x8xf32>
    %cst_15 = arith.constant 9.99999997E-7 : f32
    %19 = vector.broadcast %cst_15 : f32 to vector<1x8xf32>
    %20 = arith.addf %18, %19 : vector<1x8xf32>
    %21 = math.rsqrt %20 : vector<1x8xf32>
    %cst_16 = arith.constant dense<0.000000e+00> : vector<1x32xf32>
    %22 = tpu.matmul %13, %5, %cst_16 {dimension_numbers = #tpu.dot_dimension_numbers<[1], [0], [0], [1], [0, 0, 1, 1], [], []>} : vector<1x8xf32>, vector<8x32xf32>, vector<1x32xf32> -> vector<1x32xf32>
    %cst_17 = arith.constant dense<0.000000e+00> : vector<1x32xf32>
    %23 = tpu.matmul %21, %5, %cst_17 {dimension_numbers = #tpu.dot_dimension_numbers<[1], [0], [0], [1], [0, 0, 1, 1], [], []>} : vector<1x8xf32>, vector<8x32xf32>, vector<1x32xf32> -> vector<1x32xf32>
    %24 = vector.broadcast %22 : vector<1x32xf32> to vector<16x32xf32>
    %25 = arith.subf %1, %24 : vector<16x32xf32>
    %26 = vector.broadcast %23 : vector<1x32xf32> to vector<16x32xf32>
    %27 = arith.mulf %25, %26 : vector<16x32xf32>
    %28 = vector.broadcast %2 : vector<1x32xf32> to vector<16x32xf32>
    %29 = arith.mulf %27, %28 : vector<16x32xf32>
    %30 = vector.broadcast %3 : vector<1x32xf32> to vector<16x32xf32>
    %31 = arith.addf %29, %30 : vector<16x32xf32>
    %32 = arith.negf %31 : vector<16x32xf32>
    %33 = math.exp %32 : vector<16x32xf32>
    %cst_18 = arith.constant 1.000000e+00 : f32
    %34 = vector.broadcast %cst_18 : f32 to vector<16x32xf32>
    %35 = arith.addf %34, %33 : vector<16x32xf32>
    %36 = arith.divf %34, %35 : vector<16x32xf32>
    %37 = arith.mulf %31, %36 : vector<16x32xf32>
    %c0_19 = arith.constant 0 : index
    %c0_20 = arith.constant 0 : index
    %38 = vector.load %arg8[%c0_19, %c0_20] : memref<1x64xf32, #tpu.memory_space<vmem>>, vector<1x64xf32>
    %cst_21 = arith.constant 0.000000e+00 : f32
    %39 = vector.broadcast %cst_21 : f32 to vector<1x32xf32>
    %40 = tpu.concatenate %39, %37, %39 in 0 : vector<1x32xf32>, vector<16x32xf32>, vector<1x32xf32> -> vector<18x32xf32>
    %41 = arith.truncf %40 : vector<18x32xf32> to vector<18x32xbf16>
    %42 = vector.extract_strided_slice %41 {offsets = [0, 0], sizes = [16, 32], strides = [1, 1]} : vector<18x32xbf16> to vector<16x32xbf16>
    %c0_22 = arith.constant 0 : index
    %c0_23 = arith.constant 0 : index
    %c0_24 = arith.constant 0 : index
    %43 = vector.load %arg7[%c0_22, %c0_23, %c0_24] : memref<3x32x64xbf16, #tpu.memory_space<vmem>>, vector<1x32x64xbf16>
    %44 = vector.shape_cast %43 : vector<1x32x64xbf16> to vector<32x64xbf16>
    %cst_25 = arith.constant dense<0.000000e+00> : vector<16x64xf32>
    %45 = tpu.matmul %42, %44, %cst_25 {dimension_numbers = #tpu.dot_dimension_numbers<[1], [0], [0], [1], [0, 0, 1, 1], [], []>} : vector<16x32xbf16>, vector<32x64xbf16>, vector<16x64xf32> -> vector<16x64xf32>
    %46 = vector.extract_strided_slice %41 {offsets = [1, 0], sizes = [16, 32], strides = [1, 1]} : vector<18x32xbf16> to vector<16x32xbf16>
    %c1 = arith.constant 1 : index
    %c0_26 = arith.constant 0 : index
    %c0_27 = arith.constant 0 : index
    %47 = vector.load %arg7[%c1, %c0_26, %c0_27] : memref<3x32x64xbf16, #tpu.memory_space<vmem>>, vector<1x32x64xbf16>
    %48 = vector.shape_cast %47 : vector<1x32x64xbf16> to vector<32x64xbf16>
    %cst_28 = arith.constant dense<0.000000e+00> : vector<16x64xf32>
    %49 = tpu.matmul %46, %48, %cst_28 {dimension_numbers = #tpu.dot_dimension_numbers<[1], [0], [0], [1], [0, 0, 1, 1], [], []>} : vector<16x32xbf16>, vector<32x64xbf16>, vector<16x64xf32> -> vector<16x64xf32>
    %50 = arith.addf %45, %49 : vector<16x64xf32>
    %51 = vector.extract_strided_slice %41 {offsets = [2, 0], sizes = [16, 32], strides = [1, 1]} : vector<18x32xbf16> to vector<16x32xbf16>
    %c2 = arith.constant 2 : index
    %c0_29 = arith.constant 0 : index
    %c0_30 = arith.constant 0 : index
    %52 = vector.load %arg7[%c2, %c0_29, %c0_30] : memref<3x32x64xbf16, #tpu.memory_space<vmem>>, vector<1x32x64xbf16>
    %53 = vector.shape_cast %52 : vector<1x32x64xbf16> to vector<32x64xbf16>
    %cst_31 = arith.constant dense<0.000000e+00> : vector<16x64xf32>
    %54 = tpu.matmul %51, %53, %cst_31 {dimension_numbers = #tpu.dot_dimension_numbers<[1], [0], [0], [1], [0, 0, 1, 1], [], []>} : vector<16x32xbf16>, vector<32x64xbf16>, vector<16x64xf32> -> vector<16x64xf32>
    %55 = arith.addf %50, %54 : vector<16x64xf32>
    %56 = vector.broadcast %38 : vector<1x64xf32> to vector<16x64xf32>
    %57 = arith.addf %55, %56 : vector<16x64xf32>
    %c0_32 = arith.constant 0 : index
    %c0_33 = arith.constant 0 : index
    %c0_34 = arith.constant 0 : index
    %58 = vector.load %arg2[%c0_32, %c0_33, %c0_34] : memref<1x1x32xf32, #tpu.memory_space<vmem>>, vector<1x1x32xf32>
    %59 = vector.shape_cast %58 : vector<1x1x32xf32> to vector<1x32xf32>
    %60 = arith.negf %59 : vector<1x32xf32>
    %61 = math.exp %60 : vector<1x32xf32>
    %cst_35 = arith.constant 1.000000e+00 : f32
    %62 = vector.broadcast %cst_35 : f32 to vector<1x32xf32>
    %63 = arith.addf %62, %61 : vector<1x32xf32>
    %64 = arith.divf %62, %63 : vector<1x32xf32>
    %65 = arith.mulf %59, %64 : vector<1x32xf32>
    %c0_36 = arith.constant 0 : index
    %c0_37 = arith.constant 0 : index
    %66 = vector.load %arg9[%c0_36, %c0_37] : memref<32x64xbf16, #tpu.memory_space<vmem>>, vector<32x64xbf16>
    %67 = arith.truncf %65 : vector<1x32xf32> to vector<1x32xbf16>
    %cst_38 = arith.constant dense<0.000000e+00> : vector<1x64xf32>
    %68 = tpu.matmul %67, %66, %cst_38 {dimension_numbers = #tpu.dot_dimension_numbers<[1], [0], [0], [1], [0, 0, 1, 1], [], []>} : vector<1x32xbf16>, vector<32x64xbf16>, vector<1x64xf32> -> vector<1x64xf32>
    %c0_39 = arith.constant 0 : index
    %c0_40 = arith.constant 0 : index
    %69 = vector.load %arg10[%c0_39, %c0_40] : memref<1x64xf32, #tpu.memory_space<vmem>>, vector<1x64xf32>
    %70 = arith.addf %68, %69 : vector<1x64xf32>
    %71 = vector.broadcast %70 : vector<1x64xf32> to vector<16x64xf32>
    %72 = arith.addf %57, %71 : vector<16x64xf32>
    %c0_41 = arith.constant 0 : index
    %c0_42 = arith.constant 0 : index
    %73 = vector.load %arg11[%c0_41, %c0_42] : memref<1x64xf32, #tpu.memory_space<vmem>>, vector<1x64xf32>
    %c0_43 = arith.constant 0 : index
    %c0_44 = arith.constant 0 : index
    %74 = vector.load %arg12[%c0_43, %c0_44] : memref<1x64xf32, #tpu.memory_space<vmem>>, vector<1x64xf32>
    %c0_45 = arith.constant 0 : index
    %c0_46 = arith.constant 0 : index
    %75 = vector.load %arg13[%c0_45, %c0_46] : memref<64x8xf32, #tpu.memory_space<vmem>>, vector<64x8xf32>
    %c0_47 = arith.constant 0 : index
    %c0_48 = arith.constant 0 : index
    %76 = vector.load %arg14[%c0_47, %c0_48] : memref<8x64xf32, #tpu.memory_space<vmem>>, vector<8x64xf32>
    %cst_49 = arith.constant dense<0.000000e+00> : vector<64xf32>
    %77 = vector.multi_reduction <add>, %72, %cst_49 [0] : vector<16x64xf32> to vector<64xf32>
    %78 = vector.shape_cast %77 : vector<64xf32> to vector<1x64xf32>
    %79 = arith.mulf %72, %72 : vector<16x64xf32>
    %cst_50 = arith.constant dense<0.000000e+00> : vector<64xf32>
    %80 = vector.multi_reduction <add>, %79, %cst_50 [0] : vector<16x64xf32> to vector<64xf32>
    %81 = vector.shape_cast %80 : vector<64xf32> to vector<1x64xf32>
    %cst_51 = arith.constant dense<0.000000e+00> : vector<1x8xf32>
    %82 = tpu.matmul %78, %75, %cst_51 {dimension_numbers = #tpu.dot_dimension_numbers<[1], [0], [0], [1], [0, 0, 1, 1], [], []>} : vector<1x64xf32>, vector<64x8xf32>, vector<1x8xf32> -> vector<1x8xf32>
    %cst_52 = arith.constant 1.280000e+02 : f32
    %83 = vector.broadcast %cst_52 : f32 to vector<1x8xf32>
    %84 = arith.divf %82, %83 : vector<1x8xf32>
    %cst_53 = arith.constant dense<0.000000e+00> : vector<1x8xf32>
    %85 = tpu.matmul %81, %75, %cst_53 {dimension_numbers = #tpu.dot_dimension_numbers<[1], [0], [0], [1], [0, 0, 1, 1], [], []>} : vector<1x64xf32>, vector<64x8xf32>, vector<1x8xf32> -> vector<1x8xf32>
    %cst_54 = arith.constant 1.280000e+02 : f32
    %86 = vector.broadcast %cst_54 : f32 to vector<1x8xf32>
    %87 = arith.divf %85, %86 : vector<1x8xf32>
    %88 = arith.mulf %84, %84 : vector<1x8xf32>
    %89 = arith.subf %87, %88 : vector<1x8xf32>
    %cst_55 = arith.constant 9.99999997E-7 : f32
    %90 = vector.broadcast %cst_55 : f32 to vector<1x8xf32>
    %91 = arith.addf %89, %90 : vector<1x8xf32>
    %92 = math.rsqrt %91 : vector<1x8xf32>
    %cst_56 = arith.constant dense<0.000000e+00> : vector<1x64xf32>
    %93 = tpu.matmul %84, %76, %cst_56 {dimension_numbers = #tpu.dot_dimension_numbers<[1], [0], [0], [1], [0, 0, 1, 1], [], []>} : vector<1x8xf32>, vector<8x64xf32>, vector<1x64xf32> -> vector<1x64xf32>
    %cst_57 = arith.constant dense<0.000000e+00> : vector<1x64xf32>
    %94 = tpu.matmul %92, %76, %cst_57 {dimension_numbers = #tpu.dot_dimension_numbers<[1], [0], [0], [1], [0, 0, 1, 1], [], []>} : vector<1x8xf32>, vector<8x64xf32>, vector<1x64xf32> -> vector<1x64xf32>
    %95 = vector.broadcast %93 : vector<1x64xf32> to vector<16x64xf32>
    %96 = arith.subf %72, %95 : vector<16x64xf32>
    %97 = vector.broadcast %94 : vector<1x64xf32> to vector<16x64xf32>
    %98 = arith.mulf %96, %97 : vector<16x64xf32>
    %99 = vector.broadcast %73 : vector<1x64xf32> to vector<16x64xf32>
    %100 = arith.mulf %98, %99 : vector<16x64xf32>
    %101 = vector.broadcast %74 : vector<1x64xf32> to vector<16x64xf32>
    %102 = arith.addf %100, %101 : vector<16x64xf32>
    %103 = arith.negf %102 : vector<16x64xf32>
    %104 = math.exp %103 : vector<16x64xf32>
    %cst_58 = arith.constant 1.000000e+00 : f32
    %105 = vector.broadcast %cst_58 : f32 to vector<16x64xf32>
    %106 = arith.addf %105, %104 : vector<16x64xf32>
    %107 = arith.divf %105, %106 : vector<16x64xf32>
    %108 = arith.mulf %102, %107 : vector<16x64xf32>
    %c0_59 = arith.constant 0 : index
    %c0_60 = arith.constant 0 : index
    %109 = vector.load %arg16[%c0_59, %c0_60] : memref<1x64xf32, #tpu.memory_space<vmem>>, vector<1x64xf32>
    %cst_61 = arith.constant 0.000000e+00 : f32
    %110 = vector.broadcast %cst_61 : f32 to vector<1x64xf32>
    %111 = tpu.concatenate %110, %108, %110 in 0 : vector<1x64xf32>, vector<16x64xf32>, vector<1x64xf32> -> vector<18x64xf32>
    %112 = arith.truncf %111 : vector<18x64xf32> to vector<18x64xbf16>
    %113 = vector.extract_strided_slice %112 {offsets = [0, 0], sizes = [16, 64], strides = [1, 1]} : vector<18x64xbf16> to vector<16x64xbf16>
    %c0_62 = arith.constant 0 : index
    %c0_63 = arith.constant 0 : index
    %c0_64 = arith.constant 0 : index
    %114 = vector.load %arg15[%c0_62, %c0_63, %c0_64] : memref<3x64x64xbf16, #tpu.memory_space<vmem>>, vector<1x64x64xbf16>
    %115 = vector.shape_cast %114 : vector<1x64x64xbf16> to vector<64x64xbf16>
    %cst_65 = arith.constant dense<0.000000e+00> : vector<16x64xf32>
    %116 = tpu.matmul %113, %115, %cst_65 {dimension_numbers = #tpu.dot_dimension_numbers<[1], [0], [0], [1], [0, 0, 1, 1], [], []>} : vector<16x64xbf16>, vector<64x64xbf16>, vector<16x64xf32> -> vector<16x64xf32>
    %117 = vector.extract_strided_slice %112 {offsets = [1, 0], sizes = [16, 64], strides = [1, 1]} : vector<18x64xbf16> to vector<16x64xbf16>
    %c1_66 = arith.constant 1 : index
    %c0_67 = arith.constant 0 : index
    %c0_68 = arith.constant 0 : index
    %118 = vector.load %arg15[%c1_66, %c0_67, %c0_68] : memref<3x64x64xbf16, #tpu.memory_space<vmem>>, vector<1x64x64xbf16>
    %119 = vector.shape_cast %118 : vector<1x64x64xbf16> to vector<64x64xbf16>
    %cst_69 = arith.constant dense<0.000000e+00> : vector<16x64xf32>
    %120 = tpu.matmul %117, %119, %cst_69 {dimension_numbers = #tpu.dot_dimension_numbers<[1], [0], [0], [1], [0, 0, 1, 1], [], []>} : vector<16x64xbf16>, vector<64x64xbf16>, vector<16x64xf32> -> vector<16x64xf32>
    %121 = arith.addf %116, %120 : vector<16x64xf32>
    %122 = vector.extract_strided_slice %112 {offsets = [2, 0], sizes = [16, 64], strides = [1, 1]} : vector<18x64xbf16> to vector<16x64xbf16>
    %c2_70 = arith.constant 2 : index
    %c0_71 = arith.constant 0 : index
    %c0_72 = arith.constant 0 : index
    %123 = vector.load %arg15[%c2_70, %c0_71, %c0_72] : memref<3x64x64xbf16, #tpu.memory_space<vmem>>, vector<1x64x64xbf16>
    %124 = vector.shape_cast %123 : vector<1x64x64xbf16> to vector<64x64xbf16>
    %cst_73 = arith.constant dense<0.000000e+00> : vector<16x64xf32>
    %125 = tpu.matmul %122, %124, %cst_73 {dimension_numbers = #tpu.dot_dimension_numbers<[1], [0], [0], [1], [0, 0, 1, 1], [], []>} : vector<16x64xbf16>, vector<64x64xbf16>, vector<16x64xf32> -> vector<16x64xf32>
    %126 = arith.addf %121, %125 : vector<16x64xf32>
    %127 = vector.broadcast %109 : vector<1x64xf32> to vector<16x64xf32>
    %128 = arith.addf %126, %127 : vector<16x64xf32>
    %c0_74 = arith.constant 0 : index
    %c0_75 = arith.constant 0 : index
    %129 = vector.load %arg17[%c0_74, %c0_75] : memref<32x64xbf16, #tpu.memory_space<vmem>>, vector<32x64xbf16>
    %130 = arith.truncf %1 : vector<16x32xf32> to vector<16x32xbf16>
    %cst_76 = arith.constant dense<0.000000e+00> : vector<16x64xf32>
    %131 = tpu.matmul %130, %129, %cst_76 {dimension_numbers = #tpu.dot_dimension_numbers<[1], [0], [0], [1], [0, 0, 1, 1], [], []>} : vector<16x32xbf16>, vector<32x64xbf16>, vector<16x64xf32> -> vector<16x64xf32>
    %c0_77 = arith.constant 0 : index
    %c0_78 = arith.constant 0 : index
    %132 = vector.load %arg18[%c0_77, %c0_78] : memref<1x64xf32, #tpu.memory_space<vmem>>, vector<1x64xf32>
    %133 = vector.broadcast %132 : vector<1x64xf32> to vector<16x64xf32>
    %134 = arith.addf %131, %133 : vector<16x64xf32>
    %135 = arith.addf %134, %128 : vector<16x64xf32>
    %c0_79 = arith.constant 0 : index
    %c0_80 = arith.constant 0 : index
    %c0_81 = arith.constant 0 : index
    %136 = vector.load %arg19[%c0_79, %c0_80, %c0_81] : memref<1x16x64xf32, #tpu.memory_space<vmem>>, vector<1x16x64xf32>
    %137 = vector.shape_cast %136 : vector<1x16x64xf32> to vector<16x64xf32>
    %138 = vector.shape_cast %135 : vector<16x64xf32> to vector<1x16x64xf32>
    tpu.vector_store %arg19[%c0_79, %c0_80, %c0_81], %138 {strides = array<i32>} : memref<1x16x64xf32, #tpu.memory_space<vmem>>, vector<1x16x64xf32>,
    return
  }
  func.func @transform_0(%arg0: i32) -> (i32, i32, i32) {
    %c0_i32 = arith.constant 0 : i32
    %c0_i32_0 = arith.constant 0 : i32
    %c0_i32_1 = arith.constant 0 : i32
    return %arg0, %c0_i32, %c0_i32_0 : i32, i32, i32
  }
  func.func @transform_1(%arg0: i32) -> (i32, i32, i32) {
    %c0_i32 = arith.constant 0 : i32
    %c0_i32_0 = arith.constant 0 : i32
    %c0_i32_1 = arith.constant 0 : i32
    return %arg0, %c0_i32, %c0_i32_0 : i32, i32, i32
  }
  func.func @transform_2(%arg0: i32) -> (i32, i32) {
    %c0_i32 = arith.constant 0 : i32
    %c0_i32_0 = arith.constant 0 : i32
    %c0_i32_1 = arith.constant 0 : i32
    return %c0_i32, %c0_i32_0 : i32, i32
  }
  func.func @transform_3(%arg0: i32) -> (i32, i32) {
    %c0_i32 = arith.constant 0 : i32
    %c0_i32_0 = arith.constant 0 : i32
    %c0_i32_1 = arith.constant 0 : i32
    return %c0_i32, %c0_i32_0 : i32, i32
  }
  func.func @transform_4(%arg0: i32) -> (i32, i32) {
    %c0_i32 = arith.constant 0 : i32
    %c0_i32_0 = arith.constant 0 : i32
    %c0_i32_1 = arith.constant 0 : i32
    return %c0_i32, %c0_i32_0 : i32, i32
  }
  func.func @transform_5(%arg0: i32) -> (i32, i32) {
    %c0_i32 = arith.constant 0 : i32
    %c0_i32_0 = arith.constant 0 : i32
    %c0_i32_1 = arith.constant 0 : i32
    return %c0_i32, %c0_i32_0 : i32, i32
  }
  func.func @transform_6(%arg0: i32) -> (i32, i32, i32) {
    %c0_i32 = arith.constant 0 : i32
    %c0_i32_0 = arith.constant 0 : i32
    %c0_i32_1 = arith.constant 0 : i32
    %c0_i32_2 = arith.constant 0 : i32
    return %c0_i32, %c0_i32_0, %c0_i32_1 : i32, i32, i32
  }
  func.func @transform_7(%arg0: i32) -> (i32, i32) {
    %c0_i32 = arith.constant 0 : i32
    %c0_i32_0 = arith.constant 0 : i32
    %c0_i32_1 = arith.constant 0 : i32
    return %c0_i32, %c0_i32_0 : i32, i32
  }
  func.func @transform_8(%arg0: i32) -> (i32, i32) {
    %c0_i32 = arith.constant 0 : i32
    %c0_i32_0 = arith.constant 0 : i32
    %c0_i32_1 = arith.constant 0 : i32
    return %c0_i32, %c0_i32_0 : i32, i32
  }
  func.func @transform_9(%arg0: i32) -> (i32, i32) {
    %c0_i32 = arith.constant 0 : i32
    %c0_i32_0 = arith.constant 0 : i32
    %c0_i32_1 = arith.constant 0 : i32
    return %c0_i32, %c0_i32_0 : i32, i32
  }
  func.func @transform_10(%arg0: i32) -> (i32, i32) {
    %c0_i32 = arith.constant 0 : i32
    %c0_i32_0 = arith.constant 0 : i32
    %c0_i32_1 = arith.constant 0 : i32
    return %c0_i32, %c0_i32_0 : i32, i32
  }
  func.func @transform_11(%arg0: i32) -> (i32, i32) {
    %c0_i32 = arith.constant 0 : i32
    %c0_i32_0 = arith.constant 0 : i32
    %c0_i32_1 = arith.constant 0 : i32
    return %c0_i32, %c0_i32_0 : i32, i32
  }
  func.func @transform_12(%arg0: i32) -> (i32, i32) {
    %c0_i32 = arith.constant 0 : i32
    %c0_i32_0 = arith.constant 0 : i32
    %c0_i32_1 = arith.constant 0 : i32
    return %c0_i32, %c0_i32_0 : i32, i32
  }
  func.func @transform_13(%arg0: i32) -> (i32, i32) {
    %c0_i32 = arith.constant 0 : i32
    %c0_i32_0 = arith.constant 0 : i32
    %c0_i32_1 = arith.constant 0 : i32
    return %c0_i32, %c0_i32_0 : i32, i32
  }
  func.func @transform_14(%arg0: i32) -> (i32, i32, i32) {
    %c0_i32 = arith.constant 0 : i32
    %c0_i32_0 = arith.constant 0 : i32
    %c0_i32_1 = arith.constant 0 : i32
    %c0_i32_2 = arith.constant 0 : i32
    return %c0_i32, %c0_i32_0, %c0_i32_1 : i32, i32, i32
  }
  func.func @transform_15(%arg0: i32) -> (i32, i32) {
    %c0_i32 = arith.constant 0 : i32
    %c0_i32_0 = arith.constant 0 : i32
    %c0_i32_1 = arith.constant 0 : i32
    return %c0_i32, %c0_i32_0 : i32, i32
  }
  func.func @transform_16(%arg0: i32) -> (i32, i32) {
    %c0_i32 = arith.constant 0 : i32
    %c0_i32_0 = arith.constant 0 : i32
    %c0_i32_1 = arith.constant 0 : i32
    return %c0_i32, %c0_i32_0 : i32, i32
  }
  func.func @transform_17(%arg0: i32) -> (i32, i32) {
    %c0_i32 = arith.constant 0 : i32
    %c0_i32_0 = arith.constant 0 : i32
    %c0_i32_1 = arith.constant 0 : i32
    return %c0_i32, %c0_i32_0 : i32, i32
  }
  func.func @transform_18(%arg0: i32) -> (i32, i32, i32) {
    %c0_i32 = arith.constant 0 : i32
    %c0_i32_0 = arith.constant 0 : i32
    %c0_i32_1 = arith.constant 0 : i32
    return %arg0, %c0_i32, %c0_i32_0 : i32, i32, i32
  }
}

module attributes {stable_mosaic.version = 11 : i64} {
  func.func @_downsample_kernel(%arg0: i32, %arg1: memref<1x8x64xf32, #tpu.memory_space<vmem>>, %arg2: memref<1x8x64xf32, #tpu.memory_space<vmem>>, %arg3: memref<3x64x64xbf16, #tpu.memory_space<vmem>>, %arg4: memref<1x64xf32, #tpu.memory_space<vmem>>, %arg5: memref<1x8x64xf32, #tpu.memory_space<vmem>>) attributes {dimension_semantics = [#tpu.dimension_semantics<parallel>], iteration_bounds = array<i64: 2>, scalar_prefetch = 0 : i64, scratch_operands = 0 : i64, tpu.core_type = #tpu.core_type<tc>, window_params = [{transform_indices = @transform_0, window_bounds = array<i64: 1, 8, 64>}, {transform_indices = @transform_1, window_bounds = array<i64: 1, 8, 64>}, {pipeline_mode = #tpu.pipeline_mode<synchronous>, transform_indices = @transform_2, window_bounds = array<i64: 3, 64, 64>}, {pipeline_mode = #tpu.pipeline_mode<synchronous>, transform_indices = @transform_3, window_bounds = array<i64: 1, 64>}, {transform_indices = @transform_4, window_bounds = array<i64: 1, 8, 64>}]} {
    %c0 = arith.constant 0 : index
    %c0_0 = arith.constant 0 : index
    %c0_1 = arith.constant 0 : index
    %0 = vector.load %arg1[%c0, %c0_0, %c0_1] : memref<1x8x64xf32, #tpu.memory_space<vmem>>, vector<1x8x64xf32>
    %1 = vector.shape_cast %0 : vector<1x8x64xf32> to vector<8x64xf32>
    %c0_2 = arith.constant 0 : index
    %c0_3 = arith.constant 0 : index
    %c0_4 = arith.constant 0 : index
    %2 = vector.load %arg2[%c0_2, %c0_3, %c0_4] : memref<1x8x64xf32, #tpu.memory_space<vmem>>, vector<1x8x64xf32>
    %3 = vector.shape_cast %2 : vector<1x8x64xf32> to vector<8x64xf32>
    %cst = arith.constant 0.000000e+00 : f32
    %4 = vector.broadcast %cst : f32 to vector<1x64xf32>
    %5 = vector.extract_strided_slice %3 {offsets = [0, 0], sizes = [7, 64], strides = [1, 1]} : vector<8x64xf32> to vector<7x64xf32>
    %6 = tpu.concatenate %4, %5 in 0 : vector<1x64xf32>, vector<7x64xf32> -> vector<8x64xf32>
    %7 = arith.truncf %6 : vector<8x64xf32> to vector<8x64xbf16>
    %c0_5 = arith.constant 0 : index
    %c0_6 = arith.constant 0 : index
    %c0_7 = arith.constant 0 : index
    %8 = vector.load %arg3[%c0_5, %c0_6, %c0_7] : memref<3x64x64xbf16, #tpu.memory_space<vmem>>, vector<1x64x64xbf16>
    %9 = vector.shape_cast %8 : vector<1x64x64xbf16> to vector<64x64xbf16>
    %cst_8 = arith.constant dense<0.000000e+00> : vector<8x64xf32>
    %10 = tpu.matmul %7, %9, %cst_8 {dimension_numbers = #tpu.dot_dimension_numbers<[1], [0], [0], [1], [0, 0, 1, 1], [], []>} : vector<8x64xbf16>, vector<64x64xbf16>, vector<8x64xf32> -> vector<8x64xf32>
    %11 = arith.truncf %1 : vector<8x64xf32> to vector<8x64xbf16>
    %c1 = arith.constant 1 : index
    %c0_9 = arith.constant 0 : index
    %c0_10 = arith.constant 0 : index
    %12 = vector.load %arg3[%c1, %c0_9, %c0_10] : memref<3x64x64xbf16, #tpu.memory_space<vmem>>, vector<1x64x64xbf16>
    %13 = vector.shape_cast %12 : vector<1x64x64xbf16> to vector<64x64xbf16>
    %cst_11 = arith.constant dense<0.000000e+00> : vector<8x64xf32>
    %14 = tpu.matmul %11, %13, %cst_11 {dimension_numbers = #tpu.dot_dimension_numbers<[1], [0], [0], [1], [0, 0, 1, 1], [], []>} : vector<8x64xbf16>, vector<64x64xbf16>, vector<8x64xf32> -> vector<8x64xf32>
    %15 = arith.addf %10, %14 : vector<8x64xf32>
    %16 = arith.truncf %3 : vector<8x64xf32> to vector<8x64xbf16>
    %c2 = arith.constant 2 : index
    %c0_12 = arith.constant 0 : index
    %c0_13 = arith.constant 0 : index
    %17 = vector.load %arg3[%c2, %c0_12, %c0_13] : memref<3x64x64xbf16, #tpu.memory_space<vmem>>, vector<1x64x64xbf16>
    %18 = vector.shape_cast %17 : vector<1x64x64xbf16> to vector<64x64xbf16>
    %cst_14 = arith.constant dense<0.000000e+00> : vector<8x64xf32>
    %19 = tpu.matmul %16, %18, %cst_14 {dimension_numbers = #tpu.dot_dimension_numbers<[1], [0], [0], [1], [0, 0, 1, 1], [], []>} : vector<8x64xbf16>, vector<64x64xbf16>, vector<8x64xf32> -> vector<8x64xf32>
    %20 = arith.addf %15, %19 : vector<8x64xf32>
    %c0_15 = arith.constant 0 : index
    %c0_16 = arith.constant 0 : index
    %21 = vector.load %arg4[%c0_15, %c0_16] : memref<1x64xf32, #tpu.memory_space<vmem>>, vector<1x64xf32>
    %22 = vector.broadcast %21 : vector<1x64xf32> to vector<8x64xf32>
    %23 = arith.addf %20, %22 : vector<8x64xf32>
    %c0_17 = arith.constant 0 : index
    %c0_18 = arith.constant 0 : index
    %c0_19 = arith.constant 0 : index
    %24 = vector.load %arg5[%c0_17, %c0_18, %c0_19] : memref<1x8x64xf32, #tpu.memory_space<vmem>>, vector<1x8x64xf32>
    %25 = vector.shape_cast %24 : vector<1x8x64xf32> to vector<8x64xf32>
    %26 = vector.shape_cast %23 : vector<8x64xf32> to vector<1x8x64xf32>
    tpu.vector_store %arg5[%c0_17, %c0_18, %c0_19], %26 {strides = array<i32>} : memref<1x8x64xf32, #tpu.memory_space<vmem>>, vector<1x8x64xf32>,
    return
  }
  func.func @transform_0(%arg0: i32) -> (i32, i32, i32) {
    %c0_i32 = arith.constant 0 : i32
    %c0_i32_0 = arith.constant 0 : i32
    %c0_i32_1 = arith.constant 0 : i32
    return %arg0, %c0_i32, %c0_i32_0 : i32, i32, i32
  }
  func.func @transform_1(%arg0: i32) -> (i32, i32, i32) {
    %c0_i32 = arith.constant 0 : i32
    %c0_i32_0 = arith.constant 0 : i32
    %c0_i32_1 = arith.constant 0 : i32
    return %arg0, %c0_i32, %c0_i32_0 : i32, i32, i32
  }
  func.func @transform_2(%arg0: i32) -> (i32, i32, i32) {
    %c0_i32 = arith.constant 0 : i32
    %c0_i32_0 = arith.constant 0 : i32
    %c0_i32_1 = arith.constant 0 : i32
    %c0_i32_2 = arith.constant 0 : i32
    return %c0_i32, %c0_i32_0, %c0_i32_1 : i32, i32, i32
  }
  func.func @transform_3(%arg0: i32) -> (i32, i32) {
    %c0_i32 = arith.constant 0 : i32
    %c0_i32_0 = arith.constant 0 : i32
    %c0_i32_1 = arith.constant 0 : i32
    return %c0_i32, %c0_i32_0 : i32, i32
  }
  func.func @transform_4(%arg0: i32) -> (i32, i32, i32) {
    %c0_i32 = arith.constant 0 : i32
    %c0_i32_0 = arith.constant 0 : i32
    %c0_i32_1 = arith.constant 0 : i32
    return %arg0, %c0_i32, %c0_i32_0 : i32, i32, i32
  }
}

module attributes {stable_mosaic.version = 11 : i64} {
  func.func @_transformer_kernel(%arg0: i32, %arg1: memref<1x16x64xf32, #tpu.memory_space<vmem>>, %arg2: memref<1x8x48xf32, #tpu.memory_space<vmem>>, %arg3: memref<1x64xf32, #tpu.memory_space<vmem>>, %arg4: memref<1x64xf32, #tpu.memory_space<vmem>>, %arg5: memref<64x8xf32, #tpu.memory_space<vmem>>, %arg6: memref<8x64xf32, #tpu.memory_space<vmem>>, %arg7: memref<64x64xbf16, #tpu.memory_space<vmem>>, %arg8: memref<1x64xf32, #tpu.memory_space<vmem>>, %arg9: memref<1x64xf32, #tpu.memory_space<vmem>>, %arg10: memref<1x64xf32, #tpu.memory_space<vmem>>, %arg11: memref<64x192xbf16, #tpu.memory_space<vmem>>, %arg12: memref<64x64xbf16, #tpu.memory_space<vmem>>, %arg13: memref<1x64xf32, #tpu.memory_space<vmem>>, %arg14: memref<1x64xf32, #tpu.memory_space<vmem>>, %arg15: memref<1x64xf32, #tpu.memory_space<vmem>>, %arg16: memref<64x64xbf16, #tpu.memory_space<vmem>>, %arg17: memref<48x128xbf16, #tpu.memory_space<vmem>>, %arg18: memref<64x64xbf16, #tpu.memory_space<vmem>>, %arg19: memref<1x64xf32, #tpu.memory_space<vmem>>, %arg20: memref<1x64xf32, #tpu.memory_space<vmem>>, %arg21: memref<1x64xf32, #tpu.memory_space<vmem>>, %arg22: memref<64x256xbf16, #tpu.memory_space<vmem>>, %arg23: memref<1x256xf32, #tpu.memory_space<vmem>>, %arg24: memref<64x256xbf16, #tpu.memory_space<vmem>>, %arg25: memref<1x256xf32, #tpu.memory_space<vmem>>, %arg26: memref<256x64xbf16, #tpu.memory_space<vmem>>, %arg27: memref<1x64xf32, #tpu.memory_space<vmem>>, %arg28: memref<64x64xbf16, #tpu.memory_space<vmem>>, %arg29: memref<1x64xf32, #tpu.memory_space<vmem>>, %arg30: memref<1x16x64xf32, #tpu.memory_space<vmem>>) attributes {dimension_semantics = [#tpu.dimension_semantics<parallel>], iteration_bounds = array<i64: 2>, scalar_prefetch = 0 : i64, scratch_operands = 0 : i64, tpu.core_type = #tpu.core_type<tc>, window_params = [{transform_indices = @transform_0, window_bounds = array<i64: 1, 16, 64>}, {transform_indices = @transform_1, window_bounds = array<i64: 1, 8, 48>}, {pipeline_mode = #tpu.pipeline_mode<synchronous>, transform_indices = @transform_2, window_bounds = array<i64: 1, 64>}, {pipeline_mode = #tpu.pipeline_mode<synchronous>, transform_indices = @transform_3, window_bounds = array<i64: 1, 64>}, {pipeline_mode = #tpu.pipeline_mode<synchronous>, transform_indices = @transform_4, window_bounds = array<i64: 64, 8>}, {pipeline_mode = #tpu.pipeline_mode<synchronous>, transform_indices = @transform_5, window_bounds = array<i64: 8, 64>}, {pipeline_mode = #tpu.pipeline_mode<synchronous>, transform_indices = @transform_6, window_bounds = array<i64: 64, 64>}, {pipeline_mode = #tpu.pipeline_mode<synchronous>, transform_indices = @transform_7, window_bounds = array<i64: 1, 64>}, {pipeline_mode = #tpu.pipeline_mode<synchronous>, transform_indices = @transform_8, window_bounds = array<i64: 1, 64>}, {pipeline_mode = #tpu.pipeline_mode<synchronous>, transform_indices = @transform_9, window_bounds = array<i64: 1, 64>}, {pipeline_mode = #tpu.pipeline_mode<synchronous>, transform_indices = @transform_10, window_bounds = array<i64: 64, 192>}, {pipeline_mode = #tpu.pipeline_mode<synchronous>, transform_indices = @transform_11, window_bounds = array<i64: 64, 64>}, {pipeline_mode = #tpu.pipeline_mode<synchronous>, transform_indices = @transform_12, window_bounds = array<i64: 1, 64>}, {pipeline_mode = #tpu.pipeline_mode<synchronous>, transform_indices = @transform_13, window_bounds = array<i64: 1, 64>}, {pipeline_mode = #tpu.pipeline_mode<synchronous>, transform_indices = @transform_14, window_bounds = array<i64: 1, 64>}, {pipeline_mode = #tpu.pipeline_mode<synchronous>, transform_indices = @transform_15, window_bounds = array<i64: 64, 64>}, {pipeline_mode = #tpu.pipeline_mode<synchronous>, transform_indices = @transform_16, window_bounds = array<i64: 48, 128>}, {pipeline_mode = #tpu.pipeline_mode<synchronous>, transform_indices = @transform_17, window_bounds = array<i64: 64, 64>}, {pipeline_mode = #tpu.pipeline_mode<synchronous>, transform_indices = @transform_18, window_bounds = array<i64: 1, 64>}, {pipeline_mode = #tpu.pipeline_mode<synchronous>, transform_indices = @transform_19, window_bounds = array<i64: 1, 64>}, {pipeline_mode = #tpu.pipeline_mode<synchronous>, transform_indices = @transform_20, window_bounds = array<i64: 1, 64>}, {pipeline_mode = #tpu.pipeline_mode<synchronous>, transform_indices = @transform_21, window_bounds = array<i64: 64, 256>}, {pipeline_mode = #tpu.pipeline_mode<synchronous>, transform_indices = @transform_22, window_bounds = array<i64: 1, 256>}, {pipeline_mode = #tpu.pipeline_mode<synchronous>, transform_indices = @transform_23, window_bounds = array<i64: 64, 256>}, {pipeline_mode = #tpu.pipeline_mode<synchronous>, transform_indices = @transform_24, window_bounds = array<i64: 1, 256>}, {pipeline_mode = #tpu.pipeline_mode<synchronous>, transform_indices = @transform_25, window_bounds = array<i64: 256, 64>}, {pipeline_mode = #tpu.pipeline_mode<synchronous>, transform_indices = @transform_26, window_bounds = array<i64: 1, 64>}, {pipeline_mode = #tpu.pipeline_mode<synchronous>, transform_indices = @transform_27, window_bounds = array<i64: 64, 64>}, {pipeline_mode = #tpu.pipeline_mode<synchronous>, transform_indices = @transform_28, window_bounds = array<i64: 1, 64>}, {transform_indices = @transform_29, window_bounds = array<i64: 1, 16, 64>}]} {
    %c0 = arith.constant 0 : index
    %c0_0 = arith.constant 0 : index
    %c0_1 = arith.constant 0 : index
    %0 = vector.load %arg1[%c0, %c0_0, %c0_1] : memref<1x16x64xf32, #tpu.memory_space<vmem>>, vector<1x16x64xf32>
    %1 = vector.shape_cast %0 : vector<1x16x64xf32> to vector<16x64xf32>
    %c0_2 = arith.constant 0 : index
    %c0_3 = arith.constant 0 : index
    %c0_4 = arith.constant 0 : index
    %2 = vector.load %arg2[%c0_2, %c0_3, %c0_4] : memref<1x8x48xf32, #tpu.memory_space<vmem>>, vector<1x8x48xf32>
    %3 = vector.shape_cast %2 : vector<1x8x48xf32> to vector<8x48xf32>
    %c0_5 = arith.constant 0 : index
    %c0_6 = arith.constant 0 : index
    %4 = vector.load %arg3[%c0_5, %c0_6] : memref<1x64xf32, #tpu.memory_space<vmem>>, vector<1x64xf32>
    %c0_7 = arith.constant 0 : index
    %c0_8 = arith.constant 0 : index
    %5 = vector.load %arg4[%c0_7, %c0_8] : memref<1x64xf32, #tpu.memory_space<vmem>>, vector<1x64xf32>
    %c0_9 = arith.constant 0 : index
    %c0_10 = arith.constant 0 : index
    %6 = vector.load %arg5[%c0_9, %c0_10] : memref<64x8xf32, #tpu.memory_space<vmem>>, vector<64x8xf32>
    %c0_11 = arith.constant 0 : index
    %c0_12 = arith.constant 0 : index
    %7 = vector.load %arg6[%c0_11, %c0_12] : memref<8x64xf32, #tpu.memory_space<vmem>>, vector<8x64xf32>
    %cst = arith.constant dense<0.000000e+00> : vector<64xf32>
    %8 = vector.multi_reduction <add>, %1, %cst [0] : vector<16x64xf32> to vector<64xf32>
    %9 = vector.shape_cast %8 : vector<64xf32> to vector<1x64xf32>
    %10 = arith.mulf %1, %1 : vector<16x64xf32>
    %cst_13 = arith.constant dense<0.000000e+00> : vector<64xf32>
    %11 = vector.multi_reduction <add>, %10, %cst_13 [0] : vector<16x64xf32> to vector<64xf32>
    %12 = vector.shape_cast %11 : vector<64xf32> to vector<1x64xf32>
    %cst_14 = arith.constant dense<0.000000e+00> : vector<1x8xf32>
    %13 = tpu.matmul %9, %6, %cst_14 {dimension_numbers = #tpu.dot_dimension_numbers<[1], [0], [0], [1], [0, 0, 1, 1], [], []>} : vector<1x64xf32>, vector<64x8xf32>, vector<1x8xf32> -> vector<1x8xf32>
    %cst_15 = arith.constant 1.280000e+02 : f32
    %14 = vector.broadcast %cst_15 : f32 to vector<1x8xf32>
    %15 = arith.divf %13, %14 : vector<1x8xf32>
    %cst_16 = arith.constant dense<0.000000e+00> : vector<1x8xf32>
    %16 = tpu.matmul %12, %6, %cst_16 {dimension_numbers = #tpu.dot_dimension_numbers<[1], [0], [0], [1], [0, 0, 1, 1], [], []>} : vector<1x64xf32>, vector<64x8xf32>, vector<1x8xf32> -> vector<1x8xf32>
    %cst_17 = arith.constant 1.280000e+02 : f32
    %17 = vector.broadcast %cst_17 : f32 to vector<1x8xf32>
    %18 = arith.divf %16, %17 : vector<1x8xf32>
    %19 = arith.mulf %15, %15 : vector<1x8xf32>
    %20 = arith.subf %18, %19 : vector<1x8xf32>
    %cst_18 = arith.constant 9.99999997E-7 : f32
    %21 = vector.broadcast %cst_18 : f32 to vector<1x8xf32>
    %22 = arith.addf %20, %21 : vector<1x8xf32>
    %23 = math.rsqrt %22 : vector<1x8xf32>
    %cst_19 = arith.constant dense<0.000000e+00> : vector<1x64xf32>
    %24 = tpu.matmul %15, %7, %cst_19 {dimension_numbers = #tpu.dot_dimension_numbers<[1], [0], [0], [1], [0, 0, 1, 1], [], []>} : vector<1x8xf32>, vector<8x64xf32>, vector<1x64xf32> -> vector<1x64xf32>
    %cst_20 = arith.constant dense<0.000000e+00> : vector<1x64xf32>
    %25 = tpu.matmul %23, %7, %cst_20 {dimension_numbers = #tpu.dot_dimension_numbers<[1], [0], [0], [1], [0, 0, 1, 1], [], []>} : vector<1x8xf32>, vector<8x64xf32>, vector<1x64xf32> -> vector<1x64xf32>
    %26 = vector.broadcast %24 : vector<1x64xf32> to vector<16x64xf32>
    %27 = arith.subf %1, %26 : vector<16x64xf32>
    %28 = vector.broadcast %25 : vector<1x64xf32> to vector<16x64xf32>
    %29 = arith.mulf %27, %28 : vector<16x64xf32>
    %30 = vector.broadcast %4 : vector<1x64xf32> to vector<16x64xf32>
    %31 = arith.mulf %29, %30 : vector<16x64xf32>
    %32 = vector.broadcast %5 : vector<1x64xf32> to vector<16x64xf32>
    %33 = arith.addf %31, %32 : vector<16x64xf32>
    %c0_21 = arith.constant 0 : index
    %c0_22 = arith.constant 0 : index
    %34 = vector.load %arg7[%c0_21, %c0_22] : memref<64x64xbf16, #tpu.memory_space<vmem>>, vector<64x64xbf16>
    %35 = arith.truncf %33 : vector<16x64xf32> to vector<16x64xbf16>
    %cst_23 = arith.constant dense<0.000000e+00> : vector<16x64xf32>
    %36 = tpu.matmul %35, %34, %cst_23 {dimension_numbers = #tpu.dot_dimension_numbers<[1], [0], [0], [1], [0, 0, 1, 1], [], []>} : vector<16x64xbf16>, vector<64x64xbf16>, vector<16x64xf32> -> vector<16x64xf32>
    %c0_24 = arith.constant 0 : index
    %c0_25 = arith.constant 0 : index
    %37 = vector.load %arg8[%c0_24, %c0_25] : memref<1x64xf32, #tpu.memory_space<vmem>>, vector<1x64xf32>
    %38 = vector.broadcast %37 : vector<1x64xf32> to vector<16x64xf32>
    %39 = arith.addf %36, %38 : vector<16x64xf32>
    %c0_26 = arith.constant 0 : index
    %c0_27 = arith.constant 0 : index
    %40 = vector.load %arg9[%c0_26, %c0_27] : memref<1x64xf32, #tpu.memory_space<vmem>>, vector<1x64xf32>
    %c0_28 = arith.constant 0 : index
    %c0_29 = arith.constant 0 : index
    %41 = vector.load %arg10[%c0_28, %c0_29] : memref<1x64xf32, #tpu.memory_space<vmem>>, vector<1x64xf32>
    %cst_30 = arith.constant dense<0.000000e+00> : vector<16xf32>
    %42 = vector.multi_reduction <add>, %39, %cst_30 [1] : vector<16x64xf32> to vector<16xf32>
    %43 = vector.shape_cast %42 : vector<16xf32> to vector<16x1xf32>
    %cst_31 = arith.constant 6.400000e+01 : f32
    %44 = vector.broadcast %cst_31 : f32 to vector<16x1xf32>
    %45 = arith.divf %43, %44 : vector<16x1xf32>
    %46 = vector.broadcast %45 : vector<16x1xf32> to vector<16x64xf32>
    %47 = arith.subf %39, %46 : vector<16x64xf32>
    %48 = arith.mulf %47, %47 : vector<16x64xf32>
    %cst_32 = arith.constant dense<0.000000e+00> : vector<16xf32>
    %49 = vector.multi_reduction <add>, %48, %cst_32 [1] : vector<16x64xf32> to vector<16xf32>
    %50 = vector.shape_cast %49 : vector<16xf32> to vector<16x1xf32>
    %cst_33 = arith.constant 6.400000e+01 : f32
    %51 = vector.broadcast %cst_33 : f32 to vector<16x1xf32>
    %52 = arith.divf %50, %51 : vector<16x1xf32>
    %53 = vector.broadcast %45 : vector<16x1xf32> to vector<16x64xf32>
    %54 = arith.subf %39, %53 : vector<16x64xf32>
    %cst_34 = arith.constant 9.99999974E-6 : f32
    %55 = vector.broadcast %cst_34 : f32 to vector<16x1xf32>
    %56 = arith.addf %52, %55 : vector<16x1xf32>
    %57 = math.rsqrt %56 : vector<16x1xf32>
    %58 = vector.broadcast %57 : vector<16x1xf32> to vector<16x64xf32>
    %59 = arith.mulf %54, %58 : vector<16x64xf32>
    %60 = vector.broadcast %40 : vector<1x64xf32> to vector<16x64xf32>
    %61 = arith.mulf %59, %60 : vector<16x64xf32>
    %62 = vector.broadcast %41 : vector<1x64xf32> to vector<16x64xf32>
    %63 = arith.addf %61, %62 : vector<16x64xf32>
    %c0_35 = arith.constant 0 : index
    %c0_36 = arith.constant 0 : index
    %64 = vector.load %arg11[%c0_35, %c0_36] : memref<64x192xbf16, #tpu.memory_space<vmem>>, vector<64x192xbf16>
    %65 = arith.truncf %63 : vector<16x64xf32> to vector<16x64xbf16>
    %cst_37 = arith.constant dense<0.000000e+00> : vector<16x192xf32>
    %66 = tpu.matmul %65, %64, %cst_37 {dimension_numbers = #tpu.dot_dimension_numbers<[1], [0], [0], [1], [0, 0, 1, 1], [], []>} : vector<16x64xbf16>, vector<64x192xbf16>, vector<16x192xf32> -> vector<16x192xf32>
    %67 = vector.extract_strided_slice %66 {offsets = [0, 0], sizes = [16, 64], strides = [1, 1]} : vector<16x192xf32> to vector<16x64xf32>
    %68 = vector.extract_strided_slice %66 {offsets = [0, 64], sizes = [16, 64], strides = [1, 1]} : vector<16x192xf32> to vector<16x64xf32>
    %69 = vector.extract_strided_slice %66 {offsets = [0, 128], sizes = [16, 64], strides = [1, 1]} : vector<16x192xf32> to vector<16x64xf32>
    %70 = vector.extract_strided_slice %67 {offsets = [0, 0], sizes = [16, 32], strides = [1, 1]} : vector<16x64xf32> to vector<16x32xf32>
    %cst_38 = arith.constant 0.176776692 : f32
    %71 = vector.broadcast %cst_38 : f32 to vector<16x32xf32>
    %72 = arith.mulf %70, %71 : vector<16x32xf32>
    %73 = arith.truncf %72 : vector<16x32xf32> to vector<16x32xbf16>
    %74 = vector.extract_strided_slice %68 {offsets = [0, 0], sizes = [16, 32], strides = [1, 1]} : vector<16x64xf32> to vector<16x32xf32>
    %75 = arith.truncf %74 : vector<16x32xf32> to vector<16x32xbf16>
    %76 = vector.extract_strided_slice %69 {offsets = [0, 0], sizes = [16, 32], strides = [1, 1]} : vector<16x64xf32> to vector<16x32xf32>
    %77 = arith.truncf %76 : vector<16x32xf32> to vector<16x32xbf16>
    %cst_39 = arith.constant dense<0.000000e+00> : vector<16x16xf32>
    %78 = tpu.matmul %73, %75, %cst_39 {dimension_numbers = #tpu.dot_dimension_numbers<[1], [1], [0], [0], [0, 0, 1, 0], [], []>} : vector<16x32xbf16>, vector<16x32xbf16>, vector<16x16xf32> -> vector<16x16xf32>
    %cst_40 = arith.constant dense<0xFF800000> : vector<16xf32>
    %79 = vector.multi_reduction <maximumf>, %78, %cst_40 [1] : vector<16x16xf32> to vector<16xf32>
    %80 = vector.shape_cast %79 : vector<16xf32> to vector<16x1xf32>
    %81 = vector.broadcast %80 : vector<16x1xf32> to vector<16x16xf32>
    %82 = arith.subf %78, %81 : vector<16x16xf32>
    %83 = math.exp %82 : vector<16x16xf32>
    %cst_41 = arith.constant dense<0.000000e+00> : vector<16xf32>
    %84 = vector.multi_reduction <add>, %83, %cst_41 [1] : vector<16x16xf32> to vector<16xf32>
    %85 = vector.shape_cast %84 : vector<16xf32> to vector<16x1xf32>
    %86 = tpu.reciprocal %85 {approx = true} : vector<16x1xf32> -> vector<16x1xf32>
    %87 = vector.broadcast %86 : vector<16x1xf32> to vector<16x16xf32>
    %88 = arith.mulf %83, %87 : vector<16x16xf32>
    %89 = arith.truncf %88 : vector<16x16xf32> to vector<16x16xbf16>
    %cst_42 = arith.constant dense<0.000000e+00> : vector<16x32xf32>
    %90 = tpu.matmul %89, %77, %cst_42 {dimension_numbers = #tpu.dot_dimension_numbers<[1], [0], [0], [1], [0, 0, 1, 1], [], []>} : vector<16x16xbf16>, vector<16x32xbf16>, vector<16x32xf32> -> vector<16x32xf32>
    %91 = vector.extract_strided_slice %67 {offsets = [0, 32], sizes = [16, 32], strides = [1, 1]} : vector<16x64xf32> to vector<16x32xf32>
    %cst_43 = arith.constant 0.176776692 : f32
    %92 = vector.broadcast %cst_43 : f32 to vector<16x32xf32>
    %93 = arith.mulf %91, %92 : vector<16x32xf32>
    %94 = arith.truncf %93 : vector<16x32xf32> to vector<16x32xbf16>
    %95 = vector.extract_strided_slice %68 {offsets = [0, 32], sizes = [16, 32], strides = [1, 1]} : vector<16x64xf32> to vector<16x32xf32>
    %96 = arith.truncf %95 : vector<16x32xf32> to vector<16x32xbf16>
    %97 = vector.extract_strided_slice %69 {offsets = [0, 32], sizes = [16, 32], strides = [1, 1]} : vector<16x64xf32> to vector<16x32xf32>
    %98 = arith.truncf %97 : vector<16x32xf32> to vector<16x32xbf16>
    %cst_44 = arith.constant dense<0.000000e+00> : vector<16x16xf32>
    %99 = tpu.matmul %94, %96, %cst_44 {dimension_numbers = #tpu.dot_dimension_numbers<[1], [1], [0], [0], [0, 0, 1, 0], [], []>} : vector<16x32xbf16>, vector<16x32xbf16>, vector<16x16xf32> -> vector<16x16xf32>
    %cst_45 = arith.constant dense<0xFF800000> : vector<16xf32>
    %100 = vector.multi_reduction <maximumf>, %99, %cst_45 [1] : vector<16x16xf32> to vector<16xf32>
    %101 = vector.shape_cast %100 : vector<16xf32> to vector<16x1xf32>
    %102 = vector.broadcast %101 : vector<16x1xf32> to vector<16x16xf32>
    %103 = arith.subf %99, %102 : vector<16x16xf32>
    %104 = math.exp %103 : vector<16x16xf32>
    %cst_46 = arith.constant dense<0.000000e+00> : vector<16xf32>
    %105 = vector.multi_reduction <add>, %104, %cst_46 [1] : vector<16x16xf32> to vector<16xf32>
    %106 = vector.shape_cast %105 : vector<16xf32> to vector<16x1xf32>
    %107 = tpu.reciprocal %106 {approx = true} : vector<16x1xf32> -> vector<16x1xf32>
    %108 = vector.broadcast %107 : vector<16x1xf32> to vector<16x16xf32>
    %109 = arith.mulf %104, %108 : vector<16x16xf32>
    %110 = arith.truncf %109 : vector<16x16xf32> to vector<16x16xbf16>
    %cst_47 = arith.constant dense<0.000000e+00> : vector<16x32xf32>
    %111 = tpu.matmul %110, %98, %cst_47 {dimension_numbers = #tpu.dot_dimension_numbers<[1], [0], [0], [1], [0, 0, 1, 1], [], []>} : vector<16x16xbf16>, vector<16x32xbf16>, vector<16x32xf32> -> vector<16x32xf32>
    %112 = tpu.concatenate %90, %111 in 1 : vector<16x32xf32>, vector<16x32xf32> -> vector<16x64xf32>
    %c0_48 = arith.constant 0 : index
    %c0_49 = arith.constant 0 : index
    %113 = vector.load %arg12[%c0_48, %c0_49] : memref<64x64xbf16, #tpu.memory_space<vmem>>, vector<64x64xbf16>
    %114 = arith.truncf %112 : vector<16x64xf32> to vector<16x64xbf16>
    %cst_50 = arith.constant dense<0.000000e+00> : vector<16x64xf32>
    %115 = tpu.matmul %114, %113, %cst_50 {dimension_numbers = #tpu.dot_dimension_numbers<[1], [0], [0], [1], [0, 0, 1, 1], [], []>} : vector<16x64xbf16>, vector<64x64xbf16>, vector<16x64xf32> -> vector<16x64xf32>
    %116 = arith.addf %39, %115 : vector<16x64xf32>
    %c0_51 = arith.constant 0 : index
    %c0_52 = arith.constant 0 : index
    %117 = vector.load %arg13[%c0_51, %c0_52] : memref<1x64xf32, #tpu.memory_space<vmem>>, vector<1x64xf32>
    %118 = vector.broadcast %117 : vector<1x64xf32> to vector<16x64xf32>
    %119 = arith.addf %116, %118 : vector<16x64xf32>
    %c0_53 = arith.constant 0 : index
    %c0_54 = arith.constant 0 : index
    %120 = vector.load %arg14[%c0_53, %c0_54] : memref<1x64xf32, #tpu.memory_space<vmem>>, vector<1x64xf32>
    %c0_55 = arith.constant 0 : index
    %c0_56 = arith.constant 0 : index
    %121 = vector.load %arg15[%c0_55, %c0_56] : memref<1x64xf32, #tpu.memory_space<vmem>>, vector<1x64xf32>
    %cst_57 = arith.constant dense<0.000000e+00> : vector<16xf32>
    %122 = vector.multi_reduction <add>, %119, %cst_57 [1] : vector<16x64xf32> to vector<16xf32>
    %123 = vector.shape_cast %122 : vector<16xf32> to vector<16x1xf32>
    %cst_58 = arith.constant 6.400000e+01 : f32
    %124 = vector.broadcast %cst_58 : f32 to vector<16x1xf32>
    %125 = arith.divf %123, %124 : vector<16x1xf32>
    %126 = vector.broadcast %125 : vector<16x1xf32> to vector<16x64xf32>
    %127 = arith.subf %119, %126 : vector<16x64xf32>
    %128 = arith.mulf %127, %127 : vector<16x64xf32>
    %cst_59 = arith.constant dense<0.000000e+00> : vector<16xf32>
    %129 = vector.multi_reduction <add>, %128, %cst_59 [1] : vector<16x64xf32> to vector<16xf32>
    %130 = vector.shape_cast %129 : vector<16xf32> to vector<16x1xf32>
    %cst_60 = arith.constant 6.400000e+01 : f32
    %131 = vector.broadcast %cst_60 : f32 to vector<16x1xf32>
    %132 = arith.divf %130, %131 : vector<16x1xf32>
    %133 = vector.broadcast %125 : vector<16x1xf32> to vector<16x64xf32>
    %134 = arith.subf %119, %133 : vector<16x64xf32>
    %cst_61 = arith.constant 9.99999974E-6 : f32
    %135 = vector.broadcast %cst_61 : f32 to vector<16x1xf32>
    %136 = arith.addf %132, %135 : vector<16x1xf32>
    %137 = math.rsqrt %136 : vector<16x1xf32>
    %138 = vector.broadcast %137 : vector<16x1xf32> to vector<16x64xf32>
    %139 = arith.mulf %134, %138 : vector<16x64xf32>
    %140 = vector.broadcast %120 : vector<1x64xf32> to vector<16x64xf32>
    %141 = arith.mulf %139, %140 : vector<16x64xf32>
    %142 = vector.broadcast %121 : vector<1x64xf32> to vector<16x64xf32>
    %143 = arith.addf %141, %142 : vector<16x64xf32>
    %c0_62 = arith.constant 0 : index
    %c0_63 = arith.constant 0 : index
    %144 = vector.load %arg16[%c0_62, %c0_63] : memref<64x64xbf16, #tpu.memory_space<vmem>>, vector<64x64xbf16>
    %145 = arith.truncf %143 : vector<16x64xf32> to vector<16x64xbf16>
    %cst_64 = arith.constant dense<0.000000e+00> : vector<16x64xf32>
    %146 = tpu.matmul %145, %144, %cst_64 {dimension_numbers = #tpu.dot_dimension_numbers<[1], [0], [0], [1], [0, 0, 1, 1], [], []>} : vector<16x64xbf16>, vector<64x64xbf16>, vector<16x64xf32> -> vector<16x64xf32>
    %c0_65 = arith.constant 0 : index
    %c0_66 = arith.constant 0 : index
    %147 = vector.load %arg17[%c0_65, %c0_66] : memref<48x128xbf16, #tpu.memory_space<vmem>>, vector<48x128xbf16>
    %148 = arith.truncf %3 : vector<8x48xf32> to vector<8x48xbf16>
    %cst_67 = arith.constant dense<0.000000e+00> : vector<8x128xf32>
    %149 = tpu.matmul %148, %147, %cst_67 {dimension_numbers = #tpu.dot_dimension_numbers<[1], [0], [0], [1], [0, 0, 1, 1], [], []>} : vector<8x48xbf16>, vector<48x128xbf16>, vector<8x128xf32> -> vector<8x128xf32>
    %150 = vector.extract_strided_slice %149 {offsets = [0, 0], sizes = [8, 64], strides = [1, 1]} : vector<8x128xf32> to vector<8x64xf32>
    %151 = vector.extract_strided_slice %149 {offsets = [0, 64], sizes = [8, 64], strides = [1, 1]} : vector<8x128xf32> to vector<8x64xf32>
    %152 = vector.extract_strided_slice %146 {offsets = [0, 0], sizes = [16, 32], strides = [1, 1]} : vector<16x64xf32> to vector<16x32xf32>
    %cst_68 = arith.constant 0.176776692 : f32
    %153 = vector.broadcast %cst_68 : f32 to vector<16x32xf32>
    %154 = arith.mulf %152, %153 : vector<16x32xf32>
    %155 = arith.truncf %154 : vector<16x32xf32> to vector<16x32xbf16>
    %156 = vector.extract_strided_slice %150 {offsets = [0, 0], sizes = [8, 32], strides = [1, 1]} : vector<8x64xf32> to vector<8x32xf32>
    %157 = arith.truncf %156 : vector<8x32xf32> to vector<8x32xbf16>
    %158 = vector.extract_strided_slice %151 {offsets = [0, 0], sizes = [8, 32], strides = [1, 1]} : vector<8x64xf32> to vector<8x32xf32>
    %159 = arith.truncf %158 : vector<8x32xf32> to vector<8x32xbf16>
    %cst_69 = arith.constant dense<0.000000e+00> : vector<16x8xf32>
    %160 = tpu.matmul %155, %157, %cst_69 {dimension_numbers = #tpu.dot_dimension_numbers<[1], [1], [0], [0], [0, 0, 1, 0], [], []>} : vector<16x32xbf16>, vector<8x32xbf16>, vector<16x8xf32> -> vector<16x8xf32>
    %cst_70 = arith.constant dense<0xFF800000> : vector<16xf32>
    %161 = vector.multi_reduction <maximumf>, %160, %cst_70 [1] : vector<16x8xf32> to vector<16xf32>
    %162 = vector.shape_cast %161 : vector<16xf32> to vector<16x1xf32>
    %163 = vector.broadcast %162 : vector<16x1xf32> to vector<16x8xf32>
    %164 = arith.subf %160, %163 : vector<16x8xf32>
    %165 = math.exp %164 : vector<16x8xf32>
    %cst_71 = arith.constant dense<0.000000e+00> : vector<16xf32>
    %166 = vector.multi_reduction <add>, %165, %cst_71 [1] : vector<16x8xf32> to vector<16xf32>
    %167 = vector.shape_cast %166 : vector<16xf32> to vector<16x1xf32>
    %168 = tpu.reciprocal %167 {approx = true} : vector<16x1xf32> -> vector<16x1xf32>
    %169 = vector.broadcast %168 : vector<16x1xf32> to vector<16x8xf32>
    %170 = arith.mulf %165, %169 : vector<16x8xf32>
    %171 = arith.truncf %170 : vector<16x8xf32> to vector<16x8xbf16>
    %cst_72 = arith.constant dense<0.000000e+00> : vector<16x32xf32>
    %172 = tpu.matmul %171, %159, %cst_72 {dimension_numbers = #tpu.dot_dimension_numbers<[1], [0], [0], [1], [0, 0, 1, 1], [], []>} : vector<16x8xbf16>, vector<8x32xbf16>, vector<16x32xf32> -> vector<16x32xf32>
    %173 = vector.extract_strided_slice %146 {offsets = [0, 32], sizes = [16, 32], strides = [1, 1]} : vector<16x64xf32> to vector<16x32xf32>
    %cst_73 = arith.constant 0.176776692 : f32
    %174 = vector.broadcast %cst_73 : f32 to vector<16x32xf32>
    %175 = arith.mulf %173, %174 : vector<16x32xf32>
    %176 = arith.truncf %175 : vector<16x32xf32> to vector<16x32xbf16>
    %177 = vector.extract_strided_slice %150 {offsets = [0, 32], sizes = [8, 32], strides = [1, 1]} : vector<8x64xf32> to vector<8x32xf32>
    %178 = arith.truncf %177 : vector<8x32xf32> to vector<8x32xbf16>
    %179 = vector.extract_strided_slice %151 {offsets = [0, 32], sizes = [8, 32], strides = [1, 1]} : vector<8x64xf32> to vector<8x32xf32>
    %180 = arith.truncf %179 : vector<8x32xf32> to vector<8x32xbf16>
    %cst_74 = arith.constant dense<0.000000e+00> : vector<16x8xf32>
    %181 = tpu.matmul %176, %178, %cst_74 {dimension_numbers = #tpu.dot_dimension_numbers<[1], [1], [0], [0], [0, 0, 1, 0], [], []>} : vector<16x32xbf16>, vector<8x32xbf16>, vector<16x8xf32> -> vector<16x8xf32>
    %cst_75 = arith.constant dense<0xFF800000> : vector<16xf32>
    %182 = vector.multi_reduction <maximumf>, %181, %cst_75 [1] : vector<16x8xf32> to vector<16xf32>
    %183 = vector.shape_cast %182 : vector<16xf32> to vector<16x1xf32>
    %184 = vector.broadcast %183 : vector<16x1xf32> to vector<16x8xf32>
    %185 = arith.subf %181, %184 : vector<16x8xf32>
    %186 = math.exp %185 : vector<16x8xf32>
    %cst_76 = arith.constant dense<0.000000e+00> : vector<16xf32>
    %187 = vector.multi_reduction <add>, %186, %cst_76 [1] : vector<16x8xf32> to vector<16xf32>
    %188 = vector.shape_cast %187 : vector<16xf32> to vector<16x1xf32>
    %189 = tpu.reciprocal %188 {approx = true} : vector<16x1xf32> -> vector<16x1xf32>
    %190 = vector.broadcast %189 : vector<16x1xf32> to vector<16x8xf32>
    %191 = arith.mulf %186, %190 : vector<16x8xf32>
    %192 = arith.truncf %191 : vector<16x8xf32> to vector<16x8xbf16>
    %cst_77 = arith.constant dense<0.000000e+00> : vector<16x32xf32>
    %193 = tpu.matmul %192, %180, %cst_77 {dimension_numbers = #tpu.dot_dimension_numbers<[1], [0], [0], [1], [0, 0, 1, 1], [], []>} : vector<16x8xbf16>, vector<8x32xbf16>, vector<16x32xf32> -> vector<16x32xf32>
    %194 = tpu.concatenate %172, %193 in 1 : vector<16x32xf32>, vector<16x32xf32> -> vector<16x64xf32>
    %c0_78 = arith.constant 0 : index
    %c0_79 = arith.constant 0 : index
    %195 = vector.load %arg18[%c0_78, %c0_79] : memref<64x64xbf16, #tpu.memory_space<vmem>>, vector<64x64xbf16>
    %196 = arith.truncf %194 : vector<16x64xf32> to vector<16x64xbf16>
    %cst_80 = arith.constant dense<0.000000e+00> : vector<16x64xf32>
    %197 = tpu.matmul %196, %195, %cst_80 {dimension_numbers = #tpu.dot_dimension_numbers<[1], [0], [0], [1], [0, 0, 1, 1], [], []>} : vector<16x64xbf16>, vector<64x64xbf16>, vector<16x64xf32> -> vector<16x64xf32>
    %198 = arith.addf %119, %197 : vector<16x64xf32>
    %c0_81 = arith.constant 0 : index
    %c0_82 = arith.constant 0 : index
    %199 = vector.load %arg19[%c0_81, %c0_82] : memref<1x64xf32, #tpu.memory_space<vmem>>, vector<1x64xf32>
    %200 = vector.broadcast %199 : vector<1x64xf32> to vector<16x64xf32>
    %201 = arith.addf %198, %200 : vector<16x64xf32>
    %c0_83 = arith.constant 0 : index
    %c0_84 = arith.constant 0 : index
    %202 = vector.load %arg20[%c0_83, %c0_84] : memref<1x64xf32, #tpu.memory_space<vmem>>, vector<1x64xf32>
    %c0_85 = arith.constant 0 : index
    %c0_86 = arith.constant 0 : index
    %203 = vector.load %arg21[%c0_85, %c0_86] : memref<1x64xf32, #tpu.memory_space<vmem>>, vector<1x64xf32>
    %cst_87 = arith.constant dense<0.000000e+00> : vector<16xf32>
    %204 = vector.multi_reduction <add>, %201, %cst_87 [1] : vector<16x64xf32> to vector<16xf32>
    %205 = vector.shape_cast %204 : vector<16xf32> to vector<16x1xf32>
    %cst_88 = arith.constant 6.400000e+01 : f32
    %206 = vector.broadcast %cst_88 : f32 to vector<16x1xf32>
    %207 = arith.divf %205, %206 : vector<16x1xf32>
    %208 = vector.broadcast %207 : vector<16x1xf32> to vector<16x64xf32>
    %209 = arith.subf %201, %208 : vector<16x64xf32>
    %210 = arith.mulf %209, %209 : vector<16x64xf32>
    %cst_89 = arith.constant dense<0.000000e+00> : vector<16xf32>
    %211 = vector.multi_reduction <add>, %210, %cst_89 [1] : vector<16x64xf32> to vector<16xf32>
    %212 = vector.shape_cast %211 : vector<16xf32> to vector<16x1xf32>
    %cst_90 = arith.constant 6.400000e+01 : f32
    %213 = vector.broadcast %cst_90 : f32 to vector<16x1xf32>
    %214 = arith.divf %212, %213 : vector<16x1xf32>
    %215 = vector.broadcast %207 : vector<16x1xf32> to vector<16x64xf32>
    %216 = arith.subf %201, %215 : vector<16x64xf32>
    %cst_91 = arith.constant 9.99999974E-6 : f32
    %217 = vector.broadcast %cst_91 : f32 to vector<16x1xf32>
    %218 = arith.addf %214, %217 : vector<16x1xf32>
    %219 = math.rsqrt %218 : vector<16x1xf32>
    %220 = vector.broadcast %219 : vector<16x1xf32> to vector<16x64xf32>
    %221 = arith.mulf %216, %220 : vector<16x64xf32>
    %222 = vector.broadcast %202 : vector<1x64xf32> to vector<16x64xf32>
    %223 = arith.mulf %221, %222 : vector<16x64xf32>
    %224 = vector.broadcast %203 : vector<1x64xf32> to vector<16x64xf32>
    %225 = arith.addf %223, %224 : vector<16x64xf32>
    %226 = arith.truncf %225 : vector<16x64xf32> to vector<16x64xbf16>
    %c0_92 = arith.constant 0 : index
    %c0_93 = arith.constant 0 : index
    %227 = vector.load %arg22[%c0_92, %c0_93] : memref<64x256xbf16, #tpu.memory_space<vmem>>, vector<64x256xbf16>
    %cst_94 = arith.constant dense<0.000000e+00> : vector<16x256xf32>
    %228 = tpu.matmul %226, %227, %cst_94 {dimension_numbers = #tpu.dot_dimension_numbers<[1], [0], [0], [1], [0, 0, 1, 1], [], []>} : vector<16x64xbf16>, vector<64x256xbf16>, vector<16x256xf32> -> vector<16x256xf32>
    %c0_95 = arith.constant 0 : index
    %c0_96 = arith.constant 0 : index
    %229 = vector.load %arg23[%c0_95, %c0_96] : memref<1x256xf32, #tpu.memory_space<vmem>>, vector<1x256xf32>
    %230 = vector.broadcast %229 : vector<1x256xf32> to vector<16x256xf32>
    %231 = arith.addf %228, %230 : vector<16x256xf32>
    %c0_97 = arith.constant 0 : index
    %c0_98 = arith.constant 0 : index
    %232 = vector.load %arg24[%c0_97, %c0_98] : memref<64x256xbf16, #tpu.memory_space<vmem>>, vector<64x256xbf16>
    %cst_99 = arith.constant dense<0.000000e+00> : vector<16x256xf32>
    %233 = tpu.matmul %226, %232, %cst_99 {dimension_numbers = #tpu.dot_dimension_numbers<[1], [0], [0], [1], [0, 0, 1, 1], [], []>} : vector<16x64xbf16>, vector<64x256xbf16>, vector<16x256xf32> -> vector<16x256xf32>
    %c0_100 = arith.constant 0 : index
    %c0_101 = arith.constant 0 : index
    %234 = vector.load %arg25[%c0_100, %c0_101] : memref<1x256xf32, #tpu.memory_space<vmem>>, vector<1x256xf32>
    %235 = vector.broadcast %234 : vector<1x256xf32> to vector<16x256xf32>
    %236 = arith.addf %233, %235 : vector<16x256xf32>
    %cst_102 = arith.constant 5.000000e-01 : f32
    %237 = vector.broadcast %cst_102 : f32 to vector<16x256xf32>
    %238 = arith.mulf %237, %236 : vector<16x256xf32>
    %cst_103 = arith.constant 0.707106769 : f32
    %239 = vector.broadcast %cst_103 : f32 to vector<16x256xf32>
    %240 = arith.mulf %236, %239 : vector<16x256xf32>
    %241 = math.erf %240 : vector<16x256xf32>
    %cst_104 = arith.constant 1.000000e+00 : f32
    %242 = vector.broadcast %cst_104 : f32 to vector<16x256xf32>
    %243 = arith.addf %242, %241 : vector<16x256xf32>
    %244 = arith.mulf %238, %243 : vector<16x256xf32>
    %245 = arith.mulf %231, %244 : vector<16x256xf32>
    %c0_105 = arith.constant 0 : index
    %c0_106 = arith.constant 0 : index
    %246 = vector.load %arg26[%c0_105, %c0_106] : memref<256x64xbf16, #tpu.memory_space<vmem>>, vector<256x64xbf16>
    %247 = arith.truncf %245 : vector<16x256xf32> to vector<16x256xbf16>
    %cst_107 = arith.constant dense<0.000000e+00> : vector<16x64xf32>
    %248 = tpu.matmul %247, %246, %cst_107 {dimension_numbers = #tpu.dot_dimension_numbers<[1], [0], [0], [1], [0, 0, 1, 1], [], []>} : vector<16x256xbf16>, vector<256x64xbf16>, vector<16x64xf32> -> vector<16x64xf32>
    %249 = arith.addf %201, %248 : vector<16x64xf32>
    %c0_108 = arith.constant 0 : index
    %c0_109 = arith.constant 0 : index
    %250 = vector.load %arg27[%c0_108, %c0_109] : memref<1x64xf32, #tpu.memory_space<vmem>>, vector<1x64xf32>
    %251 = vector.broadcast %250 : vector<1x64xf32> to vector<16x64xf32>
    %252 = arith.addf %249, %251 : vector<16x64xf32>
    %c0_110 = arith.constant 0 : index
    %c0_111 = arith.constant 0 : index
    %253 = vector.load %arg28[%c0_110, %c0_111] : memref<64x64xbf16, #tpu.memory_space<vmem>>, vector<64x64xbf16>
    %254 = arith.truncf %252 : vector<16x64xf32> to vector<16x64xbf16>
    %cst_112 = arith.constant dense<0.000000e+00> : vector<16x64xf32>
    %255 = tpu.matmul %254, %253, %cst_112 {dimension_numbers = #tpu.dot_dimension_numbers<[1], [0], [0], [1], [0, 0, 1, 1], [], []>} : vector<16x64xbf16>, vector<64x64xbf16>, vector<16x64xf32> -> vector<16x64xf32>
    %c0_113 = arith.constant 0 : index
    %c0_114 = arith.constant 0 : index
    %256 = vector.load %arg29[%c0_113, %c0_114] : memref<1x64xf32, #tpu.memory_space<vmem>>, vector<1x64xf32>
    %257 = vector.broadcast %256 : vector<1x64xf32> to vector<16x64xf32>
    %258 = arith.addf %255, %257 : vector<16x64xf32>
    %259 = arith.addf %258, %1 : vector<16x64xf32>
    %c0_115 = arith.constant 0 : index
    %c0_116 = arith.constant 0 : index
    %c0_117 = arith.constant 0 : index
    %260 = vector.load %arg30[%c0_115, %c0_116, %c0_117] : memref<1x16x64xf32, #tpu.memory_space<vmem>>, vector<1x16x64xf32>
    %261 = vector.shape_cast %260 : vector<1x16x64xf32> to vector<16x64xf32>
    %262 = vector.shape_cast %259 : vector<16x64xf32> to vector<1x16x64xf32>
    tpu.vector_store %arg30[%c0_115, %c0_116, %c0_117], %262 {strides = array<i32>} : memref<1x16x64xf32, #tpu.memory_space<vmem>>, vector<1x16x64xf32>,
    return
  }
  func.func @transform_0(%arg0: i32) -> (i32, i32, i32) {
    %c0_i32 = arith.constant 0 : i32
    %c0_i32_0 = arith.constant 0 : i32
    %c0_i32_1 = arith.constant 0 : i32
    return %arg0, %c0_i32, %c0_i32_0 : i32, i32, i32
  }
  func.func @transform_1(%arg0: i32) -> (i32, i32, i32) {
    %c0_i32 = arith.constant 0 : i32
    %c0_i32_0 = arith.constant 0 : i32
    %c0_i32_1 = arith.constant 0 : i32
    return %arg0, %c0_i32, %c0_i32_0 : i32, i32, i32
  }
  func.func @transform_2(%arg0: i32) -> (i32, i32) {
    %c0_i32 = arith.constant 0 : i32
    %c0_i32_0 = arith.constant 0 : i32
    %c0_i32_1 = arith.constant 0 : i32
    return %c0_i32, %c0_i32_0 : i32, i32
  }
  func.func @transform_3(%arg0: i32) -> (i32, i32) {
    %c0_i32 = arith.constant 0 : i32
    %c0_i32_0 = arith.constant 0 : i32
    %c0_i32_1 = arith.constant 0 : i32
    return %c0_i32, %c0_i32_0 : i32, i32
  }
  func.func @transform_4(%arg0: i32) -> (i32, i32) {
    %c0_i32 = arith.constant 0 : i32
    %c0_i32_0 = arith.constant 0 : i32
    %c0_i32_1 = arith.constant 0 : i32
    return %c0_i32, %c0_i32_0 : i32, i32
  }
  func.func @transform_5(%arg0: i32) -> (i32, i32) {
    %c0_i32 = arith.constant 0 : i32
    %c0_i32_0 = arith.constant 0 : i32
    %c0_i32_1 = arith.constant 0 : i32
    return %c0_i32, %c0_i32_0 : i32, i32
  }
  func.func @transform_6(%arg0: i32) -> (i32, i32) {
    %c0_i32 = arith.constant 0 : i32
    %c0_i32_0 = arith.constant 0 : i32
    %c0_i32_1 = arith.constant 0 : i32
    return %c0_i32, %c0_i32_0 : i32, i32
  }
  func.func @transform_7(%arg0: i32) -> (i32, i32) {
    %c0_i32 = arith.constant 0 : i32
    %c0_i32_0 = arith.constant 0 : i32
    %c0_i32_1 = arith.constant 0 : i32
    return %c0_i32, %c0_i32_0 : i32, i32
  }
  func.func @transform_8(%arg0: i32) -> (i32, i32) {
    %c0_i32 = arith.constant 0 : i32
    %c0_i32_0 = arith.constant 0 : i32
    %c0_i32_1 = arith.constant 0 : i32
    return %c0_i32, %c0_i32_0 : i32, i32
  }
  func.func @transform_9(%arg0: i32) -> (i32, i32) {
    %c0_i32 = arith.constant 0 : i32
    %c0_i32_0 = arith.constant 0 : i32
    %c0_i32_1 = arith.constant 0 : i32
    return %c0_i32, %c0_i32_0 : i32, i32
  }
  func.func @transform_10(%arg0: i32) -> (i32, i32) {
    %c0_i32 = arith.constant 0 : i32
    %c0_i32_0 = arith.constant 0 : i32
    %c0_i32_1 = arith.constant 0 : i32
    return %c0_i32, %c0_i32_0 : i32, i32
  }
  func.func @transform_11(%arg0: i32) -> (i32, i32) {
    %c0_i32 = arith.constant 0 : i32
    %c0_i32_0 = arith.constant 0 : i32
    %c0_i32_1 = arith.constant 0 : i32
    return %c0_i32, %c0_i32_0 : i32, i32
  }
  func.func @transform_12(%arg0: i32) -> (i32, i32) {
    %c0_i32 = arith.constant 0 : i32
    %c0_i32_0 = arith.constant 0 : i32
    %c0_i32_1 = arith.constant 0 : i32
    return %c0_i32, %c0_i32_0 : i32, i32
  }
  func.func @transform_13(%arg0: i32) -> (i32, i32) {
    %c0_i32 = arith.constant 0 : i32
    %c0_i32_0 = arith.constant 0 : i32
    %c0_i32_1 = arith.constant 0 : i32
    return %c0_i32, %c0_i32_0 : i32, i32
  }
  func.func @transform_14(%arg0: i32) -> (i32, i32) {
    %c0_i32 = arith.constant 0 : i32
    %c0_i32_0 = arith.constant 0 : i32
    %c0_i32_1 = arith.constant 0 : i32
    return %c0_i32, %c0_i32_0 : i32, i32
  }
  func.func @transform_15(%arg0: i32) -> (i32, i32) {
    %c0_i32 = arith.constant 0 : i32
    %c0_i32_0 = arith.constant 0 : i32
    %c0_i32_1 = arith.constant 0 : i32
    return %c0_i32, %c0_i32_0 : i32, i32
  }
  func.func @transform_16(%arg0: i32) -> (i32, i32) {
    %c0_i32 = arith.constant 0 : i32
    %c0_i32_0 = arith.constant 0 : i32
    %c0_i32_1 = arith.constant 0 : i32
    return %c0_i32, %c0_i32_0 : i32, i32
  }
  func.func @transform_17(%arg0: i32) -> (i32, i32) {
    %c0_i32 = arith.constant 0 : i32
    %c0_i32_0 = arith.constant 0 : i32
    %c0_i32_1 = arith.constant 0 : i32
    return %c0_i32, %c0_i32_0 : i32, i32
  }
  func.func @transform_18(%arg0: i32) -> (i32, i32) {
    %c0_i32 = arith.constant 0 : i32
    %c0_i32_0 = arith.constant 0 : i32
    %c0_i32_1 = arith.constant 0 : i32
    return %c0_i32, %c0_i32_0 : i32, i32
  }
  func.func @transform_19(%arg0: i32) -> (i32, i32) {
    %c0_i32 = arith.constant 0 : i32
    %c0_i32_0 = arith.constant 0 : i32
    %c0_i32_1 = arith.constant 0 : i32
    return %c0_i32, %c0_i32_0 : i32, i32
  }
  func.func @transform_20(%arg0: i32) -> (i32, i32) {
    %c0_i32 = arith.constant 0 : i32
    %c0_i32_0 = arith.constant 0 : i32
    %c0_i32_1 = arith.constant 0 : i32
    return %c0_i32, %c0_i32_0 : i32, i32
  }
  func.func @transform_21(%arg0: i32) -> (i32, i32) {
    %c0_i32 = arith.constant 0 : i32
    %c0_i32_0 = arith.constant 0 : i32
    %c0_i32_1 = arith.constant 0 : i32
    return %c0_i32, %c0_i32_0 : i32, i32
  }
  func.func @transform_22(%arg0: i32) -> (i32, i32) {
    %c0_i32 = arith.constant 0 : i32
    %c0_i32_0 = arith.constant 0 : i32
    %c0_i32_1 = arith.constant 0 : i32
    return %c0_i32, %c0_i32_0 : i32, i32
  }
  func.func @transform_23(%arg0: i32) -> (i32, i32) {
    %c0_i32 = arith.constant 0 : i32
    %c0_i32_0 = arith.constant 0 : i32
    %c0_i32_1 = arith.constant 0 : i32
    return %c0_i32, %c0_i32_0 : i32, i32
  }
  func.func @transform_24(%arg0: i32) -> (i32, i32) {
    %c0_i32 = arith.constant 0 : i32
    %c0_i32_0 = arith.constant 0 : i32
    %c0_i32_1 = arith.constant 0 : i32
    return %c0_i32, %c0_i32_0 : i32, i32
  }
  func.func @transform_25(%arg0: i32) -> (i32, i32) {
    %c0_i32 = arith.constant 0 : i32
    %c0_i32_0 = arith.constant 0 : i32
    %c0_i32_1 = arith.constant 0 : i32
    return %c0_i32, %c0_i32_0 : i32, i32
  }
  func.func @transform_26(%arg0: i32) -> (i32, i32) {
    %c0_i32 = arith.constant 0 : i32
    %c0_i32_0 = arith.constant 0 : i32
    %c0_i32_1 = arith.constant 0 : i32
    return %c0_i32, %c0_i32_0 : i32, i32
  }
  func.func @transform_27(%arg0: i32) -> (i32, i32) {
    %c0_i32 = arith.constant 0 : i32
    %c0_i32_0 = arith.constant 0 : i32
    %c0_i32_1 = arith.constant 0 : i32
    return %c0_i32, %c0_i32_0 : i32, i32
  }
  func.func @transform_28(%arg0: i32) -> (i32, i32) {
    %c0_i32 = arith.constant 0 : i32
    %c0_i32_0 = arith.constant 0 : i32
    %c0_i32_1 = arith.constant 0 : i32
    return %c0_i32, %c0_i32_0 : i32, i32
  }
  func.func @transform_29(%arg0: i32) -> (i32, i32, i32) {
    %c0_i32 = arith.constant 0 : i32
    %c0_i32_0 = arith.constant 0 : i32
    %c0_i32_1 = arith.constant 0 : i32
    return %arg0, %c0_i32, %c0_i32_0 : i32, i32, i32
  }
}

</mosaic_0001>

<llo_original>
// kernel: cross_attn_down_block_1d.5
$region0: #{cross_attn_down_block_1d.5}
  #allocation0 [shape = 'u32[]', space=smem, size = 0x4, offset = 0x4, fixed_abs, tag = 'smem constant byte address 0x4 - core index']
  #allocation1 [shape = 'u32[144,128]{1,0:T(1,128)}', space=vmem, size = 0x12000, scoped, tag = 'internal scratch']
  %s0 = inlined_call_operand.vmem [shape: f32[2,8,64], index: 0, kind: input, shape index: {}]
  %s1 = inlined_call_operand.vmem [shape: f32[2,8,64], index: 1, kind: input, shape index: {}]
  %s2 = inlined_call_operand.vmem [shape: bf16[3,64,64], index: 2, kind: input, shape index: {}]
  %s3 = inlined_call_operand.vmem [shape: f32[1,64], index: 3, kind: input, shape index: {}]
  %s4 = inlined_call_operand.vmem [shape: f32[2,8,64], index: 4, kind: output, shape index: {}]
  %s5 = sld [smem:[#allocation0]]
  $region49: #{cross_attn_down_block_1d.5} parent=0
    _
  %s7 = ssub.s32 1, %s5
  %s8 = scalar_select 0, %s7, %s5
  loop: start=0, step=1, limit=4
  $region2: #{cross_attn_down_block_1d.5} parent=0 // loop_pre_header
    _
  $region3: #{cross_attn_down_block_1d.5} parent=0 // loop_header
    %s10 = sphi 0, %s14
    %p11 = scmp.ge.s32.totalorder %s10, 4
    %s20 = sphi 0, %s22
    %s23 = sphi 0, %s20
    %s24 = sphi 0, %s23
    %s40 = sphi 0, %s24
    %s46 = sphi 0, %s48
    %s49 = sphi 0, %s46
    %s50 = sphi 0, %s49
    %s66 = sphi 0, %s50
    %s70 = sphi 0, %s70
    %s72 = sphi 0, %s70
    %s73 = sphi 0, %s72
    %s87 = sphi 0, %s73
    %s91 = sphi 0, %s91
    %s93 = sphi 0, %s91
    %s94 = sphi 0, %s93
    %s108 = sphi 0, %s94
    %s114 = sphi 0, %s116
    %s117 = sphi 0, %s114
    %s118 = sphi 0, %s117
    %s134 = sphi 0, %s118
  $region4: #{cross_attn_down_block_1d.5} parent=0 // loop_header_branch
    %13 = sbr.rel (%p11) target = $region8
  $region5: #{cross_attn_down_block_1d.5} parent=0 // loop_body
    %s15 = ssub.s32 %s10, 1
    %s16 = ssub.s32 %s10, 2
    %s17 = sadd.s32 %s10, 1
    %s18 = ssub.s32 %s10, %s17
    %p19 = scmp.eq.s32.totalorder %s18, 0
    %s21 = sadd.s32 %s20, 1
    %s22 = scalar_select %p19, %s20, %s21
    %p25 = pneg %p19
    %p26 = scmp.eq.s32.totalorder %s10, 1
    %p27 = por %p25, %p26
    %p28 = scmp.ne.s32.totalorder %s20, %s23
    %p29 = scmp.eq.s32.totalorder %s10, 0
    %p30 = por %p28, %p29
    %p31 = scmp.ne.s32.totalorder %s20, %s23
    %p32 = scmp.eq.s32.totalorder %s15, 1
    %p33 = por %p31, %p32
    %p34 = scmp.ne.s32.totalorder %s23, %s24
    %p35 = scmp.eq.s32.totalorder %s15, 0
    %p36 = por %p34, %p35
    %p37 = scmp.ne.s32.totalorder %s23, %s24
    %p38 = scmp.eq.s32.totalorder %s16, 1
    %p39 = por %p37, %p38
    %p41 = scmp.ne.s32.totalorder %s24, %s40
    %p42 = scmp.eq.s32.totalorder %s16, 0
    %p43 = por %p41, %p42
    %s44 = ssub.s32 %s10, %s17
    %p45 = scmp.eq.s32.totalorder %s44, 0
    %s47 = sadd.s32 %s46, 1
    %s48 = scalar_select %p45, %s46, %s47
    %p51 = pneg %p45
    %p52 = scmp.eq.s32.totalorder %s10, 1
    %p53 = por %p51, %p52
    %p54 = scmp.ne.s32.totalorder %s46, %s49
    %p55 = scmp.eq.s32.totalorder %s10, 0
    %p56 = por %p54, %p55
    %p57 = scmp.ne.s32.totalorder %s46, %s49
    %p58 = scmp.eq.s32.totalorder %s15, 1
    %p59 = por %p57, %p58
    %p60 = scmp.ne.s32.totalorder %s49, %s50
    %p61 = scmp.eq.s32.totalorder %s15, 0
    %p62 = por %p60, %p61
    %p63 = scmp.ne.s32.totalorder %s49, %s50
    %p64 = scmp.eq.s32.totalorder %s16, 1
    %p65 = por %p63, %p64
    %p67 = scmp.ne.s32.totalorder %s50, %s66
    %p68 = scmp.eq.s32.totalorder %s16, 0
    %p69 = por %p67, %p68
    %s71 = sadd.s32 %s70, 1
    %p74 = scmp.eq.s32.totalorder %s10, 1
    %p75 = scmp.ne.s32.totalorder %s70, %s72
    %p76 = scmp.eq.s32.totalorder %s10, 0
    %p77 = por %p75, %p76
    %p78 = scmp.ne.s32.totalorder %s70, %s72
    %p79 = scmp.eq.s32.totalorder %s15, 1
    %p80 = por %p78, %p79
    %p81 = scmp.ne.s32.totalorder %s72, %s73
    %p82 = scmp.eq.s32.totalorder %s15, 0
    %p83 = por %p81, %p82
    %p84 = scmp.ne.s32.totalorder %s72, %s73
    %p85 = scmp.eq.s32.totalorder %s16, 1
    %p86 = por %p84, %p85
    %p88 = scmp.ne.s32.totalorder %s73, %s87
    %p89 = scmp.eq.s32.totalorder %s16, 0
    %p90 = por %p88, %p89
    %s92 = sadd.s32 %s91, 1
    %p95 = scmp.eq.s32.totalorder %s10, 1
    %p96 = scmp.ne.s32.totalorder %s91, %s93
    %p97 = scmp.eq.s32.totalorder %s10, 0
    %p98 = por %p96, %p97
    %p99 = scmp.ne.s32.totalorder %s91, %s93
    %p100 = scmp.eq.s32.totalorder %s15, 1
    %p101 = por %p99, %p100
    %p102 = scmp.ne.s32.totalorder %s93, %s94
    %p103 = scmp.eq.s32.totalorder %s15, 0
    %p104 = por %p102, %p103
    %p105 = scmp.ne.s32.totalorder %s93, %s94
    %p106 = scmp.eq.s32.totalorder %s16, 1
    %p107 = por %p105, %p106
    %p109 = scmp.ne.s32.totalorder %s94, %s108
    %p110 = scmp.eq.s32.totalorder %s16, 0
    %p111 = por %p109, %p110
    %s112 = ssub.s32 %s10, %s17
    %p113 = scmp.eq.s32.totalorder %s112, 0
    %s115 = sadd.s32 %s114, 1
    %s116 = scalar_select %p113, %s114, %s115
    %p119 = pneg %p113
    %p120 = scmp.eq.s32.totalorder %s10, 1
    %p121 = por %p119, %p120
    %p122 = scmp.ne.s32.totalorder %s114, %s117
    %p123 = scmp.eq.s32.totalorder %s10, 0
    %p124 = por %p122, %p123
    %p125 = scmp.ne.s32.totalorder %s114, %s117
    %p126 = scmp.eq.s32.totalorder %s15, 1
    %p127 = por %p125, %p126
    %p128 = scmp.ne.s32.totalorder %s117, %s118
    %p129 = scmp.eq.s32.totalorder %s15, 0
    %p130 = por %p128, %p129
    %p131 = scmp.ne.s32.totalorder %s117, %s118
    %p132 = scmp.eq.s32.totalorder %s16, 1
    %p133 = por %p131, %p132
    %p135 = scmp.ne.s32.totalorder %s118, %s134
    %p136 = scmp.eq.s32.totalorder %s16, 0
    %p137 = por %p135, %p136
    %p138 = scmp.le.s32.totalorder 1, %s10
    %p139 = scmp.lt.s32.totalorder %s10, 3
    %p140 = pnand %p138, %p139
    %p141 = pneg %p140
    // Predicated region
    $region9: #{cross_attn_down_block_1d.5} parent=5 // pred_check
      _
    $region10: #{cross_attn_down_block_1d.5} parent=5 // pred_check_branch
      %143 = sbr.rel (%p140) target = $region12
    $region11: #{cross_attn_down_block_1d.5} parent=5 // pred_region
      %s144 = ssub.s32 %s10, 1
      // Predicated region
      $region13: #{cross_attn_down_block_1d.5} parent=11 // pred_check
        %p145 = pneg %p83
      $region14: #{cross_attn_down_block_1d.5} parent=11 // pred_check_branch
        %147 = sbr.rel (%p145) target = $region16
      $region15: #{cross_attn_down_block_1d.5} parent=11 // pred_region
        _
      $region16: #{cross_attn_down_block_1d.5} parent=11 // pred_fallthru
        _
      // Predicated region
      $region17: #{cross_attn_down_block_1d.5} parent=11 // pred_check
        %p148 = pneg %p104
      $region18: #{cross_attn_down_block_1d.5} parent=11 // pred_check_branch
        %150 = sbr.rel (%p148) target = $region20
      $region19: #{cross_attn_down_block_1d.5} parent=11 // pred_region
        _
      $region20: #{cross_attn_down_block_1d.5} parent=11 // pred_fallthru
        _
    $region12: #{cross_attn_down_block_1d.5} parent=5 // pred_fallthru
      _
    %p151 = scmp.lt.s32.totalorder %s10, 2
    // Predicated region
    $region21: #{cross_attn_down_block_1d.5} parent=5 // pred_check
      %p152 = pneg %p151
    $region22: #{cross_attn_down_block_1d.5} parent=5 // pred_check_branch
      %154 = sbr.rel (%p152) target = $region24
    $region23: #{cross_attn_down_block_1d.5} parent=5 // pred_region
      // Predicated region
      $region25: #{cross_attn_down_block_1d.5} parent=23 // pred_check
        %p155 = pneg %p30
      $region26: #{cross_attn_down_block_1d.5} parent=23 // pred_check_branch
        %157 = sbr.rel (%p155) target = $region28
      $region27: #{cross_attn_down_block_1d.5} parent=23 // pred_region
        %p158 = scmp.lt.s32.totalorder %s10, 1
        %s159 = scalar_select %p158, %s10, 1
        %s160 = smul.addr %s159, 8
        %s161 = scalar_lea.vmem %s0, %s160
      $region28: #{cross_attn_down_block_1d.5} parent=23 // pred_fallthru
        _
      // Predicated region
      $region29: #{cross_attn_down_block_1d.5} parent=23 // pred_check
        %p162 = pneg %p56
      $region30: #{cross_attn_down_block_1d.5} parent=23 // pred_check_branch
        %164 = sbr.rel (%p162) target = $region32
      $region31: #{cross_attn_down_block_1d.5} parent=23 // pred_region
        %p165 = scmp.lt.s32.totalorder %s10, 1
        %s166 = scalar_select %p165, %s10, 1
        %s167 = smul.addr %s166, 8
        %s168 = scalar_lea.vmem %s1, %s167
      $region32: #{cross_attn_down_block_1d.5} parent=23 // pred_fallthru
        _
    $region24: #{cross_attn_down_block_1d.5} parent=5 // pred_fallthru
      _
    %p169 = scmp.le.s32.totalorder 1, %s10
    %p170 = scmp.lt.s32.totalorder %s10, 3
    %p171 = pnand %p169, %p170
    %p172 = pneg %p171
    // Predicated region
    $region33: #{cross_attn_down_block_1d.5} parent=5 // pred_check
      _
    $region34: #{cross_attn_down_block_1d.5} parent=5 // pred_check_branch
      %174 = sbr.rel (%p171) target = $region36
    $region35: #{cross_attn_down_block_1d.5} parent=5 // pred_region
      %s175 = ssub.s32 %s10, 1
      %p176 = scmp.lt.s32.totalorder %s15, 1
      %s177 = scalar_select %p176, %s15, 1
      %s178 = smul.addr %s177, 8
      %s179 = scalar_lea.vmem %s0, %s178
      %p180 = pneg %p36
      %p181 = pneg %p33
      %p182 = scmp.lt.s32.totalorder %s15, 1
      %s183 = scalar_select %p182, %s15, 1
      %s184 = smul.addr %s183, 8
      %s185 = scalar_lea.vmem %s1, %s184
      %p186 = pneg %p62
      %p187 = pneg %p59
      %p188 = pneg %p83
      %p189 = pneg %p80
      %p190 = pneg %p104
      %p191 = pneg %p101
      %p192 = pneg %p130
      %p193 = pneg %p127
      %p194 = scmp.lt.s32.totalorder %s15, 1
      %s195 = scalar_select %p194, %s15, 1
      %s196 = smul.addr %s195, 8
      %s197 = scalar_lea.vmem %s4, %s196
      %p198 = scmp.lt.s32.totalorder %s15, 1
      %s199 = scalar_select %p198, %s15, 1
      %s200 = smul.addr %s199, 8
      %s201 = scalar_lea.vmem %s0, %s200
      %p202 = scmp.lt.s32.totalorder %s15, 1
      %s203 = scalar_select %p202, %s15, 1
      %s204 = smul.addr %s203, 8
      %s205 = scalar_lea.vmem %s1, %s204
      %p206 = scmp.lt.s32.totalorder %s15, 1
      %s207 = scalar_select %p206, %s15, 1
      %s208 = smul.addr %s207, 8
      %s209 = scalar_lea.vmem %s4, %s208
      %v211 = vld [vmem:[%s201] sm:$0xff]
      %v212 = vld [vmem:[%s205] sm:$0xff]
      %v214 = vrot.slane %v212, 7
      %vm216 = vcmask 1040384
      %v217 = vsel %vm216, 0.0, %v214
      %v218 = vpack.c.bf16 %v217, %v217
      %v219 = vld [vmem:[%s2] sm:$0xf]
      %v220 = vld [vmem:[%s2 + $0x4] sm:$0xf]
      %v221 = vld [vmem:[%s2 + $0x8] sm:$0xf]
      %v222 = vld [vmem:[%s2 + $0xc] sm:$0xf]
      %v223 = vld [vmem:[%s2 + $0x10] sm:$0xf]
      %v224 = vld [vmem:[%s2 + $0x14] sm:$0xf]
      %v225 = vld [vmem:[%s2 + $0x18] sm:$0xf]
      %v226 = vld [vmem:[%s2 + $0x1c] sm:$0xf]
      %v227 = vpack.c.bf16 %v211, %v211
      %s228 = scalar_lea.vmem %s2, 32
      %v229 = vld [vmem:[%s228] sm:$0xf]
      %v230 = vld [vmem:[%s228 + $0x4] sm:$0xf]
      %v231 = vld [vmem:[%s228 + $0x8] sm:$0xf]
      %v232 = vld [vmem:[%s228 + $0xc] sm:$0xf]
      %v233 = vld [vmem:[%s228 + $0x10] sm:$0xf]
      %v234 = vld [vmem:[%s228 + $0x14] sm:$0xf]
      %v235 = vld [vmem:[%s228 + $0x18] sm:$0xf]
      %v236 = vld [vmem:[%s228 + $0x1c] sm:$0xf]
      %v245 = vunpack.c.l.b16 %v229
      %v246 = vunpack.c.l.b16 %v230
      %v247 = vunpack.c.l.b16 %v231
      %v248 = vunpack.c.l.b16 %v232
      %v249 = vunpack.c.l.b16 %v233
      %v250 = vunpack.c.l.b16 %v234
      %v251 = vunpack.c.l.b16 %v235
      %v252 = vunpack.c.l.b16 %v236
      %v253 = vpack.c.b16 %v246, %v245
      %v254 = vpack.c.b16 %v248, %v247
      %v255 = vpack.c.b16 %v250, %v249
      %v256 = vpack.c.b16 %v252, %v251
      %vm261 = vcmask 523264
      %v263 = vsel %vm261, %v227, 0
      %265 = vmatprep.subr.bf16.mxu0 0
      %266 = vmatpush1.bf16.msra.mxu0 %v253
      %267 = vmatprep.subr.bf16.mxu0 0
      %268 = vmatpush1.bf16.msra.mxu0 %v254
      %269 = vmatprep.subr.bf16.mxu0 0
      %270 = vmatpush1.bf16.msra.mxu0 %v255
      %271 = vmatprep.subr.bf16.mxu0 0
      %272 = vmatpush1.bf16.msra.mxu0 %v256
      %273 = vmatprep.subr.bf16.mxu0 0
      %274 = vmatpush1.bf16.msra.mxu0 0
      %275 = vmatprep.subr.bf16.mxu0 0
      %276 = vmatpush1.bf16.msra.mxu0 0
      %277 = vmatprep.subr.bf16.mxu0 0
      %278 = vmatpush1.bf16.msra.mxu0 0
      %279 = vmatprep.subr.bf16.mxu0 0
      %280 = vmatpush1.bf16.msra.mxu0 0
      %281 = vmatprep.subr.bf16.mxu0 0
      %282 = vmatpush1.bf16.msra.mxu0 0
      %283 = vmatprep.subr.bf16.mxu0 0
      %284 = vmatpush1.bf16.msra.mxu0 0
      %285 = vmatprep.subr.bf16.mxu0 0
      %286 = vmatpush1.bf16.msra.mxu0 0
      %287 = vmatprep.subr.bf16.mxu0 0
      %288 = vmatpush1.bf16.msra.mxu0 0
      %289 = vmatprep.subr.bf16.mxu0 0
      %290 = vmatpush1.bf16.msra.mxu0 0
      %291 = vmatprep.subr.bf16.mxu0 0
      %292 = vmatpush1.bf16.msra.mxu0 0
      %293 = vmatprep.subr.bf16.mxu0 0
      %294 = vmatpush1.bf16.msra.mxu0 0
      %295 = vmatprep.subr.bf16.mxu0 0
      %296 = vmatpush1.bf16.msra.mxu0 0
      %297 = vmatprep.mubr.bf16.mxu0 0
      %298 = vmatmul.mubr.bf16.gmra.mrb[0].mxu0 %v263
      %v299 = vpop.f32.mrb[0].mxu0
      %v300 = vadd.f32 0.0, %v299
      %v301 = vpop.f32.mrb[0].mxu0
      %v302 = vpop.f32.mrb[0].mxu0
      %v303 = vpop.f32.mrb[0].mxu0
      %304 = vdwg.mxu0
      %v313 = vunpack.c.l.b16 %v219
      %v314 = vunpack.c.l.b16 %v220
      %v315 = vunpack.c.l.b16 %v221
      %v316 = vunpack.c.l.b16 %v222
      %v317 = vunpack.c.l.b16 %v223
      %v318 = vunpack.c.l.b16 %v224
      %v319 = vunpack.c.l.b16 %v225
      %v320 = vunpack.c.l.b16 %v226
      %v321 = vpack.c.b16 %v314, %v313
      %v322 = vpack.c.b16 %v316, %v315
      %v323 = vpack.c.b16 %v318, %v317
      %v324 = vpack.c.b16 %v320, %v319
      %v330 = vsel %vm261, %v218, 0
      %332 = vmatprep.subr.bf16.mxu0 0
      %333 = vmatpush1.bf16.msra.mxu0 %v321
      %334 = vmatprep.subr.bf16.mxu0 0
      %335 = vmatpush1.bf16.msra.mxu0 %v322
      %336 = vmatprep.subr.bf16.mxu0 0
      %337 = vmatpush1.bf16.msra.mxu0 %v323
      %338 = vmatprep.subr.bf16.mxu0 0
      %339 = vmatpush1.bf16.msra.mxu0 %v324
      %340 = vmatprep.subr.bf16.mxu0 0
      %341 = vmatpush1.bf16.msra.mxu0 0
      %342 = vmatprep.subr.bf16.mxu0 0
      %343 = vmatpush1.bf16.msra.mxu0 0
      %344 = vmatprep.subr.bf16.mxu0 0
      %345 = vmatpush1.bf16.msra.mxu0 0
      %346 = vmatprep.subr.bf16.mxu0 0
      %347 = vmatpush1.bf16.msra.mxu0 0
      %348 = vmatprep.subr.bf16.mxu0 0
      %349 = vmatpush1.bf16.msra.mxu0 0
      %350 = vmatprep.subr.bf16.mxu0 0
      %351 = vmatpush1.bf16.msra.mxu0 0
      %352 = vmatprep.subr.bf16.mxu0 0
      %353 = vmatpush1.bf16.msra.mxu0 0
      %354 = vmatprep.subr.bf16.mxu0 0
      %355 = vmatpush1.bf16.msra.mxu0 0
      %356 = vmatprep.subr.bf16.mxu0 0
      %357 = vmatpush1.bf16.msra.mxu0 0
      %358 = vmatprep.subr.bf16.mxu0 0
      %359 = vmatpush1.bf16.msra.mxu0 0
      %360 = vmatprep.subr.bf16.mxu0 0
      %361 = vmatpush1.bf16.msra.mxu0 0
      %362 = vmatprep.subr.bf16.mxu0 0
      %363 = vmatpush1.bf16.msra.mxu0 0
      %364 = vmatprep.mubr.bf16.mxu0 0
      %365 = vmatmul.mubr.bf16.gmra.mrb[0].mxu0 %v330
      %v366 = vpop.f32.mrb[0].mxu0
      %v367 = vadd.f32 %v300, %v366
      %v368 = vpop.f32.mrb[0].mxu0
      %v369 = vpop.f32.mrb[0].mxu0
      %v370 = vpop.f32.mrb[0].mxu0
      %371 = vdwg.mxu0
      %v372 = vpack.c.bf16 %v212, %v212
      %s373 = scalar_lea.vmem %s2, 64
      %v374 = vld [vmem:[%s373] sm:$0xf]
      %v375 = vld [vmem:[%s373 + $0x4] sm:$0xf]
      %v376 = vld [vmem:[%s373 + $0x8] sm:$0xf]
      %v377 = vld [vmem:[%s373 + $0xc] sm:$0xf]
      %v378 = vld [vmem:[%s373 + $0x10] sm:$0xf]
      %v379 = vld [vmem:[%s373 + $0x14] sm:$0xf]
      %v380 = vld [vmem:[%s373 + $0x18] sm:$0xf]
      %v381 = vld [vmem:[%s373 + $0x1c] sm:$0xf]
      %v390 = vunpack.c.l.b16 %v374
      %v391 = vunpack.c.l.b16 %v375
      %v392 = vunpack.c.l.b16 %v376
      %v393 = vunpack.c.l.b16 %v377
      %v394 = vunpack.c.l.b16 %v378
      %v395 = vunpack.c.l.b16 %v379
      %v396 = vunpack.c.l.b16 %v380
      %v397 = vunpack.c.l.b16 %v381
      %v398 = vpack.c.b16 %v391, %v390
      %v399 = vpack.c.b16 %v393, %v392
      %v400 = vpack.c.b16 %v395, %v394
      %v401 = vpack.c.b16 %v397, %v396
      %v407 = vsel %vm261, %v372, 0
      %409 = vmatprep.subr.bf16.mxu0 0
      %410 = vmatpush1.bf16.msra.mxu0 %v398
      %411 = vmatprep.subr.bf16.mxu0 0
      %412 = vmatpush1.bf16.msra.mxu0 %v399
      %413 = vmatprep.subr.bf16.mxu0 0
      %414 = vmatpush1.bf16.msra.mxu0 %v400
      %415 = vmatprep.subr.bf16.mxu0 0
      %416 = vmatpush1.bf16.msra.mxu0 %v401
      %417 = vmatprep.subr.bf16.mxu0 0
      %418 = vmatpush1.bf16.msra.mxu0 0
      %419 = vmatprep.subr.bf16.mxu0 0
      %420 = vmatpush1.bf16.msra.mxu0 0
      %421 = vmatprep.subr.bf16.mxu0 0
      %422 = vmatpush1.bf16.msra.mxu0 0
      %423 = vmatprep.subr.bf16.mxu0 0
      %424 = vmatpush1.bf16.msra.mxu0 0
      %425 = vmatprep.subr.bf16.mxu0 0
      %426 = vmatpush1.bf16.msra.mxu0 0
      %427 = vmatprep.subr.bf16.mxu0 0
      %428 = vmatpush1.bf16.msra.mxu0 0
      %429 = vmatprep.subr.bf16.mxu0 0
      %430 = vmatpush1.bf16.msra.mxu0 0
      %431 = vmatprep.subr.bf16.mxu0 0
      %432 = vmatpush1.bf16.msra.mxu0 0
      %433 = vmatprep.subr.bf16.mxu0 0
      %434 = vmatpush1.bf16.msra.mxu0 0
      %435 = vmatprep.subr.bf16.mxu0 0
      %436 = vmatpush1.bf16.msra.mxu0 0
      %437 = vmatprep.subr.bf16.mxu0 0
      %438 = vmatpush1.bf16.msra.mxu0 0
      %439 = vmatprep.subr.bf16.mxu0 0
      %440 = vmatpush1.bf16.msra.mxu0 0
      %441 = vmatprep.mubr.bf16.mxu0 0
      %442 = vmatmul.mubr.bf16.gmra.mrb[0].mxu0 %v407
      %v443 = vpop.f32.mrb[0].mxu0
      %v444 = vadd.f32 0.0, %v443
      %v445 = vpop.f32.mrb[0].mxu0
      %v446 = vpop.f32.mrb[0].mxu0
      %v447 = vpop.f32.mrb[0].mxu0
      %448 = vdwg.mxu0
      %v449 = vadd.f32 %v367, %v444
      %v450 = vld [vmem:[%s3] sm:$0x1]
      %v452 = vlaneseq
      %v453 = vshrl.u32 %v452, 7
      %v454 = vsub.s32 0, %v453
      %v455 = vrot.slane %v450, %v454
      %v457 = vadd.f32 %v449, %v455
      %458 = vst.msk [vmem:[%s209] sm:$0xff] %vm261, %v457
      %p459 = scmp.lt.s32.totalorder %s15, 1
      %s460 = scalar_select %p459, %s15, 1
      %s461 = smul.addr %s460, 8
      %s462 = scalar_lea.vmem %s4, %s461
      // Predicated region
      $region37: #{cross_attn_down_block_1d.5} parent=35 // pred_check
        %p463 = pneg %p127
      $region38: #{cross_attn_down_block_1d.5} parent=35 // pred_check_branch
        %465 = sbr.rel (%p463) target = $region40
      $region39: #{cross_attn_down_block_1d.5} parent=35 // pred_region
        _
      $region40: #{cross_attn_down_block_1d.5} parent=35 // pred_fallthru
        _
    $region36: #{cross_attn_down_block_1d.5} parent=5 // pred_fallthru
      _
    %p466 = scmp.le.s32.totalorder 2, %s10
    // Predicated region
    $region41: #{cross_attn_down_block_1d.5} parent=5 // pred_check
      %p467 = pneg %p466
    $region42: #{cross_attn_down_block_1d.5} parent=5 // pred_check_branch
      %469 = sbr.rel (%p467) target = $region44
    $region43: #{cross_attn_down_block_1d.5} parent=5 // pred_region
      %s470 = ssub.s32 %s10, 2
      // Predicated region
      $region45: #{cross_attn_down_block_1d.5} parent=43 // pred_check
        %p471 = pneg %p133
      $region46: #{cross_attn_down_block_1d.5} parent=43 // pred_check_branch
        %473 = sbr.rel (%p471) target = $region48
      $region47: #{cross_attn_down_block_1d.5} parent=43 // pred_region
        %p474 = scmp.lt.s32.totalorder %s16, 1
        %s475 = scalar_select %p474, %s16, 1
        %s476 = smul.addr %s475, 8
        %s477 = scalar_lea.vmem %s4, %s476
      $region48: #{cross_attn_down_block_1d.5} parent=43 // pred_fallthru
        _
    $region44: #{cross_attn_down_block_1d.5} parent=5 // pred_fallthru
      _
  $region6: #{cross_attn_down_block_1d.5} parent=0 // loop_footer
    %s14 = sadd.s32 1, %s10
  $region7: #{cross_attn_down_block_1d.5} parent=0 // loop_footer_branch
    %9 = sbr.rel target = $region3
  $region8: #{cross_attn_down_block_1d.5} parent=0 // loop_exit
    _

// kernel: cross_attn_down_block_1d.3
$region0: #{cross_attn_down_block_1d.3}
  #allocation0 [shape = 'u32[]', space=smem, size = 0x4, offset = 0x4, fixed_abs, tag = 'smem constant byte address 0x4 - core index']
  #allocation1 [shape = 'u32[144,128]{1,0:T(1,128)}', space=vmem, size = 0x12000, scoped, tag = 'internal scratch']
  %s0 = inlined_call_operand.vmem [shape: f32[2,16,32], index: 0, kind: input, shape index: {}]
  %s1 = inlined_call_operand.vmem [shape: f32[2,1,32], index: 1, kind: input, shape index: {}]
  %s2 = inlined_call_operand.vmem [shape: f32[1,32], index: 2, kind: input, shape index: {}]
  %s3 = inlined_call_operand.vmem [shape: f32[1,32], index: 3, kind: input, shape index: {}]
  %s4 = inlined_call_operand.vmem [shape: f32[32,8], index: 4, kind: input, shape index: {}]
  %s5 = inlined_call_operand.vmem [shape: f32[8,32], index: 5, kind: input, shape index: {}]
  %s6 = inlined_call_operand.vmem [shape: bf16[3,32,64], index: 6, kind: input, shape index: {}]
  %s7 = inlined_call_operand.vmem [shape: f32[1,64], index: 7, kind: input, shape index: {}]
  %s8 = inlined_call_operand.vmem [shape: bf16[32,64], index: 8, kind: input, shape index: {}]
  %s9 = inlined_call_operand.vmem [shape: f32[1,64], index: 9, kind: input, shape index: {}]
  %s10 = inlined_call_operand.vmem [shape: f32[1,64], index: 10, kind: input, shape index: {}]
  %s11 = inlined_call_operand.vmem [shape: f32[1,64], index: 11, kind: input, shape index: {}]
  %s12 = inlined_call_operand.vmem [shape: f32[64,8], index: 12, kind: input, shape index: {}]
  %s13 = inlined_call_operand.vmem [shape: f32[8,64], index: 13, kind: input, shape index: {}]
  %s14 = inlined_call_operand.vmem [shape: bf16[3,64,64], index: 14, kind: input, shape index: {}]
  %s15 = inlined_call_operand.vmem [shape: f32[1,64], index: 15, kind: input, shape index: {}]
  %s16 = inlined_call_operand.vmem [shape: bf16[32,64], index: 16, kind: input, shape index: {}]
  %s17 = inlined_call_operand.vmem [shape: f32[1,64], index: 17, kind: input, shape index: {}]
  %s18 = inlined_call_operand.vmem [shape: f32[2,16,64], index: 18, kind: output, shape index: {}]
  %s19 = sld [smem:[#allocation0]]
  $region105: #{cross_attn_down_block_1d.3} parent=0
    _
  %s21 = ssub.s32 1, %s19
  %s22 = scalar_select 0, %s21, %s19
  loop: start=0, step=1, limit=4
  $region2: #{cross_attn_down_block_1d.3} parent=0 // loop_pre_header
    _
  $region3: #{cross_attn_down_block_1d.3} parent=0 // loop_header
    %s24 = sphi 0, %s28
    %p25 = scmp.ge.s32.totalorder %s24, 4
    %s34 = sphi 0, %s36
    %s37 = sphi 0, %s34
    %s38 = sphi 0, %s37
    %s54 = sphi 0, %s38
    %s60 = sphi 0, %s62
    %s63 = sphi 0, %s60
    %s64 = sphi 0, %s63
    %s80 = sphi 0, %s64
    %s84 = sphi 0, %s84
    %s86 = sphi 0, %s84
    %s87 = sphi 0, %s86
    %s101 = sphi 0, %s87
    %s105 = sphi 0, %s105
    %s107 = sphi 0, %s105
    %s108 = sphi 0, %s107
    %s122 = sphi 0, %s108
    %s126 = sphi 0, %s126
    %s128 = sphi 0, %s126
    %s129 = sphi 0, %s128
    %s143 = sphi 0, %s129
    %s147 = sphi 0, %s147
    %s149 = sphi 0, %s147
    %s150 = sphi 0, %s149
    %s164 = sphi 0, %s150
    %s168 = sphi 0, %s168
    %s170 = sphi 0, %s168
    %s171 = sphi 0, %s170
    %s185 = sphi 0, %s171
    %s189 = sphi 0, %s189
    %s191 = sphi 0, %s189
    %s192 = sphi 0, %s191
    %s206 = sphi 0, %s192
    %s210 = sphi 0, %s210
    %s212 = sphi 0, %s210
    %s213 = sphi 0, %s212
    %s227 = sphi 0, %s213
    %s231 = sphi 0, %s231
    %s233 = sphi 0, %s231
    %s234 = sphi 0, %s233
    %s248 = sphi 0, %s234
    %s252 = sphi 0, %s252
    %s254 = sphi 0, %s252
    %s255 = sphi 0, %s254
    %s269 = sphi 0, %s255
    %s273 = sphi 0, %s273
    %s275 = sphi 0, %s273
    %s276 = sphi 0, %s275
    %s290 = sphi 0, %s276
    %s294 = sphi 0, %s294
    %s296 = sphi 0, %s294
    %s297 = sphi 0, %s296
    %s311 = sphi 0, %s297
    %s315 = sphi 0, %s315
    %s317 = sphi 0, %s315
    %s318 = sphi 0, %s317
    %s332 = sphi 0, %s318
    %s336 = sphi 0, %s336
    %s338 = sphi 0, %s336
    %s339 = sphi 0, %s338
    %s353 = sphi 0, %s339
    %s357 = sphi 0, %s357
    %s359 = sphi 0, %s357
    %s360 = sphi 0, %s359
    %s374 = sphi 0, %s360
    %s378 = sphi 0, %s378
    %s380 = sphi 0, %s378
    %s381 = sphi 0, %s380
    %s395 = sphi 0, %s381
    %s399 = sphi 0, %s399
    %s401 = sphi 0, %s399
    %s402 = sphi 0, %s401
    %s416 = sphi 0, %s402
    %s422 = sphi 0, %s424
    %s425 = sphi 0, %s422
    %s426 = sphi 0, %s425
    %s442 = sphi 0, %s426
  $region4: #{cross_attn_down_block_1d.3} parent=0 // loop_header_branch
    %27 = sbr.rel (%p25) target = $region8
  $region5: #{cross_attn_down_block_1d.3} parent=0 // loop_body
    %s29 = ssub.s32 %s24, 1
    %s30 = ssub.s32 %s24, 2
    %s31 = sadd.s32 %s24, 1
    %s32 = ssub.s32 %s24, %s31
    %p33 = scmp.eq.s32.totalorder %s32, 0
    %s35 = sadd.s32 %s34, 1
    %s36 = scalar_select %p33, %s34, %s35
    %p39 = pneg %p33
    %p40 = scmp.eq.s32.totalorder %s24, 1
    %p41 = por %p39, %p40
    %p42 = scmp.ne.s32.totalorder %s34, %s37
    %p43 = scmp.eq.s32.totalorder %s24, 0
    %p44 = por %p42, %p43
    %p45 = scmp.ne.s32.totalorder %s34, %s37
    %p46 = scmp.eq.s32.totalorder %s29, 1
    %p47 = por %p45, %p46
    %p48 = scmp.ne.s32.totalorder %s37, %s38
    %p49 = scmp.eq.s32.totalorder %s29, 0
    %p50 = por %p48, %p49
    %p51 = scmp.ne.s32.totalorder %s37, %s38
    %p52 = scmp.eq.s32.totalorder %s30, 1
    %p53 = por %p51, %p52
    %p55 = scmp.ne.s32.totalorder %s38, %s54
    %p56 = scmp.eq.s32.totalorder %s30, 0
    %p57 = por %p55, %p56
    %s58 = ssub.s32 %s24, %s31
    %p59 = scmp.eq.s32.totalorder %s58, 0
    %s61 = sadd.s32 %s60, 1
    %s62 = scalar_select %p59, %s60, %s61
    %p65 = pneg %p59
    %p66 = scmp.eq.s32.totalorder %s24, 1
    %p67 = por %p65, %p66
    %p68 = scmp.ne.s32.totalorder %s60, %s63
    %p69 = scmp.eq.s32.totalorder %s24, 0
    %p70 = por %p68, %p69
    %p71 = scmp.ne.s32.totalorder %s60, %s63
    %p72 = scmp.eq.s32.totalorder %s29, 1
    %p73 = por %p71, %p72
    %p74 = scmp.ne.s32.totalorder %s63, %s64
    %p75 = scmp.eq.s32.totalorder %s29, 0
    %p76 = por %p74, %p75
    %p77 = scmp.ne.s32.totalorder %s63, %s64
    %p78 = scmp.eq.s32.totalorder %s30, 1
    %p79 = por %p77, %p78
    %p81 = scmp.ne.s32.totalorder %s64, %s80
    %p82 = scmp.eq.s32.totalorder %s30, 0
    %p83 = por %p81, %p82
    %s85 = sadd.s32 %s84, 1
    %p88 = scmp.eq.s32.totalorder %s24, 1
    %p89 = scmp.ne.s32.totalorder %s84, %s86
    %p90 = scmp.eq.s32.totalorder %s24, 0
    %p91 = por %p89, %p90
    %p92 = scmp.ne.s32.totalorder %s84, %s86
    %p93 = scmp.eq.s32.totalorder %s29, 1
    %p94 = por %p92, %p93
    %p95 = scmp.ne.s32.totalorder %s86, %s87
    %p96 = scmp.eq.s32.totalorder %s29, 0
    %p97 = por %p95, %p96
    %p98 = scmp.ne.s32.totalorder %s86, %s87
    %p99 = scmp.eq.s32.totalorder %s30, 1
    %p100 = por %p98, %p99
    %p102 = scmp.ne.s32.totalorder %s87, %s101
    %p103 = scmp.eq.s32.totalorder %s30, 0
    %p104 = por %p102, %p103
    %s106 = sadd.s32 %s105, 1
    %p109 = scmp.eq.s32.totalorder %s24, 1
    %p110 = scmp.ne.s32.totalorder %s105, %s107
    %p111 = scmp.eq.s32.totalorder %s24, 0
    %p112 = por %p110, %p111
    %p113 = scmp.ne.s32.totalorder %s105, %s107
    %p114 = scmp.eq.s32.totalorder %s29, 1
    %p115 = por %p113, %p114
    %p116 = scmp.ne.s32.totalorder %s107, %s108
    %p117 = scmp.eq.s32.totalorder %s29, 0
    %p118 = por %p116, %p117
    %p119 = scmp.ne.s32.totalorder %s107, %s108
    %p120 = scmp.eq.s32.totalorder %s30, 1
    %p121 = por %p119, %p120
    %p123 = scmp.ne.s32.totalorder %s108, %s122
    %p124 = scmp.eq.s32.totalorder %s30, 0
    %p125 = por %p123, %p124
    %s127 = sadd.s32 %s126, 1
    %p130 = scmp.eq.s32.totalorder %s24, 1
    %p131 = scmp.ne.s32.totalorder %s126, %s128
    %p132 = scmp.eq.s32.totalorder %s24, 0
    %p133 = por %p131, %p132
    %p134 = scmp.ne.s32.totalorder %s126, %s128
    %p135 = scmp.eq.s32.totalorder %s29, 1
    %p136 = por %p134, %p135
    %p137 = scmp.ne.s32.totalorder %s128, %s129
    %p138 = scmp.eq.s32.totalorder %s29, 0
    %p139 = por %p137, %p138
    %p140 = scmp.ne.s32.totalorder %s128, %s129
    %p141 = scmp.eq.s32.totalorder %s30, 1
    %p142 = por %p140, %p141
    %p144 = scmp.ne.s32.totalorder %s129, %s143
    %p145 = scmp.eq.s32.totalorder %s30, 0
    %p146 = por %p144, %p145
    %s148 = sadd.s32 %s147, 1
    %p151 = scmp.eq.s32.totalorder %s24, 1
    %p152 = scmp.ne.s32.totalorder %s147, %s149
    %p153 = scmp.eq.s32.totalorder %s24, 0
    %p154 = por %p152, %p153
    %p155 = scmp.ne.s32.totalorder %s147, %s149
    %p156 = scmp.eq.s32.totalorder %s29, 1
    %p157 = por %p155, %p156
    %p158 = scmp.ne.s32.totalorder %s149, %s150
    %p159 = scmp.eq.s32.totalorder %s29, 0
    %p160 = por %p158, %p159
    %p161 = scmp.ne.s32.totalorder %s149, %s150
    %p162 = scmp.eq.s32.totalorder %s30, 1
    %p163 = por %p161, %p162
    %p165 = scmp.ne.s32.totalorder %s150, %s164
    %p166 = scmp.eq.s32.totalorder %s30, 0
    %p167 = por %p165, %p166
    %s169 = sadd.s32 %s168, 1
    %p172 = scmp.eq.s32.totalorder %s24, 1
    %p173 = scmp.ne.s32.totalorder %s168, %s170
    %p174 = scmp.eq.s32.totalorder %s24, 0
    %p175 = por %p173, %p174
    %p176 = scmp.ne.s32.totalorder %s168, %s170
    %p177 = scmp.eq.s32.totalorder %s29, 1
    %p178 = por %p176, %p177
    %p179 = scmp.ne.s32.totalorder %s170, %s171
    %p180 = scmp.eq.s32.totalorder %s29, 0
    %p181 = por %p179, %p180
    %p182 = scmp.ne.s32.totalorder %s170, %s171
    %p183 = scmp.eq.s32.totalorder %s30, 1
    %p184 = por %p182, %p183
    %p186 = scmp.ne.s32.totalorder %s171, %s185
    %p187 = scmp.eq.s32.totalorder %s30, 0
    %p188 = por %p186, %p187
    %s190 = sadd.s32 %s189, 1
    %p193 = scmp.eq.s32.totalorder %s24, 1
    %p194 = scmp.ne.s32.totalorder %s189, %s191
    %p195 = scmp.eq.s32.totalorder %s24, 0
    %p196 = por %p194, %p195
    %p197 = scmp.ne.s32.totalorder %s189, %s191
    %p198 = scmp.eq.s32.totalorder %s29, 1
    %p199 = por %p197, %p198
    %p200 = scmp.ne.s32.totalorder %s191, %s192
    %p201 = scmp.eq.s32.totalorder %s29, 0
    %p202 = por %p200, %p201
    %p203 = scmp.ne.s32.totalorder %s191, %s192
    %p204 = scmp.eq.s32.totalorder %s30, 1
    %p205 = por %p203, %p204
    %p207 = scmp.ne.s32.totalorder %s192, %s206
    %p208 = scmp.eq.s32.totalorder %s30, 0
    %p209 = por %p207, %p208
    %s211 = sadd.s32 %s210, 1
    %p214 = scmp.eq.s32.totalorder %s24, 1
    %p215 = scmp.ne.s32.totalorder %s210, %s212
    %p216 = scmp.eq.s32.totalorder %s24, 0
    %p217 = por %p215, %p216
    %p218 = scmp.ne.s32.totalorder %s210, %s212
    %p219 = scmp.eq.s32.totalorder %s29, 1
    %p220 = por %p218, %p219
    %p221 = scmp.ne.s32.totalorder %s212, %s213
    %p222 = scmp.eq.s32.totalorder %s29, 0
    %p223 = por %p221, %p222
    %p224 = scmp.ne.s32.totalorder %s212, %s213
    %p225 = scmp.eq.s32.totalorder %s30, 1
    %p226 = por %p224, %p225
    %p228 = scmp.ne.s32.totalorder %s213, %s227
    %p229 = scmp.eq.s32.totalorder %s30, 0
    %p230 = por %p228, %p229
    %s232 = sadd.s32 %s231, 1
    %p235 = scmp.eq.s32.totalorder %s24, 1
    %p236 = scmp.ne.s32.totalorder %s231, %s233
    %p237 = scmp.eq.s32.totalorder %s24, 0
    %p238 = por %p236, %p237
    %p239 = scmp.ne.s32.totalorder %s231, %s233
    %p240 = scmp.eq.s32.totalorder %s29, 1
    %p241 = por %p239, %p240
    %p242 = scmp.ne.s32.totalorder %s233, %s234
    %p243 = scmp.eq.s32.totalorder %s29, 0
    %p244 = por %p242, %p243
    %p245 = scmp.ne.s32.totalorder %s233, %s234
    %p246 = scmp.eq.s32.totalorder %s30, 1
    %p247 = por %p245, %p246
    %p249 = scmp.ne.s32.totalorder %s234, %s248
    %p250 = scmp.eq.s32.totalorder %s30, 0
    %p251 = por %p249, %p250
    %s253 = sadd.s32 %s252, 1
    %p256 = scmp.eq.s32.totalorder %s24, 1
    %p257 = scmp.ne.s32.totalorder %s252, %s254
    %p258 = scmp.eq.s32.totalorder %s24, 0
    %p259 = por %p257, %p258
    %p260 = scmp.ne.s32.totalorder %s252, %s254
    %p261 = scmp.eq.s32.totalorder %s29, 1
    %p262 = por %p260, %p261
    %p263 = scmp.ne.s32.totalorder %s254, %s255
    %p264 = scmp.eq.s32.totalorder %s29, 0
    %p265 = por %p263, %p264
    %p266 = scmp.ne.s32.totalorder %s254, %s255
    %p267 = scmp.eq.s32.totalorder %s30, 1
    %p268 = por %p266, %p267
    %p270 = scmp.ne.s32.totalorder %s255, %s269
    %p271 = scmp.eq.s32.totalorder %s30, 0
    %p272 = por %p270, %p271
    %s274 = sadd.s32 %s273, 1
    %p277 = scmp.eq.s32.totalorder %s24, 1
    %p278 = scmp.ne.s32.totalorder %s273, %s275
    %p279 = scmp.eq.s32.totalorder %s24, 0
    %p280 = por %p278, %p279
    %p281 = scmp.ne.s32.totalorder %s273, %s275
    %p282 = scmp.eq.s32.totalorder %s29, 1
    %p283 = por %p281, %p282
    %p284 = scmp.ne.s32.totalorder %s275, %s276
    %p285 = scmp.eq.s32.totalorder %s29, 0
    %p286 = por %p284, %p285
    %p287 = scmp.ne.s32.totalorder %s275, %s276
    %p288 = scmp.eq.s32.totalorder %s30, 1
    %p289 = por %p287, %p288
    %p291 = scmp.ne.s32.totalorder %s276, %s290
    %p292 = scmp.eq.s32.totalorder %s30, 0
    %p293 = por %p291, %p292
    %s295 = sadd.s32 %s294, 1
    %p298 = scmp.eq.s32.totalorder %s24, 1
    %p299 = scmp.ne.s32.totalorder %s294, %s296
    %p300 = scmp.eq.s32.totalorder %s24, 0
    %p301 = por %p299, %p300
    %p302 = scmp.ne.s32.totalorder %s294, %s296
    %p303 = scmp.eq.s32.totalorder %s29, 1
    %p304 = por %p302, %p303
    %p305 = scmp.ne.s32.totalorder %s296, %s297
    %p306 = scmp.eq.s32.totalorder %s29, 0
    %p307 = por %p305, %p306
    %p308 = scmp.ne.s32.totalorder %s296, %s297
    %p309 = scmp.eq.s32.totalorder %s30, 1
    %p310 = por %p308, %p309
    %p312 = scmp.ne.s32.totalorder %s297, %s311
    %p313 = scmp.eq.s32.totalorder %s30, 0
    %p314 = por %p312, %p313
    %s316 = sadd.s32 %s315, 1
    %p319 = scmp.eq.s32.totalorder %s24, 1
    %p320 = scmp.ne.s32.totalorder %s315, %s317
    %p321 = scmp.eq.s32.totalorder %s24, 0
    %p322 = por %p320, %p321
    %p323 = scmp.ne.s32.totalorder %s315, %s317
    %p324 = scmp.eq.s32.totalorder %s29, 1
    %p325 = por %p323, %p324
    %p326 = scmp.ne.s32.totalorder %s317, %s318
    %p327 = scmp.eq.s32.totalorder %s29, 0
    %p328 = por %p326, %p327
    %p329 = scmp.ne.s32.totalorder %s317, %s318
    %p330 = scmp.eq.s32.totalorder %s30, 1
    %p331 = por %p329, %p330
    %p333 = scmp.ne.s32.totalorder %s318, %s332
    %p334 = scmp.eq.s32.totalorder %s30, 0
    %p335 = por %p333, %p334
    %s337 = sadd.s32 %s336, 1
    %p340 = scmp.eq.s32.totalorder %s24, 1
    %p341 = scmp.ne.s32.totalorder %s336, %s338
    %p342 = scmp.eq.s32.totalorder %s24, 0
    %p343 = por %p341, %p342
    %p344 = scmp.ne.s32.totalorder %s336, %s338
    %p345 = scmp.eq.s32.totalorder %s29, 1
    %p346 = por %p344, %p345
    %p347 = scmp.ne.s32.totalorder %s338, %s339
    %p348 = scmp.eq.s32.totalorder %s29, 0
    %p349 = por %p347, %p348
    %p350 = scmp.ne.s32.totalorder %s338, %s339
    %p351 = scmp.eq.s32.totalorder %s30, 1
    %p352 = por %p350, %p351
    %p354 = scmp.ne.s32.totalorder %s339, %s353
    %p355 = scmp.eq.s32.totalorder %s30, 0
    %p356 = por %p354, %p355
    %s358 = sadd.s32 %s357, 1
    %p361 = scmp.eq.s32.totalorder %s24, 1
    %p362 = scmp.ne.s32.totalorder %s357, %s359
    %p363 = scmp.eq.s32.totalorder %s24, 0
    %p364 = por %p362, %p363
    %p365 = scmp.ne.s32.totalorder %s357, %s359
    %p366 = scmp.eq.s32.totalorder %s29, 1
    %p367 = por %p365, %p366
    %p368 = scmp.ne.s32.totalorder %s359, %s360
    %p369 = scmp.eq.s32.totalorder %s29, 0
    %p370 = por %p368, %p369
    %p371 = scmp.ne.s32.totalorder %s359, %s360
    %p372 = scmp.eq.s32.totalorder %s30, 1
    %p373 = por %p371, %p372
    %p375 = scmp.ne.s32.totalorder %s360, %s374
    %p376 = scmp.eq.s32.totalorder %s30, 0
    %p377 = por %p375, %p376
    %s379 = sadd.s32 %s378, 1
    %p382 = scmp.eq.s32.totalorder %s24, 1
    %p383 = scmp.ne.s32.totalorder %s378, %s380
    %p384 = scmp.eq.s32.totalorder %s24, 0
    %p385 = por %p383, %p384
    %p386 = scmp.ne.s32.totalorder %s378, %s380
    %p387 = scmp.eq.s32.totalorder %s29, 1
    %p388 = por %p386, %p387
    %p389 = scmp.ne.s32.totalorder %s380, %s381
    %p390 = scmp.eq.s32.totalorder %s29, 0
    %p391 = por %p389, %p390
    %p392 = scmp.ne.s32.totalorder %s380, %s381
    %p393 = scmp.eq.s32.totalorder %s30, 1
    %p394 = por %p392, %p393
    %p396 = scmp.ne.s32.totalorder %s381, %s395
    %p397 = scmp.eq.s32.totalorder %s30, 0
    %p398 = por %p396, %p397
    %s400 = sadd.s32 %s399, 1
    %p403 = scmp.eq.s32.totalorder %s24, 1
    %p404 = scmp.ne.s32.totalorder %s399, %s401
    %p405 = scmp.eq.s32.totalorder %s24, 0
    %p406 = por %p404, %p405
    %p407 = scmp.ne.s32.totalorder %s399, %s401
    %p408 = scmp.eq.s32.totalorder %s29, 1
    %p409 = por %p407, %p408
    %p410 = scmp.ne.s32.totalorder %s401, %s402
    %p411 = scmp.eq.s32.totalorder %s29, 0
    %p412 = por %p410, %p411
    %p413 = scmp.ne.s32.totalorder %s401, %s402
    %p414 = scmp.eq.s32.totalorder %s30, 1
    %p415 = por %p413, %p414
    %p417 = scmp.ne.s32.totalorder %s402, %s416
    %p418 = scmp.eq.s32.totalorder %s30, 0
    %p419 = por %p417, %p418
    %s420 = ssub.s32 %s24, %s31
    %p421 = scmp.eq.s32.totalorder %s420, 0
    %s423 = sadd.s32 %s422, 1
    %s424 = scalar_select %p421, %s422, %s423
    %p427 = pneg %p421
    %p428 = scmp.eq.s32.totalorder %s24, 1
    %p429 = por %p427, %p428
    %p430 = scmp.ne.s32.totalorder %s422, %s425
    %p431 = scmp.eq.s32.totalorder %s24, 0
    %p432 = por %p430, %p431
    %p433 = scmp.ne.s32.totalorder %s422, %s425
    %p434 = scmp.eq.s32.totalorder %s29, 1
    %p435 = por %p433, %p434
    %p436 = scmp.ne.s32.totalorder %s425, %s426
    %p437 = scmp.eq.s32.totalorder %s29, 0
    %p438 = por %p436, %p437
    %p439 = scmp.ne.s32.totalorder %s425, %s426
    %p440 = scmp.eq.s32.totalorder %s30, 1
    %p441 = por %p439, %p440
    %p443 = scmp.ne.s32.totalorder %s426, %s442
    %p444 = scmp.eq.s32.totalorder %s30, 0
    %p445 = por %p443, %p444
    %p446 = scmp.le.s32.totalorder 1, %s24
    %p447 = scmp.lt.s32.totalorder %s24, 3
    %p448 = pnand %p446, %p447
    %p449 = pneg %p448
    // Predicated region
    $region9: #{cross_attn_down_block_1d.3} parent=5 // pred_check
      _
    $region10: #{cross_attn_down_block_1d.3} parent=5 // pred_check_branch
      %451 = sbr.rel (%p448) target = $region12
    $region11: #{cross_attn_down_block_1d.3} parent=5 // pred_region
      %s452 = ssub.s32 %s24, 1
      // Predicated region
      $region13: #{cross_attn_down_block_1d.3} parent=11 // pred_check
        %p453 = pneg %p97
      $region14: #{cross_attn_down_block_1d.3} parent=11 // pred_check_branch
        %455 = sbr.rel (%p453) target = $region16
      $region15: #{cross_attn_down_block_1d.3} parent=11 // pred_region
        _
      $region16: #{cross_attn_down_block_1d.3} parent=11 // pred_fallthru
        _
      // Predicated region
      $region17: #{cross_attn_down_block_1d.3} parent=11 // pred_check
        %p456 = pneg %p118
      $region18: #{cross_attn_down_block_1d.3} parent=11 // pred_check_branch
        %458 = sbr.rel (%p456) target = $region20
      $region19: #{cross_attn_down_block_1d.3} parent=11 // pred_region
        _
      $region20: #{cross_attn_down_block_1d.3} parent=11 // pred_fallthru
        _
      // Predicated region
      $region21: #{cross_attn_down_block_1d.3} parent=11 // pred_check
        %p459 = pneg %p139
      $region22: #{cross_attn_down_block_1d.3} parent=11 // pred_check_branch
        %461 = sbr.rel (%p459) target = $region24
      $region23: #{cross_attn_down_block_1d.3} parent=11 // pred_region
        _
      $region24: #{cross_attn_down_block_1d.3} parent=11 // pred_fallthru
        _
      // Predicated region
      $region25: #{cross_attn_down_block_1d.3} parent=11 // pred_check
        %p462 = pneg %p160
      $region26: #{cross_attn_down_block_1d.3} parent=11 // pred_check_branch
        %464 = sbr.rel (%p462) target = $region28
      $region27: #{cross_attn_down_block_1d.3} parent=11 // pred_region
        _
      $region28: #{cross_attn_down_block_1d.3} parent=11 // pred_fallthru
        _
      // Predicated region
      $region29: #{cross_attn_down_block_1d.3} parent=11 // pred_check
        %p465 = pneg %p181
      $region30: #{cross_attn_down_block_1d.3} parent=11 // pred_check_branch
        %467 = sbr.rel (%p465) target = $region32
      $region31: #{cross_attn_down_block_1d.3} parent=11 // pred_region
        _
      $region32: #{cross_attn_down_block_1d.3} parent=11 // pred_fallthru
        _
      // Predicated region
      $region33: #{cross_attn_down_block_1d.3} parent=11 // pred_check
        %p468 = pneg %p202
      $region34: #{cross_attn_down_block_1d.3} parent=11 // pred_check_branch
        %470 = sbr.rel (%p468) target = $region36
      $region35: #{cross_attn_down_block_1d.3} parent=11 // pred_region
        _
      $region36: #{cross_attn_down_block_1d.3} parent=11 // pred_fallthru
        _
      // Predicated region
      $region37: #{cross_attn_down_block_1d.3} parent=11 // pred_check
        %p471 = pneg %p223
      $region38: #{cross_attn_down_block_1d.3} parent=11 // pred_check_branch
        %473 = sbr.rel (%p471) target = $region40
      $region39: #{cross_attn_down_block_1d.3} parent=11 // pred_region
        _
      $region40: #{cross_attn_down_block_1d.3} parent=11 // pred_fallthru
        _
      // Predicated region
      $region41: #{cross_attn_down_block_1d.3} parent=11 // pred_check
        %p474 = pneg %p244
      $region42: #{cross_attn_down_block_1d.3} parent=11 // pred_check_branch
        %476 = sbr.rel (%p474) target = $region44
      $region43: #{cross_attn_down_block_1d.3} parent=11 // pred_region
        _
      $region44: #{cross_attn_down_block_1d.3} parent=11 // pred_fallthru
        _
      // Predicated region
      $region45: #{cross_attn_down_block_1d.3} parent=11 // pred_check
        %p477 = pneg %p265
      $region46: #{cross_attn_down_block_1d.3} parent=11 // pred_check_branch
        %479 = sbr.rel (%p477) target = $region48
      $region47: #{cross_attn_down_block_1d.3} parent=11 // pred_region
        _
      $region48: #{cross_attn_down_block_1d.3} parent=11 // pred_fallthru
        _
      // Predicated region
      $region49: #{cross_attn_down_block_1d.3} parent=11 // pred_check
        %p480 = pneg %p286
      $region50: #{cross_attn_down_block_1d.3} parent=11 // pred_check_branch
        %482 = sbr.rel (%p480) target = $region52
      $region51: #{cross_attn_down_block_1d.3} parent=11 // pred_region
        _
      $region52: #{cross_attn_down_block_1d.3} parent=11 // pred_fallthru
        _
      // Predicated region
      $region53: #{cross_attn_down_block_1d.3} parent=11 // pred_check
        %p483 = pneg %p307
      $region54: #{cross_attn_down_block_1d.3} parent=11 // pred_check_branch
        %485 = sbr.rel (%p483) target = $region56
      $region55: #{cross_attn_down_block_1d.3} parent=11 // pred_region
        _
      $region56: #{cross_attn_down_block_1d.3} parent=11 // pred_fallthru
        _
      // Predicated region
      $region57: #{cross_attn_down_block_1d.3} parent=11 // pred_check
        %p486 = pneg %p328
      $region58: #{cross_attn_down_block_1d.3} parent=11 // pred_check_branch
        %488 = sbr.rel (%p486) target = $region60
      $region59: #{cross_attn_down_block_1d.3} parent=11 // pred_region
        _
      $region60: #{cross_attn_down_block_1d.3} parent=11 // pred_fallthru
        _
      // Predicated region
      $region61: #{cross_attn_down_block_1d.3} parent=11 // pred_check
        %p489 = pneg %p349
      $region62: #{cross_attn_down_block_1d.3} parent=11 // pred_check_branch
        %491 = sbr.rel (%p489) target = $region64
      $region63: #{cross_attn_down_block_1d.3} parent=11 // pred_region
        _
      $region64: #{cross_attn_down_block_1d.3} parent=11 // pred_fallthru
        _
      // Predicated region
      $region65: #{cross_attn_down_block_1d.3} parent=11 // pred_check
        %p492 = pneg %p370
      $region66: #{cross_attn_down_block_1d.3} parent=11 // pred_check_branch
        %494 = sbr.rel (%p492) target = $region68
      $region67: #{cross_attn_down_block_1d.3} parent=11 // pred_region
        _
      $region68: #{cross_attn_down_block_1d.3} parent=11 // pred_fallthru
        _
      // Predicated region
      $region69: #{cross_attn_down_block_1d.3} parent=11 // pred_check
        %p495 = pneg %p391
      $region70: #{cross_attn_down_block_1d.3} parent=11 // pred_check_branch
        %497 = sbr.rel (%p495) target = $region72
      $region71: #{cross_attn_down_block_1d.3} parent=11 // pred_region
        _
      $region72: #{cross_attn_down_block_1d.3} parent=11 // pred_fallthru
        _
      // Predicated region
      $region73: #{cross_attn_down_block_1d.3} parent=11 // pred_check
        %p498 = pneg %p412
      $region74: #{cross_attn_down_block_1d.3} parent=11 // pred_check_branch
        %500 = sbr.rel (%p498) target = $region76
      $region75: #{cross_attn_down_block_1d.3} parent=11 // pred_region
        _
      $region76: #{cross_attn_down_block_1d.3} parent=11 // pred_fallthru
        _
    $region12: #{cross_attn_down_block_1d.3} parent=5 // pred_fallthru
      _
    %p501 = scmp.lt.s32.totalorder %s24, 2
    // Predicated region
    $region77: #{cross_attn_down_block_1d.3} parent=5 // pred_check
      %p502 = pneg %p501
    $region78: #{cross_attn_down_block_1d.3} parent=5 // pred_check_branch
      %504 = sbr.rel (%p502) target = $region80
    $region79: #{cross_attn_down_block_1d.3} parent=5 // pred_region
      // Predicated region
      $region81: #{cross_attn_down_block_1d.3} parent=79 // pred_check
        %p505 = pneg %p44
      $region82: #{cross_attn_down_block_1d.3} parent=79 // pred_check_branch
        %507 = sbr.rel (%p505) target = $region84
      $region83: #{cross_attn_down_block_1d.3} parent=79 // pred_region
        %p508 = scmp.lt.s32.totalorder %s24, 1
        %s509 = scalar_select %p508, %s24, 1
        %s510 = smul.addr %s509, 2
        %s511 = smul.addr %s510, 8
        %s512 = scalar_lea.vmem %s0, %s511
      $region84: #{cross_attn_down_block_1d.3} parent=79 // pred_fallthru
        _
      // Predicated region
      $region85: #{cross_attn_down_block_1d.3} parent=79 // pred_check
        %p513 = pneg %p70
      $region86: #{cross_attn_down_block_1d.3} parent=79 // pred_check_branch
        %515 = sbr.rel (%p513) target = $region88
      $region87: #{cross_attn_down_block_1d.3} parent=79 // pred_region
        %p516 = scmp.lt.s32.totalorder %s24, 1
        %s517 = scalar_select %p516, %s24, 1
        %s518 = scalar_lea.vmem %s1, %s517
      $region88: #{cross_attn_down_block_1d.3} parent=79 // pred_fallthru
        _
    $region80: #{cross_attn_down_block_1d.3} parent=5 // pred_fallthru
      _
    %p519 = scmp.le.s32.totalorder 1, %s24
    %p520 = scmp.lt.s32.totalorder %s24, 3
    %p521 = pnand %p519, %p520
    %p522 = pneg %p521
    // Predicated region
    $region89: #{cross_attn_down_block_1d.3} parent=5 // pred_check
      _
    $region90: #{cross_attn_down_block_1d.3} parent=5 // pred_check_branch
      %524 = sbr.rel (%p521) target = $region92
    $region91: #{cross_attn_down_block_1d.3} parent=5 // pred_region
      %s525 = ssub.s32 %s24, 1
      %p526 = scmp.lt.s32.totalorder %s29, 1
      %s527 = scalar_select %p526, %s29, 1
      %s528 = smul.addr %s527, 2
      %s529 = smul.addr %s528, 8
      %s530 = scalar_lea.vmem %s0, %s529
      %p531 = pneg %p50
      %p532 = pneg %p47
      %p533 = scmp.lt.s32.totalorder %s29, 1
      %s534 = scalar_select %p533, %s29, 1
      %s535 = scalar_lea.vmem %s1, %s534
      %p536 = pneg %p76
      %p537 = pneg %p73
      %p538 = pneg %p97
      %p539 = pneg %p94
      %p540 = pneg %p118
      %p541 = pneg %p115
      %p542 = pneg %p139
      %p543 = pneg %p136
      %p544 = pneg %p160
      %p545 = pneg %p157
      %p546 = pneg %p181
      %p547 = pneg %p178
      %p548 = pneg %p202
      %p549 = pneg %p199
      %p550 = pneg %p223
      %p551 = pneg %p220
      %p552 = pneg %p244
      %p553 = pneg %p241
      %p554 = pneg %p265
      %p555 = pneg %p262
      %p556 = pneg %p286
      %p557 = pneg %p283
      %p558 = pneg %p307
      %p559 = pneg %p304
      %p560 = pneg %p328
      %p561 = pneg %p325
      %p562 = pneg %p349
      %p563 = pneg %p346
      %p564 = pneg %p370
      %p565 = pneg %p367
      %p566 = pneg %p391
      %p567 = pneg %p388
      %p568 = pneg %p412
      %p569 = pneg %p409
      %p570 = pneg %p438
      %p571 = pneg %p435
      %p572 = scmp.lt.s32.totalorder %s29, 1
      %s573 = scalar_select %p572, %s29, 1
      %s574 = smul.addr %s573, 2
      %s575 = smul.addr %s574, 8
      %s576 = scalar_lea.vmem %s18, %s575
      %p577 = scmp.lt.s32.totalorder %s29, 1
      %s578 = scalar_select %p577, %s29, 1
      %s579 = smul.addr %s578, 2
      %s580 = smul.addr %s579, 8
      %s581 = scalar_lea.vmem %s0, %s580
      %p582 = scmp.lt.s32.totalorder %s29, 1
      %s583 = scalar_select %p582, %s29, 1
      %s584 = scalar_lea.vmem %s1, %s583
      %p585 = scmp.lt.s32.totalorder %s29, 1
      %s586 = scalar_select %p585, %s29, 1
      %s587 = smul.addr %s586, 2
      %s588 = smul.addr %s587, 8
      %s589 = scalar_lea.vmem %s18, %s588
      %v591 = vld [vmem:[%s581] sm:$0xff]
      %v592 = vld [vmem:[%s581 + $0x8] sm:$0xff]
      %v593 = vld [vmem:[%s2] sm:$0x1]
      %v594 = vld [vmem:[%s3] sm:$0x1]
      %v595 = vld [vmem:[%s4] sm:$0xff]
      %v596 = vld [vmem:[%s4 + $0x8] sm:$0xff]
      %v597 = vld [vmem:[%s4 + $0x10] sm:$0xff]
      %v598 = vld [vmem:[%s4 + $0x18] sm:$0xff]
      %v599 = vld [vmem:[%s5] sm:$0xff]
      %vm600 = vcmask 261120
      %v601 = vsel %vm600, %v591, 0.0
      %v602 = vsel %vm600, %v592, 0.0
      %v603 = vadd.f32 %v601, %v602
      %v604 = vrot.slane %v603, 4
      %v605 = vadd.f32 %v603, %v604
      %v606 = vrot.slane %v605, 2
      %v607 = vadd.f32 %v605, %v606
      %v608 = vrot.slane %v607, 1
      %v609 = vadd.f32 %v607, %v608
      %v610 = vmul.f32 %v591, %v591
      %v611 = vmul.f32 %v592, %v592
      %v612 = vsel %vm600, %v610, 0.0
      %v613 = vsel %vm600, %v611, 0.0
      %v614 = vadd.f32 %v612, %v613
      %v615 = vrot.slane %v614, 4
      %v616 = vadd.f32 %v614, %v615
      %v617 = vrot.slane %v616, 2
      %v618 = vadd.f32 %v616, %v617
      %v619 = vrot.slane %v618, 1
      %v620 = vadd.f32 %v618, %v619
      %v622 = vsel %vm600, %v609, 0
      %624 = vmatprep.subr.mxu0 0.0
      %625 = vmatpush1.msra.mxu0 %v595
      %626 = vmatprep.subr.mxu0 0.0
      %627 = vmatpush1.msra.mxu0 %v596
      %628 = vmatprep.subr.mxu0 0.0
      %629 = vmatpush1.msra.mxu0 %v597
      %630 = vmatprep.subr.mxu0 0.0
      %631 = vmatpush1.msra.mxu0 %v598
      %632 = vmatprep.subr.mxu0 0.0
      %633 = vmatpush1.msra.mxu0 0.0
      %634 = vmatprep.subr.mxu0 0.0
      %635 = vmatpush1.msra.mxu0 0.0
      %636 = vmatprep.subr.mxu0 0.0
      %637 = vmatpush1.msra.mxu0 0.0
      %638 = vmatprep.subr.mxu0 0.0
      %639 = vmatpush1.msra.mxu0 0.0
      %640 = vmatprep.subr.mxu0 0.0
      %641 = vmatpush1.msra.mxu0 0.0
      %642 = vmatprep.subr.mxu0 0.0
      %643 = vmatpush1.msra.mxu0 0.0
      %644 = vmatprep.subr.mxu0 0.0
      %645 = vmatpush1.msra.mxu0 0.0
      %646 = vmatprep.subr.mxu0 0.0
      %647 = vmatpush1.msra.mxu0 0.0
      %648 = vmatprep.subr.mxu0 0.0
      %649 = vmatpush1.msra.mxu0 0.0
      %650 = vmatprep.subr.mxu0 0.0
      %651 = vmatpush1.msra.mxu0 0.0
      %652 = vmatprep.subr.mxu0 0.0
      %653 = vmatpush1.msra.mxu0 0.0
      %654 = vmatprep.subr.mxu0 0.0
      %655 = vmatpush1.msra.mxu0 0.0
      %656 = vmatprep.subr.mxu0 0.0
      %657 = vmatpush1.msra.mxu0 0.0
      %658 = vmatprep.subr.mxu0 0.0
      %659 = vmatpush1.msra.mxu0 0.0
      %660 = vmatprep.subr.mxu0 0.0
      %661 = vmatpush1.msra.mxu0 0.0
      %662 = vmatprep.subr.mxu0 0.0
      %663 = vmatpush1.msra.mxu0 0.0
      %664 = vmatprep.subr.mxu0 0.0
      %665 = vmatpush1.msra.mxu0 0.0
      %666 = vmatprep.subr.mxu0 0.0
      %667 = vmatpush1.msra.mxu0 0.0
      %668 = vmatprep.subr.mxu0 0.0
      %669 = vmatpush1.msra.mxu0 0.0
      %670 = vmatprep.subr.mxu0 0.0
      %671 = vmatpush1.msra.mxu0 0.0
      %672 = vmatprep.subr.mxu0 0.0
      %673 = vmatpush1.msra.mxu0 0.0
      %674 = vmatprep.subr.mxu0 0.0
      %675 = vmatpush1.msra.mxu0 0.0
      %676 = vmatprep.subr.mxu0 0.0
      %677 = vmatpush1.msra.mxu0 0.0
      %678 = vmatprep.subr.mxu0 0.0
      %679 = vmatpush1.msra.mxu0 0.0
      %680 = vmatprep.subr.mxu0 0.0
      %681 = vmatpush1.msra.mxu0 0.0
      %682 = vmatprep.subr.mxu0 0.0
      %683 = vmatpush1.msra.mxu0 0.0
      %684 = vmatprep.subr.mxu0 0.0
      %685 = vmatpush1.msra.mxu0 0.0
      %686 = vmatprep.subr.mxu0 0.0
      %687 = vmatpush1.msra.mxu0 0.0
      %688 = vmatprep.mubr.f32.mxu0 0.0
      %689 = vmatmul.mubr.f32.gmra.mrb[0].mxu0 %v622
      %v690 = vpop.f32.mrb[0].mxu0
      %v691 = vadd.f32 0.0, %v690
      %v692 = vpop.f32.mrb[0].mxu0
      %693 = vdwg.mxu0
      %v694 = vrcp.pop 64.0
      %v695 = vmul.f32 %v691, %v694
      %v697 = vsel %vm600, %v620, 0
      %699 = vmatprep.subr.mxu0 0.0
      %700 = vmatpush1.msra.mxu0 %v595
      %701 = vmatprep.subr.mxu0 0.0
      %702 = vmatpush1.msra.mxu0 %v596
      %703 = vmatprep.subr.mxu0 0.0
      %704 = vmatpush1.msra.mxu0 %v597
      %705 = vmatprep.subr.mxu0 0.0
      %706 = vmatpush1.msra.mxu0 %v598
      %707 = vmatprep.subr.mxu0 0.0
      %708 = vmatpush1.msra.mxu0 0.0
      %709 = vmatprep.subr.mxu0 0.0
      %710 = vmatpush1.msra.mxu0 0.0
      %711 = vmatprep.subr.mxu0 0.0
      %712 = vmatpush1.msra.mxu0 0.0
      %713 = vmatprep.subr.mxu0 0.0
      %714 = vmatpush1.msra.mxu0 0.0
      %715 = vmatprep.subr.mxu0 0.0
      %716 = vmatpush1.msra.mxu0 0.0
      %717 = vmatprep.subr.mxu0 0.0
      %718 = vmatpush1.msra.mxu0 0.0
      %719 = vmatprep.subr.mxu0 0.0
      %720 = vmatpush1.msra.mxu0 0.0
      %721 = vmatprep.subr.mxu0 0.0
      %722 = vmatpush1.msra.mxu0 0.0
      %723 = vmatprep.subr.mxu0 0.0
      %724 = vmatpush1.msra.mxu0 0.0
      %725 = vmatprep.subr.mxu0 0.0
      %726 = vmatpush1.msra.mxu0 0.0
      %727 = vmatprep.subr.mxu0 0.0
      %728 = vmatpush1.msra.mxu0 0.0
      %729 = vmatprep.subr.mxu0 0.0
      %730 = vmatpush1.msra.mxu0 0.0
      %731 = vmatprep.subr.mxu0 0.0
      %732 = vmatpush1.msra.mxu0 0.0
      %733 = vmatprep.subr.mxu0 0.0
      %734 = vmatpush1.msra.mxu0 0.0
      %735 = vmatprep.subr.mxu0 0.0
      %736 = vmatpush1.msra.mxu0 0.0
      %737 = vmatprep.subr.mxu0 0.0
      %738 = vmatpush1.msra.mxu0 0.0
      %739 = vmatprep.subr.mxu0 0.0
      %740 = vmatpush1.msra.mxu0 0.0
      %741 = vmatprep.subr.mxu0 0.0
      %742 = vmatpush1.msra.mxu0 0.0
      %743 = vmatprep.subr.mxu0 0.0
      %744 = vmatpush1.msra.mxu0 0.0
      %745 = vmatprep.subr.mxu0 0.0
      %746 = vmatpush1.msra.mxu0 0.0
      %747 = vmatprep.subr.mxu0 0.0
      %748 = vmatpush1.msra.mxu0 0.0
      %749 = vmatprep.subr.mxu0 0.0
      %750 = vmatpush1.msra.mxu0 0.0
      %751 = vmatprep.subr.mxu0 0.0
      %752 = vmatpush1.msra.mxu0 0.0
      %753 = vmatprep.subr.mxu0 0.0
      %754 = vmatpush1.msra.mxu0 0.0
      %755 = vmatprep.subr.mxu0 0.0
      %756 = vmatpush1.msra.mxu0 0.0
      %757 = vmatprep.subr.mxu0 0.0
      %758 = vmatpush1.msra.mxu0 0.0
      %759 = vmatprep.subr.mxu0 0.0
      %760 = vmatpush1.msra.mxu0 0.0
      %761 = vmatprep.subr.mxu0 0.0
      %762 = vmatpush1.msra.mxu0 0.0
      %763 = vmatprep.mubr.f32.mxu0 0.0
      %764 = vmatmul.mubr.f32.gmra.mrb[0].mxu0 %v697
      %v765 = vpop.f32.mrb[0].mxu0
      %v766 = vadd.f32 0.0, %v765
      %v767 = vpop.f32.mrb[0].mxu0
      %768 = vdwg.mxu0
      %v769 = vmul.f32 %v766, %v694
      %v770 = vmul.f32 %v695, %v695
      %v771 = vsub.f32 %v769, %v770
      %v772 = vadd.f32 %v771, 1e-06
      %v773 = vrsqrt.pop %v772
      %vm774 = vcmask 64512
      %v776 = vsel %vm774, %v695, 0
      %778 = vmatprep.subr.mxu0 0.0
      %779 = vmatpush1.msra.mxu0 %v599
      %780 = vmatprep.subr.mxu0 0.0
      %781 = vmatpush1.msra.mxu0 0.0
      %782 = vmatprep.subr.mxu0 0.0
      %783 = vmatpush1.msra.mxu0 0.0
      %784 = vmatprep.subr.mxu0 0.0
      %785 = vmatpush1.msra.mxu0 0.0
      %786 = vmatprep.subr.mxu0 0.0
      %787 = vmatpush1.msra.mxu0 0.0
      %788 = vmatprep.subr.mxu0 0.0
      %789 = vmatpush1.msra.mxu0 0.0
      %790 = vmatprep.subr.mxu0 0.0
      %791 = vmatpush1.msra.mxu0 0.0
      %792 = vmatprep.subr.mxu0 0.0
      %793 = vmatpush1.msra.mxu0 0.0
      %794 = vmatprep.subr.mxu0 0.0
      %795 = vmatpush1.msra.mxu0 0.0
      %796 = vmatprep.subr.mxu0 0.0
      %797 = vmatpush1.msra.mxu0 0.0
      %798 = vmatprep.subr.mxu0 0.0
      %799 = vmatpush1.msra.mxu0 0.0
      %800 = vmatprep.subr.mxu0 0.0
      %801 = vmatpush1.msra.mxu0 0.0
      %802 = vmatprep.subr.mxu0 0.0
      %803 = vmatpush1.msra.mxu0 0.0
      %804 = vmatprep.subr.mxu0 0.0
      %805 = vmatpush1.msra.mxu0 0.0
      %806 = vmatprep.subr.mxu0 0.0
      %807 = vmatpush1.msra.mxu0 0.0
      %808 = vmatprep.subr.mxu0 0.0
      %809 = vmatpush1.msra.mxu0 0.0
      %810 = vmatprep.subr.mxu0 0.0
      %811 = vmatpush1.msra.mxu0 0.0
      %812 = vmatprep.subr.mxu0 0.0
      %813 = vmatpush1.msra.mxu0 0.0
      %814 = vmatprep.subr.mxu0 0.0
      %815 = vmatpush1.msra.mxu0 0.0
      %816 = vmatprep.subr.mxu0 0.0
      %817 = vmatpush1.msra.mxu0 0.0
      %818 = vmatprep.subr.mxu0 0.0
      %819 = vmatpush1.msra.mxu0 0.0
      %820 = vmatprep.subr.mxu0 0.0
      %821 = vmatpush1.msra.mxu0 0.0
      %822 = vmatprep.subr.mxu0 0.0
      %823 = vmatpush1.msra.mxu0 0.0
      %824 = vmatprep.subr.mxu0 0.0
      %825 = vmatpush1.msra.mxu0 0.0
      %826 = vmatprep.subr.mxu0 0.0
      %827 = vmatpush1.msra.mxu0 0.0
      %828 = vmatprep.subr.mxu0 0.0
      %829 = vmatpush1.msra.mxu0 0.0
      %830 = vmatprep.subr.mxu0 0.0
      %831 = vmatpush1.msra.mxu0 0.0
      %832 = vmatprep.subr.mxu0 0.0
      %833 = vmatpush1.msra.mxu0 0.0
      %834 = vmatprep.subr.mxu0 0.0
      %835 = vmatpush1.msra.mxu0 0.0
      %836 = vmatprep.subr.mxu0 0.0
      %837 = vmatpush1.msra.mxu0 0.0
      %838 = vmatprep.subr.mxu0 0.0
      %839 = vmatpush1.msra.mxu0 0.0
      %840 = vmatprep.subr.mxu0 0.0
      %841 = vmatpush1.msra.mxu0 0.0
      %842 = vmatprep.mubr.f32.mxu0 0.0
      %843 = vmatmul.mubr.f32.gmra.mrb[0].mxu0 %v776
      %v844 = vpop.f32.mrb[0].mxu0
      %v845 = vadd.f32 0.0, %v844
      %v846 = vpop.f32.mrb[0].mxu0
      %847 = vdwg.mxu0
      %v849 = vsel %vm774, %v773, 0
      %851 = vmatprep.subr.mxu0 0.0
      %852 = vmatpush1.msra.mxu0 %v599
      %853 = vmatprep.subr.mxu0 0.0
      %854 = vmatpush1.msra.mxu0 0.0
      %855 = vmatprep.subr.mxu0 0.0
      %856 = vmatpush1.msra.mxu0 0.0
      %857 = vmatprep.subr.mxu0 0.0
      %858 = vmatpush1.msra.mxu0 0.0
      %859 = vmatprep.subr.mxu0 0.0
      %860 = vmatpush1.msra.mxu0 0.0
      %861 = vmatprep.subr.mxu0 0.0
      %862 = vmatpush1.msra.mxu0 0.0
      %863 = vmatprep.subr.mxu0 0.0
      %864 = vmatpush1.msra.mxu0 0.0
      %865 = vmatprep.subr.mxu0 0.0
      %866 = vmatpush1.msra.mxu0 0.0
      %867 = vmatprep.subr.mxu0 0.0
      %868 = vmatpush1.msra.mxu0 0.0
      %869 = vmatprep.subr.mxu0 0.0
      %870 = vmatpush1.msra.mxu0 0.0
      %871 = vmatprep.subr.mxu0 0.0
      %872 = vmatpush1.msra.mxu0 0.0
      %873 = vmatprep.subr.mxu0 0.0
      %874 = vmatpush1.msra.mxu0 0.0
      %875 = vmatprep.subr.mxu0 0.0
      %876 = vmatpush1.msra.mxu0 0.0
      %877 = vmatprep.subr.mxu0 0.0
      %878 = vmatpush1.msra.mxu0 0.0
      %879 = vmatprep.subr.mxu0 0.0
      %880 = vmatpush1.msra.mxu0 0.0
      %881 = vmatprep.subr.mxu0 0.0
      %882 = vmatpush1.msra.mxu0 0.0
      %883 = vmatprep.subr.mxu0 0.0
      %884 = vmatpush1.msra.mxu0 0.0
      %885 = vmatprep.subr.mxu0 0.0
      %886 = vmatpush1.msra.mxu0 0.0
      %887 = vmatprep.subr.mxu0 0.0
      %888 = vmatpush1.msra.mxu0 0.0
      %889 = vmatprep.subr.mxu0 0.0
      %890 = vmatpush1.msra.mxu0 0.0
      %891 = vmatprep.subr.mxu0 0.0
      %892 = vmatpush1.msra.mxu0 0.0
      %893 = vmatprep.subr.mxu0 0.0
      %894 = vmatpush1.msra.mxu0 0.0
      %895 = vmatprep.subr.mxu0 0.0
      %896 = vmatpush1.msra.mxu0 0.0
      %897 = vmatprep.subr.mxu0 0.0
      %898 = vmatpush1.msra.mxu0 0.0
      %899 = vmatprep.subr.mxu0 0.0
      %900 = vmatpush1.msra.mxu0 0.0
      %901 = vmatprep.subr.mxu0 0.0
      %902 = vmatpush1.msra.mxu0 0.0
      %903 = vmatprep.subr.mxu0 0.0
      %904 = vmatpush1.msra.mxu0 0.0
      %905 = vmatprep.subr.mxu0 0.0
      %906 = vmatpush1.msra.mxu0 0.0
      %907 = vmatprep.subr.mxu0 0.0
      %908 = vmatpush1.msra.mxu0 0.0
      %909 = vmatprep.subr.mxu0 0.0
      %910 = vmatpush1.msra.mxu0 0.0
      %911 = vmatprep.subr.mxu0 0.0
      %912 = vmatpush1.msra.mxu0 0.0
      %913 = vmatprep.subr.mxu0 0.0
      %914 = vmatpush1.msra.mxu0 0.0
      %915 = vmatprep.mubr.f32.mxu0 0.0
      %916 = vmatmul.mubr.f32.gmra.mrb[0].mxu0 %v849
      %v917 = vpop.f32.mrb[0].mxu0
      %v918 = vadd.f32 0.0, %v917
      %v919 = vpop.f32.mrb[0].mxu0
      %920 = vdwg.mxu0
      %v921 = vlaneseq
      %v922 = vshrl.u32 %v921, 7
      %v923 = vsub.s32 0, %v922
      %v924 = vrot.slane %v845, %v923
      %v925 = vsub.f32 %v591, %v924
      %v926 = vsub.f32 %v592, %v924
      %v927 = vlaneseq
      %v928 = vshrl.u32 %v927, 7
      %v929 = vsub.s32 0, %v928
      %v930 = vrot.slane %v918, %v929
      %v931 = vmul.f32 %v925, %v930
      %v932 = vmul.f32 %v926, %v930
      %v934 = vlaneseq
      %v935 = vshrl.u32 %v934, 7
      %v936 = vsub.s32 0, %v935
      %v937 = vrot.slane %v593, %v936
      %v939 = vmul.f32 %v931, %v937
      %v940 = vmul.f32 %v932, %v937
      %v942 = vlaneseq
      %v943 = vshrl.u32 %v942, 7
      %v944 = vsub.s32 0, %v943
      %v945 = vrot.slane %v594, %v944
      %v947 = vadd.f32 %v939, %v945
      %v948 = vadd.f32 %v940, %v945
      %v949 = vxor.u32 %v947, 2147483648
      %v950 = vxor.u32 %v948, 2147483648
      %v951 = vmul.f32 %v949, 1.442695
      %v952 = vpow.pop %v951
      %v953 = vmul.f32 %v950, 1.442695
      %v954 = vpow.pop %v953
      %v955 = vadd.f32 %v952, 1.0
      %v956 = vadd.f32 %v954, 1.0
      %v957 = vrcp.pop %v955
      %v958 = vmul.f32 1.0, %v957
      %v959 = vrcp.pop %v956
      %v960 = vmul.f32 1.0, %v959
      %v961 = vmul.f32 %v947, %v958
      %v962 = vmul.f32 %v948, %v960
      %v963 = vld [vmem:[%s7] sm:$0x1]
      %vm966 = vcmask 1040384
      %v967 = vrot.slane %v961, 7
      %v968 = vrot.slane %v962, 7
      %v969 = vsel %vm966, %v967, %v968
      %v973 = vsel %vm966, 0.0, %v967
      %v974 = vsel %vm966, %v968, 0.0
      %v975 = vpack.c.bf16 %v969, %v973
      %v976 = vpack.c.bf16 %v974, %v974
      %v977 = vld [vmem:[%s6] sm:$0xf]
      %v978 = vld [vmem:[%s6 + $0x4] sm:$0xf]
      %v979 = vld [vmem:[%s6 + $0x8] sm:$0xf]
      %v980 = vld [vmem:[%s6 + $0xc] sm:$0xf]
      %s981 = scalar_lea.vmem %s6, 16
      %v982 = vld [vmem:[%s981] sm:$0xf]
      %v983 = vld [vmem:[%s981 + $0x4] sm:$0xf]
      %v984 = vld [vmem:[%s981 + $0x8] sm:$0xf]
      %v985 = vld [vmem:[%s981 + $0xc] sm:$0xf]
      %vm986 = vsmask.f32 7424
      %v988 = vshrl.u32 %v975, 16
      %v990 = vshll.u32 %v975, 16
      %v992 = vrot.slane %v990, 1
      %v993 = vor.u32 %v988, %v992
      %v995 = vshll.u32 %v976, 16
      %v997 = vrot.slane %v995, 1
      %v998 = vsel %vm986, %v993, %v997
      %v1003 = vunpack.c.l.b16 %v982
      %v1004 = vunpack.c.l.b16 %v983
      %v1005 = vunpack.c.l.b16 %v984
      %v1006 = vunpack.c.l.b16 %v985
      %v1007 = vpack.c.b16 %v1004, %v1003
      %v1008 = vpack.c.b16 %v1006, %v1005
      %v1012 = vsel %vm600, %v998, 0
      %1014 = vmatprep.subr.bf16.mxu0 0
      %1015 = vmatpush1.bf16.msra.mxu0 %v1007
      %1016 = vmatprep.subr.bf16.mxu0 0
      %1017 = vmatpush1.bf16.msra.mxu0 %v1008
      %1018 = vmatprep.subr.bf16.mxu0 0
      %1019 = vmatpush1.bf16.msra.mxu0 0
      %1020 = vmatprep.subr.bf16.mxu0 0
      %1021 = vmatpush1.bf16.msra.mxu0 0
      %1022 = vmatprep.subr.bf16.mxu0 0
      %1023 = vmatpush1.bf16.msra.mxu0 0
      %1024 = vmatprep.subr.bf16.mxu0 0
      %1025 = vmatpush1.bf16.msra.mxu0 0
      %1026 = vmatprep.subr.bf16.mxu0 0
      %1027 = vmatpush1.bf16.msra.mxu0 0
      %1028 = vmatprep.subr.bf16.mxu0 0
      %1029 = vmatpush1.bf16.msra.mxu0 0
      %1030 = vmatprep.subr.bf16.mxu0 0
      %1031 = vmatpush1.bf16.msra.mxu0 0
      %1032 = vmatprep.subr.bf16.mxu0 0
      %1033 = vmatpush1.bf16.msra.mxu0 0
      %1034 = vmatprep.subr.bf16.mxu0 0
      %1035 = vmatpush1.bf16.msra.mxu0 0
      %1036 = vmatprep.subr.bf16.mxu0 0
      %1037 = vmatpush1.bf16.msra.mxu0 0
      %1038 = vmatprep.subr.bf16.mxu0 0
      %1039 = vmatpush1.bf16.msra.mxu0 0
      %1040 = vmatprep.subr.bf16.mxu0 0
      %1041 = vmatpush1.bf16.msra.mxu0 0
      %1042 = vmatprep.subr.bf16.mxu0 0
      %1043 = vmatpush1.bf16.msra.mxu0 0
      %1044 = vmatprep.subr.bf16.mxu0 0
      %1045 = vmatpush1.bf16.msra.mxu0 0
      %1046 = vmatprep.mubr.bf16.mxu0 0
      %1047 = vmatmul.mubr.bf16.gmra.mrb[0].mxu0 %v1012
      %v1048 = vpop.f32.mrb[0].mxu0
      %v1049 = vadd.f32 0.0, %v1048
      %v1050 = vpop.f32.mrb[0].mxu0
      %v1051 = vpop.f32.mrb[0].mxu0
      %v1052 = vadd.f32 0.0, %v1051
      %v1053 = vpop.f32.mrb[0].mxu0
      %1054 = vdwg.mxu0
      %v1059 = vunpack.c.l.b16 %v977
      %v1060 = vunpack.c.l.b16 %v978
      %v1061 = vunpack.c.l.b16 %v979
      %v1062 = vunpack.c.l.b16 %v980
      %v1063 = vpack.c.b16 %v1060, %v1059
      %v1064 = vpack.c.b16 %v1062, %v1061
      %v1067 = vsel %vm600, %v975, 0
      %1069 = vmatprep.subr.bf16.mxu0 0
      %1070 = vmatpush1.bf16.msra.mxu0 %v1063
      %1071 = vmatprep.subr.bf16.mxu0 0
      %1072 = vmatpush1.bf16.msra.mxu0 %v1064
      %1073 = vmatprep.subr.bf16.mxu0 0
      %1074 = vmatpush1.bf16.msra.mxu0 0
      %1075 = vmatprep.subr.bf16.mxu0 0
      %1076 = vmatpush1.bf16.msra.mxu0 0
      %1077 = vmatprep.subr.bf16.mxu0 0
      %1078 = vmatpush1.bf16.msra.mxu0 0
      %1079 = vmatprep.subr.bf16.mxu0 0
      %1080 = vmatpush1.bf16.msra.mxu0 0
      %1081 = vmatprep.subr.bf16.mxu0 0
      %1082 = vmatpush1.bf16.msra.mxu0 0
      %1083 = vmatprep.subr.bf16.mxu0 0
      %1084 = vmatpush1.bf16.msra.mxu0 0
      %1085 = vmatprep.subr.bf16.mxu0 0
      %1086 = vmatpush1.bf16.msra.mxu0 0
      %1087 = vmatprep.subr.bf16.mxu0 0
      %1088 = vmatpush1.bf16.msra.mxu0 0
      %1089 = vmatprep.subr.bf16.mxu0 0
      %1090 = vmatpush1.bf16.msra.mxu0 0
      %1091 = vmatprep.subr.bf16.mxu0 0
      %1092 = vmatpush1.bf16.msra.mxu0 0
      %1093 = vmatprep.subr.bf16.mxu0 0
      %1094 = vmatpush1.bf16.msra.mxu0 0
      %1095 = vmatprep.subr.bf16.mxu0 0
      %1096 = vmatpush1.bf16.msra.mxu0 0
      %1097 = vmatprep.subr.bf16.mxu0 0
      %1098 = vmatpush1.bf16.msra.mxu0 0
      %1099 = vmatprep.subr.bf16.mxu0 0
      %1100 = vmatpush1.bf16.msra.mxu0 0
      %1101 = vmatprep.mubr.bf16.mxu0 0
      %1102 = vmatmul.mubr.bf16.gmra.mrb[0].mxu0 %v1067
      %v1103 = vpop.f32.mrb[0].mxu0
      %v1104 = vadd.f32 %v1049, %v1103
      %v1105 = vpop.f32.mrb[0].mxu0
      %v1106 = vpop.f32.mrb[0].mxu0
      %v1107 = vadd.f32 %v1052, %v1106
      %v1108 = vpop.f32.mrb[0].mxu0
      %1109 = vdwg.mxu0
      %s1110 = scalar_lea.vmem %s6, 32
      %v1111 = vld [vmem:[%s1110] sm:$0xf]
      %v1112 = vld [vmem:[%s1110 + $0x4] sm:$0xf]
      %v1113 = vld [vmem:[%s1110 + $0x8] sm:$0xf]
      %v1114 = vld [vmem:[%s1110 + $0xc] sm:$0xf]
      %vm1117 = vcmask 1046528
      %v1118 = vrot.slane %v975, 1
      %v1119 = vrot.slane %v976, 1
      %v1120 = vsel %vm1117, %v1118, %v1119
      %v1125 = vunpack.c.l.b16 %v1111
      %v1126 = vunpack.c.l.b16 %v1112
      %v1127 = vunpack.c.l.b16 %v1113
      %v1128 = vunpack.c.l.b16 %v1114
      %v1129 = vpack.c.b16 %v1126, %v1125
      %v1130 = vpack.c.b16 %v1128, %v1127
      %v1134 = vsel %vm600, %v1120, 0
      %1136 = vmatprep.subr.bf16.mxu0 0
      %1137 = vmatpush1.bf16.msra.mxu0 %v1129
      %1138 = vmatprep.subr.bf16.mxu0 0
      %1139 = vmatpush1.bf16.msra.mxu0 %v1130
      %1140 = vmatprep.subr.bf16.mxu0 0
      %1141 = vmatpush1.bf16.msra.mxu0 0
      %1142 = vmatprep.subr.bf16.mxu0 0
      %1143 = vmatpush1.bf16.msra.mxu0 0
      %1144 = vmatprep.subr.bf16.mxu0 0
      %1145 = vmatpush1.bf16.msra.mxu0 0
      %1146 = vmatprep.subr.bf16.mxu0 0
      %1147 = vmatpush1.bf16.msra.mxu0 0
      %1148 = vmatprep.subr.bf16.mxu0 0
      %1149 = vmatpush1.bf16.msra.mxu0 0
      %1150 = vmatprep.subr.bf16.mxu0 0
      %1151 = vmatpush1.bf16.msra.mxu0 0
      %1152 = vmatprep.subr.bf16.mxu0 0
      %1153 = vmatpush1.bf16.msra.mxu0 0
      %1154 = vmatprep.subr.bf16.mxu0 0
      %1155 = vmatpush1.bf16.msra.mxu0 0
      %1156 = vmatprep.subr.bf16.mxu0 0
      %1157 = vmatpush1.bf16.msra.mxu0 0
      %1158 = vmatprep.subr.bf16.mxu0 0
      %1159 = vmatpush1.bf16.msra.mxu0 0
      %1160 = vmatprep.subr.bf16.mxu0 0
      %1161 = vmatpush1.bf16.msra.mxu0 0
      %1162 = vmatprep.subr.bf16.mxu0 0
      %1163 = vmatpush1.bf16.msra.mxu0 0
      %1164 = vmatprep.subr.bf16.mxu0 0
      %1165 = vmatpush1.bf16.msra.mxu0 0
      %1166 = vmatprep.subr.bf16.mxu0 0
      %1167 = vmatpush1.bf16.msra.mxu0 0
      %1168 = vmatprep.mubr.bf16.mxu0 0
      %1169 = vmatmul.mubr.bf16.gmra.mrb[0].mxu0 %v1134
      %v1170 = vpop.f32.mrb[0].mxu0
      %v1171 = vadd.f32 0.0, %v1170
      %v1172 = vpop.f32.mrb[0].mxu0
      %v1173 = vpop.f32.mrb[0].mxu0
      %v1174 = vadd.f32 0.0, %v1173
      %v1175 = vpop.f32.mrb[0].mxu0
      %1176 = vdwg.mxu0
      %v1177 = vadd.f32 %v1104, %v1171
      %v1178 = vadd.f32 %v1107, %v1174
      %v1180 = vlaneseq
      %v1181 = vshrl.u32 %v1180, 7
      %v1182 = vsub.s32 0, %v1181
      %v1183 = vrot.slane %v963, %v1182
      %v1185 = vadd.f32 %v1177, %v1183
      %v1186 = vadd.f32 %v1178, %v1183
      %v1187 = vld [vmem:[%s584] sm:$0x1]
      %v1188 = vxor.u32 %v1187, 2147483648
      %v1189 = vmul.f32 %v1188, 1.442695
      %v1190 = vpow.pop %v1189
      %v1191 = vadd.f32 %v1190, 1.0
      %v1192 = vrcp.pop %v1191
      %v1193 = vmul.f32 1.0, %v1192
      %v1194 = vmul.f32 %v1187, %v1193
      %v1195 = vld [vmem:[%s8] sm:$0xf]
      %v1196 = vld [vmem:[%s8 + $0x4] sm:$0xf]
      %v1197 = vld [vmem:[%s8 + $0x8] sm:$0xf]
      %v1198 = vld [vmem:[%s8 + $0xc] sm:$0xf]
      %v1199 = vpack.c.bf16 %v1194, %v1194
      %v1200 = vld [vmem:[%s9] sm:$0x1]
      %v1205 = vunpack.c.l.b16 %v1195
      %v1206 = vunpack.c.l.b16 %v1196
      %v1207 = vunpack.c.l.b16 %v1197
      %v1208 = vunpack.c.l.b16 %v1198
      %v1209 = vpack.c.b16 %v1206, %v1205
      %v1210 = vpack.c.b16 %v1208, %v1207
      %v1214 = vsel %vm600, %v1199, 0
      %1216 = vmatprep.subr.bf16.mxu0 0
      %1217 = vmatpush1.bf16.msra.mxu0 %v1209
      %1218 = vmatprep.subr.bf16.mxu0 0
      %1219 = vmatpush1.bf16.msra.mxu0 %v1210
      %1220 = vmatprep.subr.bf16.mxu0 0
      %1221 = vmatpush1.bf16.msra.mxu0 0
      %1222 = vmatprep.subr.bf16.mxu0 0
      %1223 = vmatpush1.bf16.msra.mxu0 0
      %1224 = vmatprep.subr.bf16.mxu0 0
      %1225 = vmatpush1.bf16.msra.mxu0 0
      %1226 = vmatprep.subr.bf16.mxu0 0
      %1227 = vmatpush1.bf16.msra.mxu0 0
      %1228 = vmatprep.subr.bf16.mxu0 0
      %1229 = vmatpush1.bf16.msra.mxu0 0
      %1230 = vmatprep.subr.bf16.mxu0 0
      %1231 = vmatpush1.bf16.msra.mxu0 0
      %1232 = vmatprep.subr.bf16.mxu0 0
      %1233 = vmatpush1.bf16.msra.mxu0 0
      %1234 = vmatprep.subr.bf16.mxu0 0
      %1235 = vmatpush1.bf16.msra.mxu0 0
      %1236 = vmatprep.subr.bf16.mxu0 0
      %1237 = vmatpush1.bf16.msra.mxu0 0
      %1238 = vmatprep.subr.bf16.mxu0 0
      %1239 = vmatpush1.bf16.msra.mxu0 0
      %1240 = vmatprep.subr.bf16.mxu0 0
      %1241 = vmatpush1.bf16.msra.mxu0 0
      %1242 = vmatprep.subr.bf16.mxu0 0
      %1243 = vmatpush1.bf16.msra.mxu0 0
      %1244 = vmatprep.subr.bf16.mxu0 0
      %1245 = vmatpush1.bf16.msra.mxu0 0
      %1246 = vmatprep.subr.bf16.mxu0 0
      %1247 = vmatpush1.bf16.msra.mxu0 0
      %1248 = vmatprep.mubr.bf16.mxu0 0
      %1249 = vmatmul.mubr.bf16.gmra.mrb[0].mxu0 %v1214
      %v1250 = vpop.f32.mrb[0].mxu0
      %v1251 = vadd.f32 %v1200, %v1250
      %v1252 = vpop.f32.mrb[0].mxu0
      %v1253 = vpop.f32.mrb[0].mxu0
      %v1254 = vpop.f32.mrb[0].mxu0
      %1255 = vdwg.mxu0
      %v1256 = vlaneseq
      %v1257 = vshrl.u32 %v1256, 7
      %v1258 = vsub.s32 0, %v1257
      %v1259 = vrot.slane %v1251, %v1258
      %v1260 = vadd.f32 %v1185, %v1259
      %v1261 = vadd.f32 %v1186, %v1259
      %v1262 = vld [vmem:[%s10] sm:$0x1]
      %v1263 = vld [vmem:[%s11] sm:$0x1]
      %v1264 = vld [vmem:[%s12] sm:$0xff]
      %v1265 = vld [vmem:[%s12 + $0x8] sm:$0xff]
      %v1266 = vld [vmem:[%s12 + $0x10] sm:$0xff]
      %v1267 = vld [vmem:[%s12 + $0x18] sm:$0xff]
      %v1268 = vld [vmem:[%s12 + $0x20] sm:$0xff]
      %v1269 = vld [vmem:[%s12 + $0x28] sm:$0xff]
      %v1270 = vld [vmem:[%s12 + $0x30] sm:$0xff]
      %v1271 = vld [vmem:[%s12 + $0x38] sm:$0xff]
      %v1272 = vld [vmem:[%s13] sm:$0xff]
      %vm1273 = vcmask 523264
      %v1274 = vsel %vm1273, %v1260, 0.0
      %v1275 = vsel %vm1273, %v1261, 0.0
      %v1276 = vadd.f32 %v1274, %v1275
      %v1277 = vrot.slane %v1276, 4
      %v1278 = vadd.f32 %v1276, %v1277
      %v1279 = vrot.slane %v1278, 2
      %v1280 = vadd.f32 %v1278, %v1279
      %v1281 = vrot.slane %v1280, 1
      %v1282 = vadd.f32 %v1280, %v1281
      %v1283 = vmul.f32 %v1260, %v1260
      %v1284 = vmul.f32 %v1261, %v1261
      %v1285 = vsel %vm1273, %v1283, 0.0
      %v1286 = vsel %vm1273, %v1284, 0.0
      %v1287 = vadd.f32 %v1285, %v1286
      %v1288 = vrot.slane %v1287, 4
      %v1289 = vadd.f32 %v1287, %v1288
      %v1290 = vrot.slane %v1289, 2
      %v1291 = vadd.f32 %v1289, %v1290
      %v1292 = vrot.slane %v1291, 1
      %v1293 = vadd.f32 %v1291, %v1292
      %v1295 = vsel %vm1273, %v1282, 0
      %1297 = vmatprep.subr.mxu0 0.0
      %1298 = vmatpush1.msra.mxu0 %v1264
      %1299 = vmatprep.subr.mxu0 0.0
      %1300 = vmatpush1.msra.mxu0 %v1265
      %1301 = vmatprep.subr.mxu0 0.0
      %1302 = vmatpush1.msra.mxu0 %v1266
      %1303 = vmatprep.subr.mxu0 0.0
      %1304 = vmatpush1.msra.mxu0 %v1267
      %1305 = vmatprep.subr.mxu0 0.0
      %1306 = vmatpush1.msra.mxu0 %v1268
      %1307 = vmatprep.subr.mxu0 0.0
      %1308 = vmatpush1.msra.mxu0 %v1269
      %1309 = vmatprep.subr.mxu0 0.0
      %1310 = vmatpush1.msra.mxu0 %v1270
      %1311 = vmatprep.subr.mxu0 0.0
      %1312 = vmatpush1.msra.mxu0 %v1271
      %1313 = vmatprep.subr.mxu0 0.0
      %1314 = vmatpush1.msra.mxu0 0.0
      %1315 = vmatprep.subr.mxu0 0.0
      %1316 = vmatpush1.msra.mxu0 0.0
      %1317 = vmatprep.subr.mxu0 0.0
      %1318 = vmatpush1.msra.mxu0 0.0
      %1319 = vmatprep.subr.mxu0 0.0
      %1320 = vmatpush1.msra.mxu0 0.0
      %1321 = vmatprep.subr.mxu0 0.0
      %1322 = vmatpush1.msra.mxu0 0.0
      %1323 = vmatprep.subr.mxu0 0.0
      %1324 = vmatpush1.msra.mxu0 0.0
      %1325 = vmatprep.subr.mxu0 0.0
      %1326 = vmatpush1.msra.mxu0 0.0
      %1327 = vmatprep.subr.mxu0 0.0
      %1328 = vmatpush1.msra.mxu0 0.0
      %1329 = vmatprep.subr.mxu0 0.0
      %1330 = vmatpush1.msra.mxu0 0.0
      %1331 = vmatprep.subr.mxu0 0.0
      %1332 = vmatpush1.msra.mxu0 0.0
      %1333 = vmatprep.subr.mxu0 0.0
      %1334 = vmatpush1.msra.mxu0 0.0
      %1335 = vmatprep.subr.mxu0 0.0
      %1336 = vmatpush1.msra.mxu0 0.0
      %1337 = vmatprep.subr.mxu0 0.0
      %1338 = vmatpush1.msra.mxu0 0.0
      %1339 = vmatprep.subr.mxu0 0.0
      %1340 = vmatpush1.msra.mxu0 0.0
      %1341 = vmatprep.subr.mxu0 0.0
      %1342 = vmatpush1.msra.mxu0 0.0
      %1343 = vmatprep.subr.mxu0 0.0
      %1344 = vmatpush1.msra.mxu0 0.0
      %1345 = vmatprep.subr.mxu0 0.0
      %1346 = vmatpush1.msra.mxu0 0.0
      %1347 = vmatprep.subr.mxu0 0.0
      %1348 = vmatpush1.msra.mxu0 0.0
      %1349 = vmatprep.subr.mxu0 0.0
      %1350 = vmatpush1.msra.mxu0 0.0
      %1351 = vmatprep.subr.mxu0 0.0
      %1352 = vmatpush1.msra.mxu0 0.0
      %1353 = vmatprep.subr.mxu0 0.0
      %1354 = vmatpush1.msra.mxu0 0.0
      %1355 = vmatprep.subr.mxu0 0.0
      %1356 = vmatpush1.msra.mxu0 0.0
      %1357 = vmatprep.subr.mxu0 0.0
      %1358 = vmatpush1.msra.mxu0 0.0
      %1359 = vmatprep.subr.mxu0 0.0
      %1360 = vmatpush1.msra.mxu0 0.0
      %1361 = vmatprep.mubr.f32.mxu0 0.0
      %1362 = vmatmul.mubr.f32.gmra.mrb[0].mxu0 %v1295
      %v1363 = vpop.f32.mrb[0].mxu0
      %v1364 = vadd.f32 0.0, %v1363
      %v1365 = vpop.f32.mrb[0].mxu0
      %1366 = vdwg.mxu0
      %v1367 = vrcp.pop 128.0
      %v1368 = vmul.f32 %v1364, %v1367
      %v1370 = vsel %vm1273, %v1293, 0
      %1372 = vmatprep.subr.mxu0 0.0
      %1373 = vmatpush1.msra.mxu0 %v1264
      %1374 = vmatprep.subr.mxu0 0.0
      %1375 = vmatpush1.msra.mxu0 %v1265
      %1376 = vmatprep.subr.mxu0 0.0
      %1377 = vmatpush1.msra.mxu0 %v1266
      %1378 = vmatprep.subr.mxu0 0.0
      %1379 = vmatpush1.msra.mxu0 %v1267
      %1380 = vmatprep.subr.mxu0 0.0
      %1381 = vmatpush1.msra.mxu0 %v1268
      %1382 = vmatprep.subr.mxu0 0.0
      %1383 = vmatpush1.msra.mxu0 %v1269
      %1384 = vmatprep.subr.mxu0 0.0
      %1385 = vmatpush1.msra.mxu0 %v1270
      %1386 = vmatprep.subr.mxu0 0.0
      %1387 = vmatpush1.msra.mxu0 %v1271
      %1388 = vmatprep.subr.mxu0 0.0
      %1389 = vmatpush1.msra.mxu0 0.0
      %1390 = vmatprep.subr.mxu0 0.0
      %1391 = vmatpush1.msra.mxu0 0.0
      %1392 = vmatprep.subr.mxu0 0.0
      %1393 = vmatpush1.msra.mxu0 0.0
      %1394 = vmatprep.subr.mxu0 0.0
      %1395 = vmatpush1.msra.mxu0 0.0
      %1396 = vmatprep.subr.mxu0 0.0
      %1397 = vmatpush1.msra.mxu0 0.0
      %1398 = vmatprep.subr.mxu0 0.0
      %1399 = vmatpush1.msra.mxu0 0.0
      %1400 = vmatprep.subr.mxu0 0.0
      %1401 = vmatpush1.msra.mxu0 0.0
      %1402 = vmatprep.subr.mxu0 0.0
      %1403 = vmatpush1.msra.mxu0 0.0
      %1404 = vmatprep.subr.mxu0 0.0
      %1405 = vmatpush1.msra.mxu0 0.0
      %1406 = vmatprep.subr.mxu0 0.0
      %1407 = vmatpush1.msra.mxu0 0.0
      %1408 = vmatprep.subr.mxu0 0.0
      %1409 = vmatpush1.msra.mxu0 0.0
      %1410 = vmatprep.subr.mxu0 0.0
      %1411 = vmatpush1.msra.mxu0 0.0
      %1412 = vmatprep.subr.mxu0 0.0
      %1413 = vmatpush1.msra.mxu0 0.0
      %1414 = vmatprep.subr.mxu0 0.0
      %1415 = vmatpush1.msra.mxu0 0.0
      %1416 = vmatprep.subr.mxu0 0.0
      %1417 = vmatpush1.msra.mxu0 0.0
      %1418 = vmatprep.subr.mxu0 0.0
      %1419 = vmatpush1.msra.mxu0 0.0
      %1420 = vmatprep.subr.mxu0 0.0
      %1421 = vmatpush1.msra.mxu0 0.0
      %1422 = vmatprep.subr.mxu0 0.0
      %1423 = vmatpush1.msra.mxu0 0.0
      %1424 = vmatprep.subr.mxu0 0.0
      %1425 = vmatpush1.msra.mxu0 0.0
      %1426 = vmatprep.subr.mxu0 0.0
      %1427 = vmatpush1.msra.mxu0 0.0
      %1428 = vmatprep.subr.mxu0 0.0
      %1429 = vmatpush1.msra.mxu0 0.0
      %1430 = vmatprep.subr.mxu0 0.0
      %1431 = vmatpush1.msra.mxu0 0.0
      %1432 = vmatprep.subr.mxu0 0.0
      %1433 = vmatpush1.msra.mxu0 0.0
      %1434 = vmatprep.subr.mxu0 0.0
      %1435 = vmatpush1.msra.mxu0 0.0
      %1436 = vmatprep.mubr.f32.mxu0 0.0
      %1437 = vmatmul.mubr.f32.gmra.mrb[0].mxu0 %v1370
      %v1438 = vpop.f32.mrb[0].mxu0
      %v1439 = vadd.f32 0.0, %v1438
      %v1440 = vpop.f32.mrb[0].mxu0
      %1441 = vdwg.mxu0
      %v1442 = vmul.f32 %v1439, %v1367
      %v1443 = vmul.f32 %v1368, %v1368
      %v1444 = vsub.f32 %v1442, %v1443
      %v1445 = vadd.f32 %v1444, 1e-06
      %v1446 = vrsqrt.pop %v1445
      %v1448 = vsel %vm774, %v1368, 0
      %1450 = vmatprep.subr.mxu0 0.0
      %1451 = vmatpush1.msra.mxu0 %v1272
      %1452 = vmatprep.subr.mxu0 0.0
      %1453 = vmatpush1.msra.mxu0 0.0
      %1454 = vmatprep.subr.mxu0 0.0
      %1455 = vmatpush1.msra.mxu0 0.0
      %1456 = vmatprep.subr.mxu0 0.0
      %1457 = vmatpush1.msra.mxu0 0.0
      %1458 = vmatprep.subr.mxu0 0.0
      %1459 = vmatpush1.msra.mxu0 0.0
      %1460 = vmatprep.subr.mxu0 0.0
      %1461 = vmatpush1.msra.mxu0 0.0
      %1462 = vmatprep.subr.mxu0 0.0
      %1463 = vmatpush1.msra.mxu0 0.0
      %1464 = vmatprep.subr.mxu0 0.0
      %1465 = vmatpush1.msra.mxu0 0.0
      %1466 = vmatprep.subr.mxu0 0.0
      %1467 = vmatpush1.msra.mxu0 0.0
      %1468 = vmatprep.subr.mxu0 0.0
      %1469 = vmatpush1.msra.mxu0 0.0
      %1470 = vmatprep.subr.mxu0 0.0
      %1471 = vmatpush1.msra.mxu0 0.0
      %1472 = vmatprep.subr.mxu0 0.0
      %1473 = vmatpush1.msra.mxu0 0.0
      %1474 = vmatprep.subr.mxu0 0.0
      %1475 = vmatpush1.msra.mxu0 0.0
      %1476 = vmatprep.subr.mxu0 0.0
      %1477 = vmatpush1.msra.mxu0 0.0
      %1478 = vmatprep.subr.mxu0 0.0
      %1479 = vmatpush1.msra.mxu0 0.0
      %1480 = vmatprep.subr.mxu0 0.0
      %1481 = vmatpush1.msra.mxu0 0.0
      %1482 = vmatprep.subr.mxu0 0.0
      %1483 = vmatpush1.msra.mxu0 0.0
      %1484 = vmatprep.subr.mxu0 0.0
      %1485 = vmatpush1.msra.mxu0 0.0
      %1486 = vmatprep.subr.mxu0 0.0
      %1487 = vmatpush1.msra.mxu0 0.0
      %1488 = vmatprep.subr.mxu0 0.0
      %1489 = vmatpush1.msra.mxu0 0.0
      %1490 = vmatprep.subr.mxu0 0.0
      %1491 = vmatpush1.msra.mxu0 0.0
      %1492 = vmatprep.subr.mxu0 0.0
      %1493 = vmatpush1.msra.mxu0 0.0
      %1494 = vmatprep.subr.mxu0 0.0
      %1495 = vmatpush1.msra.mxu0 0.0
      %1496 = vmatprep.subr.mxu0 0.0
      %1497 = vmatpush1.msra.mxu0 0.0
      %1498 = vmatprep.subr.mxu0 0.0
      %1499 = vmatpush1.msra.mxu0 0.0
      %1500 = vmatprep.subr.mxu0 0.0
      %1501 = vmatpush1.msra.mxu0 0.0
      %1502 = vmatprep.subr.mxu0 0.0
      %1503 = vmatpush1.msra.mxu0 0.0
      %1504 = vmatprep.subr.mxu0 0.0
      %1505 = vmatpush1.msra.mxu0 0.0
      %1506 = vmatprep.subr.mxu0 0.0
      %1507 = vmatpush1.msra.mxu0 0.0
      %1508 = vmatprep.subr.mxu0 0.0
      %1509 = vmatpush1.msra.mxu0 0.0
      %1510 = vmatprep.subr.mxu0 0.0
      %1511 = vmatpush1.msra.mxu0 0.0
      %1512 = vmatprep.subr.mxu0 0.0
      %1513 = vmatpush1.msra.mxu0 0.0
      %1514 = vmatprep.mubr.f32.mxu0 0.0
      %1515 = vmatmul.mubr.f32.gmra.mrb[0].mxu0 %v1448
      %v1516 = vpop.f32.mrb[0].mxu0
      %v1517 = vadd.f32 0.0, %v1516
      %v1518 = vpop.f32.mrb[0].mxu0
      %1519 = vdwg.mxu0
      %v1521 = vsel %vm774, %v1446, 0
      %1523 = vmatprep.subr.mxu0 0.0
      %1524 = vmatpush1.msra.mxu0 %v1272
      %1525 = vmatprep.subr.mxu0 0.0
      %1526 = vmatpush1.msra.mxu0 0.0
      %1527 = vmatprep.subr.mxu0 0.0
      %1528 = vmatpush1.msra.mxu0 0.0
      %1529 = vmatprep.subr.mxu0 0.0
      %1530 = vmatpush1.msra.mxu0 0.0
      %1531 = vmatprep.subr.mxu0 0.0
      %1532 = vmatpush1.msra.mxu0 0.0
      %1533 = vmatprep.subr.mxu0 0.0
      %1534 = vmatpush1.msra.mxu0 0.0
      %1535 = vmatprep.subr.mxu0 0.0
      %1536 = vmatpush1.msra.mxu0 0.0
      %1537 = vmatprep.subr.mxu0 0.0
      %1538 = vmatpush1.msra.mxu0 0.0
      %1539 = vmatprep.subr.mxu0 0.0
      %1540 = vmatpush1.msra.mxu0 0.0
      %1541 = vmatprep.subr.mxu0 0.0
      %1542 = vmatpush1.msra.mxu0 0.0
      %1543 = vmatprep.subr.mxu0 0.0
      %1544 = vmatpush1.msra.mxu0 0.0
      %1545 = vmatprep.subr.mxu0 0.0
      %1546 = vmatpush1.msra.mxu0 0.0
      %1547 = vmatprep.subr.mxu0 0.0
      %1548 = vmatpush1.msra.mxu0 0.0
      %1549 = vmatprep.subr.mxu0 0.0
      %1550 = vmatpush1.msra.mxu0 0.0
      %1551 = vmatprep.subr.mxu0 0.0
      %1552 = vmatpush1.msra.mxu0 0.0
      %1553 = vmatprep.subr.mxu0 0.0
      %1554 = vmatpush1.msra.mxu0 0.0
      %1555 = vmatprep.subr.mxu0 0.0
      %1556 = vmatpush1.msra.mxu0 0.0
      %1557 = vmatprep.subr.mxu0 0.0
      %1558 = vmatpush1.msra.mxu0 0.0
      %1559 = vmatprep.subr.mxu0 0.0
      %1560 = vmatpush1.msra.mxu0 0.0
      %1561 = vmatprep.subr.mxu0 0.0
      %1562 = vmatpush1.msra.mxu0 0.0
      %1563 = vmatprep.subr.mxu0 0.0
      %1564 = vmatpush1.msra.mxu0 0.0
      %1565 = vmatprep.subr.mxu0 0.0
      %1566 = vmatpush1.msra.mxu0 0.0
      %1567 = vmatprep.subr.mxu0 0.0
      %1568 = vmatpush1.msra.mxu0 0.0
      %1569 = vmatprep.subr.mxu0 0.0
      %1570 = vmatpush1.msra.mxu0 0.0
      %1571 = vmatprep.subr.mxu0 0.0
      %1572 = vmatpush1.msra.mxu0 0.0
      %1573 = vmatprep.subr.mxu0 0.0
      %1574 = vmatpush1.msra.mxu0 0.0
      %1575 = vmatprep.subr.mxu0 0.0
      %1576 = vmatpush1.msra.mxu0 0.0
      %1577 = vmatprep.subr.mxu0 0.0
      %1578 = vmatpush1.msra.mxu0 0.0
      %1579 = vmatprep.subr.mxu0 0.0
      %1580 = vmatpush1.msra.mxu0 0.0
      %1581 = vmatprep.subr.mxu0 0.0
      %1582 = vmatpush1.msra.mxu0 0.0
      %1583 = vmatprep.subr.mxu0 0.0
      %1584 = vmatpush1.msra.mxu0 0.0
      %1585 = vmatprep.subr.mxu0 0.0
      %1586 = vmatpush1.msra.mxu0 0.0
      %1587 = vmatprep.mubr.f32.mxu0 0.0
      %1588 = vmatmul.mubr.f32.gmra.mrb[0].mxu0 %v1521
      %v1589 = vpop.f32.mrb[0].mxu0
      %v1590 = vadd.f32 0.0, %v1589
      %v1591 = vpop.f32.mrb[0].mxu0
      %1592 = vdwg.mxu0
      %v1593 = vlaneseq
      %v1594 = vshrl.u32 %v1593, 7
      %v1595 = vsub.s32 0, %v1594
      %v1596 = vrot.slane %v1517, %v1595
      %v1597 = vsub.f32 %v1260, %v1596
      %v1598 = vsub.f32 %v1261, %v1596
      %v1599 = vlaneseq
      %v1600 = vshrl.u32 %v1599, 7
      %v1601 = vsub.s32 0, %v1600
      %v1602 = vrot.slane %v1590, %v1601
      %v1603 = vmul.f32 %v1597, %v1602
      %v1604 = vmul.f32 %v1598, %v1602
      %v1606 = vlaneseq
      %v1607 = vshrl.u32 %v1606, 7
      %v1608 = vsub.s32 0, %v1607
      %v1609 = vrot.slane %v1262, %v1608
      %v1611 = vmul.f32 %v1603, %v1609
      %v1612 = vmul.f32 %v1604, %v1609
      %v1614 = vlaneseq
      %v1615 = vshrl.u32 %v1614, 7
      %v1616 = vsub.s32 0, %v1615
      %v1617 = vrot.slane %v1263, %v1616
      %v1619 = vadd.f32 %v1611, %v1617
      %v1620 = vadd.f32 %v1612, %v1617
      %v1621 = vxor.u32 %v1619, 2147483648
      %v1622 = vxor.u32 %v1620, 2147483648
      %v1623 = vmul.f32 %v1621, 1.442695
      %v1624 = vpow.pop %v1623
      %v1625 = vmul.f32 %v1622, 1.442695
      %v1626 = vpow.pop %v1625
      %v1627 = vadd.f32 %v1624, 1.0
      %v1628 = vadd.f32 %v1626, 1.0
      %v1629 = vrcp.pop %v1627
      %v1630 = vmul.f32 1.0, %v1629
      %v1631 = vrcp.pop %v1628
      %v1632 = vmul.f32 1.0, %v1631
      %v1633 = vmul.f32 %v1619, %v1630
      %v1634 = vmul.f32 %v1620, %v1632
      %v1635 = vld [vmem:[%s15] sm:$0x1]
      %v1638 = vrot.slane %v1633, 7
      %v1639 = vrot.slane %v1634, 7
      %v1640 = vsel %vm966, %v1638, %v1639
      %v1644 = vsel %vm966, 0.0, %v1638
      %v1645 = vsel %vm966, %v1639, 0.0
      %v1646 = vpack.c.bf16 %v1640, %v1644
      %v1647 = vpack.c.bf16 %v1645, %v1645
      %v1648 = vld [vmem:[%s14] sm:$0xf]
      %v1649 = vld [vmem:[%s14 + $0x4] sm:$0xf]
      %v1650 = vld [vmem:[%s14 + $0x8] sm:$0xf]
      %v1651 = vld [vmem:[%s14 + $0xc] sm:$0xf]
      %v1652 = vld [vmem:[%s14 + $0x10] sm:$0xf]
      %v1653 = vld [vmem:[%s14 + $0x14] sm:$0xf]
      %v1654 = vld [vmem:[%s14 + $0x18] sm:$0xf]
      %v1655 = vld [vmem:[%s14 + $0x1c] sm:$0xf]
      %s1656 = scalar_lea.vmem %s14, 32
      %v1657 = vld [vmem:[%s1656] sm:$0xf]
      %v1658 = vld [vmem:[%s1656 + $0x4] sm:$0xf]
      %v1659 = vld [vmem:[%s1656 + $0x8] sm:$0xf]
      %v1660 = vld [vmem:[%s1656 + $0xc] sm:$0xf]
      %v1661 = vld [vmem:[%s1656 + $0x10] sm:$0xf]
      %v1662 = vld [vmem:[%s1656 + $0x14] sm:$0xf]
      %v1663 = vld [vmem:[%s1656 + $0x18] sm:$0xf]
      %v1664 = vld [vmem:[%s1656 + $0x1c] sm:$0xf]
      %v1666 = vshrl.u32 %v1646, 16
      %v1668 = vshll.u32 %v1646, 16
      %v1670 = vrot.slane %v1668, 1
      %v1671 = vor.u32 %v1666, %v1670
      %v1673 = vshll.u32 %v1647, 16
      %v1675 = vrot.slane %v1673, 1
      %v1676 = vsel %vm986, %v1671, %v1675
      %v1685 = vunpack.c.l.b16 %v1657
      %v1686 = vunpack.c.l.b16 %v1658
      %v1687 = vunpack.c.l.b16 %v1659
      %v1688 = vunpack.c.l.b16 %v1660
      %v1689 = vunpack.c.l.b16 %v1661
      %v1690 = vunpack.c.l.b16 %v1662
      %v1691 = vunpack.c.l.b16 %v1663
      %v1692 = vunpack.c.l.b16 %v1664
      %v1693 = vpack.c.b16 %v1686, %v1685
      %v1694 = vpack.c.b16 %v1688, %v1687
      %v1695 = vpack.c.b16 %v1690, %v1689
      %v1696 = vpack.c.b16 %v1692, %v1691
      %v1702 = vsel %vm1273, %v1676, 0
      %1704 = vmatprep.subr.bf16.mxu0 0
      %1705 = vmatpush1.bf16.msra.mxu0 %v1693
      %1706 = vmatprep.subr.bf16.mxu0 0
      %1707 = vmatpush1.bf16.msra.mxu0 %v1694
      %1708 = vmatprep.subr.bf16.mxu0 0
      %1709 = vmatpush1.bf16.msra.mxu0 %v1695
      %1710 = vmatprep.subr.bf16.mxu0 0
      %1711 = vmatpush1.bf16.msra.mxu0 %v1696
      %1712 = vmatprep.subr.bf16.mxu0 0
      %1713 = vmatpush1.bf16.msra.mxu0 0
      %1714 = vmatprep.subr.bf16.mxu0 0
      %1715 = vmatpush1.bf16.msra.mxu0 0
      %1716 = vmatprep.subr.bf16.mxu0 0
      %1717 = vmatpush1.bf16.msra.mxu0 0
      %1718 = vmatprep.subr.bf16.mxu0 0
      %1719 = vmatpush1.bf16.msra.mxu0 0
      %1720 = vmatprep.subr.bf16.mxu0 0
      %1721 = vmatpush1.bf16.msra.mxu0 0
      %1722 = vmatprep.subr.bf16.mxu0 0
      %1723 = vmatpush1.bf16.msra.mxu0 0
      %1724 = vmatprep.subr.bf16.mxu0 0
      %1725 = vmatpush1.bf16.msra.mxu0 0
      %1726 = vmatprep.subr.bf16.mxu0 0
      %1727 = vmatpush1.bf16.msra.mxu0 0
      %1728 = vmatprep.subr.bf16.mxu0 0
      %1729 = vmatpush1.bf16.msra.mxu0 0
      %1730 = vmatprep.subr.bf16.mxu0 0
      %1731 = vmatpush1.bf16.msra.mxu0 0
      %1732 = vmatprep.subr.bf16.mxu0 0
      %1733 = vmatpush1.bf16.msra.mxu0 0
      %1734 = vmatprep.subr.bf16.mxu0 0
      %1735 = vmatpush1.bf16.msra.mxu0 0
      %1736 = vmatprep.mubr.bf16.mxu0 0
      %1737 = vmatmul.mubr.bf16.gmra.mrb[0].mxu0 %v1702
      %v1738 = vpop.f32.mrb[0].mxu0
      %v1739 = vadd.f32 0.0, %v1738
      %v1740 = vpop.f32.mrb[0].mxu0
      %v1741 = vpop.f32.mrb[0].mxu0
      %v1742 = vadd.f32 0.0, %v1741
      %v1743 = vpop.f32.mrb[0].mxu0
      %1744 = vdwg.mxu0
      %v1753 = vunpack.c.l.b16 %v1648
      %v1754 = vunpack.c.l.b16 %v1649
      %v1755 = vunpack.c.l.b16 %v1650
      %v1756 = vunpack.c.l.b16 %v1651
      %v1757 = vunpack.c.l.b16 %v1652
      %v1758 = vunpack.c.l.b16 %v1653
      %v1759 = vunpack.c.l.b16 %v1654
      %v1760 = vunpack.c.l.b16 %v1655
      %v1761 = vpack.c.b16 %v1754, %v1753
      %v1762 = vpack.c.b16 %v1756, %v1755
      %v1763 = vpack.c.b16 %v1758, %v1757
      %v1764 = vpack.c.b16 %v1760, %v1759
      %v1769 = vsel %vm1273, %v1646, 0
      %1771 = vmatprep.subr.bf16.mxu0 0
      %1772 = vmatpush1.bf16.msra.mxu0 %v1761
      %1773 = vmatprep.subr.bf16.mxu0 0
      %1774 = vmatpush1.bf16.msra.mxu0 %v1762
      %1775 = vmatprep.subr.bf16.mxu0 0
      %1776 = vmatpush1.bf16.msra.mxu0 %v1763
      %1777 = vmatprep.subr.bf16.mxu0 0
      %1778 = vmatpush1.bf16.msra.mxu0 %v1764
      %1779 = vmatprep.subr.bf16.mxu0 0
      %1780 = vmatpush1.bf16.msra.mxu0 0
      %1781 = vmatprep.subr.bf16.mxu0 0
      %1782 = vmatpush1.bf16.msra.mxu0 0
      %1783 = vmatprep.subr.bf16.mxu0 0
      %1784 = vmatpush1.bf16.msra.mxu0 0
      %1785 = vmatprep.subr.bf16.mxu0 0
      %1786 = vmatpush1.bf16.msra.mxu0 0
      %1787 = vmatprep.subr.bf16.mxu0 0
      %1788 = vmatpush1.bf16.msra.mxu0 0
      %1789 = vmatprep.subr.bf16.mxu0 0
      %1790 = vmatpush1.bf16.msra.mxu0 0
      %1791 = vmatprep.subr.bf16.mxu0 0
      %1792 = vmatpush1.bf16.msra.mxu0 0
      %1793 = vmatprep.subr.bf16.mxu0 0
      %1794 = vmatpush1.bf16.msra.mxu0 0
      %1795 = vmatprep.subr.bf16.mxu0 0
      %1796 = vmatpush1.bf16.msra.mxu0 0
      %1797 = vmatprep.subr.bf16.mxu0 0
      %1798 = vmatpush1.bf16.msra.mxu0 0
      %1799 = vmatprep.subr.bf16.mxu0 0
      %1800 = vmatpush1.bf16.msra.mxu0 0
      %1801 = vmatprep.subr.bf16.mxu0 0
      %1802 = vmatpush1.bf16.msra.mxu0 0
      %1803 = vmatprep.mubr.bf16.mxu0 0
      %1804 = vmatmul.mubr.bf16.gmra.mrb[0].mxu0 %v1769
      %v1805 = vpop.f32.mrb[0].mxu0
      %v1806 = vadd.f32 %v1739, %v1805
      %v1807 = vpop.f32.mrb[0].mxu0
      %v1808 = vpop.f32.mrb[0].mxu0
      %v1809 = vadd.f32 %v1742, %v1808
      %v1810 = vpop.f32.mrb[0].mxu0
      %1811 = vdwg.mxu0
      %s1812 = scalar_lea.vmem %s14, 64
      %v1813 = vld [vmem:[%s1812] sm:$0xf]
      %v1814 = vld [vmem:[%s1812 + $0x4] sm:$0xf]
      %v1815 = vld [vmem:[%s1812 + $0x8] sm:$0xf]
      %v1816 = vld [vmem:[%s1812 + $0xc] sm:$0xf]
      %v1817 = vld [vmem:[%s1812 + $0x10] sm:$0xf]
      %v1818 = vld [vmem:[%s1812 + $0x14] sm:$0xf]
      %v1819 = vld [vmem:[%s1812 + $0x18] sm:$0xf]
      %v1820 = vld [vmem:[%s1812 + $0x1c] sm:$0xf]
      %v1823 = vrot.slane %v1646, 1
      %v1824 = vrot.slane %v1647, 1
      %v1825 = vsel %vm1117, %v1823, %v1824
      %v1834 = vunpack.c.l.b16 %v1813
      %v1835 = vunpack.c.l.b16 %v1814
      %v1836 = vunpack.c.l.b16 %v1815
      %v1837 = vunpack.c.l.b16 %v1816
      %v1838 = vunpack.c.l.b16 %v1817
      %v1839 = vunpack.c.l.b16 %v1818
      %v1840 = vunpack.c.l.b16 %v1819
      %v1841 = vunpack.c.l.b16 %v1820
      %v1842 = vpack.c.b16 %v1835, %v1834
      %v1843 = vpack.c.b16 %v1837, %v1836
      %v1844 = vpack.c.b16 %v1839, %v1838
      %v1845 = vpack.c.b16 %v1841, %v1840
      %v1851 = vsel %vm1273, %v1825, 0
      %1853 = vmatprep.subr.bf16.mxu0 0
      %1854 = vmatpush1.bf16.msra.mxu0 %v1842
      %1855 = vmatprep.subr.bf16.mxu0 0
      %1856 = vmatpush1.bf16.msra.mxu0 %v1843
      %1857 = vmatprep.subr.bf16.mxu0 0
      %1858 = vmatpush1.bf16.msra.mxu0 %v1844
      %1859 = vmatprep.subr.bf16.mxu0 0
      %1860 = vmatpush1.bf16.msra.mxu0 %v1845
      %1861 = vmatprep.subr.bf16.mxu0 0
      %1862 = vmatpush1.bf16.msra.mxu0 0
      %1863 = vmatprep.subr.bf16.mxu0 0
      %1864 = vmatpush1.bf16.msra.mxu0 0
      %1865 = vmatprep.subr.bf16.mxu0 0
      %1866 = vmatpush1.bf16.msra.mxu0 0
      %1867 = vmatprep.subr.bf16.mxu0 0
      %1868 = vmatpush1.bf16.msra.mxu0 0
      %1869 = vmatprep.subr.bf16.mxu0 0
      %1870 = vmatpush1.bf16.msra.mxu0 0
      %1871 = vmatprep.subr.bf16.mxu0 0
      %1872 = vmatpush1.bf16.msra.mxu0 0
      %1873 = vmatprep.subr.bf16.mxu0 0
      %1874 = vmatpush1.bf16.msra.mxu0 0
      %1875 = vmatprep.subr.bf16.mxu0 0
      %1876 = vmatpush1.bf16.msra.mxu0 0
      %1877 = vmatprep.subr.bf16.mxu0 0
      %1878 = vmatpush1.bf16.msra.mxu0 0
      %1879 = vmatprep.subr.bf16.mxu0 0
      %1880 = vmatpush1.bf16.msra.mxu0 0
      %1881 = vmatprep.subr.bf16.mxu0 0
      %1882 = vmatpush1.bf16.msra.mxu0 0
      %1883 = vmatprep.subr.bf16.mxu0 0
      %1884 = vmatpush1.bf16.msra.mxu0 0
      %1885 = vmatprep.mubr.bf16.mxu0 0
      %1886 = vmatmul.mubr.bf16.gmra.mrb[0].mxu0 %v1851
      %v1887 = vpop.f32.mrb[0].mxu0
      %v1888 = vadd.f32 0.0, %v1887
      %v1889 = vpop.f32.mrb[0].mxu0
      %v1890 = vpop.f32.mrb[0].mxu0
      %v1891 = vadd.f32 0.0, %v1890
      %v1892 = vpop.f32.mrb[0].mxu0
      %1893 = vdwg.mxu0
      %v1894 = vadd.f32 %v1806, %v1888
      %v1895 = vadd.f32 %v1809, %v1891
      %v1897 = vlaneseq
      %v1898 = vshrl.u32 %v1897, 7
      %v1899 = vsub.s32 0, %v1898
      %v1900 = vrot.slane %v1635, %v1899
      %v1902 = vadd.f32 %v1894, %v1900
      %v1903 = vadd.f32 %v1895, %v1900
      %v1904 = vld [vmem:[%s16] sm:$0xf]
      %v1905 = vld [vmem:[%s16 + $0x4] sm:$0xf]
      %v1906 = vld [vmem:[%s16 + $0x8] sm:$0xf]
      %v1907 = vld [vmem:[%s16 + $0xc] sm:$0xf]
      %v1908 = vpack.c.bf16 %v592, %v591
      %v1909 = vld [vmem:[%s17] sm:$0x1]
      %v1911 = vlaneseq
      %v1912 = vshrl.u32 %v1911, 7
      %v1913 = vsub.s32 0, %v1912
      %v1914 = vrot.slane %v1909, %v1913
      %v1920 = vunpack.c.l.b16 %v1904
      %v1921 = vunpack.c.l.b16 %v1905
      %v1922 = vunpack.c.l.b16 %v1906
      %v1923 = vunpack.c.l.b16 %v1907
      %v1924 = vpack.c.b16 %v1921, %v1920
      %v1925 = vpack.c.b16 %v1923, %v1922
      %v1929 = vsel %vm600, %v1908, 0
      %1931 = vmatprep.subr.bf16.mxu0 0
      %1932 = vmatpush1.bf16.msra.mxu0 %v1924
      %1933 = vmatprep.subr.bf16.mxu0 0
      %1934 = vmatpush1.bf16.msra.mxu0 %v1925
      %1935 = vmatprep.subr.bf16.mxu0 0
      %1936 = vmatpush1.bf16.msra.mxu0 0
      %1937 = vmatprep.subr.bf16.mxu0 0
      %1938 = vmatpush1.bf16.msra.mxu0 0
      %1939 = vmatprep.subr.bf16.mxu0 0
      %1940 = vmatpush1.bf16.msra.mxu0 0
      %1941 = vmatprep.subr.bf16.mxu0 0
      %1942 = vmatpush1.bf16.msra.mxu0 0
      %1943 = vmatprep.subr.bf16.mxu0 0
      %1944 = vmatpush1.bf16.msra.mxu0 0
      %1945 = vmatprep.subr.bf16.mxu0 0
      %1946 = vmatpush1.bf16.msra.mxu0 0
      %1947 = vmatprep.subr.bf16.mxu0 0
      %1948 = vmatpush1.bf16.msra.mxu0 0
      %1949 = vmatprep.subr.bf16.mxu0 0
      %1950 = vmatpush1.bf16.msra.mxu0 0
      %1951 = vmatprep.subr.bf16.mxu0 0
      %1952 = vmatpush1.bf16.msra.mxu0 0
      %1953 = vmatprep.subr.bf16.mxu0 0
      %1954 = vmatpush1.bf16.msra.mxu0 0
      %1955 = vmatprep.subr.bf16.mxu0 0
      %1956 = vmatpush1.bf16.msra.mxu0 0
      %1957 = vmatprep.subr.bf16.mxu0 0
      %1958 = vmatpush1.bf16.msra.mxu0 0
      %1959 = vmatprep.subr.bf16.mxu0 0
      %1960 = vmatpush1.bf16.msra.mxu0 0
      %1961 = vmatprep.subr.bf16.mxu0 0
      %1962 = vmatpush1.bf16.msra.mxu0 0
      %1963 = vmatprep.mubr.bf16.mxu0 0
      %1964 = vmatmul.mubr.bf16.gmra.mrb[0].mxu0 %v1929
      %v1965 = vpop.f32.mrb[0].mxu0
      %v1966 = vadd.f32 %v1914, %v1965
      %v1967 = vpop.f32.mrb[0].mxu0
      %v1968 = vpop.f32.mrb[0].mxu0
      %v1969 = vadd.f32 %v1914, %v1968
      %v1970 = vpop.f32.mrb[0].mxu0
      %1971 = vdwg.mxu0
      %v1972 = vadd.f32 %v1966, %v1902
      %v1973 = vadd.f32 %v1969, %v1903
      %1974 = vst.msk [vmem:[%s589] sm:$0xff] %vm1273, %v1972
      %1975 = vst.msk [vmem:[%s589 + $0x8] sm:$0xff] %vm1273, %v1973
      %p1976 = scmp.lt.s32.totalorder %s29, 1
      %s1977 = scalar_select %p1976, %s29, 1
      %s1978 = smul.addr %s1977, 2
      %s1979 = smul.addr %s1978, 8
      %s1980 = scalar_lea.vmem %s18, %s1979
      // Predicated region
      $region93: #{cross_attn_down_block_1d.3} parent=91 // pred_check
        %p1981 = pneg %p435
      $region94: #{cross_attn_down_block_1d.3} parent=91 // pred_check_branch
        %1983 = sbr.rel (%p1981) target = $region96
      $region95: #{cross_attn_down_block_1d.3} parent=91 // pred_region
        _
      $region96: #{cross_attn_down_block_1d.3} parent=91 // pred_fallthru
        _
    $region92: #{cross_attn_down_block_1d.3} parent=5 // pred_fallthru
      _
    %p1984 = scmp.le.s32.totalorder 2, %s24
    // Predicated region
    $region97: #{cross_attn_down_block_1d.3} parent=5 // pred_check
      %p1985 = pneg %p1984
    $region98: #{cross_attn_down_block_1d.3} parent=5 // pred_check_branch
      %1987 = sbr.rel (%p1985) target = $region100
    $region99: #{cross_attn_down_block_1d.3} parent=5 // pred_region
      %s1988 = ssub.s32 %s24, 2
      // Predicated region
      $region101: #{cross_attn_down_block_1d.3} parent=99 // pred_check
        %p1989 = pneg %p441
      $region102: #{cross_attn_down_block_1d.3} parent=99 // pred_check_branch
        %1991 = sbr.rel (%p1989) target = $region104
      $region103: #{cross_attn_down_block_1d.3} parent=99 // pred_region
        %p1992 = scmp.lt.s32.totalorder %s30, 1
        %s1993 = scalar_select %p1992, %s30, 1
        %s1994 = smul.addr %s1993, 2
        %s1995 = smul.addr %s1994, 8
        %s1996 = scalar_lea.vmem %s18, %s1995
      $region104: #{cross_attn_down_block_1d.3} parent=99 // pred_fallthru
        _
    $region100: #{cross_attn_down_block_1d.3} parent=5 // pred_fallthru
      _
  $region6: #{cross_attn_down_block_1d.3} parent=0 // loop_footer
    %s28 = sadd.s32 1, %s24
  $region7: #{cross_attn_down_block_1d.3} parent=0 // loop_footer_branch
    %23 = sbr.rel target = $region3
  $region8: #{cross_attn_down_block_1d.3} parent=0 // loop_exit
    _

// kernel: cross_attn_down_block_1d.4
$region0: #{cross_attn_down_block_1d.4}
  #allocation0 [shape = 'u32[]', space=smem, size = 0x4, offset = 0x4, fixed_abs, tag = 'smem constant byte address 0x4 - core index']
  #allocation1 [shape = 'u32[144,128]{1,0:T(1,128)}', space=vmem, size = 0x12000, scoped, tag = 'internal scratch']
  %s0 = inlined_call_operand.smem [shape: u32[30], index: -1, kind: input, shape index: {}]
  %s1 = sld [smem:[%s0]]
  %s2 = scalar_lea.smem %s0, 1
  %s3 = sld [smem:[%s2]]
  %s4 = scalar_lea.smem %s0, 2
  %s5 = sld [smem:[%s4]]
  %s6 = scalar_lea.smem %s0, 3
  %s7 = sld [smem:[%s6]]
  %s8 = scalar_lea.smem %s0, 4
  %s9 = sld [smem:[%s8]]
  %s10 = scalar_lea.smem %s0, 5
  %s11 = sld [smem:[%s10]]
  %s12 = scalar_lea.smem %s0, 6
  %s13 = sld [smem:[%s12]]
  %s14 = scalar_lea.smem %s0, 7
  %s15 = sld [smem:[%s14]]
  %s16 = scalar_lea.smem %s0, 8
  %s17 = sld [smem:[%s16]]
  %s18 = scalar_lea.smem %s0, 9
  %s19 = sld [smem:[%s18]]
  %s20 = scalar_lea.smem %s0, 10
  %s21 = sld [smem:[%s20]]
  %s22 = scalar_lea.smem %s0, 11
  %s23 = sld [smem:[%s22]]
  %s24 = scalar_lea.smem %s0, 12
  %s25 = sld [smem:[%s24]]
  %s26 = scalar_lea.smem %s0, 13
  %s27 = sld [smem:[%s26]]
  %s28 = scalar_lea.smem %s0, 14
  %s29 = sld [smem:[%s28]]
  %s30 = scalar_lea.smem %s0, 15
  %s31 = sld [smem:[%s30]]
  %s32 = scalar_lea.smem %s0, 16
  %s33 = sld [smem:[%s32]]
  %s34 = scalar_lea.smem %s0, 17
  %s35 = sld [smem:[%s34]]
  %s36 = scalar_lea.smem %s0, 18
  %s37 = sld [smem:[%s36]]
  %s38 = scalar_lea.smem %s0, 19
  %s39 = sld [smem:[%s38]]
  %s40 = scalar_lea.smem %s0, 20
  %s41 = sld [smem:[%s40]]
  %s42 = scalar_lea.smem %s0, 21
  %s43 = sld [smem:[%s42]]
  %s44 = scalar_lea.smem %s0, 22
  %s45 = sld [smem:[%s44]]
  %s46 = scalar_lea.smem %s0, 23
  %s47 = sld [smem:[%s46]]
  %s48 = scalar_lea.smem %s0, 24
  %s49 = sld [smem:[%s48]]
  %s50 = scalar_lea.smem %s0, 25
  %s51 = sld [smem:[%s50]]
  %s52 = scalar_lea.smem %s0, 26
  %s53 = sld [smem:[%s52]]
  %s54 = scalar_lea.smem %s0, 27
  %s55 = sld [smem:[%s54]]
  %s56 = scalar_lea.smem %s0, 28
  %s57 = sld [smem:[%s56]]
  %s58 = scalar_lea.smem %s0, 29
  %s59 = sld [smem:[%s58]]
  %s60 = sld [smem:[#allocation0]]
  $region169: #{cross_attn_down_block_1d.4} parent=0
    _
  %s62 = ssub.s32 1, %s60
  %s63 = scalar_select 0, %s62, %s60
  $region1: #{cross_attn_down_block_1d.4} parent=0
    #allocation2 [shape = 'u8[512]{0}', space=vmem, size = 0x400, scoped, tag = 'input window, operand 18, single buffered']
    #allocation3 [shape = 's32[2]{0}', space=sflag, size = 0x8, scoped, tag = 'scoped memory for cross_attn_down_block_1d.4']
    #allocation4 [shape = 'u8[512]{0}', space=vmem, size = 0x400, scoped, tag = 'input window, operand 19, single buffered']
    #allocation5 [shape = 's32[1]{0}', space=sflag, size = 0x4, scoped, tag = 'scoped memory for cross_attn_down_block_1d.4']
    #allocation6 [shape = 'u8[512]{0}', space=vmem, size = 0x400, scoped, tag = 'input window, operand 20, single buffered']
    #allocation7 [shape = 'u8[512]{0}', space=vmem, size = 0x400, scoped, tag = 'input window, operand 26, single buffered']
    #allocation8 [shape = 's32[1]{0}', space=sflag, size = 0x4, scoped, tag = 'scoped memory for cross_attn_down_block_1d.4']
    #allocation9 [shape = 'u8[512]{0}', space=vmem, size = 0x400, scoped, tag = 'input window, operand 28, single buffered']
    %64 = vsyncpa [#allocation3], 0
    %65 = vsyncpa [#allocation5], 0
    %66 = vsyncpa [#allocation8], 0
    loop: start=0, step=1, limit=4
    $region2: #{cross_attn_down_block_1d.4} parent=1 // loop_pre_header
      _
    $region3: #{cross_attn_down_block_1d.4} parent=1 // loop_header
      %s68 = sphi 0, %s72
      %p69 = scmp.ge.s32.totalorder %s68, 4
      %s78 = sphi 0, %s80
      %s81 = sphi 0, %s78
      %s82 = sphi 0, %s81
      %s98 = sphi 0, %s82
      %s104 = sphi 0, %s106
      %s107 = sphi 0, %s104
      %s108 = sphi 0, %s107
      %s124 = sphi 0, %s108
      %s128 = sphi 0, %s128
      %s130 = sphi 0, %s128
      %s131 = sphi 0, %s130
      %s145 = sphi 0, %s131
      %s149 = sphi 0, %s149
      %s151 = sphi 0, %s149
      %s152 = sphi 0, %s151
      %s166 = sphi 0, %s152
      %s170 = sphi 0, %s170
      %s172 = sphi 0, %s170
      %s173 = sphi 0, %s172
      %s187 = sphi 0, %s173
      %s191 = sphi 0, %s191
      %s193 = sphi 0, %s191
      %s194 = sphi 0, %s193
      %s208 = sphi 0, %s194
      %s212 = sphi 0, %s212
      %s214 = sphi 0, %s212
      %s215 = sphi 0, %s214
      %s229 = sphi 0, %s215
      %s233 = sphi 0, %s233
      %s235 = sphi 0, %s233
      %s236 = sphi 0, %s235
      %s250 = sphi 0, %s236
      %s254 = sphi 0, %s254
      %s256 = sphi 0, %s254
      %s257 = sphi 0, %s256
      %s271 = sphi 0, %s257
      %s275 = sphi 0, %s275
      %s277 = sphi 0, %s275
      %s278 = sphi 0, %s277
      %s292 = sphi 0, %s278
      %s296 = sphi 0, %s296
      %s298 = sphi 0, %s296
      %s299 = sphi 0, %s298
      %s313 = sphi 0, %s299
      %s317 = sphi 0, %s317
      %s319 = sphi 0, %s317
      %s320 = sphi 0, %s319
      %s334 = sphi 0, %s320
      %s338 = sphi 0, %s338
      %s340 = sphi 0, %s338
      %s341 = sphi 0, %s340
      %s355 = sphi 0, %s341
      %s359 = sphi 0, %s359
      %s361 = sphi 0, %s359
      %s362 = sphi 0, %s361
      %s376 = sphi 0, %s362
      %s380 = sphi 0, %s380
      %s382 = sphi 0, %s380
      %s383 = sphi 0, %s382
      %s397 = sphi 0, %s383
      %s401 = sphi 0, %s401
      %s403 = sphi 0, %s401
      %s404 = sphi 0, %s403
      %s418 = sphi 0, %s404
      %s422 = sphi 0, %s422
      %s424 = sphi 0, %s422
      %s425 = sphi 0, %s424
      %s439 = sphi 0, %s425
      %s443 = sphi 0, %s443
      %s445 = sphi 0, %s443
      %s446 = sphi 0, %s445
      %s460 = sphi 0, %s446
      %s464 = sphi 0, %s464
      %s466 = sphi 0, %s464
      %s467 = sphi 0, %s466
      %s481 = sphi 0, %s467
      %s485 = sphi 0, %s485
      %s487 = sphi 0, %s485
      %s488 = sphi 0, %s487
      %s502 = sphi 0, %s488
      %s506 = sphi 0, %s506
      %s508 = sphi 0, %s506
      %s509 = sphi 0, %s508
      %s523 = sphi 0, %s509
      %s527 = sphi 0, %s527
      %s529 = sphi 0, %s527
      %s530 = sphi 0, %s529
      %s544 = sphi 0, %s530
      %s548 = sphi 0, %s548
      %s550 = sphi 0, %s548
      %s551 = sphi 0, %s550
      %s565 = sphi 0, %s551
      %s569 = sphi 0, %s569
      %s571 = sphi 0, %s569
      %s572 = sphi 0, %s571
      %s586 = sphi 0, %s572
      %s590 = sphi 0, %s590
      %s592 = sphi 0, %s590
      %s593 = sphi 0, %s592
      %s607 = sphi 0, %s593
      %s611 = sphi 0, %s611
      %s613 = sphi 0, %s611
      %s614 = sphi 0, %s613
      %s628 = sphi 0, %s614
      %s632 = sphi 0, %s632
      %s634 = sphi 0, %s632
      %s635 = sphi 0, %s634
      %s649 = sphi 0, %s635
      %s653 = sphi 0, %s653
      %s655 = sphi 0, %s653
      %s656 = sphi 0, %s655
      %s670 = sphi 0, %s656
      %s674 = sphi 0, %s674
      %s676 = sphi 0, %s674
      %s677 = sphi 0, %s676
      %s691 = sphi 0, %s677
      %s697 = sphi 0, %s699
      %s700 = sphi 0, %s697
      %s701 = sphi 0, %s700
      %s717 = sphi 0, %s701
    $region4: #{cross_attn_down_block_1d.4} parent=1 // loop_header_branch
      %71 = sbr.rel (%p69) target = $region8
    $region5: #{cross_attn_down_block_1d.4} parent=1 // loop_body
      %s73 = ssub.s32 %s68, 1
      %s74 = ssub.s32 %s68, 2
      %s75 = sadd.s32 %s68, 1
      %s76 = ssub.s32 %s68, %s75
      %p77 = scmp.eq.s32.totalorder %s76, 0
      %s79 = sadd.s32 %s78, 1
      %s80 = scalar_select %p77, %s78, %s79
      %p83 = pneg %p77
      %p84 = scmp.eq.s32.totalorder %s68, 1
      %p85 = por %p83, %p84
      %p86 = scmp.ne.s32.totalorder %s78, %s81
      %p87 = scmp.eq.s32.totalorder %s68, 0
      %p88 = por %p86, %p87
      %p89 = scmp.ne.s32.totalorder %s78, %s81
      %p90 = scmp.eq.s32.totalorder %s73, 1
      %p91 = por %p89, %p90
      %p92 = scmp.ne.s32.totalorder %s81, %s82
      %p93 = scmp.eq.s32.totalorder %s73, 0
      %p94 = por %p92, %p93
      %p95 = scmp.ne.s32.totalorder %s81, %s82
      %p96 = scmp.eq.s32.totalorder %s74, 1
      %p97 = por %p95, %p96
      %p99 = scmp.ne.s32.totalorder %s82, %s98
      %p100 = scmp.eq.s32.totalorder %s74, 0
      %p101 = por %p99, %p100
      %s102 = ssub.s32 %s68, %s75
      %p103 = scmp.eq.s32.totalorder %s102, 0
      %s105 = sadd.s32 %s104, 1
      %s106 = scalar_select %p103, %s104, %s105
      %p109 = pneg %p103
      %p110 = scmp.eq.s32.totalorder %s68, 1
      %p111 = por %p109, %p110
      %p112 = scmp.ne.s32.totalorder %s104, %s107
      %p113 = scmp.eq.s32.totalorder %s68, 0
      %p114 = por %p112, %p113
      %p115 = scmp.ne.s32.totalorder %s104, %s107
      %p116 = scmp.eq.s32.totalorder %s73, 1
      %p117 = por %p115, %p116
      %p118 = scmp.ne.s32.totalorder %s107, %s108
      %p119 = scmp.eq.s32.totalorder %s73, 0
      %p120 = por %p118, %p119
      %p121 = scmp.ne.s32.totalorder %s107, %s108
      %p122 = scmp.eq.s32.totalorder %s74, 1
      %p123 = por %p121, %p122
      %p125 = scmp.ne.s32.totalorder %s108, %s124
      %p126 = scmp.eq.s32.totalorder %s74, 0
      %p127 = por %p125, %p126
      %s129 = sadd.s32 %s128, 1
      %p132 = scmp.eq.s32.totalorder %s68, 1
      %p133 = scmp.ne.s32.totalorder %s128, %s130
      %p134 = scmp.eq.s32.totalorder %s68, 0
      %p135 = por %p133, %p134
      %p136 = scmp.ne.s32.totalorder %s128, %s130
      %p137 = scmp.eq.s32.totalorder %s73, 1
      %p138 = por %p136, %p137
      %p139 = scmp.ne.s32.totalorder %s130, %s131
      %p140 = scmp.eq.s32.totalorder %s73, 0
      %p141 = por %p139, %p140
      %p142 = scmp.ne.s32.totalorder %s130, %s131
      %p143 = scmp.eq.s32.totalorder %s74, 1
      %p144 = por %p142, %p143
      %p146 = scmp.ne.s32.totalorder %s131, %s145
      %p147 = scmp.eq.s32.totalorder %s74, 0
      %p148 = por %p146, %p147
      %s150 = sadd.s32 %s149, 1
      %p153 = scmp.eq.s32.totalorder %s68, 1
      %p154 = scmp.ne.s32.totalorder %s149, %s151
      %p155 = scmp.eq.s32.totalorder %s68, 0
      %p156 = por %p154, %p155
      %p157 = scmp.ne.s32.totalorder %s149, %s151
      %p158 = scmp.eq.s32.totalorder %s73, 1
      %p159 = por %p157, %p158
      %p160 = scmp.ne.s32.totalorder %s151, %s152
      %p161 = scmp.eq.s32.totalorder %s73, 0
      %p162 = por %p160, %p161
      %p163 = scmp.ne.s32.totalorder %s151, %s152
      %p164 = scmp.eq.s32.totalorder %s74, 1
      %p165 = por %p163, %p164
      %p167 = scmp.ne.s32.totalorder %s152, %s166
      %p168 = scmp.eq.s32.totalorder %s74, 0
      %p169 = por %p167, %p168
      %s171 = sadd.s32 %s170, 1
      %p174 = scmp.eq.s32.totalorder %s68, 1
      %p175 = scmp.ne.s32.totalorder %s170, %s172
      %p176 = scmp.eq.s32.totalorder %s68, 0
      %p177 = por %p175, %p176
      %p178 = scmp.ne.s32.totalorder %s170, %s172
      %p179 = scmp.eq.s32.totalorder %s73, 1
      %p180 = por %p178, %p179
      %p181 = scmp.ne.s32.totalorder %s172, %s173
      %p182 = scmp.eq.s32.totalorder %s73, 0
      %p183 = por %p181, %p182
      %p184 = scmp.ne.s32.totalorder %s172, %s173
      %p185 = scmp.eq.s32.totalorder %s74, 1
      %p186 = por %p184, %p185
      %p188 = scmp.ne.s32.totalorder %s173, %s187
      %p189 = scmp.eq.s32.totalorder %s74, 0
      %p190 = por %p188, %p189
      %s192 = sadd.s32 %s191, 1
      %p195 = scmp.eq.s32.totalorder %s68, 1
      %p196 = scmp.ne.s32.totalorder %s191, %s193
      %p197 = scmp.eq.s32.totalorder %s68, 0
      %p198 = por %p196, %p197
      %p199 = scmp.ne.s32.totalorder %s191, %s193
      %p200 = scmp.eq.s32.totalorder %s73, 1
      %p201 = por %p199, %p200
      %p202 = scmp.ne.s32.totalorder %s193, %s194
      %p203 = scmp.eq.s32.totalorder %s73, 0
      %p204 = por %p202, %p203
      %p205 = scmp.ne.s32.totalorder %s193, %s194
      %p206 = scmp.eq.s32.totalorder %s74, 1
      %p207 = por %p205, %p206
      %p209 = scmp.ne.s32.totalorder %s194, %s208
      %p210 = scmp.eq.s32.totalorder %s74, 0
      %p211 = por %p209, %p210
      %s213 = sadd.s32 %s212, 1
      %p216 = scmp.eq.s32.totalorder %s68, 1
      %p217 = scmp.ne.s32.totalorder %s212, %s214
      %p218 = scmp.eq.s32.totalorder %s68, 0
      %p219 = por %p217, %p218
      %p220 = scmp.ne.s32.totalorder %s212, %s214
      %p221 = scmp.eq.s32.totalorder %s73, 1
      %p222 = por %p220, %p221
      %p223 = scmp.ne.s32.totalorder %s214, %s215
      %p224 = scmp.eq.s32.totalorder %s73, 0
      %p225 = por %p223, %p224
      %p226 = scmp.ne.s32.totalorder %s214, %s215
      %p227 = scmp.eq.s32.totalorder %s74, 1
      %p228 = por %p226, %p227
      %p230 = scmp.ne.s32.totalorder %s215, %s229
      %p231 = scmp.eq.s32.totalorder %s74, 0
      %p232 = por %p230, %p231
      %s234 = sadd.s32 %s233, 1
      %p237 = scmp.eq.s32.totalorder %s68, 1
      %p238 = scmp.ne.s32.totalorder %s233, %s235
      %p239 = scmp.eq.s32.totalorder %s68, 0
      %p240 = por %p238, %p239
      %p241 = scmp.ne.s32.totalorder %s233, %s235
      %p242 = scmp.eq.s32.totalorder %s73, 1
      %p243 = por %p241, %p242
      %p244 = scmp.ne.s32.totalorder %s235, %s236
      %p245 = scmp.eq.s32.totalorder %s73, 0
      %p246 = por %p244, %p245
      %p247 = scmp.ne.s32.totalorder %s235, %s236
      %p248 = scmp.eq.s32.totalorder %s74, 1
      %p249 = por %p247, %p248
      %p251 = scmp.ne.s32.totalorder %s236, %s250
      %p252 = scmp.eq.s32.totalorder %s74, 0
      %p253 = por %p251, %p252
      %s255 = sadd.s32 %s254, 1
      %p258 = scmp.eq.s32.totalorder %s68, 1
      %p259 = scmp.ne.s32.totalorder %s254, %s256
      %p260 = scmp.eq.s32.totalorder %s68, 0
      %p261 = por %p259, %p260
      %p262 = scmp.ne.s32.totalorder %s254, %s256
      %p263 = scmp.eq.s32.totalorder %s73, 1
      %p264 = por %p262, %p263
      %p265 = scmp.ne.s32.totalorder %s256, %s257
      %p266 = scmp.eq.s32.totalorder %s73, 0
      %p267 = por %p265, %p266
      %p268 = scmp.ne.s32.totalorder %s256, %s257
      %p269 = scmp.eq.s32.totalorder %s74, 1
      %p270 = por %p268, %p269
      %p272 = scmp.ne.s32.totalorder %s257, %s271
      %p273 = scmp.eq.s32.totalorder %s74, 0
      %p274 = por %p272, %p273
      %s276 = sadd.s32 %s275, 1
      %p279 = scmp.eq.s32.totalorder %s68, 1
      %p280 = scmp.ne.s32.totalorder %s275, %s277
      %p281 = scmp.eq.s32.totalorder %s68, 0
      %p282 = por %p280, %p281
      %p283 = scmp.ne.s32.totalorder %s275, %s277
      %p284 = scmp.eq.s32.totalorder %s73, 1
      %p285 = por %p283, %p284
      %p286 = scmp.ne.s32.totalorder %s277, %s278
      %p287 = scmp.eq.s32.totalorder %s73, 0
      %p288 = por %p286, %p287
      %p289 = scmp.ne.s32.totalorder %s277, %s278
      %p290 = scmp.eq.s32.totalorder %s74, 1
      %p291 = por %p289, %p290
      %p293 = scmp.ne.s32.totalorder %s278, %s292
      %p294 = scmp.eq.s32.totalorder %s74, 0
      %p295 = por %p293, %p294
      %s297 = sadd.s32 %s296, 1
      %p300 = scmp.eq.s32.totalorder %s68, 1
      %p301 = scmp.ne.s32.totalorder %s296, %s298
      %p302 = scmp.eq.s32.totalorder %s68, 0
      %p303 = por %p301, %p302
      %p304 = scmp.ne.s32.totalorder %s296, %s298
      %p305 = scmp.eq.s32.totalorder %s73, 1
      %p306 = por %p304, %p305
      %p307 = scmp.ne.s32.totalorder %s298, %s299
      %p308 = scmp.eq.s32.totalorder %s73, 0
      %p309 = por %p307, %p308
      %p310 = scmp.ne.s32.totalorder %s298, %s299
      %p311 = scmp.eq.s32.totalorder %s74, 1
      %p312 = por %p310, %p311
      %p314 = scmp.ne.s32.totalorder %s299, %s313
      %p315 = scmp.eq.s32.totalorder %s74, 0
      %p316 = por %p314, %p315
      %s318 = sadd.s32 %s317, 1
      %p321 = scmp.eq.s32.totalorder %s68, 1
      %p322 = scmp.ne.s32.totalorder %s317, %s319
      %p323 = scmp.eq.s32.totalorder %s68, 0
      %p324 = por %p322, %p323
      %p325 = scmp.ne.s32.totalorder %s317, %s319
      %p326 = scmp.eq.s32.totalorder %s73, 1
      %p327 = por %p325, %p326
      %p328 = scmp.ne.s32.totalorder %s319, %s320
      %p329 = scmp.eq.s32.totalorder %s73, 0
      %p330 = por %p328, %p329
      %p331 = scmp.ne.s32.totalorder %s319, %s320
      %p332 = scmp.eq.s32.totalorder %s74, 1
      %p333 = por %p331, %p332
      %p335 = scmp.ne.s32.totalorder %s320, %s334
      %p336 = scmp.eq.s32.totalorder %s74, 0
      %p337 = por %p335, %p336
      %s339 = sadd.s32 %s338, 1
      %p342 = scmp.eq.s32.totalorder %s68, 1
      %p343 = scmp.ne.s32.totalorder %s338, %s340
      %p344 = scmp.eq.s32.totalorder %s68, 0
      %p345 = por %p343, %p344
      %p346 = scmp.ne.s32.totalorder %s338, %s340
      %p347 = scmp.eq.s32.totalorder %s73, 1
      %p348 = por %p346, %p347
      %p349 = scmp.ne.s32.totalorder %s340, %s341
      %p350 = scmp.eq.s32.totalorder %s73, 0
      %p351 = por %p349, %p350
      %p352 = scmp.ne.s32.totalorder %s340, %s341
      %p353 = scmp.eq.s32.totalorder %s74, 1
      %p354 = por %p352, %p353
      %p356 = scmp.ne.s32.totalorder %s341, %s355
      %p357 = scmp.eq.s32.totalorder %s74, 0
      %p358 = por %p356, %p357
      %s360 = sadd.s32 %s359, 1
      %p363 = scmp.eq.s32.totalorder %s68, 1
      %p364 = scmp.ne.s32.totalorder %s359, %s361
      %p365 = scmp.eq.s32.totalorder %s68, 0
      %p366 = por %p364, %p365
      %p367 = scmp.ne.s32.totalorder %s359, %s361
      %p368 = scmp.eq.s32.totalorder %s73, 1
      %p369 = por %p367, %p368
      %p370 = scmp.ne.s32.totalorder %s361, %s362
      %p371 = scmp.eq.s32.totalorder %s73, 0
      %p372 = por %p370, %p371
      %p373 = scmp.ne.s32.totalorder %s361, %s362
      %p374 = scmp.eq.s32.totalorder %s74, 1
      %p375 = por %p373, %p374
      %p377 = scmp.ne.s32.totalorder %s362, %s376
      %p378 = scmp.eq.s32.totalorder %s74, 0
      %p379 = por %p377, %p378
      %s381 = sadd.s32 %s380, 1
      %p384 = scmp.eq.s32.totalorder %s68, 1
      %p385 = scmp.ne.s32.totalorder %s380, %s382
      %p386 = scmp.eq.s32.totalorder %s68, 0
      %p387 = por %p385, %p386
      %p388 = scmp.ne.s32.totalorder %s380, %s382
      %p389 = scmp.eq.s32.totalorder %s73, 1
      %p390 = por %p388, %p389
      %p391 = scmp.ne.s32.totalorder %s382, %s383
      %p392 = scmp.eq.s32.totalorder %s73, 0
      %p393 = por %p391, %p392
      %p394 = scmp.ne.s32.totalorder %s382, %s383
      %p395 = scmp.eq.s32.totalorder %s74, 1
      %p396 = por %p394, %p395
      %p398 = scmp.ne.s32.totalorder %s383, %s397
      %p399 = scmp.eq.s32.totalorder %s74, 0
      %p400 = por %p398, %p399
      %s402 = sadd.s32 %s401, 1
      %p405 = scmp.eq.s32.totalorder %s68, 1
      %p406 = scmp.ne.s32.totalorder %s401, %s403
      %p407 = scmp.eq.s32.totalorder %s68, 0
      %p408 = por %p406, %p407
      %p409 = scmp.ne.s32.totalorder %s401, %s403
      %p410 = scmp.eq.s32.totalorder %s73, 1
      %p411 = por %p409, %p410
      %p412 = scmp.ne.s32.totalorder %s403, %s404
      %p413 = scmp.eq.s32.totalorder %s73, 0
      %p414 = por %p412, %p413
      %p415 = scmp.ne.s32.totalorder %s403, %s404
      %p416 = scmp.eq.s32.totalorder %s74, 1
      %p417 = por %p415, %p416
      %p419 = scmp.ne.s32.totalorder %s404, %s418
      %p420 = scmp.eq.s32.totalorder %s74, 0
      %p421 = por %p419, %p420
      %s423 = sadd.s32 %s422, 1
      %p426 = scmp.eq.s32.totalorder %s68, 1
      %p427 = scmp.ne.s32.totalorder %s422, %s424
      %p428 = scmp.eq.s32.totalorder %s68, 0
      %p429 = por %p427, %p428
      %p430 = scmp.ne.s32.totalorder %s422, %s424
      %p431 = scmp.eq.s32.totalorder %s73, 1
      %p432 = por %p430, %p431
      %p433 = scmp.ne.s32.totalorder %s424, %s425
      %p434 = scmp.eq.s32.totalorder %s73, 0
      %p435 = por %p433, %p434
      %p436 = scmp.ne.s32.totalorder %s424, %s425
      %p437 = scmp.eq.s32.totalorder %s74, 1
      %p438 = por %p436, %p437
      %p440 = scmp.ne.s32.totalorder %s425, %s439
      %p441 = scmp.eq.s32.totalorder %s74, 0
      %p442 = por %p440, %p441
      %s444 = sadd.s32 %s443, 1
      %p447 = scmp.eq.s32.totalorder %s68, 1
      %p448 = scmp.ne.s32.totalorder %s443, %s445
      %p449 = scmp.eq.s32.totalorder %s68, 0
      %p450 = por %p448, %p449
      %p451 = scmp.ne.s32.totalorder %s443, %s445
      %p452 = scmp.eq.s32.totalorder %s73, 1
      %p453 = por %p451, %p452
      %p454 = scmp.ne.s32.totalorder %s445, %s446
      %p455 = scmp.eq.s32.totalorder %s73, 0
      %p456 = por %p454, %p455
      %p457 = scmp.ne.s32.totalorder %s445, %s446
      %p458 = scmp.eq.s32.totalorder %s74, 1
      %p459 = por %p457, %p458
      %p461 = scmp.ne.s32.totalorder %s446, %s460
      %p462 = scmp.eq.s32.totalorder %s74, 0
      %p463 = por %p461, %p462
      %s465 = sadd.s32 %s464, 1
      %p468 = scmp.eq.s32.totalorder %s68, 1
      %p469 = scmp.ne.s32.totalorder %s464, %s466
      %p470 = scmp.eq.s32.totalorder %s68, 0
      %p471 = por %p469, %p470
      %p472 = scmp.ne.s32.totalorder %s464, %s466
      %p473 = scmp.eq.s32.totalorder %s73, 1
      %p474 = por %p472, %p473
      %p475 = scmp.ne.s32.totalorder %s466, %s467
      %p476 = scmp.eq.s32.totalorder %s73, 0
      %p477 = por %p475, %p476
      %p478 = scmp.ne.s32.totalorder %s466, %s467
      %p479 = scmp.eq.s32.totalorder %s74, 1
      %p480 = por %p478, %p479
      %p482 = scmp.ne.s32.totalorder %s467, %s481
      %p483 = scmp.eq.s32.totalorder %s74, 0
      %p484 = por %p482, %p483
      %s486 = sadd.s32 %s485, 1
      %p489 = scmp.eq.s32.totalorder %s68, 1
      %p490 = scmp.ne.s32.totalorder %s485, %s487
      %p491 = scmp.eq.s32.totalorder %s68, 0
      %p492 = por %p490, %p491
      %p493 = scmp.ne.s32.totalorder %s485, %s487
      %p494 = scmp.eq.s32.totalorder %s73, 1
      %p495 = por %p493, %p494
      %p496 = scmp.ne.s32.totalorder %s487, %s488
      %p497 = scmp.eq.s32.totalorder %s73, 0
      %p498 = por %p496, %p497
      %p499 = scmp.ne.s32.totalorder %s487, %s488
      %p500 = scmp.eq.s32.totalorder %s74, 1
      %p501 = por %p499, %p500
      %p503 = scmp.ne.s32.totalorder %s488, %s502
      %p504 = scmp.eq.s32.totalorder %s74, 0
      %p505 = por %p503, %p504
      %s507 = sadd.s32 %s506, 1
      %p510 = scmp.eq.s32.totalorder %s68, 1
      %p511 = scmp.ne.s32.totalorder %s506, %s508
      %p512 = scmp.eq.s32.totalorder %s68, 0
      %p513 = por %p511, %p512
      %p514 = scmp.ne.s32.totalorder %s506, %s508
      %p515 = scmp.eq.s32.totalorder %s73, 1
      %p516 = por %p514, %p515
      %p517 = scmp.ne.s32.totalorder %s508, %s509
      %p518 = scmp.eq.s32.totalorder %s73, 0
      %p519 = por %p517, %p518
      %p520 = scmp.ne.s32.totalorder %s508, %s509
      %p521 = scmp.eq.s32.totalorder %s74, 1
      %p522 = por %p520, %p521
      %p524 = scmp.ne.s32.totalorder %s509, %s523
      %p525 = scmp.eq.s32.totalorder %s74, 0
      %p526 = por %p524, %p525
      %s528 = sadd.s32 %s527, 1
      %p531 = scmp.eq.s32.totalorder %s68, 1
      %p532 = scmp.ne.s32.totalorder %s527, %s529
      %p533 = scmp.eq.s32.totalorder %s68, 0
      %p534 = por %p532, %p533
      %p535 = scmp.ne.s32.totalorder %s527, %s529
      %p536 = scmp.eq.s32.totalorder %s73, 1
      %p537 = por %p535, %p536
      %p538 = scmp.ne.s32.totalorder %s529, %s530
      %p539 = scmp.eq.s32.totalorder %s73, 0
      %p540 = por %p538, %p539
      %p541 = scmp.ne.s32.totalorder %s529, %s530
      %p542 = scmp.eq.s32.totalorder %s74, 1
      %p543 = por %p541, %p542
      %p545 = scmp.ne.s32.totalorder %s530, %s544
      %p546 = scmp.eq.s32.totalorder %s74, 0
      %p547 = por %p545, %p546
      %s549 = sadd.s32 %s548, 1
      %p552 = scmp.eq.s32.totalorder %s68, 1
      %p553 = scmp.ne.s32.totalorder %s548, %s550
      %p554 = scmp.eq.s32.totalorder %s68, 0
      %p555 = por %p553, %p554
      %p556 = scmp.ne.s32.totalorder %s548, %s550
      %p557 = scmp.eq.s32.totalorder %s73, 1
      %p558 = por %p556, %p557
      %p559 = scmp.ne.s32.totalorder %s550, %s551
      %p560 = scmp.eq.s32.totalorder %s73, 0
      %p561 = por %p559, %p560
      %p562 = scmp.ne.s32.totalorder %s550, %s551
      %p563 = scmp.eq.s32.totalorder %s74, 1
      %p564 = por %p562, %p563
      %p566 = scmp.ne.s32.totalorder %s551, %s565
      %p567 = scmp.eq.s32.totalorder %s74, 0
      %p568 = por %p566, %p567
      %s570 = sadd.s32 %s569, 1
      %p573 = scmp.eq.s32.totalorder %s68, 1
      %p574 = scmp.ne.s32.totalorder %s569, %s571
      %p575 = scmp.eq.s32.totalorder %s68, 0
      %p576 = por %p574, %p575
      %p577 = scmp.ne.s32.totalorder %s569, %s571
      %p578 = scmp.eq.s32.totalorder %s73, 1
      %p579 = por %p577, %p578
      %p580 = scmp.ne.s32.totalorder %s571, %s572
      %p581 = scmp.eq.s32.totalorder %s73, 0
      %p582 = por %p580, %p581
      %p583 = scmp.ne.s32.totalorder %s571, %s572
      %p584 = scmp.eq.s32.totalorder %s74, 1
      %p585 = por %p583, %p584
      %p587 = scmp.ne.s32.totalorder %s572, %s586
      %p588 = scmp.eq.s32.totalorder %s74, 0
      %p589 = por %p587, %p588
      %s591 = sadd.s32 %s590, 1
      %p594 = scmp.eq.s32.totalorder %s68, 1
      %p595 = scmp.ne.s32.totalorder %s590, %s592
      %p596 = scmp.eq.s32.totalorder %s68, 0
      %p597 = por %p595, %p596
      %p598 = scmp.ne.s32.totalorder %s590, %s592
      %p599 = scmp.eq.s32.totalorder %s73, 1
      %p600 = por %p598, %p599
      %p601 = scmp.ne.s32.totalorder %s592, %s593
      %p602 = scmp.eq.s32.totalorder %s73, 0
      %p603 = por %p601, %p602
      %p604 = scmp.ne.s32.totalorder %s592, %s593
      %p605 = scmp.eq.s32.totalorder %s74, 1
      %p606 = por %p604, %p605
      %p608 = scmp.ne.s32.totalorder %s593, %s607
      %p609 = scmp.eq.s32.totalorder %s74, 0
      %p610 = por %p608, %p609
      %s612 = sadd.s32 %s611, 1
      %p615 = scmp.eq.s32.totalorder %s68, 1
      %p616 = scmp.ne.s32.totalorder %s611, %s613
      %p617 = scmp.eq.s32.totalorder %s68, 0
      %p618 = por %p616, %p617
      %p619 = scmp.ne.s32.totalorder %s611, %s613
      %p620 = scmp.eq.s32.totalorder %s73, 1
      %p621 = por %p619, %p620
      %p622 = scmp.ne.s32.totalorder %s613, %s614
      %p623 = scmp.eq.s32.totalorder %s73, 0
      %p624 = por %p622, %p623
      %p625 = scmp.ne.s32.totalorder %s613, %s614
      %p626 = scmp.eq.s32.totalorder %s74, 1
      %p627 = por %p625, %p626
      %p629 = scmp.ne.s32.totalorder %s614, %s628
      %p630 = scmp.eq.s32.totalorder %s74, 0
      %p631 = por %p629, %p630
      %s633 = sadd.s32 %s632, 1
      %p636 = scmp.eq.s32.totalorder %s68, 1
      %p637 = scmp.ne.s32.totalorder %s632, %s634
      %p638 = scmp.eq.s32.totalorder %s68, 0
      %p639 = por %p637, %p638
      %p640 = scmp.ne.s32.totalorder %s632, %s634
      %p641 = scmp.eq.s32.totalorder %s73, 1
      %p642 = por %p640, %p641
      %p643 = scmp.ne.s32.totalorder %s634, %s635
      %p644 = scmp.eq.s32.totalorder %s73, 0
      %p645 = por %p643, %p644
      %p646 = scmp.ne.s32.totalorder %s634, %s635
      %p647 = scmp.eq.s32.totalorder %s74, 1
      %p648 = por %p646, %p647
      %p650 = scmp.ne.s32.totalorder %s635, %s649
      %p651 = scmp.eq.s32.totalorder %s74, 0
      %p652 = por %p650, %p651
      %s654 = sadd.s32 %s653, 1
      %p657 = scmp.eq.s32.totalorder %s68, 1
      %p658 = scmp.ne.s32.totalorder %s653, %s655
      %p659 = scmp.eq.s32.totalorder %s68, 0
      %p660 = por %p658, %p659
      %p661 = scmp.ne.s32.totalorder %s653, %s655
      %p662 = scmp.eq.s32.totalorder %s73, 1
      %p663 = por %p661, %p662
      %p664 = scmp.ne.s32.totalorder %s655, %s656
      %p665 = scmp.eq.s32.totalorder %s73, 0
      %p666 = por %p664, %p665
      %p667 = scmp.ne.s32.totalorder %s655, %s656
      %p668 = scmp.eq.s32.totalorder %s74, 1
      %p669 = por %p667, %p668
      %p671 = scmp.ne.s32.totalorder %s656, %s670
      %p672 = scmp.eq.s32.totalorder %s74, 0
      %p673 = por %p671, %p672
      %s675 = sadd.s32 %s674, 1
      %p678 = scmp.eq.s32.totalorder %s68, 1
      %p679 = scmp.ne.s32.totalorder %s674, %s676
      %p680 = scmp.eq.s32.totalorder %s68, 0
      %p681 = por %p679, %p680
      %p682 = scmp.ne.s32.totalorder %s674, %s676
      %p683 = scmp.eq.s32.totalorder %s73, 1
      %p684 = por %p682, %p683
      %p685 = scmp.ne.s32.totalorder %s676, %s677
      %p686 = scmp.eq.s32.totalorder %s73, 0
      %p687 = por %p685, %p686
      %p688 = scmp.ne.s32.totalorder %s676, %s677
      %p689 = scmp.eq.s32.totalorder %s74, 1
      %p690 = por %p688, %p689
      %p692 = scmp.ne.s32.totalorder %s677, %s691
      %p693 = scmp.eq.s32.totalorder %s74, 0
      %p694 = por %p692, %p693
      %s695 = ssub.s32 %s68, %s75
      %p696 = scmp.eq.s32.totalorder %s695, 0
      %s698 = sadd.s32 %s697, 1
      %s699 = scalar_select %p696, %s697, %s698
      %p702 = pneg %p696
      %p703 = scmp.eq.s32.totalorder %s68, 1
      %p704 = por %p702, %p703
      %p705 = scmp.ne.s32.totalorder %s697, %s700
      %p706 = scmp.eq.s32.totalorder %s68, 0
      %p707 = por %p705, %p706
      %p708 = scmp.ne.s32.totalorder %s697, %s700
      %p709 = scmp.eq.s32.totalorder %s73, 1
      %p710 = por %p708, %p709
      %p711 = scmp.ne.s32.totalorder %s700, %s701
      %p712 = scmp.eq.s32.totalorder %s73, 0
      %p713 = por %p711, %p712
      %p714 = scmp.ne.s32.totalorder %s700, %s701
      %p715 = scmp.eq.s32.totalorder %s74, 1
      %p716 = por %p714, %p715
      %p718 = scmp.ne.s32.totalorder %s701, %s717
      %p719 = scmp.eq.s32.totalorder %s74, 0
      %p720 = por %p718, %p719
      %p721 = scmp.le.s32.totalorder 1, %s68
      %p722 = scmp.lt.s32.totalorder %s68, 3
      %p723 = pnand %p721, %p722
      %p724 = pneg %p723
      // Predicated region
      $region9: #{cross_attn_down_block_1d.4} parent=5 // pred_check
        _
      $region10: #{cross_attn_down_block_1d.4} parent=5 // pred_check_branch
        %726 = sbr.rel (%p723) target = $region12
      $region11: #{cross_attn_down_block_1d.4} parent=5 // pred_region
        %s727 = ssub.s32 %s68, 1
        // Predicated region
        $region13: #{cross_attn_down_block_1d.4} parent=11 // pred_check
          %p728 = pneg %p141
        $region14: #{cross_attn_down_block_1d.4} parent=11 // pred_check_branch
          %730 = sbr.rel (%p728) target = $region16
        $region15: #{cross_attn_down_block_1d.4} parent=11 // pred_region
          _
        $region16: #{cross_attn_down_block_1d.4} parent=11 // pred_fallthru
          _
        // Predicated region
        $region17: #{cross_attn_down_block_1d.4} parent=11 // pred_check
          %p731 = pneg %p162
        $region18: #{cross_attn_down_block_1d.4} parent=11 // pred_check_branch
          %733 = sbr.rel (%p731) target = $region20
        $region19: #{cross_attn_down_block_1d.4} parent=11 // pred_region
          _
        $region20: #{cross_attn_down_block_1d.4} parent=11 // pred_fallthru
          _
        // Predicated region
        $region21: #{cross_attn_down_block_1d.4} parent=11 // pred_check
          %p734 = pneg %p183
        $region22: #{cross_attn_down_block_1d.4} parent=11 // pred_check_branch
          %736 = sbr.rel (%p734) target = $region24
        $region23: #{cross_attn_down_block_1d.4} parent=11 // pred_region
          _
        $region24: #{cross_attn_down_block_1d.4} parent=11 // pred_fallthru
          _
        // Predicated region
        $region25: #{cross_attn_down_block_1d.4} parent=11 // pred_check
          %p737 = pneg %p204
        $region26: #{cross_attn_down_block_1d.4} parent=11 // pred_check_branch
          %739 = sbr.rel (%p737) target = $region28
        $region27: #{cross_attn_down_block_1d.4} parent=11 // pred_region
          _
        $region28: #{cross_attn_down_block_1d.4} parent=11 // pred_fallthru
          _
        // Predicated region
        $region29: #{cross_attn_down_block_1d.4} parent=11 // pred_check
          %p740 = pneg %p225
        $region30: #{cross_attn_down_block_1d.4} parent=11 // pred_check_branch
          %742 = sbr.rel (%p740) target = $region32
        $region31: #{cross_attn_down_block_1d.4} parent=11 // pred_region
          _
        $region32: #{cross_attn_down_block_1d.4} parent=11 // pred_fallthru
          _
        // Predicated region
        $region33: #{cross_attn_down_block_1d.4} parent=11 // pred_check
          %p743 = pneg %p246
        $region34: #{cross_attn_down_block_1d.4} parent=11 // pred_check_branch
          %745 = sbr.rel (%p743) target = $region36
        $region35: #{cross_attn_down_block_1d.4} parent=11 // pred_region
          _
        $region36: #{cross_attn_down_block_1d.4} parent=11 // pred_fallthru
          _
        // Predicated region
        $region37: #{cross_attn_down_block_1d.4} parent=11 // pred_check
          %p746 = pneg %p267
        $region38: #{cross_attn_down_block_1d.4} parent=11 // pred_check_branch
          %748 = sbr.rel (%p746) target = $region40
        $region39: #{cross_attn_down_block_1d.4} parent=11 // pred_region
          _
        $region40: #{cross_attn_down_block_1d.4} parent=11 // pred_fallthru
          _
        // Predicated region
        $region41: #{cross_attn_down_block_1d.4} parent=11 // pred_check
          %p749 = pneg %p288
        $region42: #{cross_attn_down_block_1d.4} parent=11 // pred_check_branch
          %751 = sbr.rel (%p749) target = $region44
        $region43: #{cross_attn_down_block_1d.4} parent=11 // pred_region
          _
        $region44: #{cross_attn_down_block_1d.4} parent=11 // pred_fallthru
          _
        // Predicated region
        $region45: #{cross_attn_down_block_1d.4} parent=11 // pred_check
          %p752 = pneg %p309
        $region46: #{cross_attn_down_block_1d.4} parent=11 // pred_check_branch
          %754 = sbr.rel (%p752) target = $region48
        $region47: #{cross_attn_down_block_1d.4} parent=11 // pred_region
          _
        $region48: #{cross_attn_down_block_1d.4} parent=11 // pred_fallthru
          _
        // Predicated region
        $region49: #{cross_attn_down_block_1d.4} parent=11 // pred_check
          %p755 = pneg %p330
        $region50: #{cross_attn_down_block_1d.4} parent=11 // pred_check_branch
          %757 = sbr.rel (%p755) target = $region52
        $region51: #{cross_attn_down_block_1d.4} parent=11 // pred_region
          _
        $region52: #{cross_attn_down_block_1d.4} parent=11 // pred_fallthru
          _
        // Predicated region
        $region53: #{cross_attn_down_block_1d.4} parent=11 // pred_check
          %p758 = pneg %p351
        $region54: #{cross_attn_down_block_1d.4} parent=11 // pred_check_branch
          %760 = sbr.rel (%p758) target = $region56
        $region55: #{cross_attn_down_block_1d.4} parent=11 // pred_region
          _
        $region56: #{cross_attn_down_block_1d.4} parent=11 // pred_fallthru
          _
        // Predicated region
        $region57: #{cross_attn_down_block_1d.4} parent=11 // pred_check
          %p761 = pneg %p372
        $region58: #{cross_attn_down_block_1d.4} parent=11 // pred_check_branch
          %763 = sbr.rel (%p761) target = $region60
        $region59: #{cross_attn_down_block_1d.4} parent=11 // pred_region
          _
        $region60: #{cross_attn_down_block_1d.4} parent=11 // pred_fallthru
          _
        // Predicated region
        $region61: #{cross_attn_down_block_1d.4} parent=11 // pred_check
          %p764 = pneg %p393
        $region62: #{cross_attn_down_block_1d.4} parent=11 // pred_check_branch
          %766 = sbr.rel (%p764) target = $region64
        $region63: #{cross_attn_down_block_1d.4} parent=11 // pred_region
          _
        $region64: #{cross_attn_down_block_1d.4} parent=11 // pred_fallthru
          _
        // Predicated region
        $region65: #{cross_attn_down_block_1d.4} parent=11 // pred_check
          %p767 = pneg %p414
        $region66: #{cross_attn_down_block_1d.4} parent=11 // pred_check_branch
          %769 = sbr.rel (%p767) target = $region68
        $region67: #{cross_attn_down_block_1d.4} parent=11 // pred_region
          _
        $region68: #{cross_attn_down_block_1d.4} parent=11 // pred_fallthru
          _
        // Predicated region
        $region69: #{cross_attn_down_block_1d.4} parent=11 // pred_check
          %p770 = pneg %p435
        $region70: #{cross_attn_down_block_1d.4} parent=11 // pred_check_branch
          %772 = sbr.rel (%p770) target = $region72
        $region71: #{cross_attn_down_block_1d.4} parent=11 // pred_region
          _
        $region72: #{cross_attn_down_block_1d.4} parent=11 // pred_fallthru
          _
        // Predicated region
        $region73: #{cross_attn_down_block_1d.4} parent=11 // pred_check
          %p773 = pneg %p456
        $region74: #{cross_attn_down_block_1d.4} parent=11 // pred_check_branch
          %775 = sbr.rel (%p773) target = $region76
        $region75: #{cross_attn_down_block_1d.4} parent=11 // pred_region
          _
        $region76: #{cross_attn_down_block_1d.4} parent=11 // pred_fallthru
          _
        // Predicated region
        $region77: #{cross_attn_down_block_1d.4} parent=11 // pred_check
          %p776 = pneg %p477
        $region78: #{cross_attn_down_block_1d.4} parent=11 // pred_check_branch
          %778 = sbr.rel (%p776) target = $region80
        $region79: #{cross_attn_down_block_1d.4} parent=11 // pred_region
          %s780 = ssub.s32 16, 16
          %781 = vsyncadd [#allocation3], %s780
          %s783 = sshll.u32 [#allocation2], 4
          %s784 = int_to_ptr.vmem [resolvable:$true] %s783
          %786 = dma.hbm_to_vmem [thread:$0]  %s37, 16, %s784, [#allocation3]
        $region80: #{cross_attn_down_block_1d.4} parent=11 // pred_fallthru
          _
        // Predicated region
        $region81: #{cross_attn_down_block_1d.4} parent=11 // pred_check
          %p787 = pneg %p498
        $region82: #{cross_attn_down_block_1d.4} parent=11 // pred_check_branch
          %789 = sbr.rel (%p787) target = $region84
        $region83: #{cross_attn_down_block_1d.4} parent=11 // pred_region
          %s791 = ssub.s32 16, 16
          %792 = vsyncadd [#allocation5], %s791
          %s794 = sshll.u32 [#allocation4], 4
          %s795 = int_to_ptr.vmem [resolvable:$true] %s794
          %797 = dma.hbm_to_vmem [thread:$0]  %s39, 16, %s795, [#allocation5]
        $region84: #{cross_attn_down_block_1d.4} parent=11 // pred_fallthru
          _
        // Predicated region
        $region85: #{cross_attn_down_block_1d.4} parent=11 // pred_check
          %p798 = pneg %p519
        $region86: #{cross_attn_down_block_1d.4} parent=11 // pred_check_branch
          %800 = sbr.rel (%p798) target = $region88
        $region87: #{cross_attn_down_block_1d.4} parent=11 // pred_region
          %s802 = ssub.s32 16, 16
          %803 = vsyncadd [#allocation5], %s802
          %s805 = sshll.u32 [#allocation6], 4
          %s806 = int_to_ptr.vmem [resolvable:$true] %s805
          %808 = dma.hbm_to_vmem [thread:$0]  %s41, 16, %s806, [#allocation5]
        $region88: #{cross_attn_down_block_1d.4} parent=11 // pred_fallthru
          _
        // Predicated region
        $region89: #{cross_attn_down_block_1d.4} parent=11 // pred_check
          %p809 = pneg %p540
        $region90: #{cross_attn_down_block_1d.4} parent=11 // pred_check_branch
          %811 = sbr.rel (%p809) target = $region92
        $region91: #{cross_attn_down_block_1d.4} parent=11 // pred_region
          _
        $region92: #{cross_attn_down_block_1d.4} parent=11 // pred_fallthru
          _
        // Predicated region
        $region93: #{cross_attn_down_block_1d.4} parent=11 // pred_check
          %p812 = pneg %p561
        $region94: #{cross_attn_down_block_1d.4} parent=11 // pred_check_branch
          %814 = sbr.rel (%p812) target = $region96
        $region95: #{cross_attn_down_block_1d.4} parent=11 // pred_region
          _
        $region96: #{cross_attn_down_block_1d.4} parent=11 // pred_fallthru
          _
        // Predicated region
        $region97: #{cross_attn_down_block_1d.4} parent=11 // pred_check
          %p815 = pneg %p582
        $region98: #{cross_attn_down_block_1d.4} parent=11 // pred_check_branch
          %817 = sbr.rel (%p815) target = $region100
        $region99: #{cross_attn_down_block_1d.4} parent=11 // pred_region
          _
        $region100: #{cross_attn_down_block_1d.4} parent=11 // pred_fallthru
          _
        // Predicated region
        $region101: #{cross_attn_down_block_1d.4} parent=11 // pred_check
          %p818 = pneg %p603
        $region102: #{cross_attn_down_block_1d.4} parent=11 // pred_check_branch
          %820 = sbr.rel (%p818) target = $region104
        $region103: #{cross_attn_down_block_1d.4} parent=11 // pred_region
          _
        $region104: #{cross_attn_down_block_1d.4} parent=11 // pred_fallthru
          _
        // Predicated region
        $region105: #{cross_attn_down_block_1d.4} parent=11 // pred_check
          %p821 = pneg %p624
        $region106: #{cross_attn_down_block_1d.4} parent=11 // pred_check_branch
          %823 = sbr.rel (%p821) target = $region108
        $region107: #{cross_attn_down_block_1d.4} parent=11 // pred_region
          _
        $region108: #{cross_attn_down_block_1d.4} parent=11 // pred_fallthru
          _
        // Predicated region
        $region109: #{cross_attn_down_block_1d.4} parent=11 // pred_check
          %p824 = pneg %p645
        $region110: #{cross_attn_down_block_1d.4} parent=11 // pred_check_branch
          %826 = sbr.rel (%p824) target = $region112
        $region111: #{cross_attn_down_block_1d.4} parent=11 // pred_region
          %s828 = ssub.s32 16, 16
          %829 = vsyncadd [#allocation8], %s828
          %s831 = sshll.u32 [#allocation7], 4
          %s832 = int_to_ptr.vmem [resolvable:$true] %s831
          %834 = dma.hbm_to_vmem [thread:$0]  %s53, 16, %s832, [#allocation8]
        $region112: #{cross_attn_down_block_1d.4} parent=11 // pred_fallthru
          _
        // Predicated region
        $region113: #{cross_attn_down_block_1d.4} parent=11 // pred_check
          %p835 = pneg %p666
        $region114: #{cross_attn_down_block_1d.4} parent=11 // pred_check_branch
          %837 = sbr.rel (%p835) target = $region116
        $region115: #{cross_attn_down_block_1d.4} parent=11 // pred_region
          _
        $region116: #{cross_attn_down_block_1d.4} parent=11 // pred_fallthru
          _
        // Predicated region
        $region117: #{cross_attn_down_block_1d.4} parent=11 // pred_check
          %p838 = pneg %p687
        $region118: #{cross_attn_down_block_1d.4} parent=11 // pred_check_branch
          %840 = sbr.rel (%p838) target = $region120
        $region119: #{cross_attn_down_block_1d.4} parent=11 // pred_region
          %s842 = ssub.s32 16, 16
          %843 = vsyncadd [#allocation8], %s842
          %s845 = sshll.u32 [#allocation9], 4
          %s846 = int_to_ptr.vmem [resolvable:$true] %s845
          %848 = dma.hbm_to_vmem [thread:$0]  %s57, 16, %s846, [#allocation8]
        $region120: #{cross_attn_down_block_1d.4} parent=11 // pred_fallthru
          _
      $region12: #{cross_attn_down_block_1d.4} parent=5 // pred_fallthru
        _
      %p849 = scmp.lt.s32.totalorder %s68, 2
      // Predicated region
      $region121: #{cross_attn_down_block_1d.4} parent=5 // pred_check
        %p850 = pneg %p849
      $region122: #{cross_attn_down_block_1d.4} parent=5 // pred_check_branch
        %852 = sbr.rel (%p850) target = $region124
      $region123: #{cross_attn_down_block_1d.4} parent=5 // pred_region
        // Predicated region
        $region125: #{cross_attn_down_block_1d.4} parent=123 // pred_check
          %p853 = pneg %p88
        $region126: #{cross_attn_down_block_1d.4} parent=123 // pred_check_branch
          %855 = sbr.rel (%p853) target = $region128
        $region127: #{cross_attn_down_block_1d.4} parent=123 // pred_region
          %p856 = scmp.lt.s32.totalorder %s68, 1
          %s857 = scalar_select %p856, %s68, 1
          %s858 = smul.addr %s857, 2
          %s859 = smul.addr %s858, 8
          %s860 = scalar_lea.vmem %s1, %s859
        $region128: #{cross_attn_down_block_1d.4} parent=123 // pred_fallthru
          _
        // Predicated region
        $region129: #{cross_attn_down_block_1d.4} parent=123 // pred_check
          %p861 = pneg %p114
        $region130: #{cross_attn_down_block_1d.4} parent=123 // pred_check_branch
          %863 = sbr.rel (%p861) target = $region132
        $region131: #{cross_attn_down_block_1d.4} parent=123 // pred_region
          %p864 = scmp.lt.s32.totalorder %s68, 1
          %s865 = scalar_select %p864, %s68, 1
          %s866 = smul.addr %s865, 8
          %s867 = scalar_lea.vmem %s3, %s866
        $region132: #{cross_attn_down_block_1d.4} parent=123 // pred_fallthru
          _
      $region124: #{cross_attn_down_block_1d.4} parent=5 // pred_fallthru
        _
      %p868 = scmp.le.s32.totalorder 1, %s68
      %p869 = scmp.lt.s32.totalorder %s68, 3
      %p870 = pnand %p868, %p869
      %p871 = pneg %p870
      // Predicated region
      $region133: #{cross_attn_down_block_1d.4} parent=5 // pred_check
        _
      $region134: #{cross_attn_down_block_1d.4} parent=5 // pred_check_branch
        %873 = sbr.rel (%p870) target = $region136
      $region135: #{cross_attn_down_block_1d.4} parent=5 // pred_region
        %s874 = ssub.s32 %s68, 1
        // Predicated region
        $region137: #{cross_attn_down_block_1d.4} parent=135 // pred_check
          %p875 = pneg %p477
        $region138: #{cross_attn_down_block_1d.4} parent=135 // pred_check_branch
          %877 = sbr.rel (%p875) target = $region140
        $region139: #{cross_attn_down_block_1d.4} parent=135 // pred_region
          %878 = dma.done [#allocation3], 16
        $region140: #{cross_attn_down_block_1d.4} parent=135 // pred_fallthru
          _
        // Predicated region
        $region141: #{cross_attn_down_block_1d.4} parent=135 // pred_check
          %p879 = pneg %p498
        $region142: #{cross_attn_down_block_1d.4} parent=135 // pred_check_branch
          %881 = sbr.rel (%p879) target = $region144
        $region143: #{cross_attn_down_block_1d.4} parent=135 // pred_region
          %882 = dma.done [#allocation5], 16
        $region144: #{cross_attn_down_block_1d.4} parent=135 // pred_fallthru
          _
        // Predicated region
        $region145: #{cross_attn_down_block_1d.4} parent=135 // pred_check
          %p883 = pneg %p519
        $region146: #{cross_attn_down_block_1d.4} parent=135 // pred_check_branch
          %885 = sbr.rel (%p883) target = $region148
        $region147: #{cross_attn_down_block_1d.4} parent=135 // pred_region
          %886 = dma.done [#allocation5], 16
        $region148: #{cross_attn_down_block_1d.4} parent=135 // pred_fallthru
          _
        // Predicated region
        $region149: #{cross_attn_down_block_1d.4} parent=135 // pred_check
          %p887 = pneg %p645
        $region150: #{cross_attn_down_block_1d.4} parent=135 // pred_check_branch
          %889 = sbr.rel (%p887) target = $region152
        $region151: #{cross_attn_down_block_1d.4} parent=135 // pred_region
          %890 = dma.done [#allocation8], 16
        $region152: #{cross_attn_down_block_1d.4} parent=135 // pred_fallthru
          _
        // Predicated region
        $region153: #{cross_attn_down_block_1d.4} parent=135 // pred_check
          %p891 = pneg %p687
        $region154: #{cross_attn_down_block_1d.4} parent=135 // pred_check_branch
          %893 = sbr.rel (%p891) target = $region156
        $region155: #{cross_attn_down_block_1d.4} parent=135 // pred_region
          %894 = dma.done [#allocation8], 16
        $region156: #{cross_attn_down_block_1d.4} parent=135 // pred_fallthru
          _
        %p895 = scmp.lt.s32.totalorder %s73, 1
        %s896 = scalar_select %p895, %s73, 1
        %s897 = smul.addr %s896, 2
        %s898 = smul.addr %s897, 8
        %s899 = scalar_lea.vmem %s1, %s898
        %p900 = pneg %p94
        %p901 = pneg %p91
        %p902 = scmp.lt.s32.totalorder %s73, 1
        %s903 = scalar_select %p902, %s73, 1
        %s904 = smul.addr %s903, 8
        %s905 = scalar_lea.vmem %s3, %s904
        %p906 = pneg %p120
        %p907 = pneg %p117
        %p908 = pneg %p141
        %p909 = pneg %p138
        %p910 = pneg %p162
        %p911 = pneg %p159
        %p912 = pneg %p183
        %p913 = pneg %p180
        %p914 = pneg %p204
        %p915 = pneg %p201
        %p916 = pneg %p225
        %p917 = pneg %p222
        %p918 = pneg %p246
        %p919 = pneg %p243
        %p920 = pneg %p267
        %p921 = pneg %p264
        %p922 = pneg %p288
        %p923 = pneg %p285
        %p924 = pneg %p309
        %p925 = pneg %p306
        %p926 = pneg %p330
        %p927 = pneg %p327
        %p928 = pneg %p351
        %p929 = pneg %p348
        %p930 = pneg %p372
        %p931 = pneg %p369
        %p932 = pneg %p393
        %p933 = pneg %p390
        %p934 = pneg %p414
        %p935 = pneg %p411
        %p936 = pneg %p435
        %p937 = pneg %p432
        %p938 = pneg %p456
        %p939 = pneg %p453
        %p940 = pneg %p477
        %p941 = pneg %p474
        %p942 = pneg %p498
        %p943 = pneg %p495
        %p944 = pneg %p519
        %p945 = pneg %p516
        %p946 = pneg %p540
        %p947 = pneg %p537
        %p948 = pneg %p561
        %p949 = pneg %p558
        %p950 = pneg %p582
        %p951 = pneg %p579
        %p952 = pneg %p603
        %p953 = pneg %p600
        %p954 = pneg %p624
        %p955 = pneg %p621
        %p956 = pneg %p645
        %p957 = pneg %p642
        %p958 = pneg %p666
        %p959 = pneg %p663
        %p960 = pneg %p687
        %p961 = pneg %p684
        %p962 = pneg %p713
        %p963 = pneg %p710
        %p964 = scmp.lt.s32.totalorder %s73, 1
        %s965 = scalar_select %p964, %s73, 1
        %s966 = smul.addr %s965, 2
        %s967 = smul.addr %s966, 8
        %s968 = scalar_lea.vmem %s59, %s967
        %p969 = scmp.lt.s32.totalorder %s73, 1
        %s970 = scalar_select %p969, %s73, 1
        %s971 = smul.addr %s970, 2
        %s972 = smul.addr %s971, 8
        %s973 = scalar_lea.vmem %s1, %s972
        %p974 = scmp.lt.s32.totalorder %s73, 1
        %s975 = scalar_select %p974, %s73, 1
        %s976 = smul.addr %s975, 8
        %s977 = scalar_lea.vmem %s3, %s976
        %p978 = scmp.lt.s32.totalorder %s73, 1
        %s979 = scalar_select %p978, %s73, 1
        %s980 = smul.addr %s979, 2
        %s981 = smul.addr %s980, 8
        %s982 = scalar_lea.vmem %s59, %s981
        %v984 = vld [vmem:[%s973] sm:$0xff]
        %v985 = vld [vmem:[%s973 + $0x8] sm:$0xff]
        %v986 = vld [vmem:[%s977] sm:$0xff]
        %v987 = vld [vmem:[%s5] sm:$0x1]
        %v988 = vld [vmem:[%s7] sm:$0x1]
        %v989 = vld [vmem:[%s9] sm:$0xff]
        %v990 = vld [vmem:[%s9 + $0x8] sm:$0xff]
        %v991 = vld [vmem:[%s9 + $0x10] sm:$0xff]
        %v992 = vld [vmem:[%s9 + $0x18] sm:$0xff]
        %v993 = vld [vmem:[%s9 + $0x20] sm:$0xff]
        %v994 = vld [vmem:[%s9 + $0x28] sm:$0xff]
        %v995 = vld [vmem:[%s9 + $0x30] sm:$0xff]
        %v996 = vld [vmem:[%s9 + $0x38] sm:$0xff]
        %v997 = vld [vmem:[%s11] sm:$0xff]
        %vm998 = vcmask 523264
        %v999 = vsel %vm998, %v984, 0.0
        %v1000 = vsel %vm998, %v985, 0.0
        %v1001 = vadd.f32 %v999, %v1000
        %v1002 = vrot.slane %v1001, 4
        %v1003 = vadd.f32 %v1001, %v1002
        %v1004 = vrot.slane %v1003, 2
        %v1005 = vadd.f32 %v1003, %v1004
        %v1006 = vrot.slane %v1005, 1
        %v1007 = vadd.f32 %v1005, %v1006
        %v1008 = vmul.f32 %v984, %v984
        %v1009 = vmul.f32 %v985, %v985
        %v1010 = vsel %vm998, %v1008, 0.0
        %v1011 = vsel %vm998, %v1009, 0.0
        %v1012 = vadd.f32 %v1010, %v1011
        %v1013 = vrot.slane %v1012, 4
        %v1014 = vadd.f32 %v1012, %v1013
        %v1015 = vrot.slane %v1014, 2
        %v1016 = vadd.f32 %v1014, %v1015
        %v1017 = vrot.slane %v1016, 1
        %v1018 = vadd.f32 %v1016, %v1017
        %v1020 = vsel %vm998, %v1007, 0
        %1022 = vmatprep.subr.mxu0 0.0
        %1023 = vmatpush1.msra.mxu0 %v989
        %1024 = vmatprep.subr.mxu0 0.0
        %1025 = vmatpush1.msra.mxu0 %v990
        %1026 = vmatprep.subr.mxu0 0.0
        %1027 = vmatpush1.msra.mxu0 %v991
        %1028 = vmatprep.subr.mxu0 0.0
        %1029 = vmatpush1.msra.mxu0 %v992
        %1030 = vmatprep.subr.mxu0 0.0
        %1031 = vmatpush1.msra.mxu0 %v993
        %1032 = vmatprep.subr.mxu0 0.0
        %1033 = vmatpush1.msra.mxu0 %v994
        %1034 = vmatprep.subr.mxu0 0.0
        %1035 = vmatpush1.msra.mxu0 %v995
        %1036 = vmatprep.subr.mxu0 0.0
        %1037 = vmatpush1.msra.mxu0 %v996
        %1038 = vmatprep.subr.mxu0 0.0
        %1039 = vmatpush1.msra.mxu0 0.0
        %1040 = vmatprep.subr.mxu0 0.0
        %1041 = vmatpush1.msra.mxu0 0.0
        %1042 = vmatprep.subr.mxu0 0.0
        %1043 = vmatpush1.msra.mxu0 0.0
        %1044 = vmatprep.subr.mxu0 0.0
        %1045 = vmatpush1.msra.mxu0 0.0
        %1046 = vmatprep.subr.mxu0 0.0
        %1047 = vmatpush1.msra.mxu0 0.0
        %1048 = vmatprep.subr.mxu0 0.0
        %1049 = vmatpush1.msra.mxu0 0.0
        %1050 = vmatprep.subr.mxu0 0.0
        %1051 = vmatpush1.msra.mxu0 0.0
        %1052 = vmatprep.subr.mxu0 0.0
        %1053 = vmatpush1.msra.mxu0 0.0
        %1054 = vmatprep.subr.mxu0 0.0
        %1055 = vmatpush1.msra.mxu0 0.0
        %1056 = vmatprep.subr.mxu0 0.0
        %1057 = vmatpush1.msra.mxu0 0.0
        %1058 = vmatprep.subr.mxu0 0.0
        %1059 = vmatpush1.msra.mxu0 0.0
        %1060 = vmatprep.subr.mxu0 0.0
        %1061 = vmatpush1.msra.mxu0 0.0
        %1062 = vmatprep.subr.mxu0 0.0
        %1063 = vmatpush1.msra.mxu0 0.0
        %1064 = vmatprep.subr.mxu0 0.0
        %1065 = vmatpush1.msra.mxu0 0.0
        %1066 = vmatprep.subr.mxu0 0.0
        %1067 = vmatpush1.msra.mxu0 0.0
        %1068 = vmatprep.subr.mxu0 0.0
        %1069 = vmatpush1.msra.mxu0 0.0
        %1070 = vmatprep.subr.mxu0 0.0
        %1071 = vmatpush1.msra.mxu0 0.0
        %1072 = vmatprep.subr.mxu0 0.0
        %1073 = vmatpush1.msra.mxu0 0.0
        %1074 = vmatprep.subr.mxu0 0.0
        %1075 = vmatpush1.msra.mxu0 0.0
        %1076 = vmatprep.subr.mxu0 0.0
        %1077 = vmatpush1.msra.mxu0 0.0
        %1078 = vmatprep.subr.mxu0 0.0
        %1079 = vmatpush1.msra.mxu0 0.0
        %1080 = vmatprep.subr.mxu0 0.0
        %1081 = vmatpush1.msra.mxu0 0.0
        %1082 = vmatprep.subr.mxu0 0.0
        %1083 = vmatpush1.msra.mxu0 0.0
        %1084 = vmatprep.subr.mxu0 0.0
        %1085 = vmatpush1.msra.mxu0 0.0
        %1086 = vmatprep.mubr.f32.mxu0 0.0
        %1087 = vmatmul.mubr.f32.gmra.mrb[0].mxu0 %v1020
        %v1088 = vpop.f32.mrb[0].mxu0
        %v1089 = vadd.f32 0.0, %v1088
        %v1090 = vpop.f32.mrb[0].mxu0
        %1091 = vdwg.mxu0
        %v1092 = vrcp.pop 128.0
        %v1093 = vmul.f32 %v1089, %v1092
        %v1095 = vsel %vm998, %v1018, 0
        %1097 = vmatprep.subr.mxu0 0.0
        %1098 = vmatpush1.msra.mxu0 %v989
        %1099 = vmatprep.subr.mxu0 0.0
        %1100 = vmatpush1.msra.mxu0 %v990
        %1101 = vmatprep.subr.mxu0 0.0
        %1102 = vmatpush1.msra.mxu0 %v991
        %1103 = vmatprep.subr.mxu0 0.0
        %1104 = vmatpush1.msra.mxu0 %v992
        %1105 = vmatprep.subr.mxu0 0.0
        %1106 = vmatpush1.msra.mxu0 %v993
        %1107 = vmatprep.subr.mxu0 0.0
        %1108 = vmatpush1.msra.mxu0 %v994
        %1109 = vmatprep.subr.mxu0 0.0
        %1110 = vmatpush1.msra.mxu0 %v995
        %1111 = vmatprep.subr.mxu0 0.0
        %1112 = vmatpush1.msra.mxu0 %v996
        %1113 = vmatprep.subr.mxu0 0.0
        %1114 = vmatpush1.msra.mxu0 0.0
        %1115 = vmatprep.subr.mxu0 0.0
        %1116 = vmatpush1.msra.mxu0 0.0
        %1117 = vmatprep.subr.mxu0 0.0
        %1118 = vmatpush1.msra.mxu0 0.0
        %1119 = vmatprep.subr.mxu0 0.0
        %1120 = vmatpush1.msra.mxu0 0.0
        %1121 = vmatprep.subr.mxu0 0.0
        %1122 = vmatpush1.msra.mxu0 0.0
        %1123 = vmatprep.subr.mxu0 0.0
        %1124 = vmatpush1.msra.mxu0 0.0
        %1125 = vmatprep.subr.mxu0 0.0
        %1126 = vmatpush1.msra.mxu0 0.0
        %1127 = vmatprep.subr.mxu0 0.0
        %1128 = vmatpush1.msra.mxu0 0.0
        %1129 = vmatprep.subr.mxu0 0.0
        %1130 = vmatpush1.msra.mxu0 0.0
        %1131 = vmatprep.subr.mxu0 0.0
        %1132 = vmatpush1.msra.mxu0 0.0
        %1133 = vmatprep.subr.mxu0 0.0
        %1134 = vmatpush1.msra.mxu0 0.0
        %1135 = vmatprep.subr.mxu0 0.0
        %1136 = vmatpush1.msra.mxu0 0.0
        %1137 = vmatprep.subr.mxu0 0.0
        %1138 = vmatpush1.msra.mxu0 0.0
        %1139 = vmatprep.subr.mxu0 0.0
        %1140 = vmatpush1.msra.mxu0 0.0
        %1141 = vmatprep.subr.mxu0 0.0
        %1142 = vmatpush1.msra.mxu0 0.0
        %1143 = vmatprep.subr.mxu0 0.0
        %1144 = vmatpush1.msra.mxu0 0.0
        %1145 = vmatprep.subr.mxu0 0.0
        %1146 = vmatpush1.msra.mxu0 0.0
        %1147 = vmatprep.subr.mxu0 0.0
        %1148 = vmatpush1.msra.mxu0 0.0
        %1149 = vmatprep.subr.mxu0 0.0
        %1150 = vmatpush1.msra.mxu0 0.0
        %1151 = vmatprep.subr.mxu0 0.0
        %1152 = vmatpush1.msra.mxu0 0.0
        %1153 = vmatprep.subr.mxu0 0.0
        %1154 = vmatpush1.msra.mxu0 0.0
        %1155 = vmatprep.subr.mxu0 0.0
        %1156 = vmatpush1.msra.mxu0 0.0
        %1157 = vmatprep.subr.mxu0 0.0
        %1158 = vmatpush1.msra.mxu0 0.0
        %1159 = vmatprep.subr.mxu0 0.0
        %1160 = vmatpush1.msra.mxu0 0.0
        %1161 = vmatprep.mubr.f32.mxu0 0.0
        %1162 = vmatmul.mubr.f32.gmra.mrb[0].mxu0 %v1095
        %v1163 = vpop.f32.mrb[0].mxu0
        %v1164 = vadd.f32 0.0, %v1163
        %v1165 = vpop.f32.mrb[0].mxu0
        %1166 = vdwg.mxu0
        %v1167 = vmul.f32 %v1164, %v1092
        %v1168 = vmul.f32 %v1093, %v1093
        %v1169 = vsub.f32 %v1167, %v1168
        %v1170 = vadd.f32 %v1169, 1e-06
        %v1171 = vrsqrt.pop %v1170
        %vm1172 = vcmask 64512
        %v1174 = vsel %vm1172, %v1093, 0
        %1176 = vmatprep.subr.mxu0 0.0
        %1177 = vmatpush1.msra.mxu0 %v997
        %1178 = vmatprep.subr.mxu0 0.0
        %1179 = vmatpush1.msra.mxu0 0.0
        %1180 = vmatprep.subr.mxu0 0.0
        %1181 = vmatpush1.msra.mxu0 0.0
        %1182 = vmatprep.subr.mxu0 0.0
        %1183 = vmatpush1.msra.mxu0 0.0
        %1184 = vmatprep.subr.mxu0 0.0
        %1185 = vmatpush1.msra.mxu0 0.0
        %1186 = vmatprep.subr.mxu0 0.0
        %1187 = vmatpush1.msra.mxu0 0.0
        %1188 = vmatprep.subr.mxu0 0.0
        %1189 = vmatpush1.msra.mxu0 0.0
        %1190 = vmatprep.subr.mxu0 0.0
        %1191 = vmatpush1.msra.mxu0 0.0
        %1192 = vmatprep.subr.mxu0 0.0
        %1193 = vmatpush1.msra.mxu0 0.0
        %1194 = vmatprep.subr.mxu0 0.0
        %1195 = vmatpush1.msra.mxu0 0.0
        %1196 = vmatprep.subr.mxu0 0.0
        %1197 = vmatpush1.msra.mxu0 0.0
        %1198 = vmatprep.subr.mxu0 0.0
        %1199 = vmatpush1.msra.mxu0 0.0
        %1200 = vmatprep.subr.mxu0 0.0
        %1201 = vmatpush1.msra.mxu0 0.0
        %1202 = vmatprep.subr.mxu0 0.0
        %1203 = vmatpush1.msra.mxu0 0.0
        %1204 = vmatprep.subr.mxu0 0.0
        %1205 = vmatpush1.msra.mxu0 0.0
        %1206 = vmatprep.subr.mxu0 0.0
        %1207 = vmatpush1.msra.mxu0 0.0
        %1208 = vmatprep.subr.mxu0 0.0
        %1209 = vmatpush1.msra.mxu0 0.0
        %1210 = vmatprep.subr.mxu0 0.0
        %1211 = vmatpush1.msra.mxu0 0.0
        %1212 = vmatprep.subr.mxu0 0.0
        %1213 = vmatpush1.msra.mxu0 0.0
        %1214 = vmatprep.subr.mxu0 0.0
        %1215 = vmatpush1.msra.mxu0 0.0
        %1216 = vmatprep.subr.mxu0 0.0
        %1217 = vmatpush1.msra.mxu0 0.0
        %1218 = vmatprep.subr.mxu0 0.0
        %1219 = vmatpush1.msra.mxu0 0.0
        %1220 = vmatprep.subr.mxu0 0.0
        %1221 = vmatpush1.msra.mxu0 0.0
        %1222 = vmatprep.subr.mxu0 0.0
        %1223 = vmatpush1.msra.mxu0 0.0
        %1224 = vmatprep.subr.mxu0 0.0
        %1225 = vmatpush1.msra.mxu0 0.0
        %1226 = vmatprep.subr.mxu0 0.0
        %1227 = vmatpush1.msra.mxu0 0.0
        %1228 = vmatprep.subr.mxu0 0.0
        %1229 = vmatpush1.msra.mxu0 0.0
        %1230 = vmatprep.subr.mxu0 0.0
        %1231 = vmatpush1.msra.mxu0 0.0
        %1232 = vmatprep.subr.mxu0 0.0
        %1233 = vmatpush1.msra.mxu0 0.0
        %1234 = vmatprep.subr.mxu0 0.0
        %1235 = vmatpush1.msra.mxu0 0.0
        %1236 = vmatprep.subr.mxu0 0.0
        %1237 = vmatpush1.msra.mxu0 0.0
        %1238 = vmatprep.subr.mxu0 0.0
        %1239 = vmatpush1.msra.mxu0 0.0
        %1240 = vmatprep.mubr.f32.mxu0 0.0
        %1241 = vmatmul.mubr.f32.gmra.mrb[0].mxu0 %v1174
        %v1242 = vpop.f32.mrb[0].mxu0
        %v1243 = vadd.f32 0.0, %v1242
        %v1244 = vpop.f32.mrb[0].mxu0
        %1245 = vdwg.mxu0
        %v1247 = vsel %vm1172, %v1171, 0
        %1249 = vmatprep.subr.mxu0 0.0
        %1250 = vmatpush1.msra.mxu0 %v997
        %1251 = vmatprep.subr.mxu0 0.0
        %1252 = vmatpush1.msra.mxu0 0.0
        %1253 = vmatprep.subr.mxu0 0.0
        %1254 = vmatpush1.msra.mxu0 0.0
        %1255 = vmatprep.subr.mxu0 0.0
        %1256 = vmatpush1.msra.mxu0 0.0
        %1257 = vmatprep.subr.mxu0 0.0
        %1258 = vmatpush1.msra.mxu0 0.0
        %1259 = vmatprep.subr.mxu0 0.0
        %1260 = vmatpush1.msra.mxu0 0.0
        %1261 = vmatprep.subr.mxu0 0.0
        %1262 = vmatpush1.msra.mxu0 0.0
        %1263 = vmatprep.subr.mxu0 0.0
        %1264 = vmatpush1.msra.mxu0 0.0
        %1265 = vmatprep.subr.mxu0 0.0
        %1266 = vmatpush1.msra.mxu0 0.0
        %1267 = vmatprep.subr.mxu0 0.0
        %1268 = vmatpush1.msra.mxu0 0.0
        %1269 = vmatprep.subr.mxu0 0.0
        %1270 = vmatpush1.msra.mxu0 0.0
        %1271 = vmatprep.subr.mxu0 0.0
        %1272 = vmatpush1.msra.mxu0 0.0
        %1273 = vmatprep.subr.mxu0 0.0
        %1274 = vmatpush1.msra.mxu0 0.0
        %1275 = vmatprep.subr.mxu0 0.0
        %1276 = vmatpush1.msra.mxu0 0.0
        %1277 = vmatprep.subr.mxu0 0.0
        %1278 = vmatpush1.msra.mxu0 0.0
        %1279 = vmatprep.subr.mxu0 0.0
        %1280 = vmatpush1.msra.mxu0 0.0
        %1281 = vmatprep.subr.mxu0 0.0
        %1282 = vmatpush1.msra.mxu0 0.0
        %1283 = vmatprep.subr.mxu0 0.0
        %1284 = vmatpush1.msra.mxu0 0.0
        %1285 = vmatprep.subr.mxu0 0.0
        %1286 = vmatpush1.msra.mxu0 0.0
        %1287 = vmatprep.subr.mxu0 0.0
        %1288 = vmatpush1.msra.mxu0 0.0
        %1289 = vmatprep.subr.mxu0 0.0
        %1290 = vmatpush1.msra.mxu0 0.0
        %1291 = vmatprep.subr.mxu0 0.0
        %1292 = vmatpush1.msra.mxu0 0.0
        %1293 = vmatprep.subr.mxu0 0.0
        %1294 = vmatpush1.msra.mxu0 0.0
        %1295 = vmatprep.subr.mxu0 0.0
        %1296 = vmatpush1.msra.mxu0 0.0
        %1297 = vmatprep.subr.mxu0 0.0
        %1298 = vmatpush1.msra.mxu0 0.0
        %1299 = vmatprep.subr.mxu0 0.0
        %1300 = vmatpush1.msra.mxu0 0.0
        %1301 = vmatprep.subr.mxu0 0.0
        %1302 = vmatpush1.msra.mxu0 0.0
        %1303 = vmatprep.subr.mxu0 0.0
        %1304 = vmatpush1.msra.mxu0 0.0
        %1305 = vmatprep.subr.mxu0 0.0
        %1306 = vmatpush1.msra.mxu0 0.0
        %1307 = vmatprep.subr.mxu0 0.0
        %1308 = vmatpush1.msra.mxu0 0.0
        %1309 = vmatprep.subr.mxu0 0.0
        %1310 = vmatpush1.msra.mxu0 0.0
        %1311 = vmatprep.subr.mxu0 0.0
        %1312 = vmatpush1.msra.mxu0 0.0
        %1313 = vmatprep.mubr.f32.mxu0 0.0
        %1314 = vmatmul.mubr.f32.gmra.mrb[0].mxu0 %v1247
        %v1315 = vpop.f32.mrb[0].mxu0
        %v1316 = vadd.f32 0.0, %v1315
        %v1317 = vpop.f32.mrb[0].mxu0
        %1318 = vdwg.mxu0
        %v1319 = vlaneseq
        %v1320 = vshrl.u32 %v1319, 7
        %v1321 = vsub.s32 0, %v1320
        %v1322 = vrot.slane %v1243, %v1321
        %v1323 = vsub.f32 %v984, %v1322
        %v1324 = vsub.f32 %v985, %v1322
        %v1325 = vlaneseq
        %v1326 = vshrl.u32 %v1325, 7
        %v1327 = vsub.s32 0, %v1326
        %v1328 = vrot.slane %v1316, %v1327
        %v1329 = vmul.f32 %v1323, %v1328
        %v1330 = vmul.f32 %v1324, %v1328
        %v1332 = vlaneseq
        %v1333 = vshrl.u32 %v1332, 7
        %v1334 = vsub.s32 0, %v1333
        %v1335 = vrot.slane %v987, %v1334
        %v1337 = vmul.f32 %v1329, %v1335
        %v1338 = vmul.f32 %v1330, %v1335
        %v1340 = vlaneseq
        %v1341 = vshrl.u32 %v1340, 7
        %v1342 = vsub.s32 0, %v1341
        %v1343 = vrot.slane %v988, %v1342
        %v1345 = vadd.f32 %v1337, %v1343
        %v1346 = vadd.f32 %v1338, %v1343
        %v1347 = vld [vmem:[%s13] sm:$0xf]
        %v1348 = vld [vmem:[%s13 + $0x4] sm:$0xf]
        %v1349 = vld [vmem:[%s13 + $0x8] sm:$0xf]
        %v1350 = vld [vmem:[%s13 + $0xc] sm:$0xf]
        %v1351 = vld [vmem:[%s13 + $0x10] sm:$0xf]
        %v1352 = vld [vmem:[%s13 + $0x14] sm:$0xf]
        %v1353 = vld [vmem:[%s13 + $0x18] sm:$0xf]
        %v1354 = vld [vmem:[%s13 + $0x1c] sm:$0xf]
        %v1355 = vpack.c.bf16 %v1346, %v1345
        %v1356 = vld [vmem:[%s15] sm:$0x1]
        %v1358 = vlaneseq
        %v1359 = vshrl.u32 %v1358, 7
        %v1360 = vsub.s32 0, %v1359
        %v1361 = vrot.slane %v1356, %v1360
        %v1371 = vunpack.c.l.b16 %v1347
        %v1372 = vunpack.c.l.b16 %v1348
        %v1373 = vunpack.c.l.b16 %v1349
        %v1374 = vunpack.c.l.b16 %v1350
        %v1375 = vunpack.c.l.b16 %v1351
        %v1376 = vunpack.c.l.b16 %v1352
        %v1377 = vunpack.c.l.b16 %v1353
        %v1378 = vunpack.c.l.b16 %v1354
        %v1379 = vpack.c.b16 %v1372, %v1371
        %v1380 = vpack.c.b16 %v1374, %v1373
        %v1381 = vpack.c.b16 %v1376, %v1375
        %v1382 = vpack.c.b16 %v1378, %v1377
        %v1388 = vsel %vm998, %v1355, 0
        %1390 = vmatprep.subr.bf16.mxu0 0
        %1391 = vmatpush1.bf16.msra.mxu0 %v1379
        %1392 = vmatprep.subr.bf16.mxu0 0
        %1393 = vmatpush1.bf16.msra.mxu0 %v1380
        %1394 = vmatprep.subr.bf16.mxu0 0
        %1395 = vmatpush1.bf16.msra.mxu0 %v1381
        %1396 = vmatprep.subr.bf16.mxu0 0
        %1397 = vmatpush1.bf16.msra.mxu0 %v1382
        %1398 = vmatprep.subr.bf16.mxu0 0
        %1399 = vmatpush1.bf16.msra.mxu0 0
        %1400 = vmatprep.subr.bf16.mxu0 0
        %1401 = vmatpush1.bf16.msra.mxu0 0
        %1402 = vmatprep.subr.bf16.mxu0 0
        %1403 = vmatpush1.bf16.msra.mxu0 0
        %1404 = vmatprep.subr.bf16.mxu0 0
        %1405 = vmatpush1.bf16.msra.mxu0 0
        %1406 = vmatprep.subr.bf16.mxu0 0
        %1407 = vmatpush1.bf16.msra.mxu0 0
        %1408 = vmatprep.subr.bf16.mxu0 0
        %1409 = vmatpush1.bf16.msra.mxu0 0
        %1410 = vmatprep.subr.bf16.mxu0 0
        %1411 = vmatpush1.bf16.msra.mxu0 0
        %1412 = vmatprep.subr.bf16.mxu0 0
        %1413 = vmatpush1.bf16.msra.mxu0 0
        %1414 = vmatprep.subr.bf16.mxu0 0
        %1415 = vmatpush1.bf16.msra.mxu0 0
        %1416 = vmatprep.subr.bf16.mxu0 0
        %1417 = vmatpush1.bf16.msra.mxu0 0
        %1418 = vmatprep.subr.bf16.mxu0 0
        %1419 = vmatpush1.bf16.msra.mxu0 0
        %1420 = vmatprep.subr.bf16.mxu0 0
        %1421 = vmatpush1.bf16.msra.mxu0 0
        %1422 = vmatprep.mubr.bf16.mxu0 0
        %1423 = vmatmul.mubr.bf16.gmra.mrb[0].mxu0 %v1388
        %v1424 = vpop.f32.mrb[0].mxu0
        %v1425 = vadd.f32 %v1361, %v1424
        %v1426 = vpop.f32.mrb[0].mxu0
        %v1427 = vpop.f32.mrb[0].mxu0
        %v1428 = vadd.f32 %v1361, %v1427
        %v1429 = vpop.f32.mrb[0].mxu0
        %1430 = vdwg.mxu0
        %v1431 = vld [vmem:[%s17] sm:$0x1]
        %v1432 = vld [vmem:[%s19] sm:$0x1]
        %v1433 = vsel %vm998, %v1425, 0.0
        %1434 = vadd.xlane.f32.xlu0 %v1433
        %v1435 = vpop.xlane.xlu0 %1434
        %v1436 = vsel %vm998, %v1428, 0.0
        %1437 = vadd.xlane.f32.xlu0 %v1436
        %v1438 = vpop.xlane.xlu0 %1437
        %v1439 = vrcp.pop 64.0
        %v1440 = vmul.f32 %v1435, %v1439
        %v1441 = vmul.f32 %v1438, %v1439
        %v1442 = vsub.f32 %v1425, %v1440
        %v1443 = vsub.f32 %v1428, %v1441
        %v1444 = vmul.f32 %v1442, %v1442
        %v1445 = vmul.f32 %v1443, %v1443
        %v1446 = vsel %vm998, %v1444, 0.0
        %1447 = vadd.xlane.f32.xlu0 %v1446
        %v1448 = vpop.xlane.xlu0 %1447
        %v1449 = vsel %vm998, %v1445, 0.0
        %1450 = vadd.xlane.f32.xlu0 %v1449
        %v1451 = vpop.xlane.xlu0 %1450
        %v1452 = vmul.f32 %v1448, %v1439
        %v1453 = vmul.f32 %v1451, %v1439
        %v1454 = vadd.f32 %v1452, 1e-05
        %v1455 = vadd.f32 %v1453, 1e-05
        %v1456 = vrsqrt.pop %v1454
        %v1457 = vrsqrt.pop %v1455
        %v1458 = vmul.f32 %v1442, %v1456
        %v1459 = vmul.f32 %v1443, %v1457
        %v1461 = vlaneseq
        %v1462 = vshrl.u32 %v1461, 7
        %v1463 = vsub.s32 0, %v1462
        %v1464 = vrot.slane %v1431, %v1463
        %v1466 = vmul.f32 %v1458, %v1464
        %v1467 = vmul.f32 %v1459, %v1464
        %v1469 = vlaneseq
        %v1470 = vshrl.u32 %v1469, 7
        %v1471 = vsub.s32 0, %v1470
        %v1472 = vrot.slane %v1432, %v1471
        %v1474 = vadd.f32 %v1466, %v1472
        %v1475 = vadd.f32 %v1467, %v1472
        %v1476 = vld [vmem:[%s21] sm:$0xff]
        %v1477 = vld [vmem:[%s21 + $0x8] sm:$0xff]
        %v1478 = vld [vmem:[%s21 + $0x10] sm:$0xff]
        %v1479 = vld [vmem:[%s21 + $0x18] sm:$0xff]
        %v1480 = vld [vmem:[%s21 + $0x20] sm:$0xff]
        %v1481 = vld [vmem:[%s21 + $0x28] sm:$0xff]
        %v1482 = vld [vmem:[%s21 + $0x30] sm:$0xff]
        %v1483 = vld [vmem:[%s21 + $0x38] sm:$0xff]
        %v1484 = vpack.c.bf16 %v1475, %v1474
        %v1493 = vunpack.c.l.b16 %v1476
        %v1494 = vunpack.c.h.b16 %v1476
        %v1495 = vunpack.c.l.b16 %v1477
        %v1496 = vunpack.c.h.b16 %v1477
        %v1497 = vunpack.c.l.b16 %v1478
        %v1498 = vunpack.c.h.b16 %v1478
        %v1499 = vunpack.c.l.b16 %v1479
        %v1500 = vunpack.c.h.b16 %v1479
        %v1501 = vunpack.c.l.b16 %v1480
        %v1502 = vunpack.c.h.b16 %v1480
        %v1503 = vunpack.c.l.b16 %v1481
        %v1504 = vunpack.c.h.b16 %v1481
        %v1505 = vunpack.c.l.b16 %v1482
        %v1506 = vunpack.c.h.b16 %v1482
        %v1507 = vunpack.c.l.b16 %v1483
        %v1508 = vunpack.c.h.b16 %v1483
        %v1509 = vpack.c.b16 %v1495, %v1493
        %v1510 = vpack.c.b16 %v1496, %v1494
        %v1511 = vpack.c.b16 %v1499, %v1497
        %v1512 = vpack.c.b16 %v1500, %v1498
        %v1513 = vpack.c.b16 %v1503, %v1501
        %v1514 = vpack.c.b16 %v1504, %v1502
        %v1515 = vpack.c.b16 %v1507, %v1505
        %v1516 = vpack.c.b16 %v1508, %v1506
        %v1526 = vsel %vm998, %v1484, 0
        %1528 = vmatprep.subr.bf16.mxu0 %v1510
        %1529 = vmatpush1.bf16.msra.mxu0 %v1509
        %1530 = vmatprep.subr.bf16.mxu0 %v1512
        %1531 = vmatpush1.bf16.msra.mxu0 %v1511
        %1532 = vmatprep.subr.bf16.mxu0 %v1514
        %1533 = vmatpush1.bf16.msra.mxu0 %v1513
        %1534 = vmatprep.subr.bf16.mxu0 %v1516
        %1535 = vmatpush1.bf16.msra.mxu0 %v1515
        %1536 = vmatprep.subr.bf16.mxu0 0
        %1537 = vmatpush1.bf16.msra.mxu0 0
        %1538 = vmatprep.subr.bf16.mxu0 0
        %1539 = vmatpush1.bf16.msra.mxu0 0
        %1540 = vmatprep.subr.bf16.mxu0 0
        %1541 = vmatpush1.bf16.msra.mxu0 0
        %1542 = vmatprep.subr.bf16.mxu0 0
        %1543 = vmatpush1.bf16.msra.mxu0 0
        %1544 = vmatprep.subr.bf16.mxu0 0
        %1545 = vmatpush1.bf16.msra.mxu0 0
        %1546 = vmatprep.subr.bf16.mxu0 0
        %1547 = vmatpush1.bf16.msra.mxu0 0
        %1548 = vmatprep.subr.bf16.mxu0 0
        %1549 = vmatpush1.bf16.msra.mxu0 0
        %1550 = vmatprep.subr.bf16.mxu0 0
        %1551 = vmatpush1.bf16.msra.mxu0 0
        %1552 = vmatprep.subr.bf16.mxu0 0
        %1553 = vmatpush1.bf16.msra.mxu0 0
        %1554 = vmatprep.subr.bf16.mxu0 0
        %1555 = vmatpush1.bf16.msra.mxu0 0
        %1556 = vmatprep.subr.bf16.mxu0 0
        %1557 = vmatpush1.bf16.msra.mxu0 0
        %1558 = vmatprep.subr.bf16.mxu0 0
        %1559 = vmatpush1.bf16.msra.mxu0 0
        %1560 = vmatprep.mubr.bf16.mxu0 0
        %1561 = vmatmul.mubr.bf16.gmra.mrb[0].mxu0 %v1526
        %v1562 = vpop.f32.mrb[0].mxu0
        %v1563 = vadd.f32 0.0, %v1562
        %v1564 = vpop.f32.mrb[0].mxu0
        %v1565 = vadd.f32 0.0, %v1564
        %v1566 = vpop.f32.mrb[0].mxu0
        %v1567 = vadd.f32 0.0, %v1566
        %v1568 = vpop.f32.mrb[0].mxu0
        %v1569 = vadd.f32 0.0, %v1568
        %1570 = vdwg.mxu0
        %v1571 = vmul.f32 %v1563, 0.17677669
        %v1572 = vmul.f32 %v1567, 0.17677669
        %v1573 = vpack.c.bf16 %v1572, %v1571
        %v1574 = vpack.c.bf16 %v1567, %v1563
        %v1575 = vpack.c.bf16 %v1569, %v1565
        %1577 = vrot.lane.b32.xlu0 %v1574, 64
        %v1578 = vpop.permute.xlu0 %1577
        %vm1579 = vcmask 261120
        %v1581 = vsel %vm1579, %v1573, 0
        %v1584 = vsel %vm1579, %v1578, 0
        %1586 = vmatprep.subr.bf16.mxu0 0
        %1587 = vmatpush1.bf16.xpose.msra.mxu0 %v1584
        %1588 = vmatprep.subr.bf16.mxu0 0
        %1589 = vmatpush1.bf16.xpose.msra.mxu0 0
        %1590 = vmatprep.subr.bf16.mxu0 0
        %1591 = vmatpush1.bf16.xpose.msra.mxu0 0
        %1592 = vmatprep.subr.bf16.mxu0 0
        %1593 = vmatpush1.bf16.xpose.msra.mxu0 0
        %1594 = vmatprep.subr.bf16.mxu0 0
        %1595 = vmatpush1.bf16.xpose.msra.mxu0 0
        %1596 = vmatprep.subr.bf16.mxu0 0
        %1597 = vmatpush1.bf16.xpose.msra.mxu0 0
        %1598 = vmatprep.subr.bf16.mxu0 0
        %1599 = vmatpush1.bf16.xpose.msra.mxu0 0
        %1600 = vmatprep.subr.bf16.mxu0 0
        %1601 = vmatpush1.bf16.xpose.msra.mxu0 0
        %1602 = vmatprep.subr.bf16.mxu0 0
        %1603 = vmatpush1.bf16.xpose.msra.mxu0 0
        %1604 = vmatprep.subr.bf16.mxu0 0
        %1605 = vmatpush1.bf16.xpose.msra.mxu0 0
        %1606 = vmatprep.subr.bf16.mxu0 0
        %1607 = vmatpush1.bf16.xpose.msra.mxu0 0
        %1608 = vmatprep.subr.bf16.mxu0 0
        %1609 = vmatpush1.bf16.xpose.msra.mxu0 0
        %1610 = vmatprep.subr.bf16.mxu0 0
        %1611 = vmatpush1.bf16.xpose.msra.mxu0 0
        %1612 = vmatprep.subr.bf16.mxu0 0
        %1613 = vmatpush1.bf16.xpose.msra.mxu0 0
        %1614 = vmatprep.subr.bf16.mxu0 0
        %1615 = vmatpush1.bf16.xpose.msra.mxu0 0
        %1616 = vmatprep.subr.bf16.mxu0 0
        %1617 = vmatpush1.bf16.xpose.msra.mxu0 0
        %1618 = vmatprep.mubr.bf16.mxu0 0
        %1619 = vmatmul.mubr.bf16.gmra.mrb[0].mxu0 %v1581
        %v1620 = vpop.f32.mrb[0].mxu0
        %v1621 = vadd.f32 0.0, %v1620
        %v1622 = vpop.f32.mrb[0].mxu0
        %v1623 = vpop.f32.mrb[0].mxu0
        %v1624 = vadd.f32 0.0, %v1623
        %v1625 = vpop.f32.mrb[0].mxu0
        %1626 = vdwg.mxu0
        %vm1627 = vcmask 130048
        %v1628 = vsel %vm1627, %v1621, -inf
        %1629 = vmax.xlane.f32.xlu0 %v1628
        %v1630 = vpop.xlane.xlu0 %1629
        %v1631 = vsel %vm1627, %v1624, -inf
        %1632 = vmax.xlane.f32.xlu0 %v1631
        %v1633 = vpop.xlane.xlu0 %1632
        %v1634 = vsub.f32 %v1621, %v1630
        %v1635 = vsub.f32 %v1624, %v1633
        %v1636 = vmul.f32 %v1634, 1.442695
        %v1637 = vpow.pop %v1636
        %v1638 = vmul.f32 %v1635, 1.442695
        %v1639 = vpow.pop %v1638
        %v1640 = vsel %vm1627, %v1637, 0.0
        %1641 = vadd.xlane.f32.xlu0 %v1640
        %v1642 = vpop.xlane.xlu0 %1641
        %v1643 = vsel %vm1627, %v1639, 0.0
        %1644 = vadd.xlane.f32.xlu0 %v1643
        %v1645 = vpop.xlane.xlu0 %1644
        %v1646 = vrcp.pop %v1642
        %v1647 = vrcp.pop %v1645
        %v1648 = vmul.f32 %v1637, %v1646
        %v1649 = vmul.f32 %v1639, %v1647
        %v1650 = vpack.c.bf16 %v1649, %v1648
        %v1652 = vsel %vm1627, %v1650, 0
        %1654 = vmatprep.subr.bf16.mxu0 0
        %1655 = vmatpush1.bf16.msra.mxu0 %v1575
        %1656 = vmatprep.subr.bf16.mxu0 0
        %1657 = vmatpush1.bf16.msra.mxu0 0
        %1658 = vmatprep.subr.bf16.mxu0 0
        %1659 = vmatpush1.bf16.msra.mxu0 0
        %1660 = vmatprep.subr.bf16.mxu0 0
        %1661 = vmatpush1.bf16.msra.mxu0 0
        %1662 = vmatprep.subr.bf16.mxu0 0
        %1663 = vmatpush1.bf16.msra.mxu0 0
        %1664 = vmatprep.subr.bf16.mxu0 0
        %1665 = vmatpush1.bf16.msra.mxu0 0
        %1666 = vmatprep.subr.bf16.mxu0 0
        %1667 = vmatpush1.bf16.msra.mxu0 0
        %1668 = vmatprep.subr.bf16.mxu0 0
        %1669 = vmatpush1.bf16.msra.mxu0 0
        %1670 = vmatprep.subr.bf16.mxu0 0
        %1671 = vmatpush1.bf16.msra.mxu0 0
        %1672 = vmatprep.subr.bf16.mxu0 0
        %1673 = vmatpush1.bf16.msra.mxu0 0
        %1674 = vmatprep.subr.bf16.mxu0 0
        %1675 = vmatpush1.bf16.msra.mxu0 0
        %1676 = vmatprep.subr.bf16.mxu0 0
        %1677 = vmatpush1.bf16.msra.mxu0 0
        %1678 = vmatprep.subr.bf16.mxu0 0
        %1679 = vmatpush1.bf16.msra.mxu0 0
        %1680 = vmatprep.subr.bf16.mxu0 0
        %1681 = vmatpush1.bf16.msra.mxu0 0
        %1682 = vmatprep.subr.bf16.mxu0 0
        %1683 = vmatpush1.bf16.msra.mxu0 0
        %1684 = vmatprep.subr.bf16.mxu0 0
        %1685 = vmatpush1.bf16.msra.mxu0 0
        %1686 = vmatprep.mubr.bf16.mxu0 0
        %1687 = vmatmul.mubr.bf16.gmra.mrb[0].mxu0 %v1652
        %v1688 = vpop.f32.mrb[0].mxu0
        %v1689 = vadd.f32 0.0, %v1688
        %v1690 = vpop.f32.mrb[0].mxu0
        %v1691 = vpop.f32.mrb[0].mxu0
        %v1692 = vadd.f32 0.0, %v1691
        %v1693 = vpop.f32.mrb[0].mxu0
        %1694 = vdwg.mxu0
        %1696 = vrot.lane.b32.xlu0 %v1573, 96
        %v1697 = vpop.permute.xlu0 %1696
        %1698 = vrot.lane.b32.xlu0 %v1574, 32
        %v1699 = vpop.permute.xlu0 %1698
        %v1701 = vsel %vm1579, %v1697, 0
        %v1704 = vsel %vm1579, %v1699, 0
        %1706 = vmatprep.subr.bf16.mxu0 0
        %1707 = vmatpush1.bf16.xpose.msra.mxu0 %v1704
        %1708 = vmatprep.subr.bf16.mxu0 0
        %1709 = vmatpush1.bf16.xpose.msra.mxu0 0
        %1710 = vmatprep.subr.bf16.mxu0 0
        %1711 = vmatpush1.bf16.xpose.msra.mxu0 0
        %1712 = vmatprep.subr.bf16.mxu0 0
        %1713 = vmatpush1.bf16.xpose.msra.mxu0 0
        %1714 = vmatprep.subr.bf16.mxu0 0
        %1715 = vmatpush1.bf16.xpose.msra.mxu0 0
        %1716 = vmatprep.subr.bf16.mxu0 0
        %1717 = vmatpush1.bf16.xpose.msra.mxu0 0
        %1718 = vmatprep.subr.bf16.mxu0 0
        %1719 = vmatpush1.bf16.xpose.msra.mxu0 0
        %1720 = vmatprep.subr.bf16.mxu0 0
        %1721 = vmatpush1.bf16.xpose.msra.mxu0 0
        %1722 = vmatprep.subr.bf16.mxu0 0
        %1723 = vmatpush1.bf16.xpose.msra.mxu0 0
        %1724 = vmatprep.subr.bf16.mxu0 0
        %1725 = vmatpush1.bf16.xpose.msra.mxu0 0
        %1726 = vmatprep.subr.bf16.mxu0 0
        %1727 = vmatpush1.bf16.xpose.msra.mxu0 0
        %1728 = vmatprep.subr.bf16.mxu0 0
        %1729 = vmatpush1.bf16.xpose.msra.mxu0 0
        %1730 = vmatprep.subr.bf16.mxu0 0
        %1731 = vmatpush1.bf16.xpose.msra.mxu0 0
        %1732 = vmatprep.subr.bf16.mxu0 0
        %1733 = vmatpush1.bf16.xpose.msra.mxu0 0
        %1734 = vmatprep.subr.bf16.mxu0 0
        %1735 = vmatpush1.bf16.xpose.msra.mxu0 0
        %1736 = vmatprep.subr.bf16.mxu0 0
        %1737 = vmatpush1.bf16.xpose.msra.mxu0 0
        %1738 = vmatprep.mubr.bf16.mxu0 0
        %1739 = vmatmul.mubr.bf16.gmra.mrb[0].mxu0 %v1701
        %v1740 = vpop.f32.mrb[0].mxu0
        %v1741 = vadd.f32 0.0, %v1740
        %v1742 = vpop.f32.mrb[0].mxu0
        %v1743 = vpop.f32.mrb[0].mxu0
        %v1744 = vadd.f32 0.0, %v1743
        %v1745 = vpop.f32.mrb[0].mxu0
        %1746 = vdwg.mxu0
        %v1747 = vsel %vm1627, %v1741, -inf
        %1748 = vmax.xlane.f32.xlu0 %v1747
        %v1749 = vpop.xlane.xlu0 %1748
        %v1750 = vsel %vm1627, %v1744, -inf
        %1751 = vmax.xlane.f32.xlu0 %v1750
        %v1752 = vpop.xlane.xlu0 %1751
        %v1753 = vsub.f32 %v1741, %v1749
        %v1754 = vsub.f32 %v1744, %v1752
        %v1755 = vmul.f32 %v1753, 1.442695
        %v1756 = vpow.pop %v1755
        %v1757 = vmul.f32 %v1754, 1.442695
        %v1758 = vpow.pop %v1757
        %v1759 = vsel %vm1627, %v1756, 0.0
        %1760 = vadd.xlane.f32.xlu0 %v1759
        %v1761 = vpop.xlane.xlu0 %1760
        %v1762 = vsel %vm1627, %v1758, 0.0
        %1763 = vadd.xlane.f32.xlu0 %v1762
        %v1764 = vpop.xlane.xlu0 %1763
        %v1765 = vrcp.pop %v1761
        %v1766 = vrcp.pop %v1764
        %v1767 = vmul.f32 %v1756, %v1765
        %v1768 = vmul.f32 %v1758, %v1766
        %v1769 = vpack.c.bf16 %v1768, %v1767
        %1771 = vrot.lane.b32.xlu0 %v1575, 96
        %v1772 = vpop.permute.xlu0 %1771
        %v1775 = vsel %vm1627, %v1769, 0
        %1777 = vmatprep.subr.bf16.mxu0 0
        %1778 = vmatpush1.bf16.msra.mxu0 %v1772
        %1779 = vmatprep.subr.bf16.mxu0 0
        %1780 = vmatpush1.bf16.msra.mxu0 0
        %1781 = vmatprep.subr.bf16.mxu0 0
        %1782 = vmatpush1.bf16.msra.mxu0 0
        %1783 = vmatprep.subr.bf16.mxu0 0
        %1784 = vmatpush1.bf16.msra.mxu0 0
        %1785 = vmatprep.subr.bf16.mxu0 0
        %1786 = vmatpush1.bf16.msra.mxu0 0
        %1787 = vmatprep.subr.bf16.mxu0 0
        %1788 = vmatpush1.bf16.msra.mxu0 0
        %1789 = vmatprep.subr.bf16.mxu0 0
        %1790 = vmatpush1.bf16.msra.mxu0 0
        %1791 = vmatprep.subr.bf16.mxu0 0
        %1792 = vmatpush1.bf16.msra.mxu0 0
        %1793 = vmatprep.subr.bf16.mxu0 0
        %1794 = vmatpush1.bf16.msra.mxu0 0
        %1795 = vmatprep.subr.bf16.mxu0 0
        %1796 = vmatpush1.bf16.msra.mxu0 0
        %1797 = vmatprep.subr.bf16.mxu0 0
        %1798 = vmatpush1.bf16.msra.mxu0 0
        %1799 = vmatprep.subr.bf16.mxu0 0
        %1800 = vmatpush1.bf16.msra.mxu0 0
        %1801 = vmatprep.subr.bf16.mxu0 0
        %1802 = vmatpush1.bf16.msra.mxu0 0
        %1803 = vmatprep.subr.bf16.mxu0 0
        %1804 = vmatpush1.bf16.msra.mxu0 0
        %1805 = vmatprep.subr.bf16.mxu0 0
        %1806 = vmatpush1.bf16.msra.mxu0 0
        %1807 = vmatprep.subr.bf16.mxu0 0
        %1808 = vmatpush1.bf16.msra.mxu0 0
        %1809 = vmatprep.mubr.bf16.mxu0 0
        %1810 = vmatmul.mubr.bf16.gmra.mrb[0].mxu0 %v1775
        %v1811 = vpop.f32.mrb[0].mxu0
        %v1812 = vadd.f32 0.0, %v1811
        %v1813 = vpop.f32.mrb[0].mxu0
        %v1814 = vpop.f32.mrb[0].mxu0
        %v1815 = vadd.f32 0.0, %v1814
        %v1816 = vpop.f32.mrb[0].mxu0
        %1817 = vdwg.mxu0
        %1820 = vrot.lane.b32.xlu0 %v1812, 32
        %v1821 = vpop.permute.xlu0 %1820
        %1822 = vrot.lane.b32.xlu0 %v1815, 32
        %v1823 = vpop.permute.xlu0 %1822
        %v1826 = vsel %vm1579, %v1689, %v1821
        %v1827 = vsel %vm1579, %v1692, %v1823
        %v1828 = vld [vmem:[%s23] sm:$0xf]
        %v1829 = vld [vmem:[%s23 + $0x4] sm:$0xf]
        %v1830 = vld [vmem:[%s23 + $0x8] sm:$0xf]
        %v1831 = vld [vmem:[%s23 + $0xc] sm:$0xf]
        %v1832 = vld [vmem:[%s23 + $0x10] sm:$0xf]
        %v1833 = vld [vmem:[%s23 + $0x14] sm:$0xf]
        %v1834 = vld [vmem:[%s23 + $0x18] sm:$0xf]
        %v1835 = vld [vmem:[%s23 + $0x1c] sm:$0xf]
        %v1836 = vpack.c.bf16 %v1827, %v1826
        %v1845 = vunpack.c.l.b16 %v1828
        %v1846 = vunpack.c.l.b16 %v1829
        %v1847 = vunpack.c.l.b16 %v1830
        %v1848 = vunpack.c.l.b16 %v1831
        %v1849 = vunpack.c.l.b16 %v1832
        %v1850 = vunpack.c.l.b16 %v1833
        %v1851 = vunpack.c.l.b16 %v1834
        %v1852 = vunpack.c.l.b16 %v1835
        %v1853 = vpack.c.b16 %v1846, %v1845
        %v1854 = vpack.c.b16 %v1848, %v1847
        %v1855 = vpack.c.b16 %v1850, %v1849
        %v1856 = vpack.c.b16 %v1852, %v1851
        %v1862 = vsel %vm998, %v1836, 0
        %1864 = vmatprep.subr.bf16.mxu0 0
        %1865 = vmatpush1.bf16.msra.mxu0 %v1853
        %1866 = vmatprep.subr.bf16.mxu0 0
        %1867 = vmatpush1.bf16.msra.mxu0 %v1854
        %1868 = vmatprep.subr.bf16.mxu0 0
        %1869 = vmatpush1.bf16.msra.mxu0 %v1855
        %1870 = vmatprep.subr.bf16.mxu0 0
        %1871 = vmatpush1.bf16.msra.mxu0 %v1856
        %1872 = vmatprep.subr.bf16.mxu0 0
        %1873 = vmatpush1.bf16.msra.mxu0 0
        %1874 = vmatprep.subr.bf16.mxu0 0
        %1875 = vmatpush1.bf16.msra.mxu0 0
        %1876 = vmatprep.subr.bf16.mxu0 0
        %1877 = vmatpush1.bf16.msra.mxu0 0
        %1878 = vmatprep.subr.bf16.mxu0 0
        %1879 = vmatpush1.bf16.msra.mxu0 0
        %1880 = vmatprep.subr.bf16.mxu0 0
        %1881 = vmatpush1.bf16.msra.mxu0 0
        %1882 = vmatprep.subr.bf16.mxu0 0
        %1883 = vmatpush1.bf16.msra.mxu0 0
        %1884 = vmatprep.subr.bf16.mxu0 0
        %1885 = vmatpush1.bf16.msra.mxu0 0
        %1886 = vmatprep.subr.bf16.mxu0 0
        %1887 = vmatpush1.bf16.msra.mxu0 0
        %1888 = vmatprep.subr.bf16.mxu0 0
        %1889 = vmatpush1.bf16.msra.mxu0 0
        %1890 = vmatprep.subr.bf16.mxu0 0
        %1891 = vmatpush1.bf16.msra.mxu0 0
        %1892 = vmatprep.subr.bf16.mxu0 0
        %1893 = vmatpush1.bf16.msra.mxu0 0
        %1894 = vmatprep.subr.bf16.mxu0 0
        %1895 = vmatpush1.bf16.msra.mxu0 0
        %1896 = vmatprep.mubr.bf16.mxu0 0
        %1897 = vmatmul.mubr.bf16.gmra.mrb[0].mxu0 %v1862
        %v1898 = vpop.f32.mrb[0].mxu0
        %v1899 = vadd.f32 0.0, %v1898
        %v1900 = vpop.f32.mrb[0].mxu0
        %v1901 = vpop.f32.mrb[0].mxu0
        %v1902 = vadd.f32 0.0, %v1901
        %v1903 = vpop.f32.mrb[0].mxu0
        %1904 = vdwg.mxu0
        %v1905 = vadd.f32 %v1425, %v1899
        %v1906 = vadd.f32 %v1428, %v1902
        %v1907 = vld [vmem:[%s25] sm:$0x1]
        %v1909 = vlaneseq
        %v1910 = vshrl.u32 %v1909, 7
        %v1911 = vsub.s32 0, %v1910
        %v1912 = vrot.slane %v1907, %v1911
        %v1914 = vadd.f32 %v1905, %v1912
        %v1915 = vadd.f32 %v1906, %v1912
        %v1916 = vld [vmem:[%s27] sm:$0x1]
        %v1917 = vld [vmem:[%s29] sm:$0x1]
        %v1918 = vsel %vm998, %v1914, 0.0
        %1919 = vadd.xlane.f32.xlu0 %v1918
        %v1920 = vpop.xlane.xlu0 %1919
        %v1921 = vsel %vm998, %v1915, 0.0
        %1922 = vadd.xlane.f32.xlu0 %v1921
        %v1923 = vpop.xlane.xlu0 %1922
        %v1924 = vmul.f32 %v1920, %v1439
        %v1925 = vmul.f32 %v1923, %v1439
        %v1926 = vsub.f32 %v1914, %v1924
        %v1927 = vsub.f32 %v1915, %v1925
        %v1928 = vmul.f32 %v1926, %v1926
        %v1929 = vmul.f32 %v1927, %v1927
        %v1930 = vsel %vm998, %v1928, 0.0
        %1931 = vadd.xlane.f32.xlu0 %v1930
        %v1932 = vpop.xlane.xlu0 %1931
        %v1933 = vsel %vm998, %v1929, 0.0
        %1934 = vadd.xlane.f32.xlu0 %v1933
        %v1935 = vpop.xlane.xlu0 %1934
        %v1936 = vmul.f32 %v1932, %v1439
        %v1937 = vmul.f32 %v1935, %v1439
        %v1938 = vadd.f32 %v1936, 1e-05
        %v1939 = vadd.f32 %v1937, 1e-05
        %v1940 = vrsqrt.pop %v1938
        %v1941 = vrsqrt.pop %v1939
        %v1942 = vmul.f32 %v1926, %v1940
        %v1943 = vmul.f32 %v1927, %v1941
        %v1945 = vlaneseq
        %v1946 = vshrl.u32 %v1945, 7
        %v1947 = vsub.s32 0, %v1946
        %v1948 = vrot.slane %v1916, %v1947
        %v1950 = vmul.f32 %v1942, %v1948
        %v1951 = vmul.f32 %v1943, %v1948
        %v1953 = vlaneseq
        %v1954 = vshrl.u32 %v1953, 7
        %v1955 = vsub.s32 0, %v1954
        %v1956 = vrot.slane %v1917, %v1955
        %v1958 = vadd.f32 %v1950, %v1956
        %v1959 = vadd.f32 %v1951, %v1956
        %v1960 = vld [vmem:[%s31] sm:$0xf]
        %v1961 = vld [vmem:[%s31 + $0x4] sm:$0xf]
        %v1962 = vld [vmem:[%s31 + $0x8] sm:$0xf]
        %v1963 = vld [vmem:[%s31 + $0xc] sm:$0xf]
        %v1964 = vld [vmem:[%s31 + $0x10] sm:$0xf]
        %v1965 = vld [vmem:[%s31 + $0x14] sm:$0xf]
        %v1966 = vld [vmem:[%s31 + $0x18] sm:$0xf]
        %v1967 = vld [vmem:[%s31 + $0x1c] sm:$0xf]
        %v1968 = vpack.c.bf16 %v1959, %v1958
        %v1977 = vunpack.c.l.b16 %v1960
        %v1978 = vunpack.c.l.b16 %v1961
        %v1979 = vunpack.c.l.b16 %v1962
        %v1980 = vunpack.c.l.b16 %v1963
        %v1981 = vunpack.c.l.b16 %v1964
        %v1982 = vunpack.c.l.b16 %v1965
        %v1983 = vunpack.c.l.b16 %v1966
        %v1984 = vunpack.c.l.b16 %v1967
        %v1985 = vpack.c.b16 %v1978, %v1977
        %v1986 = vpack.c.b16 %v1980, %v1979
        %v1987 = vpack.c.b16 %v1982, %v1981
        %v1988 = vpack.c.b16 %v1984, %v1983
        %v1994 = vsel %vm998, %v1968, 0
        %1996 = vmatprep.subr.bf16.mxu0 0
        %1997 = vmatpush1.bf16.msra.mxu0 %v1985
        %1998 = vmatprep.subr.bf16.mxu0 0
        %1999 = vmatpush1.bf16.msra.mxu0 %v1986
        %2000 = vmatprep.subr.bf16.mxu0 0
        %2001 = vmatpush1.bf16.msra.mxu0 %v1987
        %2002 = vmatprep.subr.bf16.mxu0 0
        %2003 = vmatpush1.bf16.msra.mxu0 %v1988
        %2004 = vmatprep.subr.bf16.mxu0 0
        %2005 = vmatpush1.bf16.msra.mxu0 0
        %2006 = vmatprep.subr.bf16.mxu0 0
        %2007 = vmatpush1.bf16.msra.mxu0 0
        %2008 = vmatprep.subr.bf16.mxu0 0
        %2009 = vmatpush1.bf16.msra.mxu0 0
        %2010 = vmatprep.subr.bf16.mxu0 0
        %2011 = vmatpush1.bf16.msra.mxu0 0
        %2012 = vmatprep.subr.bf16.mxu0 0
        %2013 = vmatpush1.bf16.msra.mxu0 0
        %2014 = vmatprep.subr.bf16.mxu0 0
        %2015 = vmatpush1.bf16.msra.mxu0 0
        %2016 = vmatprep.subr.bf16.mxu0 0
        %2017 = vmatpush1.bf16.msra.mxu0 0
        %2018 = vmatprep.subr.bf16.mxu0 0
        %2019 = vmatpush1.bf16.msra.mxu0 0
        %2020 = vmatprep.subr.bf16.mxu0 0
        %2021 = vmatpush1.bf16.msra.mxu0 0
        %2022 = vmatprep.subr.bf16.mxu0 0
        %2023 = vmatpush1.bf16.msra.mxu0 0
        %2024 = vmatprep.subr.bf16.mxu0 0
        %2025 = vmatpush1.bf16.msra.mxu0 0
        %2026 = vmatprep.subr.bf16.mxu0 0
        %2027 = vmatpush1.bf16.msra.mxu0 0
        %2028 = vmatprep.mubr.bf16.mxu0 0
        %2029 = vmatmul.mubr.bf16.gmra.mrb[0].mxu0 %v1994
        %v2030 = vpop.f32.mrb[0].mxu0
        %v2031 = vadd.f32 0.0, %v2030
        %v2032 = vpop.f32.mrb[0].mxu0
        %v2033 = vpop.f32.mrb[0].mxu0
        %v2034 = vadd.f32 0.0, %v2033
        %v2035 = vpop.f32.mrb[0].mxu0
        %2036 = vdwg.mxu0
        %v2037 = vld [vmem:[%s33] sm:$0xf]
        %v2038 = vld [vmem:[%s33 + $0x4] sm:$0xf]
        %v2039 = vld [vmem:[%s33 + $0x8] sm:$0xf]
        %v2040 = vld [vmem:[%s33 + $0xc] sm:$0xf]
        %v2041 = vld [vmem:[%s33 + $0x10] sm:$0xf]
        %v2042 = vld [vmem:[%s33 + $0x14] sm:$0xf]
        %v2043 = vpack.c.bf16 %v986, %v986
        %v2050 = vunpack.c.l.b16 %v2037
        %v2051 = vunpack.c.l.b16 %v2038
        %v2052 = vunpack.c.l.b16 %v2039
        %v2053 = vunpack.c.l.b16 %v2040
        %v2054 = vunpack.c.l.b16 %v2041
        %v2055 = vunpack.c.l.b16 %v2042
        %v2056 = vpack.c.b16 %v2051, %v2050
        %v2057 = vpack.c.b16 %v2053, %v2052
        %v2058 = vpack.c.b16 %v2055, %v2054
        %vm2062 = vcmask 392192
        %v2064 = vsel %vm2062, %v2043, 0
        %2066 = vmatprep.subr.bf16.mxu0 0
        %2067 = vmatpush1.bf16.msra.mxu0 %v2056
        %2068 = vmatprep.subr.bf16.mxu0 0
        %2069 = vmatpush1.bf16.msra.mxu0 %v2057
        %2070 = vmatprep.subr.bf16.mxu0 0
        %2071 = vmatpush1.bf16.msra.mxu0 %v2058
        %2072 = vmatprep.subr.bf16.mxu0 0
        %2073 = vmatpush1.bf16.msra.mxu0 0
        %2074 = vmatprep.subr.bf16.mxu0 0
        %2075 = vmatpush1.bf16.msra.mxu0 0
        %2076 = vmatprep.subr.bf16.mxu0 0
        %2077 = vmatpush1.bf16.msra.mxu0 0
        %2078 = vmatprep.subr.bf16.mxu0 0
        %2079 = vmatpush1.bf16.msra.mxu0 0
        %2080 = vmatprep.subr.bf16.mxu0 0
        %2081 = vmatpush1.bf16.msra.mxu0 0
        %2082 = vmatprep.subr.bf16.mxu0 0
        %2083 = vmatpush1.bf16.msra.mxu0 0
        %2084 = vmatprep.subr.bf16.mxu0 0
        %2085 = vmatpush1.bf16.msra.mxu0 0
        %2086 = vmatprep.subr.bf16.mxu0 0
        %2087 = vmatpush1.bf16.msra.mxu0 0
        %2088 = vmatprep.subr.bf16.mxu0 0
        %2089 = vmatpush1.bf16.msra.mxu0 0
        %2090 = vmatprep.subr.bf16.mxu0 0
        %2091 = vmatpush1.bf16.msra.mxu0 0
        %2092 = vmatprep.subr.bf16.mxu0 0
        %2093 = vmatpush1.bf16.msra.mxu0 0
        %2094 = vmatprep.subr.bf16.mxu0 0
        %2095 = vmatpush1.bf16.msra.mxu0 0
        %2096 = vmatprep.subr.bf16.mxu0 0
        %2097 = vmatpush1.bf16.msra.mxu0 0
        %2098 = vmatprep.mubr.bf16.mxu0 0
        %2099 = vmatmul.mubr.bf16.gmra.mrb[0].mxu0 %v2064
        %v2100 = vpop.f32.mrb[0].mxu0
        %v2101 = vadd.f32 0.0, %v2100
        %v2102 = vpop.f32.mrb[0].mxu0
        %v2103 = vpop.f32.mrb[0].mxu0
        %v2104 = vpop.f32.mrb[0].mxu0
        %2105 = vdwg.mxu0
        %v2106 = vmul.f32 %v2031, 0.17677669
        %v2107 = vmul.f32 %v2034, 0.17677669
        %v2108 = vpack.c.bf16 %v2107, %v2106
        %v2109 = vpack.c.bf16 %v2101, %v2101
        %v2111 = vsel %vm1579, %v2108, 0
        %v2114 = vsel %vm1579, %v2109, 0
        %2116 = vmatprep.subr.bf16.mxu0 0
        %2117 = vmatpush1.bf16.xpose.msra.mxu0 %v2114
        %2118 = vmatprep.subr.bf16.mxu0 0
        %2119 = vmatpush1.bf16.xpose.msra.mxu0 0
        %2120 = vmatprep.subr.bf16.mxu0 0
        %2121 = vmatpush1.bf16.xpose.msra.mxu0 0
        %2122 = vmatprep.subr.bf16.mxu0 0
        %2123 = vmatpush1.bf16.xpose.msra.mxu0 0
        %2124 = vmatprep.subr.bf16.mxu0 0
        %2125 = vmatpush1.bf16.xpose.msra.mxu0 0
        %2126 = vmatprep.subr.bf16.mxu0 0
        %2127 = vmatpush1.bf16.xpose.msra.mxu0 0
        %2128 = vmatprep.subr.bf16.mxu0 0
        %2129 = vmatpush1.bf16.xpose.msra.mxu0 0
        %2130 = vmatprep.subr.bf16.mxu0 0
        %2131 = vmatpush1.bf16.xpose.msra.mxu0 0
        %2132 = vmatprep.subr.bf16.mxu0 0
        %2133 = vmatpush1.bf16.xpose.msra.mxu0 0
        %2134 = vmatprep.subr.bf16.mxu0 0
        %2135 = vmatpush1.bf16.xpose.msra.mxu0 0
        %2136 = vmatprep.subr.bf16.mxu0 0
        %2137 = vmatpush1.bf16.xpose.msra.mxu0 0
        %2138 = vmatprep.subr.bf16.mxu0 0
        %2139 = vmatpush1.bf16.xpose.msra.mxu0 0
        %2140 = vmatprep.subr.bf16.mxu0 0
        %2141 = vmatpush1.bf16.xpose.msra.mxu0 0
        %2142 = vmatprep.subr.bf16.mxu0 0
        %2143 = vmatpush1.bf16.xpose.msra.mxu0 0
        %2144 = vmatprep.subr.bf16.mxu0 0
        %2145 = vmatpush1.bf16.xpose.msra.mxu0 0
        %2146 = vmatprep.subr.bf16.mxu0 0
        %2147 = vmatpush1.bf16.xpose.msra.mxu0 0
        %2148 = vmatprep.mubr.bf16.mxu0 0
        %2149 = vmatmul.mubr.bf16.gmra.mrb[0].mxu0 %v2111
        %v2150 = vpop.f32.mrb[0].mxu0
        %v2151 = vadd.f32 0.0, %v2150
        %v2152 = vpop.f32.mrb[0].mxu0
        %v2153 = vpop.f32.mrb[0].mxu0
        %v2154 = vadd.f32 0.0, %v2153
        %v2155 = vpop.f32.mrb[0].mxu0
        %2156 = vdwg.mxu0
        %v2157 = vsel %vm1172, %v2151, -inf
        %2158 = vmax.xlane.f32.xlu0 %v2157
        %v2159 = vpop.xlane.xlu0 %2158
        %v2160 = vsel %vm1172, %v2154, -inf
        %2161 = vmax.xlane.f32.xlu0 %v2160
        %v2162 = vpop.xlane.xlu0 %2161
        %v2163 = vsub.f32 %v2151, %v2159
        %v2164 = vsub.f32 %v2154, %v2162
        %v2165 = vmul.f32 %v2163, 1.442695
        %v2166 = vpow.pop %v2165
        %v2167 = vmul.f32 %v2164, 1.442695
        %v2168 = vpow.pop %v2167
        %v2169 = vsel %vm1172, %v2166, 0.0
        %2170 = vadd.xlane.f32.xlu0 %v2169
        %v2171 = vpop.xlane.xlu0 %2170
        %v2172 = vsel %vm1172, %v2168, 0.0
        %2173 = vadd.xlane.f32.xlu0 %v2172
        %v2174 = vpop.xlane.xlu0 %2173
        %v2175 = vrcp.pop %v2171
        %v2176 = vrcp.pop %v2174
        %v2177 = vmul.f32 %v2166, %v2175
        %v2178 = vmul.f32 %v2168, %v2176
        %v2179 = vpack.c.bf16 %v2178, %v2177
        %2181 = vrot.lane.b32.xlu0 %v2109, 64
        %v2182 = vpop.permute.xlu0 %2181
        %v2184 = vsel %vm1172, %v2179, 0
        %vm2186 = vcmask 1043456
        %v2188 = vsel %vm2186, %v2182, 0
        %2190 = vmatprep.subr.bf16.mxu0 0
        %2191 = vmatpush1.bf16.msra.mxu0 %v2188
        %2192 = vmatprep.subr.bf16.mxu0 0
        %2193 = vmatpush1.bf16.msra.mxu0 0
        %2194 = vmatprep.subr.bf16.mxu0 0
        %2195 = vmatpush1.bf16.msra.mxu0 0
        %2196 = vmatprep.subr.bf16.mxu0 0
        %2197 = vmatpush1.bf16.msra.mxu0 0
        %2198 = vmatprep.subr.bf16.mxu0 0
        %2199 = vmatpush1.bf16.msra.mxu0 0
        %2200 = vmatprep.subr.bf16.mxu0 0
        %2201 = vmatpush1.bf16.msra.mxu0 0
        %2202 = vmatprep.subr.bf16.mxu0 0
        %2203 = vmatpush1.bf16.msra.mxu0 0
        %2204 = vmatprep.subr.bf16.mxu0 0
        %2205 = vmatpush1.bf16.msra.mxu0 0
        %2206 = vmatprep.subr.bf16.mxu0 0
        %2207 = vmatpush1.bf16.msra.mxu0 0
        %2208 = vmatprep.subr.bf16.mxu0 0
        %2209 = vmatpush1.bf16.msra.mxu0 0
        %2210 = vmatprep.subr.bf16.mxu0 0
        %2211 = vmatpush1.bf16.msra.mxu0 0
        %2212 = vmatprep.subr.bf16.mxu0 0
        %2213 = vmatpush1.bf16.msra.mxu0 0
        %2214 = vmatprep.subr.bf16.mxu0 0
        %2215 = vmatpush1.bf16.msra.mxu0 0
        %2216 = vmatprep.subr.bf16.mxu0 0
        %2217 = vmatpush1.bf16.msra.mxu0 0
        %2218 = vmatprep.subr.bf16.mxu0 0
        %2219 = vmatpush1.bf16.msra.mxu0 0
        %2220 = vmatprep.subr.bf16.mxu0 0
        %2221 = vmatpush1.bf16.msra.mxu0 0
        %2222 = vmatprep.mubr.bf16.mxu0 0
        %2223 = vmatmul.mubr.bf16.gmra.mrb[0].mxu0 %v2184
        %v2224 = vpop.f32.mrb[0].mxu0
        %v2225 = vadd.f32 0.0, %v2224
        %v2226 = vpop.f32.mrb[0].mxu0
        %v2227 = vpop.f32.mrb[0].mxu0
        %v2228 = vadd.f32 0.0, %v2227
        %v2229 = vpop.f32.mrb[0].mxu0
        %2230 = vdwg.mxu0
        %2232 = vrot.lane.b32.xlu0 %v2108, 96
        %v2233 = vpop.permute.xlu0 %2232
        %2234 = vrot.lane.b32.xlu0 %v2109, 96
        %v2235 = vpop.permute.xlu0 %2234
        %v2237 = vsel %vm1579, %v2233, 0
        %v2240 = vsel %vm1579, %v2235, 0
        %2242 = vmatprep.subr.bf16.mxu0 0
        %2243 = vmatpush1.bf16.xpose.msra.mxu0 %v2240
        %2244 = vmatprep.subr.bf16.mxu0 0
        %2245 = vmatpush1.bf16.xpose.msra.mxu0 0
        %2246 = vmatprep.subr.bf16.mxu0 0
        %2247 = vmatpush1.bf16.xpose.msra.mxu0 0
        %2248 = vmatprep.subr.bf16.mxu0 0
        %2249 = vmatpush1.bf16.xpose.msra.mxu0 0
        %2250 = vmatprep.subr.bf16.mxu0 0
        %2251 = vmatpush1.bf16.xpose.msra.mxu0 0
        %2252 = vmatprep.subr.bf16.mxu0 0
        %2253 = vmatpush1.bf16.xpose.msra.mxu0 0
        %2254 = vmatprep.subr.bf16.mxu0 0
        %2255 = vmatpush1.bf16.xpose.msra.mxu0 0
        %2256 = vmatprep.subr.bf16.mxu0 0
        %2257 = vmatpush1.bf16.xpose.msra.mxu0 0
        %2258 = vmatprep.subr.bf16.mxu0 0
        %2259 = vmatpush1.bf16.xpose.msra.mxu0 0
        %2260 = vmatprep.subr.bf16.mxu0 0
        %2261 = vmatpush1.bf16.xpose.msra.mxu0 0
        %2262 = vmatprep.subr.bf16.mxu0 0
        %2263 = vmatpush1.bf16.xpose.msra.mxu0 0
        %2264 = vmatprep.subr.bf16.mxu0 0
        %2265 = vmatpush1.bf16.xpose.msra.mxu0 0
        %2266 = vmatprep.subr.bf16.mxu0 0
        %2267 = vmatpush1.bf16.xpose.msra.mxu0 0
        %2268 = vmatprep.subr.bf16.mxu0 0
        %2269 = vmatpush1.bf16.xpose.msra.mxu0 0
        %2270 = vmatprep.subr.bf16.mxu0 0
        %2271 = vmatpush1.bf16.xpose.msra.mxu0 0
        %2272 = vmatprep.subr.bf16.mxu0 0
        %2273 = vmatpush1.bf16.xpose.msra.mxu0 0
        %2274 = vmatprep.mubr.bf16.mxu0 0
        %2275 = vmatmul.mubr.bf16.gmra.mrb[0].mxu0 %v2237
        %v2276 = vpop.f32.mrb[0].mxu0
        %v2277 = vadd.f32 0.0, %v2276
        %v2278 = vpop.f32.mrb[0].mxu0
        %v2279 = vpop.f32.mrb[0].mxu0
        %v2280 = vadd.f32 0.0, %v2279
        %v2281 = vpop.f32.mrb[0].mxu0
        %2282 = vdwg.mxu0
        %v2283 = vsel %vm1172, %v2277, -inf
        %2284 = vmax.xlane.f32.xlu0 %v2283
        %v2285 = vpop.xlane.xlu0 %2284
        %v2286 = vsel %vm1172, %v2280, -inf
        %2287 = vmax.xlane.f32.xlu0 %v2286
        %v2288 = vpop.xlane.xlu0 %2287
        %v2289 = vsub.f32 %v2277, %v2285
        %v2290 = vsub.f32 %v2280, %v2288
        %v2291 = vmul.f32 %v2289, 1.442695
        %v2292 = vpow.pop %v2291
        %v2293 = vmul.f32 %v2290, 1.442695
        %v2294 = vpow.pop %v2293
        %v2295 = vsel %vm1172, %v2292, 0.0
        %2296 = vadd.xlane.f32.xlu0 %v2295
        %v2297 = vpop.xlane.xlu0 %2296
        %v2298 = vsel %vm1172, %v2294, 0.0
        %2299 = vadd.xlane.f32.xlu0 %v2298
        %v2300 = vpop.xlane.xlu0 %2299
        %v2301 = vrcp.pop %v2297
        %v2302 = vrcp.pop %v2300
        %v2303 = vmul.f32 %v2292, %v2301
        %v2304 = vmul.f32 %v2294, %v2302
        %v2305 = vpack.c.bf16 %v2304, %v2303
        %2306 = vrot.lane.b32.xlu0 %v2109, 32
        %v2307 = vpop.permute.xlu0 %2306
        %v2309 = vsel %vm1172, %v2305, 0
        %v2312 = vsel %vm2186, %v2307, 0
        %2314 = vmatprep.subr.bf16.mxu0 0
        %2315 = vmatpush1.bf16.msra.mxu0 %v2312
        %2316 = vmatprep.subr.bf16.mxu0 0
        %2317 = vmatpush1.bf16.msra.mxu0 0
        %2318 = vmatprep.subr.bf16.mxu0 0
        %2319 = vmatpush1.bf16.msra.mxu0 0
        %2320 = vmatprep.subr.bf16.mxu0 0
        %2321 = vmatpush1.bf16.msra.mxu0 0
        %2322 = vmatprep.subr.bf16.mxu0 0
        %2323 = vmatpush1.bf16.msra.mxu0 0
        %2324 = vmatprep.subr.bf16.mxu0 0
        %2325 = vmatpush1.bf16.msra.mxu0 0
        %2326 = vmatprep.subr.bf16.mxu0 0
        %2327 = vmatpush1.bf16.msra.mxu0 0
        %2328 = vmatprep.subr.bf16.mxu0 0
        %2329 = vmatpush1.bf16.msra.mxu0 0
        %2330 = vmatprep.subr.bf16.mxu0 0
        %2331 = vmatpush1.bf16.msra.mxu0 0
        %2332 = vmatprep.subr.bf16.mxu0 0
        %2333 = vmatpush1.bf16.msra.mxu0 0
        %2334 = vmatprep.subr.bf16.mxu0 0
        %2335 = vmatpush1.bf16.msra.mxu0 0
        %2336 = vmatprep.subr.bf16.mxu0 0
        %2337 = vmatpush1.bf16.msra.mxu0 0
        %2338 = vmatprep.subr.bf16.mxu0 0
        %2339 = vmatpush1.bf16.msra.mxu0 0
        %2340 = vmatprep.subr.bf16.mxu0 0
        %2341 = vmatpush1.bf16.msra.mxu0 0
        %2342 = vmatprep.subr.bf16.mxu0 0
        %2343 = vmatpush1.bf16.msra.mxu0 0
        %2344 = vmatprep.subr.bf16.mxu0 0
        %2345 = vmatpush1.bf16.msra.mxu0 0
        %2346 = vmatprep.mubr.bf16.mxu0 0
        %2347 = vmatmul.mubr.bf16.gmra.mrb[0].mxu0 %v2309
        %v2348 = vpop.f32.mrb[0].mxu0
        %v2349 = vadd.f32 0.0, %v2348
        %v2350 = vpop.f32.mrb[0].mxu0
        %v2351 = vpop.f32.mrb[0].mxu0
        %v2352 = vadd.f32 0.0, %v2351
        %v2353 = vpop.f32.mrb[0].mxu0
        %2354 = vdwg.mxu0
        %2357 = vrot.lane.b32.xlu0 %v2349, 32
        %v2358 = vpop.permute.xlu0 %2357
        %2359 = vrot.lane.b32.xlu0 %v2352, 32
        %v2360 = vpop.permute.xlu0 %2359
        %v2363 = vsel %vm1579, %v2225, %v2358
        %v2364 = vsel %vm1579, %v2228, %v2360
        %v2365 = vld [vmem:[%s35] sm:$0xf]
        %v2366 = vld [vmem:[%s35 + $0x4] sm:$0xf]
        %v2367 = vld [vmem:[%s35 + $0x8] sm:$0xf]
        %v2368 = vld [vmem:[%s35 + $0xc] sm:$0xf]
        %v2369 = vld [vmem:[%s35 + $0x10] sm:$0xf]
        %v2370 = vld [vmem:[%s35 + $0x14] sm:$0xf]
        %v2371 = vld [vmem:[%s35 + $0x18] sm:$0xf]
        %v2372 = vld [vmem:[%s35 + $0x1c] sm:$0xf]
        %v2373 = vpack.c.bf16 %v2364, %v2363
        %v2382 = vunpack.c.l.b16 %v2365
        %v2383 = vunpack.c.l.b16 %v2366
        %v2384 = vunpack.c.l.b16 %v2367
        %v2385 = vunpack.c.l.b16 %v2368
        %v2386 = vunpack.c.l.b16 %v2369
        %v2387 = vunpack.c.l.b16 %v2370
        %v2388 = vunpack.c.l.b16 %v2371
        %v2389 = vunpack.c.l.b16 %v2372
        %v2390 = vpack.c.b16 %v2383, %v2382
        %v2391 = vpack.c.b16 %v2385, %v2384
        %v2392 = vpack.c.b16 %v2387, %v2386
        %v2393 = vpack.c.b16 %v2389, %v2388
        %v2399 = vsel %vm998, %v2373, 0
        %2401 = vmatprep.subr.bf16.mxu0 0
        %2402 = vmatpush1.bf16.msra.mxu0 %v2390
        %2403 = vmatprep.subr.bf16.mxu0 0
        %2404 = vmatpush1.bf16.msra.mxu0 %v2391
        %2405 = vmatprep.subr.bf16.mxu0 0
        %2406 = vmatpush1.bf16.msra.mxu0 %v2392
        %2407 = vmatprep.subr.bf16.mxu0 0
        %2408 = vmatpush1.bf16.msra.mxu0 %v2393
        %2409 = vmatprep.subr.bf16.mxu0 0
        %2410 = vmatpush1.bf16.msra.mxu0 0
        %2411 = vmatprep.subr.bf16.mxu0 0
        %2412 = vmatpush1.bf16.msra.mxu0 0
        %2413 = vmatprep.subr.bf16.mxu0 0
        %2414 = vmatpush1.bf16.msra.mxu0 0
        %2415 = vmatprep.subr.bf16.mxu0 0
        %2416 = vmatpush1.bf16.msra.mxu0 0
        %2417 = vmatprep.subr.bf16.mxu0 0
        %2418 = vmatpush1.bf16.msra.mxu0 0
        %2419 = vmatprep.subr.bf16.mxu0 0
        %2420 = vmatpush1.bf16.msra.mxu0 0
        %2421 = vmatprep.subr.bf16.mxu0 0
        %2422 = vmatpush1.bf16.msra.mxu0 0
        %2423 = vmatprep.subr.bf16.mxu0 0
        %2424 = vmatpush1.bf16.msra.mxu0 0
        %2425 = vmatprep.subr.bf16.mxu0 0
        %2426 = vmatpush1.bf16.msra.mxu0 0
        %2427 = vmatprep.subr.bf16.mxu0 0
        %2428 = vmatpush1.bf16.msra.mxu0 0
        %2429 = vmatprep.subr.bf16.mxu0 0
        %2430 = vmatpush1.bf16.msra.mxu0 0
        %2431 = vmatprep.subr.bf16.mxu0 0
        %2432 = vmatpush1.bf16.msra.mxu0 0
        %2433 = vmatprep.mubr.bf16.mxu0 0
        %2434 = vmatmul.mubr.bf16.gmra.mrb[0].mxu0 %v2399
        %v2435 = vpop.f32.mrb[0].mxu0
        %v2436 = vadd.f32 0.0, %v2435
        %v2437 = vpop.f32.mrb[0].mxu0
        %v2438 = vpop.f32.mrb[0].mxu0
        %v2439 = vadd.f32 0.0, %v2438
        %v2440 = vpop.f32.mrb[0].mxu0
        %2441 = vdwg.mxu0
        %v2442 = vadd.f32 %v1914, %v2436
        %v2443 = vadd.f32 %v1915, %v2439
        %v2444 = vld [vmem:[#allocation2] sm:$0x1]
        %v2446 = vlaneseq
        %v2447 = vshrl.u32 %v2446, 7
        %v2448 = vsub.s32 0, %v2447
        %v2449 = vrot.slane %v2444, %v2448
        %v2451 = vadd.f32 %v2442, %v2449
        %v2452 = vadd.f32 %v2443, %v2449
        %v2453 = vld [vmem:[#allocation4] sm:$0x1]
        %v2454 = vld [vmem:[#allocation6] sm:$0x1]
        %v2455 = vsel %vm998, %v2451, 0.0
        %2456 = vadd.xlane.f32.xlu0 %v2455
        %v2457 = vpop.xlane.xlu0 %2456
        %v2458 = vsel %vm998, %v2452, 0.0
        %2459 = vadd.xlane.f32.xlu0 %v2458
        %v2460 = vpop.xlane.xlu0 %2459
        %v2461 = vmul.f32 %v2457, %v1439
        %v2462 = vmul.f32 %v2460, %v1439
        %v2463 = vsub.f32 %v2451, %v2461
        %v2464 = vsub.f32 %v2452, %v2462
        %v2465 = vmul.f32 %v2463, %v2463
        %v2466 = vmul.f32 %v2464, %v2464
        %v2467 = vsel %vm998, %v2465, 0.0
        %2468 = vadd.xlane.f32.xlu0 %v2467
        %v2469 = vpop.xlane.xlu0 %2468
        %v2470 = vsel %vm998, %v2466, 0.0
        %2471 = vadd.xlane.f32.xlu0 %v2470
        %v2472 = vpop.xlane.xlu0 %2471
        %v2473 = vmul.f32 %v2469, %v1439
        %v2474 = vmul.f32 %v2472, %v1439
        %v2475 = vadd.f32 %v2473, 1e-05
        %v2476 = vadd.f32 %v2474, 1e-05
        %v2477 = vrsqrt.pop %v2475
        %v2478 = vrsqrt.pop %v2476
        %v2479 = vmul.f32 %v2463, %v2477
        %v2480 = vmul.f32 %v2464, %v2478
        %v2482 = vlaneseq
        %v2483 = vshrl.u32 %v2482, 7
        %v2484 = vsub.s32 0, %v2483
        %v2485 = vrot.slane %v2453, %v2484
        %v2487 = vmul.f32 %v2479, %v2485
        %v2488 = vmul.f32 %v2480, %v2485
        %v2490 = vlaneseq
        %v2491 = vshrl.u32 %v2490, 7
        %v2492 = vsub.s32 0, %v2491
        %v2493 = vrot.slane %v2454, %v2492
        %v2495 = vadd.f32 %v2487, %v2493
        %v2496 = vadd.f32 %v2488, %v2493
        %v2497 = vpack.c.bf16 %v2496, %v2495
        %v2498 = vld [vmem:[%s43] sm:$0xff]
        %v2499 = vld [vmem:[%s43 + $0x8] sm:$0xff]
        %v2500 = vld [vmem:[%s43 + $0x10] sm:$0xff]
        %v2501 = vld [vmem:[%s43 + $0x18] sm:$0xff]
        %v2502 = vld [vmem:[%s43 + $0x20] sm:$0xff]
        %v2503 = vld [vmem:[%s43 + $0x28] sm:$0xff]
        %v2504 = vld [vmem:[%s43 + $0x30] sm:$0xff]
        %v2505 = vld [vmem:[%s43 + $0x38] sm:$0xff]
        %v2506 = vld [vmem:[%s45] sm:$0x3]
        %v2508 = vlaneseq
        %v2509 = vshrl.u32 %v2508, 7
        %v2510 = vsub.s32 0, %v2509
        %v2511 = vrot.slane %v2506, %v2510
        %v2512 = vlaneseq
        %v2513 = vshrl.u32 %v2512, 7
        %v2514 = vsub.s32 1, %v2513
        %v2515 = vrot.slane %v2506, %v2514
        %v2526 = vunpack.c.l.b16 %v2498
        %v2527 = vunpack.c.h.b16 %v2498
        %v2528 = vunpack.c.l.b16 %v2499
        %v2529 = vunpack.c.h.b16 %v2499
        %v2530 = vunpack.c.l.b16 %v2500
        %v2531 = vunpack.c.h.b16 %v2500
        %v2532 = vunpack.c.l.b16 %v2501
        %v2533 = vunpack.c.h.b16 %v2501
        %v2534 = vunpack.c.l.b16 %v2502
        %v2535 = vunpack.c.h.b16 %v2502
        %v2536 = vunpack.c.l.b16 %v2503
        %v2537 = vunpack.c.h.b16 %v2503
        %v2538 = vunpack.c.l.b16 %v2504
        %v2539 = vunpack.c.h.b16 %v2504
        %v2540 = vunpack.c.l.b16 %v2505
        %v2541 = vunpack.c.h.b16 %v2505
        %v2542 = vpack.c.b16 %v2528, %v2526
        %v2543 = vpack.c.b16 %v2529, %v2527
        %v2544 = vpack.c.b16 %v2532, %v2530
        %v2545 = vpack.c.b16 %v2533, %v2531
        %v2546 = vpack.c.b16 %v2536, %v2534
        %v2547 = vpack.c.b16 %v2537, %v2535
        %v2548 = vpack.c.b16 %v2540, %v2538
        %v2549 = vpack.c.b16 %v2541, %v2539
        %v2559 = vsel %vm998, %v2497, 0
        %2561 = vmatprep.subr.bf16.mxu0 %v2543
        %2562 = vmatpush1.bf16.msra.mxu0 %v2542
        %2563 = vmatprep.subr.bf16.mxu0 %v2545
        %2564 = vmatpush1.bf16.msra.mxu0 %v2544
        %2565 = vmatprep.subr.bf16.mxu0 %v2547
        %2566 = vmatpush1.bf16.msra.mxu0 %v2546
        %2567 = vmatprep.subr.bf16.mxu0 %v2549
        %2568 = vmatpush1.bf16.msra.mxu0 %v2548
        %2569 = vmatprep.subr.bf16.mxu0 0
        %2570 = vmatpush1.bf16.msra.mxu0 0
        %2571 = vmatprep.subr.bf16.mxu0 0
        %2572 = vmatpush1.bf16.msra.mxu0 0
        %2573 = vmatprep.subr.bf16.mxu0 0
        %2574 = vmatpush1.bf16.msra.mxu0 0
        %2575 = vmatprep.subr.bf16.mxu0 0
        %2576 = vmatpush1.bf16.msra.mxu0 0
        %2577 = vmatprep.subr.bf16.mxu0 0
        %2578 = vmatpush1.bf16.msra.mxu0 0
        %2579 = vmatprep.subr.bf16.mxu0 0
        %2580 = vmatpush1.bf16.msra.mxu0 0
        %2581 = vmatprep.subr.bf16.mxu0 0
        %2582 = vmatpush1.bf16.msra.mxu0 0
        %2583 = vmatprep.subr.bf16.mxu0 0
        %2584 = vmatpush1.bf16.msra.mxu0 0
        %2585 = vmatprep.subr.bf16.mxu0 0
        %2586 = vmatpush1.bf16.msra.mxu0 0
        %2587 = vmatprep.subr.bf16.mxu0 0
        %2588 = vmatpush1.bf16.msra.mxu0 0
        %2589 = vmatprep.subr.bf16.mxu0 0
        %2590 = vmatpush1.bf16.msra.mxu0 0
        %2591 = vmatprep.subr.bf16.mxu0 0
        %2592 = vmatpush1.bf16.msra.mxu0 0
        %2593 = vmatprep.mubr.bf16.mxu0 0
        %2594 = vmatmul.mubr.bf16.gmra.mrb[0].mxu0 %v2559
        %v2595 = vpop.f32.mrb[0].mxu0
        %v2596 = vadd.f32 %v2511, %v2595
        %v2597 = vpop.f32.mrb[0].mxu0
        %v2598 = vadd.f32 %v2515, %v2597
        %v2599 = vpop.f32.mrb[0].mxu0
        %v2600 = vadd.f32 %v2511, %v2599
        %v2601 = vpop.f32.mrb[0].mxu0
        %v2602 = vadd.f32 %v2515, %v2601
        %2603 = vdwg.mxu0
        %v2604 = vld [vmem:[%s47] sm:$0xff]
        %v2605 = vld [vmem:[%s47 + $0x8] sm:$0xff]
        %v2606 = vld [vmem:[%s47 + $0x10] sm:$0xff]
        %v2607 = vld [vmem:[%s47 + $0x18] sm:$0xff]
        %v2608 = vld [vmem:[%s47 + $0x20] sm:$0xff]
        %v2609 = vld [vmem:[%s47 + $0x28] sm:$0xff]
        %v2610 = vld [vmem:[%s47 + $0x30] sm:$0xff]
        %v2611 = vld [vmem:[%s47 + $0x38] sm:$0xff]
        %v2612 = vld [vmem:[%s49] sm:$0x3]
        %v2614 = vlaneseq
        %v2615 = vshrl.u32 %v2614, 7
        %v2616 = vsub.s32 0, %v2615
        %v2617 = vrot.slane %v2612, %v2616
        %v2618 = vlaneseq
        %v2619 = vshrl.u32 %v2618, 7
        %v2620 = vsub.s32 1, %v2619
        %v2621 = vrot.slane %v2612, %v2620
        %v2632 = vunpack.c.l.b16 %v2604
        %v2633 = vunpack.c.h.b16 %v2604
        %v2634 = vunpack.c.l.b16 %v2605
        %v2635 = vunpack.c.h.b16 %v2605
        %v2636 = vunpack.c.l.b16 %v2606
        %v2637 = vunpack.c.h.b16 %v2606
        %v2638 = vunpack.c.l.b16 %v2607
        %v2639 = vunpack.c.h.b16 %v2607
        %v2640 = vunpack.c.l.b16 %v2608
        %v2641 = vunpack.c.h.b16 %v2608
        %v2642 = vunpack.c.l.b16 %v2609
        %v2643 = vunpack.c.h.b16 %v2609
        %v2644 = vunpack.c.l.b16 %v2610
        %v2645 = vunpack.c.h.b16 %v2610
        %v2646 = vunpack.c.l.b16 %v2611
        %v2647 = vunpack.c.h.b16 %v2611
        %v2648 = vpack.c.b16 %v2634, %v2632
        %v2649 = vpack.c.b16 %v2635, %v2633
        %v2650 = vpack.c.b16 %v2638, %v2636
        %v2651 = vpack.c.b16 %v2639, %v2637
        %v2652 = vpack.c.b16 %v2642, %v2640
        %v2653 = vpack.c.b16 %v2643, %v2641
        %v2654 = vpack.c.b16 %v2646, %v2644
        %v2655 = vpack.c.b16 %v2647, %v2645
        %2664 = vmatprep.subr.bf16.mxu0 %v2649
        %2665 = vmatpush1.bf16.msra.mxu0 %v2648
        %2666 = vmatprep.subr.bf16.mxu0 %v2651
        %2667 = vmatpush1.bf16.msra.mxu0 %v2650
        %2668 = vmatprep.subr.bf16.mxu0 %v2653
        %2669 = vmatpush1.bf16.msra.mxu0 %v2652
        %2670 = vmatprep.subr.bf16.mxu0 %v2655
        %2671 = vmatpush1.bf16.msra.mxu0 %v2654
        %2672 = vmatprep.subr.bf16.mxu0 0
        %2673 = vmatpush1.bf16.msra.mxu0 0
        %2674 = vmatprep.subr.bf16.mxu0 0
        %2675 = vmatpush1.bf16.msra.mxu0 0
        %2676 = vmatprep.subr.bf16.mxu0 0
        %2677 = vmatpush1.bf16.msra.mxu0 0
        %2678 = vmatprep.subr.bf16.mxu0 0
        %2679 = vmatpush1.bf16.msra.mxu0 0
        %2680 = vmatprep.subr.bf16.mxu0 0
        %2681 = vmatpush1.bf16.msra.mxu0 0
        %2682 = vmatprep.subr.bf16.mxu0 0
        %2683 = vmatpush1.bf16.msra.mxu0 0
        %2684 = vmatprep.subr.bf16.mxu0 0
        %2685 = vmatpush1.bf16.msra.mxu0 0
        %2686 = vmatprep.subr.bf16.mxu0 0
        %2687 = vmatpush1.bf16.msra.mxu0 0
        %2688 = vmatprep.subr.bf16.mxu0 0
        %2689 = vmatpush1.bf16.msra.mxu0 0
        %2690 = vmatprep.subr.bf16.mxu0 0
        %2691 = vmatpush1.bf16.msra.mxu0 0
        %2692 = vmatprep.subr.bf16.mxu0 0
        %2693 = vmatpush1.bf16.msra.mxu0 0
        %2694 = vmatprep.subr.bf16.mxu0 0
        %2695 = vmatpush1.bf16.msra.mxu0 0
        %2696 = vmatprep.mubr.bf16.mxu0 0
        %2697 = vmatmul.mubr.bf16.gmra.mrb[0].mxu0 %v2559
        %v2698 = vpop.f32.mrb[0].mxu0
        %v2699 = vadd.f32 %v2617, %v2698
        %v2700 = vpop.f32.mrb[0].mxu0
        %v2701 = vadd.f32 %v2621, %v2700
        %v2702 = vpop.f32.mrb[0].mxu0
        %v2703 = vadd.f32 %v2617, %v2702
        %v2704 = vpop.f32.mrb[0].mxu0
        %v2705 = vadd.f32 %v2621, %v2704
        %2706 = vdwg.mxu0
        %v2707 = vmul.f32 %v2699, 0.5
        %v2708 = vmul.f32 %v2701, 0.5
        %v2709 = vmul.f32 %v2703, 0.5
        %v2710 = vmul.f32 %v2705, 0.5
        %v2711 = vmul.f32 %v2699, 0.70710677
        %v2712 = vmul.f32 %v2701, 0.70710677
        %v2713 = vmul.f32 %v2703, 0.70710677
        %v2714 = vmul.f32 %v2705, 0.70710677
        %v2715 = verf.f32.pop %v2711
        %v2716 = verf.f32.pop %v2712
        %v2717 = verf.f32.pop %v2713
        %v2718 = verf.f32.pop %v2714
        %v2719 = vadd.f32 %v2715, 1.0
        %v2720 = vadd.f32 %v2716, 1.0
        %v2721 = vadd.f32 %v2717, 1.0
        %v2722 = vadd.f32 %v2718, 1.0
        %v2723 = vmul.f32 %v2707, %v2719
        %v2724 = vmul.f32 %v2708, %v2720
        %v2725 = vmul.f32 %v2709, %v2721
        %v2726 = vmul.f32 %v2710, %v2722
        %v2727 = vmul.f32 %v2596, %v2723
        %v2728 = vmul.f32 %v2598, %v2724
        %v2729 = vmul.f32 %v2600, %v2725
        %v2730 = vmul.f32 %v2602, %v2726
        %v2731 = vld [vmem:[%s51] sm:$0xf]
        %v2732 = vld [vmem:[%s51 + $0x4] sm:$0xf]
        %v2733 = vld [vmem:[%s51 + $0x8] sm:$0xf]
        %v2734 = vld [vmem:[%s51 + $0xc] sm:$0xf]
        %v2735 = vld [vmem:[%s51 + $0x10] sm:$0xf]
        %v2736 = vld [vmem:[%s51 + $0x14] sm:$0xf]
        %v2737 = vld [vmem:[%s51 + $0x18] sm:$0xf]
        %v2738 = vld [vmem:[%s51 + $0x1c] sm:$0xf]
        %v2739 = vld [vmem:[%s51 + $0x20] sm:$0xf]
        %v2740 = vld [vmem:[%s51 + $0x24] sm:$0xf]
        %v2741 = vld [vmem:[%s51 + $0x28] sm:$0xf]
        %v2742 = vld [vmem:[%s51 + $0x2c] sm:$0xf]
        %v2743 = vld [vmem:[%s51 + $0x30] sm:$0xf]
        %v2744 = vld [vmem:[%s51 + $0x34] sm:$0xf]
        %v2745 = vld [vmem:[%s51 + $0x38] sm:$0xf]
        %v2746 = vld [vmem:[%s51 + $0x3c] sm:$0xf]
        %v2747 = vld [vmem:[%s51 + $0x40] sm:$0xf]
        %v2748 = vld [vmem:[%s51 + $0x44] sm:$0xf]
        %v2749 = vld [vmem:[%s51 + $0x48] sm:$0xf]
        %v2750 = vld [vmem:[%s51 + $0x4c] sm:$0xf]
        %v2751 = vld [vmem:[%s51 + $0x50] sm:$0xf]
        %v2752 = vld [vmem:[%s51 + $0x54] sm:$0xf]
        %v2753 = vld [vmem:[%s51 + $0x58] sm:$0xf]
        %v2754 = vld [vmem:[%s51 + $0x5c] sm:$0xf]
        %v2755 = vld [vmem:[%s51 + $0x60] sm:$0xf]
        %v2756 = vld [vmem:[%s51 + $0x64] sm:$0xf]
        %v2757 = vld [vmem:[%s51 + $0x68] sm:$0xf]
        %v2758 = vld [vmem:[%s51 + $0x6c] sm:$0xf]
        %v2759 = vld [vmem:[%s51 + $0x70] sm:$0xf]
        %v2760 = vld [vmem:[%s51 + $0x74] sm:$0xf]
        %v2761 = vld [vmem:[%s51 + $0x78] sm:$0xf]
        %v2762 = vld [vmem:[%s51 + $0x7c] sm:$0xf]
        %v2763 = vpack.c.bf16 %v2729, %v2727
        %v2764 = vpack.c.bf16 %v2730, %v2728
        %v2797 = vunpack.c.l.b16 %v2731
        %v2798 = vunpack.c.l.b16 %v2732
        %v2799 = vunpack.c.l.b16 %v2733
        %v2800 = vunpack.c.l.b16 %v2734
        %v2801 = vunpack.c.l.b16 %v2735
        %v2802 = vunpack.c.l.b16 %v2736
        %v2803 = vunpack.c.l.b16 %v2737
        %v2804 = vunpack.c.l.b16 %v2738
        %v2805 = vunpack.c.l.b16 %v2739
        %v2806 = vunpack.c.l.b16 %v2740
        %v2807 = vunpack.c.l.b16 %v2741
        %v2808 = vunpack.c.l.b16 %v2742
        %v2809 = vunpack.c.l.b16 %v2743
        %v2810 = vunpack.c.l.b16 %v2744
        %v2811 = vunpack.c.l.b16 %v2745
        %v2812 = vunpack.c.l.b16 %v2746
        %v2813 = vunpack.c.l.b16 %v2747
        %v2814 = vunpack.c.l.b16 %v2748
        %v2815 = vunpack.c.l.b16 %v2749
        %v2816 = vunpack.c.l.b16 %v2750
        %v2817 = vunpack.c.l.b16 %v2751
        %v2818 = vunpack.c.l.b16 %v2752
        %v2819 = vunpack.c.l.b16 %v2753
        %v2820 = vunpack.c.l.b16 %v2754
        %v2821 = vunpack.c.l.b16 %v2755
        %v2822 = vunpack.c.l.b16 %v2756
        %v2823 = vunpack.c.l.b16 %v2757
        %v2824 = vunpack.c.l.b16 %v2758
        %v2825 = vunpack.c.l.b16 %v2759
        %v2826 = vunpack.c.l.b16 %v2760
        %v2827 = vunpack.c.l.b16 %v2761
        %v2828 = vunpack.c.l.b16 %v2762
        %v2829 = vpack.c.b16 %v2798, %v2797
        %v2830 = vpack.c.b16 %v2800, %v2799
        %v2831 = vpack.c.b16 %v2802, %v2801
        %v2832 = vpack.c.b16 %v2804, %v2803
        %v2833 = vpack.c.b16 %v2806, %v2805
        %v2834 = vpack.c.b16 %v2808, %v2807
        %v2835 = vpack.c.b16 %v2810, %v2809
        %v2836 = vpack.c.b16 %v2812, %v2811
        %v2837 = vpack.c.b16 %v2814, %v2813
        %v2838 = vpack.c.b16 %v2816, %v2815
        %v2839 = vpack.c.b16 %v2818, %v2817
        %v2840 = vpack.c.b16 %v2820, %v2819
        %v2841 = vpack.c.b16 %v2822, %v2821
        %v2842 = vpack.c.b16 %v2824, %v2823
        %v2843 = vpack.c.b16 %v2826, %v2825
        %v2844 = vpack.c.b16 %v2828, %v2827
        %2861 = vmatprep.subr.bf16.mxu0 0
        %2862 = vmatpush1.bf16.msra.mxu0 %v2829
        %2863 = vmatprep.subr.bf16.mxu0 0
        %2864 = vmatpush1.bf16.msra.mxu0 %v2830
        %2865 = vmatprep.subr.bf16.mxu0 0
        %2866 = vmatpush1.bf16.msra.mxu0 %v2831
        %2867 = vmatprep.subr.bf16.mxu0 0
        %2868 = vmatpush1.bf16.msra.mxu0 %v2832
        %2869 = vmatprep.subr.bf16.mxu0 0
        %2870 = vmatpush1.bf16.msra.mxu0 %v2833
        %2871 = vmatprep.subr.bf16.mxu0 0
        %2872 = vmatpush1.bf16.msra.mxu0 %v2834
        %2873 = vmatprep.subr.bf16.mxu0 0
        %2874 = vmatpush1.bf16.msra.mxu0 %v2835
        %2875 = vmatprep.subr.bf16.mxu0 0
        %2876 = vmatpush1.bf16.msra.mxu0 %v2836
        %2877 = vmatprep.subr.bf16.mxu0 0
        %2878 = vmatpush1.bf16.msra.mxu0 %v2837
        %2879 = vmatprep.subr.bf16.mxu0 0
        %2880 = vmatpush1.bf16.msra.mxu0 %v2838
        %2881 = vmatprep.subr.bf16.mxu0 0
        %2882 = vmatpush1.bf16.msra.mxu0 %v2839
        %2883 = vmatprep.subr.bf16.mxu0 0
        %2884 = vmatpush1.bf16.msra.mxu0 %v2840
        %2885 = vmatprep.subr.bf16.mxu0 0
        %2886 = vmatpush1.bf16.msra.mxu0 %v2841
        %2887 = vmatprep.subr.bf16.mxu0 0
        %2888 = vmatpush1.bf16.msra.mxu0 %v2842
        %2889 = vmatprep.subr.bf16.mxu0 0
        %2890 = vmatpush1.bf16.msra.mxu0 %v2843
        %2891 = vmatprep.subr.bf16.mxu0 0
        %2892 = vmatpush1.bf16.msra.mxu0 %v2844
        %2893 = vmatprep.mubr.bf16.mxu0 %v2764
        %2894 = vmatmul.mubr.bf16.gmra.mrb[0].mxu0 %v2763
        %v2895 = vpop.f32.mrb[0].mxu0
        %v2896 = vadd.f32 0.0, %v2895
        %v2897 = vpop.f32.mrb[0].mxu0
        %v2898 = vpop.f32.mrb[0].mxu0
        %v2899 = vadd.f32 0.0, %v2898
        %v2900 = vpop.f32.mrb[0].mxu0
        %2901 = vdwg.mxu0
        %v2902 = vadd.f32 %v2451, %v2896
        %v2903 = vadd.f32 %v2452, %v2899
        %v2904 = vld [vmem:[#allocation7] sm:$0x1]
        %v2906 = vlaneseq
        %v2907 = vshrl.u32 %v2906, 7
        %v2908 = vsub.s32 0, %v2907
        %v2909 = vrot.slane %v2904, %v2908
        %v2911 = vadd.f32 %v2902, %v2909
        %v2912 = vadd.f32 %v2903, %v2909
        %v2913 = vld [vmem:[%s55] sm:$0xf]
        %v2914 = vld [vmem:[%s55 + $0x4] sm:$0xf]
        %v2915 = vld [vmem:[%s55 + $0x8] sm:$0xf]
        %v2916 = vld [vmem:[%s55 + $0xc] sm:$0xf]
        %v2917 = vld [vmem:[%s55 + $0x10] sm:$0xf]
        %v2918 = vld [vmem:[%s55 + $0x14] sm:$0xf]
        %v2919 = vld [vmem:[%s55 + $0x18] sm:$0xf]
        %v2920 = vld [vmem:[%s55 + $0x1c] sm:$0xf]
        %v2921 = vpack.c.bf16 %v2912, %v2911
        %v2922 = vld [vmem:[#allocation9] sm:$0x1]
        %v2924 = vlaneseq
        %v2925 = vshrl.u32 %v2924, 7
        %v2926 = vsub.s32 0, %v2925
        %v2927 = vrot.slane %v2922, %v2926
        %v2937 = vunpack.c.l.b16 %v2913
        %v2938 = vunpack.c.l.b16 %v2914
        %v2939 = vunpack.c.l.b16 %v2915
        %v2940 = vunpack.c.l.b16 %v2916
        %v2941 = vunpack.c.l.b16 %v2917
        %v2942 = vunpack.c.l.b16 %v2918
        %v2943 = vunpack.c.l.b16 %v2919
        %v2944 = vunpack.c.l.b16 %v2920
        %v2945 = vpack.c.b16 %v2938, %v2937
        %v2946 = vpack.c.b16 %v2940, %v2939
        %v2947 = vpack.c.b16 %v2942, %v2941
        %v2948 = vpack.c.b16 %v2944, %v2943
        %v2954 = vsel %vm998, %v2921, 0
        %2956 = vmatprep.subr.bf16.mxu0 0
        %2957 = vmatpush1.bf16.msra.mxu0 %v2945
        %2958 = vmatprep.subr.bf16.mxu0 0
        %2959 = vmatpush1.bf16.msra.mxu0 %v2946
        %2960 = vmatprep.subr.bf16.mxu0 0
        %2961 = vmatpush1.bf16.msra.mxu0 %v2947
        %2962 = vmatprep.subr.bf16.mxu0 0
        %2963 = vmatpush1.bf16.msra.mxu0 %v2948
        %2964 = vmatprep.subr.bf16.mxu0 0
        %2965 = vmatpush1.bf16.msra.mxu0 0
        %2966 = vmatprep.subr.bf16.mxu0 0
        %2967 = vmatpush1.bf16.msra.mxu0 0
        %2968 = vmatprep.subr.bf16.mxu0 0
        %2969 = vmatpush1.bf16.msra.mxu0 0
        %2970 = vmatprep.subr.bf16.mxu0 0
        %2971 = vmatpush1.bf16.msra.mxu0 0
        %2972 = vmatprep.subr.bf16.mxu0 0
        %2973 = vmatpush1.bf16.msra.mxu0 0
        %2974 = vmatprep.subr.bf16.mxu0 0
        %2975 = vmatpush1.bf16.msra.mxu0 0
        %2976 = vmatprep.subr.bf16.mxu0 0
        %2977 = vmatpush1.bf16.msra.mxu0 0
        %2978 = vmatprep.subr.bf16.mxu0 0
        %2979 = vmatpush1.bf16.msra.mxu0 0
        %2980 = vmatprep.subr.bf16.mxu0 0
        %2981 = vmatpush1.bf16.msra.mxu0 0
        %2982 = vmatprep.subr.bf16.mxu0 0
        %2983 = vmatpush1.bf16.msra.mxu0 0
        %2984 = vmatprep.subr.bf16.mxu0 0
        %2985 = vmatpush1.bf16.msra.mxu0 0
        %2986 = vmatprep.subr.bf16.mxu0 0
        %2987 = vmatpush1.bf16.msra.mxu0 0
        %2988 = vmatprep.mubr.bf16.mxu0 0
        %2989 = vmatmul.mubr.bf16.gmra.mrb[0].mxu0 %v2954
        %v2990 = vpop.f32.mrb[0].mxu0
        %v2991 = vadd.f32 %v2927, %v2990
        %v2992 = vpop.f32.mrb[0].mxu0
        %v2993 = vpop.f32.mrb[0].mxu0
        %v2994 = vadd.f32 %v2927, %v2993
        %v2995 = vpop.f32.mrb[0].mxu0
        %2996 = vdwg.mxu0
        %v2997 = vadd.f32 %v2991, %v984
        %v2998 = vadd.f32 %v2994, %v985
        %2999 = vst.msk [vmem:[%s982] sm:$0xff] %vm998, %v2997
        %3000 = vst.msk [vmem:[%s982 + $0x8] sm:$0xff] %vm998, %v2998
        %p3001 = scmp.lt.s32.totalorder %s73, 1
        %s3002 = scalar_select %p3001, %s73, 1
        %s3003 = smul.addr %s3002, 2
        %s3004 = smul.addr %s3003, 8
        %s3005 = scalar_lea.vmem %s59, %s3004
        // Predicated region
        $region157: #{cross_attn_down_block_1d.4} parent=135 // pred_check
          %p3006 = pneg %p710
        $region158: #{cross_attn_down_block_1d.4} parent=135 // pred_check_branch
          %3008 = sbr.rel (%p3006) target = $region160
        $region159: #{cross_attn_down_block_1d.4} parent=135 // pred_region
          _
        $region160: #{cross_attn_down_block_1d.4} parent=135 // pred_fallthru
          _
      $region136: #{cross_attn_down_block_1d.4} parent=5 // pred_fallthru
        _
      %p3009 = scmp.le.s32.totalorder 2, %s68
      // Predicated region
      $region161: #{cross_attn_down_block_1d.4} parent=5 // pred_check
        %p3010 = pneg %p3009
      $region162: #{cross_attn_down_block_1d.4} parent=5 // pred_check_branch
        %3012 = sbr.rel (%p3010) target = $region164
      $region163: #{cross_attn_down_block_1d.4} parent=5 // pred_region
        %s3013 = ssub.s32 %s68, 2
        // Predicated region
        $region165: #{cross_attn_down_block_1d.4} parent=163 // pred_check
          %p3014 = pneg %p716
        $region166: #{cross_attn_down_block_1d.4} parent=163 // pred_check_branch
          %3016 = sbr.rel (%p3014) target = $region168
        $region167: #{cross_attn_down_block_1d.4} parent=163 // pred_region
          %p3017 = scmp.lt.s32.totalorder %s74, 1
          %s3018 = scalar_select %p3017, %s74, 1
          %s3019 = smul.addr %s3018, 2
          %s3020 = smul.addr %s3019, 8
          %s3021 = scalar_lea.vmem %s59, %s3020
        $region168: #{cross_attn_down_block_1d.4} parent=163 // pred_fallthru
          _
      $region164: #{cross_attn_down_block_1d.4} parent=5 // pred_fallthru
        _
    $region6: #{cross_attn_down_block_1d.4} parent=1 // loop_footer
      %s72 = sadd.s32 1, %s68
    $region7: #{cross_attn_down_block_1d.4} parent=1 // loop_footer_branch
      %67 = sbr.rel target = $region3
    $region8: #{cross_attn_down_block_1d.4} parent=1 // loop_exit
      _
    %3022 = vsyncpa [#allocation3], 1
    %s3023 = scalar_lea.sflag [#allocation3], 1
    %3024 = vsyncpa %s3023, 1
    %3025 = vsyncpa [#allocation5], 1
    %3026 = vsyncpa [#allocation8], 1

</llo_original>
